<compile_context>
chip_gen: v7x
topology: tpu7x:2x2x1
jax: 0.10.0
libtpu: 0.0.40
codegen_flags: <defaults>
</compile_context>

<pallas_src>
import jax
import jax.numpy as jnp
from jax import lax
from jax.experimental import pallas as pl
from jax.experimental.pallas import tpu as pltpu

EPS = 1e-5
VMEM_LIMIT = 32 * 1024 * 1024   # explicit scoped-VMEM budget, safe on v5e/v6e/v7x


# ---------------------------------------------------------------------------
# Pass 1: per-channel batch statistics (sum / sum-of-squares), tiled over rows.
# ---------------------------------------------------------------------------
def bn_stats_kernel(x_ref, sum_ref, ssq_ref):
    @pl.when(pl.program_id(0) == 0)
    def _init():
        sum_ref[...] = jnp.zeros_like(sum_ref)
        ssq_ref[...] = jnp.zeros_like(ssq_ref)

    x = x_ref[...]
    sum_ref[...] += jnp.sum(x, axis=0, keepdims=True)
    ssq_ref[...] += jnp.sum(x * x, axis=0, keepdims=True)


def batch_norm_stats(x_nhwc):
    """Training-mode (biased) batch statistics via a tiled Pallas reduction."""
    N, H, W, C = x_nhwc.shape
    R = N * H * W
    xf = x_nhwc.reshape(R, C).astype(jnp.float32)
    TR = 256 if (R % 256 == 0) else R
    s, ss = pl.pallas_call(
        bn_stats_kernel,
        grid=(R // TR,),
        in_specs=[pl.BlockSpec((TR, C), lambda i: (i, 0))],
        out_specs=(pl.BlockSpec((1, C), lambda i: (0, 0)),
                   pl.BlockSpec((1, C), lambda i: (0, 0))),
        out_shape=(jax.ShapeDtypeStruct((1, C), jnp.float32),
                   jax.ShapeDtypeStruct((1, C), jnp.float32)),
        compiler_params=pltpu.CompilerParams(
            dimension_semantics=("arbitrary",),
            vmem_limit_bytes=VMEM_LIMIT),
        cost_estimate=pl.CostEstimate(flops=3 * R * C, transcendentals=0,
                                      bytes_accessed=4 * (R * C + 4 * C)),
    )(xf)
    mean = s[0] / R
    # NOTE: E[x^2]-mean^2 in f32; clamped at 0. For huge R / large means a
    # two-pass (subtract-mean) variance would be preferable numerically.
    var = jnp.maximum(ss[0] / R - mean * mean, 0.0)
    return mean, var


# ---------------------------------------------------------------------------
# Pass 2: fused BN-affine + ReLU + Conv2d(3x3, stride 1, pad 1), row-tiled.
# ---------------------------------------------------------------------------
def dense_layer_kernel(scale_ref, shift_ref, m_ref, x_ref, w_ref, b_ref, out_ref):
    # x_ref : (3, TH, W+2, Cin) f32  dy-shifted, zero-padded rows of this tile
    # m_ref : (3, TH, W+2, 1)   f32  1.0 at interior pixels, 0.0 at conv padding
    # w_ref : (9*Cin, Cout_p)   bf16 (dy, dx, cin)-major im2col weights
    # out   : (1, TH*W, Cout_p) f32  lane-dense (Cout padded to 128)
    _, TH, Wp, Cin = x_ref.shape
    W = Wp - 2
    scale = scale_ref[...].reshape(1, 1, Cin)
    shift = shift_ref[...].reshape(1, 1, Cin)

    cols = []
    for dy in range(3):
        xb = x_ref[dy]                                      # (TH, W+2, Cin)
        # BN affine + ReLU in f32; the mask restores exact zeros at conv padding
        # (cheaper than full-tensor iota masks; only at the matmul input is the
        #  activation cast to bf16).
        ab = (jnp.maximum(xb * scale + shift, 0.0) * m_ref[dy]).astype(jnp.bfloat16)
        for dx in range(3):
            cols.append(ab[:, dx:dx + W, :])                # (TH, W, Cin)
    patches = jnp.concatenate(cols, axis=-1).reshape(TH * W, 9 * Cin)
    acc = jnp.dot(patches, w_ref[...], preferred_element_type=jnp.float32)
    out_ref[0] = acc + b_ref[...]


def _pick_row_tile(H, W, max_rows=128):
    """Largest TH dividing H with TH*W <= max_rows and TH*W % 8 == 0."""
    for th in range(H, 0, -1):
        if H % th == 0 and th * W <= max_rows and (th * W) % 8 == 0:
            return th
    return H


def dense_layer(x_nhwc, gamma, beta, w_hwio, b):
    """One DenseLayer: BN(train stats) -> ReLU -> Conv2d(3x3, pad 1). NHWC."""
    N, H, W, Cin = x_nhwc.shape
    Cout = w_hwio.shape[-1]
    Cout_p = ((Cout + 127) // 128) * 128               # lane-dense output width
    TH = _pick_row_tile(H, W)
    rows = TH * W

    # -- pass 1: batch statistics, folded into a per-channel affine -----------
    mean, var = batch_norm_stats(x_nhwc)
    inv_std = lax.rsqrt(var + EPS)
    scale_vec = gamma * inv_std
    scale = scale_vec.reshape(1, Cin).astype(jnp.float32)
    shift = (beta - mean * scale_vec).reshape(1, Cin).astype(jnp.float32)

    # -- halo: three dy-shifted views of the zero-padded input ---------------
    xpad = jnp.pad(x_nhwc.astype(jnp.float32), ((0, 0), (1, 1), (1, 1), (0, 0)))
    xsh = jnp.stack([xpad[:, 0:H], xpad[:, 1:H + 1], xpad[:, 2:H + 2]],
                    axis=1).reshape(N * 3, H, W + 2, Cin)

    mfull = jnp.zeros((H + 2, W + 2), jnp.float32).at[1:H + 1, 1:W + 1].set(1.0)
    msh = jnp.stack([mfull[0:H], mfull[1:H + 1], mfull[2:H + 2]], axis=0)[..., None]

    # -- weights: im2col layout, bf16 MXU operands, Cout padded to 128 lanes --
    w9 = w_hwio.reshape(9 * Cin, Cout).astype(jnp.bfloat16)
    w9p = jnp.pad(w9, ((0, 0), (0, Cout_p - Cout)))
    bp = jnp.pad(b.reshape(1, Cout).astype(jnp.float32),
                 ((0, 0), (0, Cout_p - Cout)))

    flops = 2 * N * H * W * 9 * Cin * Cout_p + 5 * int(xsh.size)
    bytes_accessed = int(4 * (xsh.size + msh.size + scale.size + shift.size
                              + bp.size + N * H * W * Cout_p) + 2 * w9p.size)

    out = pl.pallas_call(
        dense_layer_kernel,
        grid=(N, H // TH),
        in_specs=[
            pl.BlockSpec((1, Cin), lambda n, t: (0, 0)),                 # scale
            pl.BlockSpec((1, Cin), lambda n, t: (0, 0)),                 # shift
            pl.BlockSpec((3, TH, W + 2, 1), lambda n, t: (0, t, 0, 0)),  # mask
            pl.BlockSpec((3, TH, W + 2, Cin), lambda n, t: (n, t, 0, 0)),  # x
            pl.BlockSpec((9 * Cin, Cout_p), lambda n, t: (0, 0)),        # weights
            pl.BlockSpec((1, Cout_p), lambda n, t: (0, 0)),              # bias
        ],
        out_specs=pl.BlockSpec((1, rows, Cout_p), lambda n, t: (n, t, 0)),
        out_shape=jax.ShapeDtypeStruct((N, H * W, Cout_p), jnp.float32),
        compiler_params=pltpu.CompilerParams(
            dimension_semantics=("parallel", "parallel"),
            vmem_limit_bytes=VMEM_LIMIT),
        cost_estimate=pl.CostEstimate(flops=flops, transcendentals=0,
                                      bytes_accessed=bytes_accessed),
    )(scale, shift, msh, xsh, w9p, bp)

    return out.reshape(N, H, W, Cout_p)[..., :Cout]


# ---------------------------------------------------------------------------
# Bottleneck = DenseBlock(upsample=True): channel-concat glue stays in JAX.
# ---------------------------------------------------------------------------
def bottleneck_forward(x_nchw, params):
    x = jnp.transpose(x_nchw, (0, 2, 3, 1)).astype(jnp.float32)   # NCHW -> NHWC
    outs = []
    for gamma, beta, w, b in params:
        out = dense_layer(x, gamma, beta, w, b)
        x = jnp.concatenate([x, out], axis=-1)        # dense connectivity
        outs.append(out)
    y = jnp.concatenate(outs, axis=-1)                # upsample=True: cat(outs)
    return jnp.transpose(y, (0, 3, 1, 2))             # NHWC -> NCHW


def init_params(key, in_channels, growth_rate, n_layers):
    params = []
    for i in range(n_layers):
        cin = in_channels + i * growth_rate
        k1, k2, k3, k4, key = jax.random.split(key, 5)
        gamma = 1.0 + 0.1 * jax.random.normal(k1, (cin,), jnp.float32)
        beta = 0.1 * jax.random.normal(k2, (cin,), jnp.float32)
        # HWIO conv weight (same values as PyTorch OIHW, transposed layout)
        w = 0.1 * jax.random.normal(k3, (3, 3, cin, growth_rate), jnp.float32)
        b = 0.1 * jax.random.normal(k4, (growth_rate,), jnp.float32)
        params.append((gamma, beta, w, b))
    return params


def ref_forward(x_nchw, params, mxu_bf16=False):
    """Pure-JAX reference (XLA conv). mxu_bf16=True mirrors the kernel's
    bf16 MXU operands / folded BN affine for a tight numerical check."""
    x = jnp.transpose(x_nchw, (0, 2, 3, 1)).astype(jnp.float32)
    outs = []
    for gamma, beta, w, b in params:
        mean = jnp.mean(x, axis=(0, 1, 2))
        if mxu_bf16:
            var = jnp.maximum(jnp.mean(x * x, axis=(0, 1, 2)) - mean * mean, 0.0)
            scale = gamma * lax.rsqrt(var + EPS)
            a = jnp.maximum(x * scale + (beta - mean * scale), 0.0)
            lhs, rhs = a.astype(jnp.bfloat16), w.astype(jnp.bfloat16)
        else:
            var = jnp.mean((x - mean) ** 2, axis=(0, 1, 2))
            a = jnp.maximum((x - mean) * lax.rsqrt(var + EPS) * gamma + beta, 0.0)
            lhs, rhs = a, w
        out = lax.conv_general_dilated(
            lhs, rhs, window_strides=(1, 1), padding="SAME",
            dimension_numbers=("NHWC", "HWIO", "NHWC"),
            preferred_element_type=jnp.float32) + b
        x = jnp.concatenate([x, out], axis=-1)
        outs.append(out)
    return jnp.transpose(jnp.concatenate(outs, axis=-1), (0, 3, 1, 2))


if __name__ == "__main__":
    key = jax.random.PRNGKey(0)
    kx, kp = jax.random.split(key)

    N, C, H, W = 2, 4, 16, 16
    growth_rate, n_layers = 4, 3

    x = jax.random.normal(kx, (N, C, H, W), jnp.float32)
    params = init_params(kp, C, growth_rate, n_layers)

    y = jax.block_until_ready(jax.jit(bottleneck_forward)(x, params))
    assert y.shape == (N, growth_rate * n_layers, H, W), y.shape

    # Tight check vs a reference that also uses bf16 MXU operands.
    y_bf16 = ref_forward(x, params, mxu_bf16=True)
    err_t = float(jnp.max(jnp.abs(y - y_bf16)))
    assert jnp.allclose(y, y_bf16, atol=5e-3, rtol=5e-3), err_t

    # Loose sanity bound vs the pure-f32 reference (bf16 quantization budget).
    y_f32 = ref_forward(x, params, mxu_bf16=False)
    err_l = float(jnp.max(jnp.abs(y - y_f32)))
    assert jnp.allclose(y, y_f32, atol=5e-2, rtol=5e-2), err_l

    print("KERNEL_OK")
</pallas_src>

<mosaic_0001>
module attributes {stable_mosaic.version = 11 : i64} {
  func.func @bn_stats_kernel(%arg0: i32, %arg1: memref<256x4xf32, #tpu.memory_space<vmem>>, %arg2: memref<1x4xf32, #tpu.memory_space<vmem>>, %arg3: memref<1x4xf32, #tpu.memory_space<vmem>>) attributes {dimension_semantics = [#tpu.dimension_semantics<arbitrary>], iteration_bounds = array<i64: 2>, scalar_prefetch = 0 : i64, scratch_operands = 0 : i64, tpu.core_type = #tpu.core_type<tc>, window_params = [{transform_indices = @transform_0, window_bounds = array<i64: 256, 4>}, {pipeline_mode = #tpu.pipeline_mode<synchronous>, transform_indices = @transform_1, window_bounds = array<i64: 1, 4>}, {pipeline_mode = #tpu.pipeline_mode<synchronous>, transform_indices = @transform_2, window_bounds = array<i64: 1, 4>}]} {
    %c0_i32 = arith.constant 0 : i32
    %0 = arith.cmpi eq, %arg0, %c0_i32 : i32
    %1 = arith.extui %0 : i1 to i32
    %c0_i32_0 = arith.constant 0 : i32
    %2 = arith.cmpi ne, %1, %c0_i32_0 : i32
    scf.if %2 {
      %cst_11 = arith.constant 0.000000e+00 : f32
      %15 = vector.broadcast %cst_11 : f32 to vector<1x4xf32>
      %c0_12 = arith.constant 0 : index
      %c0_13 = arith.constant 0 : index
      %16 = vector.load %arg2[%c0_12, %c0_13] : memref<1x4xf32, #tpu.memory_space<vmem>>, vector<1x4xf32>
      tpu.vector_store %arg2[%c0_12, %c0_13], %15 {strides = array<i32>} : memref<1x4xf32, #tpu.memory_space<vmem>>, vector<1x4xf32>,
      %cst_14 = arith.constant 0.000000e+00 : f32
      %17 = vector.broadcast %cst_14 : f32 to vector<1x4xf32>
      %c0_15 = arith.constant 0 : index
      %c0_16 = arith.constant 0 : index
      %18 = vector.load %arg3[%c0_15, %c0_16] : memref<1x4xf32, #tpu.memory_space<vmem>>, vector<1x4xf32>
      tpu.vector_store %arg3[%c0_15, %c0_16], %17 {strides = array<i32>} : memref<1x4xf32, #tpu.memory_space<vmem>>, vector<1x4xf32>,
    } else {
    }
    %c0 = arith.constant 0 : index
    %c0_1 = arith.constant 0 : index
    %3 = vector.load %arg1[%c0, %c0_1] : memref<256x4xf32, #tpu.memory_space<vmem>>, vector<256x4xf32>
    %c0_2 = arith.constant 0 : index
    %c0_3 = arith.constant 0 : index
    %4 = vector.load %arg2[%c0_2, %c0_3] : memref<1x4xf32, #tpu.memory_space<vmem>>, vector<1x4xf32>
    %cst = arith.constant dense<0.000000e+00> : vector<4xf32>
    %5 = vector.multi_reduction <add>, %3, %cst [0] : vector<256x4xf32> to vector<4xf32>
    %6 = vector.shape_cast %5 : vector<4xf32> to vector<1x4xf32>
    %7 = arith.addf %4, %6 : vector<1x4xf32>
    %c0_4 = arith.constant 0 : index
    %c0_5 = arith.constant 0 : index
    %8 = vector.load %arg2[%c0_4, %c0_5] : memref<1x4xf32, #tpu.memory_space<vmem>>, vector<1x4xf32>
    tpu.vector_store %arg2[%c0_4, %c0_5], %7 {strides = array<i32>} : memref<1x4xf32, #tpu.memory_space<vmem>>, vector<1x4xf32>,
    %c0_6 = arith.constant 0 : index
    %c0_7 = arith.constant 0 : index
    %9 = vector.load %arg3[%c0_6, %c0_7] : memref<1x4xf32, #tpu.memory_space<vmem>>, vector<1x4xf32>
    %10 = arith.mulf %3, %3 : vector<256x4xf32>
    %cst_8 = arith.constant dense<0.000000e+00> : vector<4xf32>
    %11 = vector.multi_reduction <add>, %10, %cst_8 [0] : vector<256x4xf32> to vector<4xf32>
    %12 = vector.shape_cast %11 : vector<4xf32> to vector<1x4xf32>
    %13 = arith.addf %9, %12 : vector<1x4xf32>
    %c0_9 = arith.constant 0 : index
    %c0_10 = arith.constant 0 : index
    %14 = vector.load %arg3[%c0_9, %c0_10] : memref<1x4xf32, #tpu.memory_space<vmem>>, vector<1x4xf32>
    tpu.vector_store %arg3[%c0_9, %c0_10], %13 {strides = array<i32>} : memref<1x4xf32, #tpu.memory_space<vmem>>, vector<1x4xf32>,
    return
  }
  func.func @transform_0(%arg0: i32) -> (i32, i32) {
    %c0_i32 = arith.constant 0 : i32
    %c0_i32_0 = arith.constant 0 : i32
    return %arg0, %c0_i32 : i32, i32
  }
  func.func @transform_1(%arg0: i32) -> (i32, i32) {
    %c0_i32 = arith.constant 0 : i32
    %c0_i32_0 = arith.constant 0 : i32
    %c0_i32_1 = arith.constant 0 : i32
    return %c0_i32, %c0_i32_0 : i32, i32
  }
  func.func @transform_2(%arg0: i32) -> (i32, i32) {
    %c0_i32 = arith.constant 0 : i32
    %c0_i32_0 = arith.constant 0 : i32
    %c0_i32_1 = arith.constant 0 : i32
    return %c0_i32, %c0_i32_0 : i32, i32
  }
}

module attributes {stable_mosaic.version = 11 : i64} {
  func.func @dense_layer_kernel(%arg0: i32, %arg1: i32, %arg2: memref<1x4xf32, #tpu.memory_space<vmem>>, %arg3: memref<1x4xf32, #tpu.memory_space<vmem>>, %arg4: memref<3x8x18x1xf32, #tpu.memory_space<vmem>>, %arg5: memref<3x8x18x4xf32, #tpu.memory_space<vmem>>, %arg6: memref<36x128xbf16, #tpu.memory_space<vmem>>, %arg7: memref<1x128xf32, #tpu.memory_space<vmem>>, %arg8: memref<1x128x128xf32, #tpu.memory_space<vmem>>) attributes {dimension_semantics = [#tpu.dimension_semantics<parallel>, #tpu.dimension_semantics<parallel>], iteration_bounds = array<i64: 2, 2>, scalar_prefetch = 0 : i64, scratch_operands = 0 : i64, tpu.core_type = #tpu.core_type<tc>, window_params = [{pipeline_mode = #tpu.pipeline_mode<synchronous>, transform_indices = @transform_0, window_bounds = array<i64: 1, 4>}, {pipeline_mode = #tpu.pipeline_mode<synchronous>, transform_indices = @transform_1, window_bounds = array<i64: 1, 4>}, {transform_indices = @transform_2, window_bounds = array<i64: 3, 8, 18, 1>}, {transform_indices = @transform_3, window_bounds = array<i64: 3, 8, 18, 4>}, {pipeline_mode = #tpu.pipeline_mode<synchronous>, transform_indices = @transform_4, window_bounds = array<i64: 36, 128>}, {pipeline_mode = #tpu.pipeline_mode<synchronous>, transform_indices = @transform_5, window_bounds = array<i64: 1, 128>}, {transform_indices = @transform_6, window_bounds = array<i64: 1, 128, 128>}]} {
    %c0 = arith.constant 0 : index
    %c0_0 = arith.constant 0 : index
    %0 = vector.load %arg2[%c0, %c0_0] : memref<1x4xf32, #tpu.memory_space<vmem>>, vector<1x4xf32>
    %1 = vector.shape_cast %0 : vector<1x4xf32> to vector<1x1x4xf32>
    %c0_1 = arith.constant 0 : index
    %c0_2 = arith.constant 0 : index
    %2 = vector.load %arg3[%c0_1, %c0_2] : memref<1x4xf32, #tpu.memory_space<vmem>>, vector<1x4xf32>
    %3 = vector.shape_cast %2 : vector<1x4xf32> to vector<1x1x4xf32>
    %c0_3 = arith.constant 0 : index
    %c0_4 = arith.constant 0 : index
    %c0_5 = arith.constant 0 : index
    %c0_6 = arith.constant 0 : index
    %4 = vector.load %arg5[%c0_3, %c0_4, %c0_5, %c0_6] : memref<3x8x18x4xf32, #tpu.memory_space<vmem>>, vector<1x8x18x4xf32>
    %5 = vector.shape_cast %4 : vector<1x8x18x4xf32> to vector<8x18x4xf32>
    %6 = vector.broadcast %1 : vector<1x1x4xf32> to vector<8x18x4xf32>
    %7 = arith.mulf %5, %6 : vector<8x18x4xf32>
    %8 = vector.broadcast %3 : vector<1x1x4xf32> to vector<8x18x4xf32>
    %9 = arith.addf %7, %8 : vector<8x18x4xf32>
    %cst = arith.constant 0.000000e+00 : f32
    %10 = vector.broadcast %cst : f32 to vector<8x18x4xf32>
    %11 = arith.maximumf %9, %10 : vector<8x18x4xf32>
    %c0_7 = arith.constant 0 : index
    %c0_8 = arith.constant 0 : index
    %c0_9 = arith.constant 0 : index
    %c0_10 = arith.constant 0 : index
    %12 = vector.load %arg4[%c0_7, %c0_8, %c0_9, %c0_10] : memref<3x8x18x1xf32, #tpu.memory_space<vmem>>, vector<1x8x18x1xf32>
    %13 = vector.shape_cast %12 : vector<1x8x18x1xf32> to vector<8x18x1xf32>
    %14 = vector.broadcast %13 : vector<8x18x1xf32> to vector<8x18x4xf32>
    %15 = arith.mulf %11, %14 : vector<8x18x4xf32>
    %16 = arith.truncf %15 : vector<8x18x4xf32> to vector<8x18x4xbf16>
    %17 = vector.extract_strided_slice %16 {offsets = [0, 0, 0], sizes = [8, 16, 4], strides = [1, 1, 1]} : vector<8x18x4xbf16> to vector<8x16x4xbf16>
    %18 = vector.extract_strided_slice %16 {offsets = [0, 1, 0], sizes = [8, 16, 4], strides = [1, 1, 1]} : vector<8x18x4xbf16> to vector<8x16x4xbf16>
    %19 = vector.extract_strided_slice %16 {offsets = [0, 2, 0], sizes = [8, 16, 4], strides = [1, 1, 1]} : vector<8x18x4xbf16> to vector<8x16x4xbf16>
    %c1 = arith.constant 1 : index
    %c0_11 = arith.constant 0 : index
    %c0_12 = arith.constant 0 : index
    %c0_13 = arith.constant 0 : index
    %20 = vector.load %arg5[%c1, %c0_11, %c0_12, %c0_13] : memref<3x8x18x4xf32, #tpu.memory_space<vmem>>, vector<1x8x18x4xf32>
    %21 = vector.shape_cast %20 : vector<1x8x18x4xf32> to vector<8x18x4xf32>
    %22 = vector.broadcast %1 : vector<1x1x4xf32> to vector<8x18x4xf32>
    %23 = arith.mulf %21, %22 : vector<8x18x4xf32>
    %24 = vector.broadcast %3 : vector<1x1x4xf32> to vector<8x18x4xf32>
    %25 = arith.addf %23, %24 : vector<8x18x4xf32>
    %cst_14 = arith.constant 0.000000e+00 : f32
    %26 = vector.broadcast %cst_14 : f32 to vector<8x18x4xf32>
    %27 = arith.maximumf %25, %26 : vector<8x18x4xf32>
    %c1_15 = arith.constant 1 : index
    %c0_16 = arith.constant 0 : index
    %c0_17 = arith.constant 0 : index
    %c0_18 = arith.constant 0 : index
    %28 = vector.load %arg4[%c1_15, %c0_16, %c0_17, %c0_18] : memref<3x8x18x1xf32, #tpu.memory_space<vmem>>, vector<1x8x18x1xf32>
    %29 = vector.shape_cast %28 : vector<1x8x18x1xf32> to vector<8x18x1xf32>
    %30 = vector.broadcast %29 : vector<8x18x1xf32> to vector<8x18x4xf32>
    %31 = arith.mulf %27, %30 : vector<8x18x4xf32>
    %32 = arith.truncf %31 : vector<8x18x4xf32> to vector<8x18x4xbf16>
    %33 = vector.extract_strided_slice %32 {offsets = [0, 0, 0], sizes = [8, 16, 4], strides = [1, 1, 1]} : vector<8x18x4xbf16> to vector<8x16x4xbf16>
    %34 = vector.extract_strided_slice %32 {offsets = [0, 1, 0], sizes = [8, 16, 4], strides = [1, 1, 1]} : vector<8x18x4xbf16> to vector<8x16x4xbf16>
    %35 = vector.extract_strided_slice %32 {offsets = [0, 2, 0], sizes = [8, 16, 4], strides = [1, 1, 1]} : vector<8x18x4xbf16> to vector<8x16x4xbf16>
    %c2 = arith.constant 2 : index
    %c0_19 = arith.constant 0 : index
    %c0_20 = arith.constant 0 : index
    %c0_21 = arith.constant 0 : index
    %36 = vector.load %arg5[%c2, %c0_19, %c0_20, %c0_21] : memref<3x8x18x4xf32, #tpu.memory_space<vmem>>, vector<1x8x18x4xf32>
    %37 = vector.shape_cast %36 : vector<1x8x18x4xf32> to vector<8x18x4xf32>
    %38 = vector.broadcast %1 : vector<1x1x4xf32> to vector<8x18x4xf32>
    %39 = arith.mulf %37, %38 : vector<8x18x4xf32>
    %40 = vector.broadcast %3 : vector<1x1x4xf32> to vector<8x18x4xf32>
    %41 = arith.addf %39, %40 : vector<8x18x4xf32>
    %cst_22 = arith.constant 0.000000e+00 : f32
    %42 = vector.broadcast %cst_22 : f32 to vector<8x18x4xf32>
    %43 = arith.maximumf %41, %42 : vector<8x18x4xf32>
    %c2_23 = arith.constant 2 : index
    %c0_24 = arith.constant 0 : index
    %c0_25 = arith.constant 0 : index
    %c0_26 = arith.constant 0 : index
    %44 = vector.load %arg4[%c2_23, %c0_24, %c0_25, %c0_26] : memref<3x8x18x1xf32, #tpu.memory_space<vmem>>, vector<1x8x18x1xf32>
    %45 = vector.shape_cast %44 : vector<1x8x18x1xf32> to vector<8x18x1xf32>
    %46 = vector.broadcast %45 : vector<8x18x1xf32> to vector<8x18x4xf32>
    %47 = arith.mulf %43, %46 : vector<8x18x4xf32>
    %48 = arith.truncf %47 : vector<8x18x4xf32> to vector<8x18x4xbf16>
    %49 = vector.extract_strided_slice %48 {offsets = [0, 0, 0], sizes = [8, 16, 4], strides = [1, 1, 1]} : vector<8x18x4xbf16> to vector<8x16x4xbf16>
    %50 = vector.extract_strided_slice %48 {offsets = [0, 1, 0], sizes = [8, 16, 4], strides = [1, 1, 1]} : vector<8x18x4xbf16> to vector<8x16x4xbf16>
    %51 = vector.extract_strided_slice %48 {offsets = [0, 2, 0], sizes = [8, 16, 4], strides = [1, 1, 1]} : vector<8x18x4xbf16> to vector<8x16x4xbf16>
    %52 = tpu.concatenate %17, %18, %19, %33, %34, %35, %49, %50, %51 in 2 : vector<8x16x4xbf16>, vector<8x16x4xbf16>, vector<8x16x4xbf16>, vector<8x16x4xbf16>, vector<8x16x4xbf16>, vector<8x16x4xbf16>, vector<8x16x4xbf16>, vector<8x16x4xbf16>, vector<8x16x4xbf16> -> vector<8x16x36xbf16>
    %53 = vector.shape_cast %52 : vector<8x16x36xbf16> to vector<128x36xbf16>
    %c0_27 = arith.constant 0 : index
    %c0_28 = arith.constant 0 : index
    %54 = vector.load %arg6[%c0_27, %c0_28] : memref<36x128xbf16, #tpu.memory_space<vmem>>, vector<36x128xbf16>
    %cst_29 = arith.constant dense<0.000000e+00> : vector<128x128xf32>
    %55 = tpu.matmul %53, %54, %cst_29 {dimension_numbers = #tpu.dot_dimension_numbers<[1], [0], [0], [1], [0, 0, 1, 1], [], []>} : vector<128x36xbf16>, vector<36x128xbf16>, vector<128x128xf32> -> vector<128x128xf32>
    %c0_30 = arith.constant 0 : index
    %c0_31 = arith.constant 0 : index
    %56 = vector.load %arg7[%c0_30, %c0_31] : memref<1x128xf32, #tpu.memory_space<vmem>>, vector<1x128xf32>
    %57 = vector.broadcast %56 : vector<1x128xf32> to vector<128x128xf32>
    %58 = arith.addf %55, %57 : vector<128x128xf32>
    %c0_32 = arith.constant 0 : index
    %c0_33 = arith.constant 0 : index
    %c0_34 = arith.constant 0 : index
    %59 = vector.load %arg8[%c0_32, %c0_33, %c0_34] : memref<1x128x128xf32, #tpu.memory_space<vmem>>, vector<1x128x128xf32>
    %60 = vector.shape_cast %59 : vector<1x128x128xf32> to vector<128x128xf32>
    %61 = vector.shape_cast %58 : vector<128x128xf32> to vector<1x128x128xf32>
    tpu.vector_store %arg8[%c0_32, %c0_33, %c0_34], %61 {strides = array<i32>} : memref<1x128x128xf32, #tpu.memory_space<vmem>>, vector<1x128x128xf32>,
    return
  }
  func.func @transform_0(%arg0: i32, %arg1: i32) -> (i32, i32) {
    %c0_i32 = arith.constant 0 : i32
    %c0_i32_0 = arith.constant 0 : i32
    %c0_i32_1 = arith.constant 0 : i32
    return %c0_i32, %c0_i32_0 : i32, i32
  }
  func.func @transform_1(%arg0: i32, %arg1: i32) -> (i32, i32) {
    %c0_i32 = arith.constant 0 : i32
    %c0_i32_0 = arith.constant 0 : i32
    %c0_i32_1 = arith.constant 0 : i32
    return %c0_i32, %c0_i32_0 : i32, i32
  }
  func.func @transform_2(%arg0: i32, %arg1: i32) -> (i32, i32, i32, i32) {
    %c0_i32 = arith.constant 0 : i32
    %c0_i32_0 = arith.constant 0 : i32
    %c0_i32_1 = arith.constant 0 : i32
    %c0_i32_2 = arith.constant 0 : i32
    return %c0_i32, %arg1, %c0_i32_0, %c0_i32_1 : i32, i32, i32, i32
  }
  func.func @transform_3(%arg0: i32, %arg1: i32) -> (i32, i32, i32, i32) {
    %c0_i32 = arith.constant 0 : i32
    %c0_i32_0 = arith.constant 0 : i32
    %c0_i32_1 = arith.constant 0 : i32
    return %arg0, %arg1, %c0_i32, %c0_i32_0 : i32, i32, i32, i32
  }
  func.func @transform_4(%arg0: i32, %arg1: i32) -> (i32, i32) {
    %c0_i32 = arith.constant 0 : i32
    %c0_i32_0 = arith.constant 0 : i32
    %c0_i32_1 = arith.constant 0 : i32
    return %c0_i32, %c0_i32_0 : i32, i32
  }
  func.func @transform_5(%arg0: i32, %arg1: i32) -> (i32, i32) {
    %c0_i32 = arith.constant 0 : i32
    %c0_i32_0 = arith.constant 0 : i32
    %c0_i32_1 = arith.constant 0 : i32
    return %c0_i32, %c0_i32_0 : i32, i32
  }
  func.func @transform_6(%arg0: i32, %arg1: i32) -> (i32, i32, i32) {
    %c0_i32 = arith.constant 0 : i32
    %c0_i32_0 = arith.constant 0 : i32
    return %arg0, %arg1, %c0_i32 : i32, i32, i32
  }
}

module attributes {stable_mosaic.version = 11 : i64} {
  func.func @bn_stats_kernel(%arg0: i32, %arg1: memref<256x8xf32, #tpu.memory_space<vmem>>, %arg2: memref<1x8xf32, #tpu.memory_space<vmem>>, %arg3: memref<1x8xf32, #tpu.memory_space<vmem>>) attributes {dimension_semantics = [#tpu.dimension_semantics<arbitrary>], iteration_bounds = array<i64: 2>, scalar_prefetch = 0 : i64, scratch_operands = 0 : i64, tpu.core_type = #tpu.core_type<tc>, window_params = [{transform_indices = @transform_0, window_bounds = array<i64: 256, 8>}, {pipeline_mode = #tpu.pipeline_mode<synchronous>, transform_indices = @transform_1, window_bounds = array<i64: 1, 8>}, {pipeline_mode = #tpu.pipeline_mode<synchronous>, transform_indices = @transform_2, window_bounds = array<i64: 1, 8>}]} {
    %c0_i32 = arith.constant 0 : i32
    %0 = arith.cmpi eq, %arg0, %c0_i32 : i32
    %1 = arith.extui %0 : i1 to i32
    %c0_i32_0 = arith.constant 0 : i32
    %2 = arith.cmpi ne, %1, %c0_i32_0 : i32
    scf.if %2 {
      %cst_11 = arith.constant 0.000000e+00 : f32
      %15 = vector.broadcast %cst_11 : f32 to vector<1x8xf32>
      %c0_12 = arith.constant 0 : index
      %c0_13 = arith.constant 0 : index
      %16 = vector.load %arg2[%c0_12, %c0_13] : memref<1x8xf32, #tpu.memory_space<vmem>>, vector<1x8xf32>
      tpu.vector_store %arg2[%c0_12, %c0_13], %15 {strides = array<i32>} : memref<1x8xf32, #tpu.memory_space<vmem>>, vector<1x8xf32>,
      %cst_14 = arith.constant 0.000000e+00 : f32
      %17 = vector.broadcast %cst_14 : f32 to vector<1x8xf32>
      %c0_15 = arith.constant 0 : index
      %c0_16 = arith.constant 0 : index
      %18 = vector.load %arg3[%c0_15, %c0_16] : memref<1x8xf32, #tpu.memory_space<vmem>>, vector<1x8xf32>
      tpu.vector_store %arg3[%c0_15, %c0_16], %17 {strides = array<i32>} : memref<1x8xf32, #tpu.memory_space<vmem>>, vector<1x8xf32>,
    } else {
    }
    %c0 = arith.constant 0 : index
    %c0_1 = arith.constant 0 : index
    %3 = vector.load %arg1[%c0, %c0_1] : memref<256x8xf32, #tpu.memory_space<vmem>>, vector<256x8xf32>
    %c0_2 = arith.constant 0 : index
    %c0_3 = arith.constant 0 : index
    %4 = vector.load %arg2[%c0_2, %c0_3] : memref<1x8xf32, #tpu.memory_space<vmem>>, vector<1x8xf32>
    %cst = arith.constant dense<0.000000e+00> : vector<8xf32>
    %5 = vector.multi_reduction <add>, %3, %cst [0] : vector<256x8xf32> to vector<8xf32>
    %6 = vector.shape_cast %5 : vector<8xf32> to vector<1x8xf32>
    %7 = arith.addf %4, %6 : vector<1x8xf32>
    %c0_4 = arith.constant 0 : index
    %c0_5 = arith.constant 0 : index
    %8 = vector.load %arg2[%c0_4, %c0_5] : memref<1x8xf32, #tpu.memory_space<vmem>>, vector<1x8xf32>
    tpu.vector_store %arg2[%c0_4, %c0_5], %7 {strides = array<i32>} : memref<1x8xf32, #tpu.memory_space<vmem>>, vector<1x8xf32>,
    %c0_6 = arith.constant 0 : index
    %c0_7 = arith.constant 0 : index
    %9 = vector.load %arg3[%c0_6, %c0_7] : memref<1x8xf32, #tpu.memory_space<vmem>>, vector<1x8xf32>
    %10 = arith.mulf %3, %3 : vector<256x8xf32>
    %cst_8 = arith.constant dense<0.000000e+00> : vector<8xf32>
    %11 = vector.multi_reduction <add>, %10, %cst_8 [0] : vector<256x8xf32> to vector<8xf32>
    %12 = vector.shape_cast %11 : vector<8xf32> to vector<1x8xf32>
    %13 = arith.addf %9, %12 : vector<1x8xf32>
    %c0_9 = arith.constant 0 : index
    %c0_10 = arith.constant 0 : index
    %14 = vector.load %arg3[%c0_9, %c0_10] : memref<1x8xf32, #tpu.memory_space<vmem>>, vector<1x8xf32>
    tpu.vector_store %arg3[%c0_9, %c0_10], %13 {strides = array<i32>} : memref<1x8xf32, #tpu.memory_space<vmem>>, vector<1x8xf32>,
    return
  }
  func.func @transform_0(%arg0: i32) -> (i32, i32) {
    %c0_i32 = arith.constant 0 : i32
    %c0_i32_0 = arith.constant 0 : i32
    return %arg0, %c0_i32 : i32, i32
  }
  func.func @transform_1(%arg0: i32) -> (i32, i32) {
    %c0_i32 = arith.constant 0 : i32
    %c0_i32_0 = arith.constant 0 : i32
    %c0_i32_1 = arith.constant 0 : i32
    return %c0_i32, %c0_i32_0 : i32, i32
  }
  func.func @transform_2(%arg0: i32) -> (i32, i32) {
    %c0_i32 = arith.constant 0 : i32
    %c0_i32_0 = arith.constant 0 : i32
    %c0_i32_1 = arith.constant 0 : i32
    return %c0_i32, %c0_i32_0 : i32, i32
  }
}

module attributes {stable_mosaic.version = 11 : i64} {
  func.func @dense_layer_kernel(%arg0: i32, %arg1: i32, %arg2: memref<1x8xf32, #tpu.memory_space<vmem>>, %arg3: memref<1x8xf32, #tpu.memory_space<vmem>>, %arg4: memref<3x8x18x1xf32, #tpu.memory_space<vmem>>, %arg5: memref<3x8x18x8xf32, #tpu.memory_space<vmem>>, %arg6: memref<72x128xbf16, #tpu.memory_space<vmem>>, %arg7: memref<1x128xf32, #tpu.memory_space<vmem>>, %arg8: memref<1x128x128xf32, #tpu.memory_space<vmem>>) attributes {dimension_semantics = [#tpu.dimension_semantics<parallel>, #tpu.dimension_semantics<parallel>], iteration_bounds = array<i64: 2, 2>, scalar_prefetch = 0 : i64, scratch_operands = 0 : i64, tpu.core_type = #tpu.core_type<tc>, window_params = [{pipeline_mode = #tpu.pipeline_mode<synchronous>, transform_indices = @transform_0, window_bounds = array<i64: 1, 8>}, {pipeline_mode = #tpu.pipeline_mode<synchronous>, transform_indices = @transform_1, window_bounds = array<i64: 1, 8>}, {transform_indices = @transform_2, window_bounds = array<i64: 3, 8, 18, 1>}, {transform_indices = @transform_3, window_bounds = array<i64: 3, 8, 18, 8>}, {pipeline_mode = #tpu.pipeline_mode<synchronous>, transform_indices = @transform_4, window_bounds = array<i64: 72, 128>}, {pipeline_mode = #tpu.pipeline_mode<synchronous>, transform_indices = @transform_5, window_bounds = array<i64: 1, 128>}, {transform_indices = @transform_6, window_bounds = array<i64: 1, 128, 128>}]} {
    %c0 = arith.constant 0 : index
    %c0_0 = arith.constant 0 : index
    %0 = vector.load %arg2[%c0, %c0_0] : memref<1x8xf32, #tpu.memory_space<vmem>>, vector<1x8xf32>
    %1 = vector.shape_cast %0 : vector<1x8xf32> to vector<1x1x8xf32>
    %c0_1 = arith.constant 0 : index
    %c0_2 = arith.constant 0 : index
    %2 = vector.load %arg3[%c0_1, %c0_2] : memref<1x8xf32, #tpu.memory_space<vmem>>, vector<1x8xf32>
    %3 = vector.shape_cast %2 : vector<1x8xf32> to vector<1x1x8xf32>
    %c0_3 = arith.constant 0 : index
    %c0_4 = arith.constant 0 : index
    %c0_5 = arith.constant 0 : index
    %c0_6 = arith.constant 0 : index
    %4 = vector.load %arg5[%c0_3, %c0_4, %c0_5, %c0_6] : memref<3x8x18x8xf32, #tpu.memory_space<vmem>>, vector<1x8x18x8xf32>
    %5 = vector.shape_cast %4 : vector<1x8x18x8xf32> to vector<8x18x8xf32>
    %6 = vector.broadcast %1 : vector<1x1x8xf32> to vector<8x18x8xf32>
    %7 = arith.mulf %5, %6 : vector<8x18x8xf32>
    %8 = vector.broadcast %3 : vector<1x1x8xf32> to vector<8x18x8xf32>
    %9 = arith.addf %7, %8 : vector<8x18x8xf32>
    %cst = arith.constant 0.000000e+00 : f32
    %10 = vector.broadcast %cst : f32 to vector<8x18x8xf32>
    %11 = arith.maximumf %9, %10 : vector<8x18x8xf32>
    %c0_7 = arith.constant 0 : index
    %c0_8 = arith.constant 0 : index
    %c0_9 = arith.constant 0 : index
    %c0_10 = arith.constant 0 : index
    %12 = vector.load %arg4[%c0_7, %c0_8, %c0_9, %c0_10] : memref<3x8x18x1xf32, #tpu.memory_space<vmem>>, vector<1x8x18x1xf32>
    %13 = vector.shape_cast %12 : vector<1x8x18x1xf32> to vector<8x18x1xf32>
    %14 = vector.broadcast %13 : vector<8x18x1xf32> to vector<8x18x8xf32>
    %15 = arith.mulf %11, %14 : vector<8x18x8xf32>
    %16 = arith.truncf %15 : vector<8x18x8xf32> to vector<8x18x8xbf16>
    %17 = vector.extract_strided_slice %16 {offsets = [0, 0, 0], sizes = [8, 16, 8], strides = [1, 1, 1]} : vector<8x18x8xbf16> to vector<8x16x8xbf16>
    %18 = vector.extract_strided_slice %16 {offsets = [0, 1, 0], sizes = [8, 16, 8], strides = [1, 1, 1]} : vector<8x18x8xbf16> to vector<8x16x8xbf16>
    %19 = vector.extract_strided_slice %16 {offsets = [0, 2, 0], sizes = [8, 16, 8], strides = [1, 1, 1]} : vector<8x18x8xbf16> to vector<8x16x8xbf16>
    %c1 = arith.constant 1 : index
    %c0_11 = arith.constant 0 : index
    %c0_12 = arith.constant 0 : index
    %c0_13 = arith.constant 0 : index
    %20 = vector.load %arg5[%c1, %c0_11, %c0_12, %c0_13] : memref<3x8x18x8xf32, #tpu.memory_space<vmem>>, vector<1x8x18x8xf32>
    %21 = vector.shape_cast %20 : vector<1x8x18x8xf32> to vector<8x18x8xf32>
    %22 = vector.broadcast %1 : vector<1x1x8xf32> to vector<8x18x8xf32>
    %23 = arith.mulf %21, %22 : vector<8x18x8xf32>
    %24 = vector.broadcast %3 : vector<1x1x8xf32> to vector<8x18x8xf32>
    %25 = arith.addf %23, %24 : vector<8x18x8xf32>
    %cst_14 = arith.constant 0.000000e+00 : f32
    %26 = vector.broadcast %cst_14 : f32 to vector<8x18x8xf32>
    %27 = arith.maximumf %25, %26 : vector<8x18x8xf32>
    %c1_15 = arith.constant 1 : index
    %c0_16 = arith.constant 0 : index
    %c0_17 = arith.constant 0 : index
    %c0_18 = arith.constant 0 : index
    %28 = vector.load %arg4[%c1_15, %c0_16, %c0_17, %c0_18] : memref<3x8x18x1xf32, #tpu.memory_space<vmem>>, vector<1x8x18x1xf32>
    %29 = vector.shape_cast %28 : vector<1x8x18x1xf32> to vector<8x18x1xf32>
    %30 = vector.broadcast %29 : vector<8x18x1xf32> to vector<8x18x8xf32>
    %31 = arith.mulf %27, %30 : vector<8x18x8xf32>
    %32 = arith.truncf %31 : vector<8x18x8xf32> to vector<8x18x8xbf16>
    %33 = vector.extract_strided_slice %32 {offsets = [0, 0, 0], sizes = [8, 16, 8], strides = [1, 1, 1]} : vector<8x18x8xbf16> to vector<8x16x8xbf16>
    %34 = vector.extract_strided_slice %32 {offsets = [0, 1, 0], sizes = [8, 16, 8], strides = [1, 1, 1]} : vector<8x18x8xbf16> to vector<8x16x8xbf16>
    %35 = vector.extract_strided_slice %32 {offsets = [0, 2, 0], sizes = [8, 16, 8], strides = [1, 1, 1]} : vector<8x18x8xbf16> to vector<8x16x8xbf16>
    %c2 = arith.constant 2 : index
    %c0_19 = arith.constant 0 : index
    %c0_20 = arith.constant 0 : index
    %c0_21 = arith.constant 0 : index
    %36 = vector.load %arg5[%c2, %c0_19, %c0_20, %c0_21] : memref<3x8x18x8xf32, #tpu.memory_space<vmem>>, vector<1x8x18x8xf32>
    %37 = vector.shape_cast %36 : vector<1x8x18x8xf32> to vector<8x18x8xf32>
    %38 = vector.broadcast %1 : vector<1x1x8xf32> to vector<8x18x8xf32>
    %39 = arith.mulf %37, %38 : vector<8x18x8xf32>
    %40 = vector.broadcast %3 : vector<1x1x8xf32> to vector<8x18x8xf32>
    %41 = arith.addf %39, %40 : vector<8x18x8xf32>
    %cst_22 = arith.constant 0.000000e+00 : f32
    %42 = vector.broadcast %cst_22 : f32 to vector<8x18x8xf32>
    %43 = arith.maximumf %41, %42 : vector<8x18x8xf32>
    %c2_23 = arith.constant 2 : index
    %c0_24 = arith.constant 0 : index
    %c0_25 = arith.constant 0 : index
    %c0_26 = arith.constant 0 : index
    %44 = vector.load %arg4[%c2_23, %c0_24, %c0_25, %c0_26] : memref<3x8x18x1xf32, #tpu.memory_space<vmem>>, vector<1x8x18x1xf32>
    %45 = vector.shape_cast %44 : vector<1x8x18x1xf32> to vector<8x18x1xf32>
    %46 = vector.broadcast %45 : vector<8x18x1xf32> to vector<8x18x8xf32>
    %47 = arith.mulf %43, %46 : vector<8x18x8xf32>
    %48 = arith.truncf %47 : vector<8x18x8xf32> to vector<8x18x8xbf16>
    %49 = vector.extract_strided_slice %48 {offsets = [0, 0, 0], sizes = [8, 16, 8], strides = [1, 1, 1]} : vector<8x18x8xbf16> to vector<8x16x8xbf16>
    %50 = vector.extract_strided_slice %48 {offsets = [0, 1, 0], sizes = [8, 16, 8], strides = [1, 1, 1]} : vector<8x18x8xbf16> to vector<8x16x8xbf16>
    %51 = vector.extract_strided_slice %48 {offsets = [0, 2, 0], sizes = [8, 16, 8], strides = [1, 1, 1]} : vector<8x18x8xbf16> to vector<8x16x8xbf16>
    %52 = tpu.concatenate %17, %18, %19, %33, %34, %35, %49, %50, %51 in 2 : vector<8x16x8xbf16>, vector<8x16x8xbf16>, vector<8x16x8xbf16>, vector<8x16x8xbf16>, vector<8x16x8xbf16>, vector<8x16x8xbf16>, vector<8x16x8xbf16>, vector<8x16x8xbf16>, vector<8x16x8xbf16> -> vector<8x16x72xbf16>
    %53 = vector.shape_cast %52 : vector<8x16x72xbf16> to vector<128x72xbf16>
    %c0_27 = arith.constant 0 : index
    %c0_28 = arith.constant 0 : index
    %54 = vector.load %arg6[%c0_27, %c0_28] : memref<72x128xbf16, #tpu.memory_space<vmem>>, vector<72x128xbf16>
    %cst_29 = arith.constant dense<0.000000e+00> : vector<128x128xf32>
    %55 = tpu.matmul %53, %54, %cst_29 {dimension_numbers = #tpu.dot_dimension_numbers<[1], [0], [0], [1], [0, 0, 1, 1], [], []>} : vector<128x72xbf16>, vector<72x128xbf16>, vector<128x128xf32> -> vector<128x128xf32>
    %c0_30 = arith.constant 0 : index
    %c0_31 = arith.constant 0 : index
    %56 = vector.load %arg7[%c0_30, %c0_31] : memref<1x128xf32, #tpu.memory_space<vmem>>, vector<1x128xf32>
    %57 = vector.broadcast %56 : vector<1x128xf32> to vector<128x128xf32>
    %58 = arith.addf %55, %57 : vector<128x128xf32>
    %c0_32 = arith.constant 0 : index
    %c0_33 = arith.constant 0 : index
    %c0_34 = arith.constant 0 : index
    %59 = vector.load %arg8[%c0_32, %c0_33, %c0_34] : memref<1x128x128xf32, #tpu.memory_space<vmem>>, vector<1x128x128xf32>
    %60 = vector.shape_cast %59 : vector<1x128x128xf32> to vector<128x128xf32>
    %61 = vector.shape_cast %58 : vector<128x128xf32> to vector<1x128x128xf32>
    tpu.vector_store %arg8[%c0_32, %c0_33, %c0_34], %61 {strides = array<i32>} : memref<1x128x128xf32, #tpu.memory_space<vmem>>, vector<1x128x128xf32>,
    return
  }
  func.func @transform_0(%arg0: i32, %arg1: i32) -> (i32, i32) {
    %c0_i32 = arith.constant 0 : i32
    %c0_i32_0 = arith.constant 0 : i32
    %c0_i32_1 = arith.constant 0 : i32
    return %c0_i32, %c0_i32_0 : i32, i32
  }
  func.func @transform_1(%arg0: i32, %arg1: i32) -> (i32, i32) {
    %c0_i32 = arith.constant 0 : i32
    %c0_i32_0 = arith.constant 0 : i32
    %c0_i32_1 = arith.constant 0 : i32
    return %c0_i32, %c0_i32_0 : i32, i32
  }
  func.func @transform_2(%arg0: i32, %arg1: i32) -> (i32, i32, i32, i32) {
    %c0_i32 = arith.constant 0 : i32
    %c0_i32_0 = arith.constant 0 : i32
    %c0_i32_1 = arith.constant 0 : i32
    %c0_i32_2 = arith.constant 0 : i32
    return %c0_i32, %arg1, %c0_i32_0, %c0_i32_1 : i32, i32, i32, i32
  }
  func.func @transform_3(%arg0: i32, %arg1: i32) -> (i32, i32, i32, i32) {
    %c0_i32 = arith.constant 0 : i32
    %c0_i32_0 = arith.constant 0 : i32
    %c0_i32_1 = arith.constant 0 : i32
    return %arg0, %arg1, %c0_i32, %c0_i32_0 : i32, i32, i32, i32
  }
  func.func @transform_4(%arg0: i32, %arg1: i32) -> (i32, i32) {
    %c0_i32 = arith.constant 0 : i32
    %c0_i32_0 = arith.constant 0 : i32
    %c0_i32_1 = arith.constant 0 : i32
    return %c0_i32, %c0_i32_0 : i32, i32
  }
  func.func @transform_5(%arg0: i32, %arg1: i32) -> (i32, i32) {
    %c0_i32 = arith.constant 0 : i32
    %c0_i32_0 = arith.constant 0 : i32
    %c0_i32_1 = arith.constant 0 : i32
    return %c0_i32, %c0_i32_0 : i32, i32
  }
  func.func @transform_6(%arg0: i32, %arg1: i32) -> (i32, i32, i32) {
    %c0_i32 = arith.constant 0 : i32
    %c0_i32_0 = arith.constant 0 : i32
    return %arg0, %arg1, %c0_i32 : i32, i32, i32
  }
}

module attributes {stable_mosaic.version = 11 : i64} {
  func.func @bn_stats_kernel(%arg0: i32, %arg1: memref<256x12xf32, #tpu.memory_space<vmem>>, %arg2: memref<1x12xf32, #tpu.memory_space<vmem>>, %arg3: memref<1x12xf32, #tpu.memory_space<vmem>>) attributes {dimension_semantics = [#tpu.dimension_semantics<arbitrary>], iteration_bounds = array<i64: 2>, scalar_prefetch = 0 : i64, scratch_operands = 0 : i64, tpu.core_type = #tpu.core_type<tc>, window_params = [{transform_indices = @transform_0, window_bounds = array<i64: 256, 12>}, {pipeline_mode = #tpu.pipeline_mode<synchronous>, transform_indices = @transform_1, window_bounds = array<i64: 1, 12>}, {pipeline_mode = #tpu.pipeline_mode<synchronous>, transform_indices = @transform_2, window_bounds = array<i64: 1, 12>}]} {
    %c0_i32 = arith.constant 0 : i32
    %0 = arith.cmpi eq, %arg0, %c0_i32 : i32
    %1 = arith.extui %0 : i1 to i32
    %c0_i32_0 = arith.constant 0 : i32
    %2 = arith.cmpi ne, %1, %c0_i32_0 : i32
    scf.if %2 {
      %cst_11 = arith.constant 0.000000e+00 : f32
      %15 = vector.broadcast %cst_11 : f32 to vector<1x12xf32>
      %c0_12 = arith.constant 0 : index
      %c0_13 = arith.constant 0 : index
      %16 = vector.load %arg2[%c0_12, %c0_13] : memref<1x12xf32, #tpu.memory_space<vmem>>, vector<1x12xf32>
      tpu.vector_store %arg2[%c0_12, %c0_13], %15 {strides = array<i32>} : memref<1x12xf32, #tpu.memory_space<vmem>>, vector<1x12xf32>,
      %cst_14 = arith.constant 0.000000e+00 : f32
      %17 = vector.broadcast %cst_14 : f32 to vector<1x12xf32>
      %c0_15 = arith.constant 0 : index
      %c0_16 = arith.constant 0 : index
      %18 = vector.load %arg3[%c0_15, %c0_16] : memref<1x12xf32, #tpu.memory_space<vmem>>, vector<1x12xf32>
      tpu.vector_store %arg3[%c0_15, %c0_16], %17 {strides = array<i32>} : memref<1x12xf32, #tpu.memory_space<vmem>>, vector<1x12xf32>,
    } else {
    }
    %c0 = arith.constant 0 : index
    %c0_1 = arith.constant 0 : index
    %3 = vector.load %arg1[%c0, %c0_1] : memref<256x12xf32, #tpu.memory_space<vmem>>, vector<256x12xf32>
    %c0_2 = arith.constant 0 : index
    %c0_3 = arith.constant 0 : index
    %4 = vector.load %arg2[%c0_2, %c0_3] : memref<1x12xf32, #tpu.memory_space<vmem>>, vector<1x12xf32>
    %cst = arith.constant dense<0.000000e+00> : vector<12xf32>
    %5 = vector.multi_reduction <add>, %3, %cst [0] : vector<256x12xf32> to vector<12xf32>
    %6 = vector.shape_cast %5 : vector<12xf32> to vector<1x12xf32>
    %7 = arith.addf %4, %6 : vector<1x12xf32>
    %c0_4 = arith.constant 0 : index
    %c0_5 = arith.constant 0 : index
    %8 = vector.load %arg2[%c0_4, %c0_5] : memref<1x12xf32, #tpu.memory_space<vmem>>, vector<1x12xf32>
    tpu.vector_store %arg2[%c0_4, %c0_5], %7 {strides = array<i32>} : memref<1x12xf32, #tpu.memory_space<vmem>>, vector<1x12xf32>,
    %c0_6 = arith.constant 0 : index
    %c0_7 = arith.constant 0 : index
    %9 = vector.load %arg3[%c0_6, %c0_7] : memref<1x12xf32, #tpu.memory_space<vmem>>, vector<1x12xf32>
    %10 = arith.mulf %3, %3 : vector<256x12xf32>
    %cst_8 = arith.constant dense<0.000000e+00> : vector<12xf32>
    %11 = vector.multi_reduction <add>, %10, %cst_8 [0] : vector<256x12xf32> to vector<12xf32>
    %12 = vector.shape_cast %11 : vector<12xf32> to vector<1x12xf32>
    %13 = arith.addf %9, %12 : vector<1x12xf32>
    %c0_9 = arith.constant 0 : index
    %c0_10 = arith.constant 0 : index
    %14 = vector.load %arg3[%c0_9, %c0_10] : memref<1x12xf32, #tpu.memory_space<vmem>>, vector<1x12xf32>
    tpu.vector_store %arg3[%c0_9, %c0_10], %13 {strides = array<i32>} : memref<1x12xf32, #tpu.memory_space<vmem>>, vector<1x12xf32>,
    return
  }
  func.func @transform_0(%arg0: i32) -> (i32, i32) {
    %c0_i32 = arith.constant 0 : i32
    %c0_i32_0 = arith.constant 0 : i32
    return %arg0, %c0_i32 : i32, i32
  }
  func.func @transform_1(%arg0: i32) -> (i32, i32) {
    %c0_i32 = arith.constant 0 : i32
    %c0_i32_0 = arith.constant 0 : i32
    %c0_i32_1 = arith.constant 0 : i32
    return %c0_i32, %c0_i32_0 : i32, i32
  }
  func.func @transform_2(%arg0: i32) -> (i32, i32) {
    %c0_i32 = arith.constant 0 : i32
    %c0_i32_0 = arith.constant 0 : i32
    %c0_i32_1 = arith.constant 0 : i32
    return %c0_i32, %c0_i32_0 : i32, i32
  }
}

module attributes {stable_mosaic.version = 11 : i64} {
  func.func @dense_layer_kernel(%arg0: i32, %arg1: i32, %arg2: memref<1x12xf32, #tpu.memory_space<vmem>>, %arg3: memref<1x12xf32, #tpu.memory_space<vmem>>, %arg4: memref<3x8x18x1xf32, #tpu.memory_space<vmem>>, %arg5: memref<3x8x18x12xf32, #tpu.memory_space<vmem>>, %arg6: memref<108x128xbf16, #tpu.memory_space<vmem>>, %arg7: memref<1x128xf32, #tpu.memory_space<vmem>>, %arg8: memref<1x128x128xf32, #tpu.memory_space<vmem>>) attributes {dimension_semantics = [#tpu.dimension_semantics<parallel>, #tpu.dimension_semantics<parallel>], iteration_bounds = array<i64: 2, 2>, scalar_prefetch = 0 : i64, scratch_operands = 0 : i64, tpu.core_type = #tpu.core_type<tc>, window_params = [{pipeline_mode = #tpu.pipeline_mode<synchronous>, transform_indices = @transform_0, window_bounds = array<i64: 1, 12>}, {pipeline_mode = #tpu.pipeline_mode<synchronous>, transform_indices = @transform_1, window_bounds = array<i64: 1, 12>}, {transform_indices = @transform_2, window_bounds = array<i64: 3, 8, 18, 1>}, {transform_indices = @transform_3, window_bounds = array<i64: 3, 8, 18, 12>}, {pipeline_mode = #tpu.pipeline_mode<synchronous>, transform_indices = @transform_4, window_bounds = array<i64: 108, 128>}, {pipeline_mode = #tpu.pipeline_mode<synchronous>, transform_indices = @transform_5, window_bounds = array<i64: 1, 128>}, {transform_indices = @transform_6, window_bounds = array<i64: 1, 128, 128>}]} {
    %c0 = arith.constant 0 : index
    %c0_0 = arith.constant 0 : index
    %0 = vector.load %arg2[%c0, %c0_0] : memref<1x12xf32, #tpu.memory_space<vmem>>, vector<1x12xf32>
    %1 = vector.shape_cast %0 : vector<1x12xf32> to vector<1x1x12xf32>
    %c0_1 = arith.constant 0 : index
    %c0_2 = arith.constant 0 : index
    %2 = vector.load %arg3[%c0_1, %c0_2] : memref<1x12xf32, #tpu.memory_space<vmem>>, vector<1x12xf32>
    %3 = vector.shape_cast %2 : vector<1x12xf32> to vector<1x1x12xf32>
    %c0_3 = arith.constant 0 : index
    %c0_4 = arith.constant 0 : index
    %c0_5 = arith.constant 0 : index
    %c0_6 = arith.constant 0 : index
    %4 = vector.load %arg5[%c0_3, %c0_4, %c0_5, %c0_6] : memref<3x8x18x12xf32, #tpu.memory_space<vmem>>, vector<1x8x18x12xf32>
    %5 = vector.shape_cast %4 : vector<1x8x18x12xf32> to vector<8x18x12xf32>
    %6 = vector.broadcast %1 : vector<1x1x12xf32> to vector<8x18x12xf32>
    %7 = arith.mulf %5, %6 : vector<8x18x12xf32>
    %8 = vector.broadcast %3 : vector<1x1x12xf32> to vector<8x18x12xf32>
    %9 = arith.addf %7, %8 : vector<8x18x12xf32>
    %cst = arith.constant 0.000000e+00 : f32
    %10 = vector.broadcast %cst : f32 to vector<8x18x12xf32>
    %11 = arith.maximumf %9, %10 : vector<8x18x12xf32>
    %c0_7 = arith.constant 0 : index
    %c0_8 = arith.constant 0 : index
    %c0_9 = arith.constant 0 : index
    %c0_10 = arith.constant 0 : index
    %12 = vector.load %arg4[%c0_7, %c0_8, %c0_9, %c0_10] : memref<3x8x18x1xf32, #tpu.memory_space<vmem>>, vector<1x8x18x1xf32>
    %13 = vector.shape_cast %12 : vector<1x8x18x1xf32> to vector<8x18x1xf32>
    %14 = vector.broadcast %13 : vector<8x18x1xf32> to vector<8x18x12xf32>
    %15 = arith.mulf %11, %14 : vector<8x18x12xf32>
    %16 = arith.truncf %15 : vector<8x18x12xf32> to vector<8x18x12xbf16>
    %17 = vector.extract_strided_slice %16 {offsets = [0, 0, 0], sizes = [8, 16, 12], strides = [1, 1, 1]} : vector<8x18x12xbf16> to vector<8x16x12xbf16>
    %18 = vector.extract_strided_slice %16 {offsets = [0, 1, 0], sizes = [8, 16, 12], strides = [1, 1, 1]} : vector<8x18x12xbf16> to vector<8x16x12xbf16>
    %19 = vector.extract_strided_slice %16 {offsets = [0, 2, 0], sizes = [8, 16, 12], strides = [1, 1, 1]} : vector<8x18x12xbf16> to vector<8x16x12xbf16>
    %c1 = arith.constant 1 : index
    %c0_11 = arith.constant 0 : index
    %c0_12 = arith.constant 0 : index
    %c0_13 = arith.constant 0 : index
    %20 = vector.load %arg5[%c1, %c0_11, %c0_12, %c0_13] : memref<3x8x18x12xf32, #tpu.memory_space<vmem>>, vector<1x8x18x12xf32>
    %21 = vector.shape_cast %20 : vector<1x8x18x12xf32> to vector<8x18x12xf32>
    %22 = vector.broadcast %1 : vector<1x1x12xf32> to vector<8x18x12xf32>
    %23 = arith.mulf %21, %22 : vector<8x18x12xf32>
    %24 = vector.broadcast %3 : vector<1x1x12xf32> to vector<8x18x12xf32>
    %25 = arith.addf %23, %24 : vector<8x18x12xf32>
    %cst_14 = arith.constant 0.000000e+00 : f32
    %26 = vector.broadcast %cst_14 : f32 to vector<8x18x12xf32>
    %27 = arith.maximumf %25, %26 : vector<8x18x12xf32>
    %c1_15 = arith.constant 1 : index
    %c0_16 = arith.constant 0 : index
    %c0_17 = arith.constant 0 : index
    %c0_18 = arith.constant 0 : index
    %28 = vector.load %arg4[%c1_15, %c0_16, %c0_17, %c0_18] : memref<3x8x18x1xf32, #tpu.memory_space<vmem>>, vector<1x8x18x1xf32>
    %29 = vector.shape_cast %28 : vector<1x8x18x1xf32> to vector<8x18x1xf32>
    %30 = vector.broadcast %29 : vector<8x18x1xf32> to vector<8x18x12xf32>
    %31 = arith.mulf %27, %30 : vector<8x18x12xf32>
    %32 = arith.truncf %31 : vector<8x18x12xf32> to vector<8x18x12xbf16>
    %33 = vector.extract_strided_slice %32 {offsets = [0, 0, 0], sizes = [8, 16, 12], strides = [1, 1, 1]} : vector<8x18x12xbf16> to vector<8x16x12xbf16>
    %34 = vector.extract_strided_slice %32 {offsets = [0, 1, 0], sizes = [8, 16, 12], strides = [1, 1, 1]} : vector<8x18x12xbf16> to vector<8x16x12xbf16>
    %35 = vector.extract_strided_slice %32 {offsets = [0, 2, 0], sizes = [8, 16, 12], strides = [1, 1, 1]} : vector<8x18x12xbf16> to vector<8x16x12xbf16>
    %c2 = arith.constant 2 : index
    %c0_19 = arith.constant 0 : index
    %c0_20 = arith.constant 0 : index
    %c0_21 = arith.constant 0 : index
    %36 = vector.load %arg5[%c2, %c0_19, %c0_20, %c0_21] : memref<3x8x18x12xf32, #tpu.memory_space<vmem>>, vector<1x8x18x12xf32>
    %37 = vector.shape_cast %36 : vector<1x8x18x12xf32> to vector<8x18x12xf32>
    %38 = vector.broadcast %1 : vector<1x1x12xf32> to vector<8x18x12xf32>
    %39 = arith.mulf %37, %38 : vector<8x18x12xf32>
    %40 = vector.broadcast %3 : vector<1x1x12xf32> to vector<8x18x12xf32>
    %41 = arith.addf %39, %40 : vector<8x18x12xf32>
    %cst_22 = arith.constant 0.000000e+00 : f32
    %42 = vector.broadcast %cst_22 : f32 to vector<8x18x12xf32>
    %43 = arith.maximumf %41, %42 : vector<8x18x12xf32>
    %c2_23 = arith.constant 2 : index
    %c0_24 = arith.constant 0 : index
    %c0_25 = arith.constant 0 : index
    %c0_26 = arith.constant 0 : index
    %44 = vector.load %arg4[%c2_23, %c0_24, %c0_25, %c0_26] : memref<3x8x18x1xf32, #tpu.memory_space<vmem>>, vector<1x8x18x1xf32>
    %45 = vector.shape_cast %44 : vector<1x8x18x1xf32> to vector<8x18x1xf32>
    %46 = vector.broadcast %45 : vector<8x18x1xf32> to vector<8x18x12xf32>
    %47 = arith.mulf %43, %46 : vector<8x18x12xf32>
    %48 = arith.truncf %47 : vector<8x18x12xf32> to vector<8x18x12xbf16>
    %49 = vector.extract_strided_slice %48 {offsets = [0, 0, 0], sizes = [8, 16, 12], strides = [1, 1, 1]} : vector<8x18x12xbf16> to vector<8x16x12xbf16>
    %50 = vector.extract_strided_slice %48 {offsets = [0, 1, 0], sizes = [8, 16, 12], strides = [1, 1, 1]} : vector<8x18x12xbf16> to vector<8x16x12xbf16>
    %51 = vector.extract_strided_slice %48 {offsets = [0, 2, 0], sizes = [8, 16, 12], strides = [1, 1, 1]} : vector<8x18x12xbf16> to vector<8x16x12xbf16>
    %52 = tpu.concatenate %17, %18, %19, %33, %34, %35, %49, %50, %51 in 2 : vector<8x16x12xbf16>, vector<8x16x12xbf16>, vector<8x16x12xbf16>, vector<8x16x12xbf16>, vector<8x16x12xbf16>, vector<8x16x12xbf16>, vector<8x16x12xbf16>, vector<8x16x12xbf16>, vector<8x16x12xbf16> -> vector<8x16x108xbf16>
    %53 = vector.shape_cast %52 : vector<8x16x108xbf16> to vector<128x108xbf16>
    %c0_27 = arith.constant 0 : index
    %c0_28 = arith.constant 0 : index
    %54 = vector.load %arg6[%c0_27, %c0_28] : memref<108x128xbf16, #tpu.memory_space<vmem>>, vector<108x128xbf16>
    %cst_29 = arith.constant dense<0.000000e+00> : vector<128x128xf32>
    %55 = tpu.matmul %53, %54, %cst_29 {dimension_numbers = #tpu.dot_dimension_numbers<[1], [0], [0], [1], [0, 0, 1, 1], [], []>} : vector<128x108xbf16>, vector<108x128xbf16>, vector<128x128xf32> -> vector<128x128xf32>
    %c0_30 = arith.constant 0 : index
    %c0_31 = arith.constant 0 : index
    %56 = vector.load %arg7[%c0_30, %c0_31] : memref<1x128xf32, #tpu.memory_space<vmem>>, vector<1x128xf32>
    %57 = vector.broadcast %56 : vector<1x128xf32> to vector<128x128xf32>
    %58 = arith.addf %55, %57 : vector<128x128xf32>
    %c0_32 = arith.constant 0 : index
    %c0_33 = arith.constant 0 : index
    %c0_34 = arith.constant 0 : index
    %59 = vector.load %arg8[%c0_32, %c0_33, %c0_34] : memref<1x128x128xf32, #tpu.memory_space<vmem>>, vector<1x128x128xf32>
    %60 = vector.shape_cast %59 : vector<1x128x128xf32> to vector<128x128xf32>
    %61 = vector.shape_cast %58 : vector<128x128xf32> to vector<1x128x128xf32>
    tpu.vector_store %arg8[%c0_32, %c0_33, %c0_34], %61 {strides = array<i32>} : memref<1x128x128xf32, #tpu.memory_space<vmem>>, vector<1x128x128xf32>,
    return
  }
  func.func @transform_0(%arg0: i32, %arg1: i32) -> (i32, i32) {
    %c0_i32 = arith.constant 0 : i32
    %c0_i32_0 = arith.constant 0 : i32
    %c0_i32_1 = arith.constant 0 : i32
    return %c0_i32, %c0_i32_0 : i32, i32
  }
  func.func @transform_1(%arg0: i32, %arg1: i32) -> (i32, i32) {
    %c0_i32 = arith.constant 0 : i32
    %c0_i32_0 = arith.constant 0 : i32
    %c0_i32_1 = arith.constant 0 : i32
    return %c0_i32, %c0_i32_0 : i32, i32
  }
  func.func @transform_2(%arg0: i32, %arg1: i32) -> (i32, i32, i32, i32) {
    %c0_i32 = arith.constant 0 : i32
    %c0_i32_0 = arith.constant 0 : i32
    %c0_i32_1 = arith.constant 0 : i32
    %c0_i32_2 = arith.constant 0 : i32
    return %c0_i32, %arg1, %c0_i32_0, %c0_i32_1 : i32, i32, i32, i32
  }
  func.func @transform_3(%arg0: i32, %arg1: i32) -> (i32, i32, i32, i32) {
    %c0_i32 = arith.constant 0 : i32
    %c0_i32_0 = arith.constant 0 : i32
    %c0_i32_1 = arith.constant 0 : i32
    return %arg0, %arg1, %c0_i32, %c0_i32_0 : i32, i32, i32, i32
  }
  func.func @transform_4(%arg0: i32, %arg1: i32) -> (i32, i32) {
    %c0_i32 = arith.constant 0 : i32
    %c0_i32_0 = arith.constant 0 : i32
    %c0_i32_1 = arith.constant 0 : i32
    return %c0_i32, %c0_i32_0 : i32, i32
  }
  func.func @transform_5(%arg0: i32, %arg1: i32) -> (i32, i32) {
    %c0_i32 = arith.constant 0 : i32
    %c0_i32_0 = arith.constant 0 : i32
    %c0_i32_1 = arith.constant 0 : i32
    return %c0_i32, %c0_i32_0 : i32, i32
  }
  func.func @transform_6(%arg0: i32, %arg1: i32) -> (i32, i32, i32) {
    %c0_i32 = arith.constant 0 : i32
    %c0_i32_0 = arith.constant 0 : i32
    return %arg0, %arg1, %c0_i32 : i32, i32, i32
  }
}

</mosaic_0001>

<llo_original>
// kernel: bottleneck_forward.6
$region0: #{bottleneck_forward.6}
  #allocation0 [shape = 'u32[]', space=smem, size = 0x4, offset = 0x4, fixed_abs, tag = 'smem constant byte address 0x4 - core index']
  #allocation1 [shape = 'u32[144,128]{1,0:T(1,128)}', space=vmem, size = 0x12000, scoped, tag = 'internal scratch']
  %s0 = inlined_call_operand.vmem [shape: f32[512,4], index: 0, kind: input, shape index: {}]
  %s1 = inlined_call_operand.vmem [shape: f32[1,4], index: 1, kind: output, shape index: {0}]
  %s2 = inlined_call_operand.vmem [shape: f32[1,4], index: 2, kind: output, shape index: {1}]
  %3 = xla_tuple %s1, %s2
  %s4 = sld [smem:[#allocation0]]
  $region49: #{bottleneck_forward.6} parent=0
    _
  %s6 = ssub.s32 1, %s4
  %s7 = scalar_select 0, %s6, %s4
  loop: start=0, step=1, limit=4
  $region2: #{bottleneck_forward.6} parent=0 // loop_pre_header
    _
  $region3: #{bottleneck_forward.6} parent=0 // loop_header
    %s9 = sphi 0, %s13
    %p10 = scmp.ge.s32.totalorder %s9, 4
    %s19 = sphi 0, %s21
    %s22 = sphi 0, %s19
    %s23 = sphi 0, %s22
    %s39 = sphi 0, %s23
    %s43 = sphi 0, %s43
    %s45 = sphi 0, %s43
    %s46 = sphi 0, %s45
    %s60 = sphi 0, %s46
    %s64 = sphi 0, %s64
    %s66 = sphi 0, %s64
    %s67 = sphi 0, %s66
    %s81 = sphi 0, %s67
  $region4: #{bottleneck_forward.6} parent=0 // loop_header_branch
    %12 = sbr.rel (%p10) target = $region8
  $region5: #{bottleneck_forward.6} parent=0 // loop_body
    %s14 = ssub.s32 %s9, 1
    %s15 = ssub.s32 %s9, 2
    %s16 = sadd.s32 %s9, 1
    %s17 = ssub.s32 %s9, %s16
    %p18 = scmp.eq.s32.totalorder %s17, 0
    %s20 = sadd.s32 %s19, 1
    %s21 = scalar_select %p18, %s19, %s20
    %p24 = pneg %p18
    %p25 = scmp.eq.s32.totalorder %s9, 1
    %p26 = por %p24, %p25
    %p27 = scmp.ne.s32.totalorder %s19, %s22
    %p28 = scmp.eq.s32.totalorder %s9, 0
    %p29 = por %p27, %p28
    %p30 = scmp.ne.s32.totalorder %s19, %s22
    %p31 = scmp.eq.s32.totalorder %s14, 1
    %p32 = por %p30, %p31
    %p33 = scmp.ne.s32.totalorder %s22, %s23
    %p34 = scmp.eq.s32.totalorder %s14, 0
    %p35 = por %p33, %p34
    %p36 = scmp.ne.s32.totalorder %s22, %s23
    %p37 = scmp.eq.s32.totalorder %s15, 1
    %p38 = por %p36, %p37
    %p40 = scmp.ne.s32.totalorder %s23, %s39
    %p41 = scmp.eq.s32.totalorder %s15, 0
    %p42 = por %p40, %p41
    %s44 = sadd.s32 %s43, 1
    %p47 = scmp.eq.s32.totalorder %s9, 1
    %p48 = scmp.ne.s32.totalorder %s43, %s45
    %p49 = scmp.eq.s32.totalorder %s9, 0
    %p50 = por %p48, %p49
    %p51 = scmp.ne.s32.totalorder %s43, %s45
    %p52 = scmp.eq.s32.totalorder %s14, 1
    %p53 = por %p51, %p52
    %p54 = scmp.ne.s32.totalorder %s45, %s46
    %p55 = scmp.eq.s32.totalorder %s14, 0
    %p56 = por %p54, %p55
    %p57 = scmp.ne.s32.totalorder %s45, %s46
    %p58 = scmp.eq.s32.totalorder %s15, 1
    %p59 = por %p57, %p58
    %p61 = scmp.ne.s32.totalorder %s46, %s60
    %p62 = scmp.eq.s32.totalorder %s15, 0
    %p63 = por %p61, %p62
    %s65 = sadd.s32 %s64, 1
    %p68 = scmp.eq.s32.totalorder %s9, 1
    %p69 = scmp.ne.s32.totalorder %s64, %s66
    %p70 = scmp.eq.s32.totalorder %s9, 0
    %p71 = por %p69, %p70
    %p72 = scmp.ne.s32.totalorder %s64, %s66
    %p73 = scmp.eq.s32.totalorder %s14, 1
    %p74 = por %p72, %p73
    %p75 = scmp.ne.s32.totalorder %s66, %s67
    %p76 = scmp.eq.s32.totalorder %s14, 0
    %p77 = por %p75, %p76
    %p78 = scmp.ne.s32.totalorder %s66, %s67
    %p79 = scmp.eq.s32.totalorder %s15, 1
    %p80 = por %p78, %p79
    %p82 = scmp.ne.s32.totalorder %s67, %s81
    %p83 = scmp.eq.s32.totalorder %s15, 0
    %p84 = por %p82, %p83
    %p85 = scmp.le.s32.totalorder 1, %s9
    %p86 = scmp.lt.s32.totalorder %s9, 3
    %p87 = pnand %p85, %p86
    %p88 = pneg %p87
    // Predicated region
    $region9: #{bottleneck_forward.6} parent=5 // pred_check
      _
    $region10: #{bottleneck_forward.6} parent=5 // pred_check_branch
      %90 = sbr.rel (%p87) target = $region12
    $region11: #{bottleneck_forward.6} parent=5 // pred_region
      %s91 = ssub.s32 %s9, 1
    $region12: #{bottleneck_forward.6} parent=5 // pred_fallthru
      _
    %p92 = scmp.lt.s32.totalorder %s9, 2
    // Predicated region
    $region13: #{bottleneck_forward.6} parent=5 // pred_check
      %p93 = pneg %p92
    $region14: #{bottleneck_forward.6} parent=5 // pred_check_branch
      %95 = sbr.rel (%p93) target = $region16
    $region15: #{bottleneck_forward.6} parent=5 // pred_region
      // Predicated region
      $region17: #{bottleneck_forward.6} parent=15 // pred_check
        %p96 = pneg %p29
      $region18: #{bottleneck_forward.6} parent=15 // pred_check_branch
        %98 = sbr.rel (%p96) target = $region20
      $region19: #{bottleneck_forward.6} parent=15 // pred_region
        %s99 = smul.u32 32, %s9
        %p100 = scmp.lt.s32.totalorder %s99, 63
        %s101 = scalar_select %p100, %s99, 63
        %s102 = smul.addr %s101, 8
        %s103 = scalar_lea.vmem %s0, %s102
        %s104 = smul.u32 32, %s9
      $region20: #{bottleneck_forward.6} parent=15 // pred_fallthru
        _
    $region16: #{bottleneck_forward.6} parent=5 // pred_fallthru
      _
    %p105 = scmp.le.s32.totalorder 1, %s9
    %p106 = scmp.lt.s32.totalorder %s9, 3
    %p107 = pnand %p105, %p106
    %p108 = pneg %p107
    // Predicated region
    $region21: #{bottleneck_forward.6} parent=5 // pred_check
      _
    $region22: #{bottleneck_forward.6} parent=5 // pred_check_branch
      %110 = sbr.rel (%p107) target = $region24
    $region23: #{bottleneck_forward.6} parent=5 // pred_region
      %s111 = ssub.s32 %s9, 1
      %s112 = smul.u32 32, %s14
      %p113 = scmp.lt.s32.totalorder %s112, 63
      %s114 = scalar_select %p113, %s112, 63
      %s115 = smul.addr %s114, 8
      %s116 = scalar_lea.vmem %s0, %s115
      %p117 = pneg %p35
      %p118 = pneg %p32
      %p119 = pneg %p56
      %p120 = pneg %p53
      %p121 = pneg %p77
      %p122 = pneg %p74
      %s123 = smul.u32 32, %s14
      %p124 = scmp.lt.s32.totalorder %s123, 63
      %s125 = scalar_select %p124, %s123, 63
      %s126 = smul.addr %s125, 8
      %s127 = scalar_lea.vmem %s0, %s126
      %s128 = smul.u32 32, %s14
      %p129 = scmp.eq.s32.totalorder %s14, 0
      // Predicated region
      $region25: #{bottleneck_forward.6} parent=23 // pred_check
        %p130 = pneg %p129
      $region26: #{bottleneck_forward.6} parent=23 // pred_check_branch
        %132 = sbr.rel (%p130) target = $region28
      $region27: #{bottleneck_forward.6} parent=23 // pred_region
        %vm133 = vcmask 24576
        %134 = vst.msk [vmem:[%s1] sm:$0x1] %vm133, 0.0
        %135 = vst.msk [vmem:[%s2] sm:$0x1] %vm133, 0.0
      $region28: #{bottleneck_forward.6} parent=23 // pred_fallthru
        _
      %v136 = vld [vmem:[%s127] sm:$0xff]
      %v137 = vld [vmem:[%s127 + $0x8] sm:$0xff]
      %v138 = vld [vmem:[%s127 + $0x10] sm:$0xff]
      %v139 = vld [vmem:[%s127 + $0x18] sm:$0xff]
      %v140 = vld [vmem:[%s127 + $0x20] sm:$0xff]
      %v141 = vld [vmem:[%s127 + $0x28] sm:$0xff]
      %v142 = vld [vmem:[%s127 + $0x30] sm:$0xff]
      %v143 = vld [vmem:[%s127 + $0x38] sm:$0xff]
      %v144 = vld [vmem:[%s127 + $0x40] sm:$0xff]
      %v145 = vld [vmem:[%s127 + $0x48] sm:$0xff]
      %v146 = vld [vmem:[%s127 + $0x50] sm:$0xff]
      %v147 = vld [vmem:[%s127 + $0x58] sm:$0xff]
      %v148 = vld [vmem:[%s127 + $0x60] sm:$0xff]
      %v149 = vld [vmem:[%s127 + $0x68] sm:$0xff]
      %v150 = vld [vmem:[%s127 + $0x70] sm:$0xff]
      %v151 = vld [vmem:[%s127 + $0x78] sm:$0xff]
      %v152 = vld [vmem:[%s127 + $0x80] sm:$0xff]
      %v153 = vld [vmem:[%s127 + $0x88] sm:$0xff]
      %v154 = vld [vmem:[%s127 + $0x90] sm:$0xff]
      %v155 = vld [vmem:[%s127 + $0x98] sm:$0xff]
      %v156 = vld [vmem:[%s127 + $0xa0] sm:$0xff]
      %v157 = vld [vmem:[%s127 + $0xa8] sm:$0xff]
      %v158 = vld [vmem:[%s127 + $0xb0] sm:$0xff]
      %v159 = vld [vmem:[%s127 + $0xb8] sm:$0xff]
      %v160 = vld [vmem:[%s127 + $0xc0] sm:$0xff]
      %v161 = vld [vmem:[%s127 + $0xc8] sm:$0xff]
      %v162 = vld [vmem:[%s127 + $0xd0] sm:$0xff]
      %v163 = vld [vmem:[%s127 + $0xd8] sm:$0xff]
      %v164 = vld [vmem:[%s127 + $0xe0] sm:$0xff]
      %v165 = vld [vmem:[%s127 + $0xe8] sm:$0xff]
      %v166 = vld [vmem:[%s127 + $0xf0] sm:$0xff]
      %v167 = vld [vmem:[%s127 + $0xf8] sm:$0xff]
      %v168 = vld [vmem:[%s1] sm:$0x1]
      %vm169 = vcmask 31744
      %v170 = vsel %vm169, %v136, 0.0
      %v171 = vsel %vm169, %v137, 0.0
      %v172 = vadd.f32 %v170, %v171
      %v173 = vsel %vm169, %v138, 0.0
      %v174 = vadd.f32 %v172, %v173
      %v175 = vsel %vm169, %v139, 0.0
      %v176 = vadd.f32 %v174, %v175
      %v177 = vsel %vm169, %v140, 0.0
      %v178 = vadd.f32 %v176, %v177
      %v179 = vsel %vm169, %v141, 0.0
      %v180 = vadd.f32 %v178, %v179
      %v181 = vsel %vm169, %v142, 0.0
      %v182 = vadd.f32 %v180, %v181
      %v183 = vsel %vm169, %v143, 0.0
      %v184 = vadd.f32 %v182, %v183
      %v185 = vsel %vm169, %v144, 0.0
      %v186 = vadd.f32 %v184, %v185
      %v187 = vsel %vm169, %v145, 0.0
      %v188 = vadd.f32 %v186, %v187
      %v189 = vsel %vm169, %v146, 0.0
      %v190 = vadd.f32 %v188, %v189
      %v191 = vsel %vm169, %v147, 0.0
      %v192 = vadd.f32 %v190, %v191
      %v193 = vsel %vm169, %v148, 0.0
      %v194 = vadd.f32 %v192, %v193
      %v195 = vsel %vm169, %v149, 0.0
      %v196 = vadd.f32 %v194, %v195
      %v197 = vsel %vm169, %v150, 0.0
      %v198 = vadd.f32 %v196, %v197
      %v199 = vsel %vm169, %v151, 0.0
      %v200 = vadd.f32 %v198, %v199
      %v201 = vsel %vm169, %v152, 0.0
      %v202 = vadd.f32 %v200, %v201
      %v203 = vsel %vm169, %v153, 0.0
      %v204 = vadd.f32 %v202, %v203
      %v205 = vsel %vm169, %v154, 0.0
      %v206 = vadd.f32 %v204, %v205
      %v207 = vsel %vm169, %v155, 0.0
      %v208 = vadd.f32 %v206, %v207
      %v209 = vsel %vm169, %v156, 0.0
      %v210 = vadd.f32 %v208, %v209
      %v211 = vsel %vm169, %v157, 0.0
      %v212 = vadd.f32 %v210, %v211
      %v213 = vsel %vm169, %v158, 0.0
      %v214 = vadd.f32 %v212, %v213
      %v215 = vsel %vm169, %v159, 0.0
      %v216 = vadd.f32 %v214, %v215
      %v217 = vsel %vm169, %v160, 0.0
      %v218 = vadd.f32 %v216, %v217
      %v219 = vsel %vm169, %v161, 0.0
      %v220 = vadd.f32 %v218, %v219
      %v221 = vsel %vm169, %v162, 0.0
      %v222 = vadd.f32 %v220, %v221
      %v223 = vsel %vm169, %v163, 0.0
      %v224 = vadd.f32 %v222, %v223
      %v225 = vsel %vm169, %v164, 0.0
      %v226 = vadd.f32 %v224, %v225
      %v227 = vsel %vm169, %v165, 0.0
      %v228 = vadd.f32 %v226, %v227
      %v229 = vsel %vm169, %v166, 0.0
      %v230 = vadd.f32 %v228, %v229
      %v231 = vsel %vm169, %v167, 0.0
      %v232 = vadd.f32 %v230, %v231
      %v233 = vrot.slane %v232, 4
      %v234 = vadd.f32 %v232, %v233
      %v235 = vrot.slane %v234, 2
      %v236 = vadd.f32 %v234, %v235
      %v237 = vrot.slane %v236, 1
      %v238 = vadd.f32 %v236, %v237
      %v239 = vadd.f32 %v168, %v238
      %vm240 = vcmask 24576
      %241 = vst.msk [vmem:[%s1] sm:$0x1] %vm240, %v239
      %v242 = vld [vmem:[%s2] sm:$0x1]
      %v243 = vmul.f32 %v136, %v136
      %v244 = vmul.f32 %v137, %v137
      %v245 = vmul.f32 %v138, %v138
      %v246 = vmul.f32 %v139, %v139
      %v247 = vmul.f32 %v140, %v140
      %v248 = vmul.f32 %v141, %v141
      %v249 = vmul.f32 %v142, %v142
      %v250 = vmul.f32 %v143, %v143
      %v251 = vmul.f32 %v144, %v144
      %v252 = vmul.f32 %v145, %v145
      %v253 = vmul.f32 %v146, %v146
      %v254 = vmul.f32 %v147, %v147
      %v255 = vmul.f32 %v148, %v148
      %v256 = vmul.f32 %v149, %v149
      %v257 = vmul.f32 %v150, %v150
      %v258 = vmul.f32 %v151, %v151
      %v259 = vmul.f32 %v152, %v152
      %v260 = vmul.f32 %v153, %v153
      %v261 = vmul.f32 %v154, %v154
      %v262 = vmul.f32 %v155, %v155
      %v263 = vmul.f32 %v156, %v156
      %v264 = vmul.f32 %v157, %v157
      %v265 = vmul.f32 %v158, %v158
      %v266 = vmul.f32 %v159, %v159
      %v267 = vmul.f32 %v160, %v160
      %v268 = vmul.f32 %v161, %v161
      %v269 = vmul.f32 %v162, %v162
      %v270 = vmul.f32 %v163, %v163
      %v271 = vmul.f32 %v164, %v164
      %v272 = vmul.f32 %v165, %v165
      %v273 = vmul.f32 %v166, %v166
      %v274 = vmul.f32 %v167, %v167
      %v275 = vsel %vm169, %v243, 0.0
      %v276 = vsel %vm169, %v244, 0.0
      %v277 = vadd.f32 %v275, %v276
      %v278 = vsel %vm169, %v245, 0.0
      %v279 = vadd.f32 %v277, %v278
      %v280 = vsel %vm169, %v246, 0.0
      %v281 = vadd.f32 %v279, %v280
      %v282 = vsel %vm169, %v247, 0.0
      %v283 = vadd.f32 %v281, %v282
      %v284 = vsel %vm169, %v248, 0.0
      %v285 = vadd.f32 %v283, %v284
      %v286 = vsel %vm169, %v249, 0.0
      %v287 = vadd.f32 %v285, %v286
      %v288 = vsel %vm169, %v250, 0.0
      %v289 = vadd.f32 %v287, %v288
      %v290 = vsel %vm169, %v251, 0.0
      %v291 = vadd.f32 %v289, %v290
      %v292 = vsel %vm169, %v252, 0.0
      %v293 = vadd.f32 %v291, %v292
      %v294 = vsel %vm169, %v253, 0.0
      %v295 = vadd.f32 %v293, %v294
      %v296 = vsel %vm169, %v254, 0.0
      %v297 = vadd.f32 %v295, %v296
      %v298 = vsel %vm169, %v255, 0.0
      %v299 = vadd.f32 %v297, %v298
      %v300 = vsel %vm169, %v256, 0.0
      %v301 = vadd.f32 %v299, %v300
      %v302 = vsel %vm169, %v257, 0.0
      %v303 = vadd.f32 %v301, %v302
      %v304 = vsel %vm169, %v258, 0.0
      %v305 = vadd.f32 %v303, %v304
      %v306 = vsel %vm169, %v259, 0.0
      %v307 = vadd.f32 %v305, %v306
      %v308 = vsel %vm169, %v260, 0.0
      %v309 = vadd.f32 %v307, %v308
      %v310 = vsel %vm169, %v261, 0.0
      %v311 = vadd.f32 %v309, %v310
      %v312 = vsel %vm169, %v262, 0.0
      %v313 = vadd.f32 %v311, %v312
      %v314 = vsel %vm169, %v263, 0.0
      %v315 = vadd.f32 %v313, %v314
      %v316 = vsel %vm169, %v264, 0.0
      %v317 = vadd.f32 %v315, %v316
      %v318 = vsel %vm169, %v265, 0.0
      %v319 = vadd.f32 %v317, %v318
      %v320 = vsel %vm169, %v266, 0.0
      %v321 = vadd.f32 %v319, %v320
      %v322 = vsel %vm169, %v267, 0.0
      %v323 = vadd.f32 %v321, %v322
      %v324 = vsel %vm169, %v268, 0.0
      %v325 = vadd.f32 %v323, %v324
      %v326 = vsel %vm169, %v269, 0.0
      %v327 = vadd.f32 %v325, %v326
      %v328 = vsel %vm169, %v270, 0.0
      %v329 = vadd.f32 %v327, %v328
      %v330 = vsel %vm169, %v271, 0.0
      %v331 = vadd.f32 %v329, %v330
      %v332 = vsel %vm169, %v272, 0.0
      %v333 = vadd.f32 %v331, %v332
      %v334 = vsel %vm169, %v273, 0.0
      %v335 = vadd.f32 %v333, %v334
      %v336 = vsel %vm169, %v274, 0.0
      %v337 = vadd.f32 %v335, %v336
      %v338 = vrot.slane %v337, 4
      %v339 = vadd.f32 %v337, %v338
      %v340 = vrot.slane %v339, 2
      %v341 = vadd.f32 %v339, %v340
      %v342 = vrot.slane %v341, 1
      %v343 = vadd.f32 %v341, %v342
      %v344 = vadd.f32 %v242, %v343
      %345 = vst.msk [vmem:[%s2] sm:$0x1] %vm240, %v344
      // Predicated region
      $region29: #{bottleneck_forward.6} parent=23 // pred_check
        %p346 = pneg %p53
      $region30: #{bottleneck_forward.6} parent=23 // pred_check_branch
        %348 = sbr.rel (%p346) target = $region32
      $region31: #{bottleneck_forward.6} parent=23 // pred_region
        _
      $region32: #{bottleneck_forward.6} parent=23 // pred_fallthru
        _
      // Predicated region
      $region33: #{bottleneck_forward.6} parent=23 // pred_check
        %p349 = pneg %p74
      $region34: #{bottleneck_forward.6} parent=23 // pred_check_branch
        %351 = sbr.rel (%p349) target = $region36
      $region35: #{bottleneck_forward.6} parent=23 // pred_region
        _
      $region36: #{bottleneck_forward.6} parent=23 // pred_fallthru
        _
      // Predicated region
      $region37: #{bottleneck_forward.6} parent=23 // pred_check
        %p352 = pneg %p53
      $region38: #{bottleneck_forward.6} parent=23 // pred_check_branch
        %354 = sbr.rel (%p352) target = $region40
      $region39: #{bottleneck_forward.6} parent=23 // pred_region
        _
      $region40: #{bottleneck_forward.6} parent=23 // pred_fallthru
        _
      // Predicated region
      $region41: #{bottleneck_forward.6} parent=23 // pred_check
        %p355 = pneg %p74
      $region42: #{bottleneck_forward.6} parent=23 // pred_check_branch
        %357 = sbr.rel (%p355) target = $region44
      $region43: #{bottleneck_forward.6} parent=23 // pred_region
        _
      $region44: #{bottleneck_forward.6} parent=23 // pred_fallthru
        _
    $region24: #{bottleneck_forward.6} parent=5 // pred_fallthru
      _
    %p358 = scmp.le.s32.totalorder 2, %s9
    // Predicated region
    $region45: #{bottleneck_forward.6} parent=5 // pred_check
      %p359 = pneg %p358
    $region46: #{bottleneck_forward.6} parent=5 // pred_check_branch
      %361 = sbr.rel (%p359) target = $region48
    $region47: #{bottleneck_forward.6} parent=5 // pred_region
      %s362 = ssub.s32 %s9, 2
    $region48: #{bottleneck_forward.6} parent=5 // pred_fallthru
      _
  $region6: #{bottleneck_forward.6} parent=0 // loop_footer
    %s13 = sadd.s32 1, %s9
  $region7: #{bottleneck_forward.6} parent=0 // loop_footer_branch
    %8 = sbr.rel target = $region3
  $region8: #{bottleneck_forward.6} parent=0 // loop_exit
    _

// kernel: bottleneck_forward.8
$region0: #{bottleneck_forward.8}
  #allocation0 [shape = 'u32[]', space=smem, size = 0x4, offset = 0x4, fixed_abs, tag = 'smem constant byte address 0x4 - core index']
  #allocation1 [shape = 'u32[144,128]{1,0:T(1,128)}', space=vmem, size = 0x12000, scoped, tag = 'internal scratch']
  %s0 = inlined_call_operand.vmem [shape: f32[512,8], index: 0, kind: input, shape index: {}]
  %s1 = inlined_call_operand.vmem [shape: f32[1,8], index: 1, kind: output, shape index: {0}]
  %s2 = inlined_call_operand.vmem [shape: f32[1,8], index: 2, kind: output, shape index: {1}]
  %3 = xla_tuple %s1, %s2
  %s4 = sld [smem:[#allocation0]]
  $region49: #{bottleneck_forward.8} parent=0
    _
  %s6 = ssub.s32 1, %s4
  %s7 = scalar_select 0, %s6, %s4
  loop: start=0, step=1, limit=4
  $region2: #{bottleneck_forward.8} parent=0 // loop_pre_header
    _
  $region3: #{bottleneck_forward.8} parent=0 // loop_header
    %s9 = sphi 0, %s13
    %p10 = scmp.ge.s32.totalorder %s9, 4
    %s19 = sphi 0, %s21
    %s22 = sphi 0, %s19
    %s23 = sphi 0, %s22
    %s39 = sphi 0, %s23
    %s43 = sphi 0, %s43
    %s45 = sphi 0, %s43
    %s46 = sphi 0, %s45
    %s60 = sphi 0, %s46
    %s64 = sphi 0, %s64
    %s66 = sphi 0, %s64
    %s67 = sphi 0, %s66
    %s81 = sphi 0, %s67
  $region4: #{bottleneck_forward.8} parent=0 // loop_header_branch
    %12 = sbr.rel (%p10) target = $region8
  $region5: #{bottleneck_forward.8} parent=0 // loop_body
    %s14 = ssub.s32 %s9, 1
    %s15 = ssub.s32 %s9, 2
    %s16 = sadd.s32 %s9, 1
    %s17 = ssub.s32 %s9, %s16
    %p18 = scmp.eq.s32.totalorder %s17, 0
    %s20 = sadd.s32 %s19, 1
    %s21 = scalar_select %p18, %s19, %s20
    %p24 = pneg %p18
    %p25 = scmp.eq.s32.totalorder %s9, 1
    %p26 = por %p24, %p25
    %p27 = scmp.ne.s32.totalorder %s19, %s22
    %p28 = scmp.eq.s32.totalorder %s9, 0
    %p29 = por %p27, %p28
    %p30 = scmp.ne.s32.totalorder %s19, %s22
    %p31 = scmp.eq.s32.totalorder %s14, 1
    %p32 = por %p30, %p31
    %p33 = scmp.ne.s32.totalorder %s22, %s23
    %p34 = scmp.eq.s32.totalorder %s14, 0
    %p35 = por %p33, %p34
    %p36 = scmp.ne.s32.totalorder %s22, %s23
    %p37 = scmp.eq.s32.totalorder %s15, 1
    %p38 = por %p36, %p37
    %p40 = scmp.ne.s32.totalorder %s23, %s39
    %p41 = scmp.eq.s32.totalorder %s15, 0
    %p42 = por %p40, %p41
    %s44 = sadd.s32 %s43, 1
    %p47 = scmp.eq.s32.totalorder %s9, 1
    %p48 = scmp.ne.s32.totalorder %s43, %s45
    %p49 = scmp.eq.s32.totalorder %s9, 0
    %p50 = por %p48, %p49
    %p51 = scmp.ne.s32.totalorder %s43, %s45
    %p52 = scmp.eq.s32.totalorder %s14, 1
    %p53 = por %p51, %p52
    %p54 = scmp.ne.s32.totalorder %s45, %s46
    %p55 = scmp.eq.s32.totalorder %s14, 0
    %p56 = por %p54, %p55
    %p57 = scmp.ne.s32.totalorder %s45, %s46
    %p58 = scmp.eq.s32.totalorder %s15, 1
    %p59 = por %p57, %p58
    %p61 = scmp.ne.s32.totalorder %s46, %s60
    %p62 = scmp.eq.s32.totalorder %s15, 0
    %p63 = por %p61, %p62
    %s65 = sadd.s32 %s64, 1
    %p68 = scmp.eq.s32.totalorder %s9, 1
    %p69 = scmp.ne.s32.totalorder %s64, %s66
    %p70 = scmp.eq.s32.totalorder %s9, 0
    %p71 = por %p69, %p70
    %p72 = scmp.ne.s32.totalorder %s64, %s66
    %p73 = scmp.eq.s32.totalorder %s14, 1
    %p74 = por %p72, %p73
    %p75 = scmp.ne.s32.totalorder %s66, %s67
    %p76 = scmp.eq.s32.totalorder %s14, 0
    %p77 = por %p75, %p76
    %p78 = scmp.ne.s32.totalorder %s66, %s67
    %p79 = scmp.eq.s32.totalorder %s15, 1
    %p80 = por %p78, %p79
    %p82 = scmp.ne.s32.totalorder %s67, %s81
    %p83 = scmp.eq.s32.totalorder %s15, 0
    %p84 = por %p82, %p83
    %p85 = scmp.le.s32.totalorder 1, %s9
    %p86 = scmp.lt.s32.totalorder %s9, 3
    %p87 = pnand %p85, %p86
    %p88 = pneg %p87
    // Predicated region
    $region9: #{bottleneck_forward.8} parent=5 // pred_check
      _
    $region10: #{bottleneck_forward.8} parent=5 // pred_check_branch
      %90 = sbr.rel (%p87) target = $region12
    $region11: #{bottleneck_forward.8} parent=5 // pred_region
      %s91 = ssub.s32 %s9, 1
    $region12: #{bottleneck_forward.8} parent=5 // pred_fallthru
      _
    %p92 = scmp.lt.s32.totalorder %s9, 2
    // Predicated region
    $region13: #{bottleneck_forward.8} parent=5 // pred_check
      %p93 = pneg %p92
    $region14: #{bottleneck_forward.8} parent=5 // pred_check_branch
      %95 = sbr.rel (%p93) target = $region16
    $region15: #{bottleneck_forward.8} parent=5 // pred_region
      // Predicated region
      $region17: #{bottleneck_forward.8} parent=15 // pred_check
        %p96 = pneg %p29
      $region18: #{bottleneck_forward.8} parent=15 // pred_check_branch
        %98 = sbr.rel (%p96) target = $region20
      $region19: #{bottleneck_forward.8} parent=15 // pred_region
        %s99 = smul.u32 32, %s9
        %p100 = scmp.lt.s32.totalorder %s99, 63
        %s101 = scalar_select %p100, %s99, 63
        %s102 = smul.addr %s101, 8
        %s103 = scalar_lea.vmem %s0, %s102
        %s104 = smul.u32 32, %s9
      $region20: #{bottleneck_forward.8} parent=15 // pred_fallthru
        _
    $region16: #{bottleneck_forward.8} parent=5 // pred_fallthru
      _
    %p105 = scmp.le.s32.totalorder 1, %s9
    %p106 = scmp.lt.s32.totalorder %s9, 3
    %p107 = pnand %p105, %p106
    %p108 = pneg %p107
    // Predicated region
    $region21: #{bottleneck_forward.8} parent=5 // pred_check
      _
    $region22: #{bottleneck_forward.8} parent=5 // pred_check_branch
      %110 = sbr.rel (%p107) target = $region24
    $region23: #{bottleneck_forward.8} parent=5 // pred_region
      %s111 = ssub.s32 %s9, 1
      %s112 = smul.u32 32, %s14
      %p113 = scmp.lt.s32.totalorder %s112, 63
      %s114 = scalar_select %p113, %s112, 63
      %s115 = smul.addr %s114, 8
      %s116 = scalar_lea.vmem %s0, %s115
      %p117 = pneg %p35
      %p118 = pneg %p32
      %p119 = pneg %p56
      %p120 = pneg %p53
      %p121 = pneg %p77
      %p122 = pneg %p74
      %s123 = smul.u32 32, %s14
      %p124 = scmp.lt.s32.totalorder %s123, 63
      %s125 = scalar_select %p124, %s123, 63
      %s126 = smul.addr %s125, 8
      %s127 = scalar_lea.vmem %s0, %s126
      %s128 = smul.u32 32, %s14
      %p129 = scmp.eq.s32.totalorder %s14, 0
      // Predicated region
      $region25: #{bottleneck_forward.8} parent=23 // pred_check
        %p130 = pneg %p129
      $region26: #{bottleneck_forward.8} parent=23 // pred_check_branch
        %132 = sbr.rel (%p130) target = $region28
      $region27: #{bottleneck_forward.8} parent=23 // pred_region
        %vm133 = vcmask 57344
        %134 = vst.msk [vmem:[%s1] sm:$0x1] %vm133, 0.0
        %135 = vst.msk [vmem:[%s2] sm:$0x1] %vm133, 0.0
      $region28: #{bottleneck_forward.8} parent=23 // pred_fallthru
        _
      %v136 = vld [vmem:[%s127] sm:$0xff]
      %v137 = vld [vmem:[%s127 + $0x8] sm:$0xff]
      %v138 = vld [vmem:[%s127 + $0x10] sm:$0xff]
      %v139 = vld [vmem:[%s127 + $0x18] sm:$0xff]
      %v140 = vld [vmem:[%s127 + $0x20] sm:$0xff]
      %v141 = vld [vmem:[%s127 + $0x28] sm:$0xff]
      %v142 = vld [vmem:[%s127 + $0x30] sm:$0xff]
      %v143 = vld [vmem:[%s127 + $0x38] sm:$0xff]
      %v144 = vld [vmem:[%s127 + $0x40] sm:$0xff]
      %v145 = vld [vmem:[%s127 + $0x48] sm:$0xff]
      %v146 = vld [vmem:[%s127 + $0x50] sm:$0xff]
      %v147 = vld [vmem:[%s127 + $0x58] sm:$0xff]
      %v148 = vld [vmem:[%s127 + $0x60] sm:$0xff]
      %v149 = vld [vmem:[%s127 + $0x68] sm:$0xff]
      %v150 = vld [vmem:[%s127 + $0x70] sm:$0xff]
      %v151 = vld [vmem:[%s127 + $0x78] sm:$0xff]
      %v152 = vld [vmem:[%s127 + $0x80] sm:$0xff]
      %v153 = vld [vmem:[%s127 + $0x88] sm:$0xff]
      %v154 = vld [vmem:[%s127 + $0x90] sm:$0xff]
      %v155 = vld [vmem:[%s127 + $0x98] sm:$0xff]
      %v156 = vld [vmem:[%s127 + $0xa0] sm:$0xff]
      %v157 = vld [vmem:[%s127 + $0xa8] sm:$0xff]
      %v158 = vld [vmem:[%s127 + $0xb0] sm:$0xff]
      %v159 = vld [vmem:[%s127 + $0xb8] sm:$0xff]
      %v160 = vld [vmem:[%s127 + $0xc0] sm:$0xff]
      %v161 = vld [vmem:[%s127 + $0xc8] sm:$0xff]
      %v162 = vld [vmem:[%s127 + $0xd0] sm:$0xff]
      %v163 = vld [vmem:[%s127 + $0xd8] sm:$0xff]
      %v164 = vld [vmem:[%s127 + $0xe0] sm:$0xff]
      %v165 = vld [vmem:[%s127 + $0xe8] sm:$0xff]
      %v166 = vld [vmem:[%s127 + $0xf0] sm:$0xff]
      %v167 = vld [vmem:[%s127 + $0xf8] sm:$0xff]
      %v168 = vld [vmem:[%s1] sm:$0x1]
      %vm169 = vcmask 64512
      %v170 = vsel %vm169, %v136, 0.0
      %v171 = vsel %vm169, %v137, 0.0
      %v172 = vadd.f32 %v170, %v171
      %v173 = vsel %vm169, %v138, 0.0
      %v174 = vadd.f32 %v172, %v173
      %v175 = vsel %vm169, %v139, 0.0
      %v176 = vadd.f32 %v174, %v175
      %v177 = vsel %vm169, %v140, 0.0
      %v178 = vadd.f32 %v176, %v177
      %v179 = vsel %vm169, %v141, 0.0
      %v180 = vadd.f32 %v178, %v179
      %v181 = vsel %vm169, %v142, 0.0
      %v182 = vadd.f32 %v180, %v181
      %v183 = vsel %vm169, %v143, 0.0
      %v184 = vadd.f32 %v182, %v183
      %v185 = vsel %vm169, %v144, 0.0
      %v186 = vadd.f32 %v184, %v185
      %v187 = vsel %vm169, %v145, 0.0
      %v188 = vadd.f32 %v186, %v187
      %v189 = vsel %vm169, %v146, 0.0
      %v190 = vadd.f32 %v188, %v189
      %v191 = vsel %vm169, %v147, 0.0
      %v192 = vadd.f32 %v190, %v191
      %v193 = vsel %vm169, %v148, 0.0
      %v194 = vadd.f32 %v192, %v193
      %v195 = vsel %vm169, %v149, 0.0
      %v196 = vadd.f32 %v194, %v195
      %v197 = vsel %vm169, %v150, 0.0
      %v198 = vadd.f32 %v196, %v197
      %v199 = vsel %vm169, %v151, 0.0
      %v200 = vadd.f32 %v198, %v199
      %v201 = vsel %vm169, %v152, 0.0
      %v202 = vadd.f32 %v200, %v201
      %v203 = vsel %vm169, %v153, 0.0
      %v204 = vadd.f32 %v202, %v203
      %v205 = vsel %vm169, %v154, 0.0
      %v206 = vadd.f32 %v204, %v205
      %v207 = vsel %vm169, %v155, 0.0
      %v208 = vadd.f32 %v206, %v207
      %v209 = vsel %vm169, %v156, 0.0
      %v210 = vadd.f32 %v208, %v209
      %v211 = vsel %vm169, %v157, 0.0
      %v212 = vadd.f32 %v210, %v211
      %v213 = vsel %vm169, %v158, 0.0
      %v214 = vadd.f32 %v212, %v213
      %v215 = vsel %vm169, %v159, 0.0
      %v216 = vadd.f32 %v214, %v215
      %v217 = vsel %vm169, %v160, 0.0
      %v218 = vadd.f32 %v216, %v217
      %v219 = vsel %vm169, %v161, 0.0
      %v220 = vadd.f32 %v218, %v219
      %v221 = vsel %vm169, %v162, 0.0
      %v222 = vadd.f32 %v220, %v221
      %v223 = vsel %vm169, %v163, 0.0
      %v224 = vadd.f32 %v222, %v223
      %v225 = vsel %vm169, %v164, 0.0
      %v226 = vadd.f32 %v224, %v225
      %v227 = vsel %vm169, %v165, 0.0
      %v228 = vadd.f32 %v226, %v227
      %v229 = vsel %vm169, %v166, 0.0
      %v230 = vadd.f32 %v228, %v229
      %v231 = vsel %vm169, %v167, 0.0
      %v232 = vadd.f32 %v230, %v231
      %v233 = vrot.slane %v232, 4
      %v234 = vadd.f32 %v232, %v233
      %v235 = vrot.slane %v234, 2
      %v236 = vadd.f32 %v234, %v235
      %v237 = vrot.slane %v236, 1
      %v238 = vadd.f32 %v236, %v237
      %v239 = vadd.f32 %v168, %v238
      %vm240 = vcmask 57344
      %241 = vst.msk [vmem:[%s1] sm:$0x1] %vm240, %v239
      %v242 = vld [vmem:[%s2] sm:$0x1]
      %v243 = vmul.f32 %v136, %v136
      %v244 = vmul.f32 %v137, %v137
      %v245 = vmul.f32 %v138, %v138
      %v246 = vmul.f32 %v139, %v139
      %v247 = vmul.f32 %v140, %v140
      %v248 = vmul.f32 %v141, %v141
      %v249 = vmul.f32 %v142, %v142
      %v250 = vmul.f32 %v143, %v143
      %v251 = vmul.f32 %v144, %v144
      %v252 = vmul.f32 %v145, %v145
      %v253 = vmul.f32 %v146, %v146
      %v254 = vmul.f32 %v147, %v147
      %v255 = vmul.f32 %v148, %v148
      %v256 = vmul.f32 %v149, %v149
      %v257 = vmul.f32 %v150, %v150
      %v258 = vmul.f32 %v151, %v151
      %v259 = vmul.f32 %v152, %v152
      %v260 = vmul.f32 %v153, %v153
      %v261 = vmul.f32 %v154, %v154
      %v262 = vmul.f32 %v155, %v155
      %v263 = vmul.f32 %v156, %v156
      %v264 = vmul.f32 %v157, %v157
      %v265 = vmul.f32 %v158, %v158
      %v266 = vmul.f32 %v159, %v159
      %v267 = vmul.f32 %v160, %v160
      %v268 = vmul.f32 %v161, %v161
      %v269 = vmul.f32 %v162, %v162
      %v270 = vmul.f32 %v163, %v163
      %v271 = vmul.f32 %v164, %v164
      %v272 = vmul.f32 %v165, %v165
      %v273 = vmul.f32 %v166, %v166
      %v274 = vmul.f32 %v167, %v167
      %v275 = vsel %vm169, %v243, 0.0
      %v276 = vsel %vm169, %v244, 0.0
      %v277 = vadd.f32 %v275, %v276
      %v278 = vsel %vm169, %v245, 0.0
      %v279 = vadd.f32 %v277, %v278
      %v280 = vsel %vm169, %v246, 0.0
      %v281 = vadd.f32 %v279, %v280
      %v282 = vsel %vm169, %v247, 0.0
      %v283 = vadd.f32 %v281, %v282
      %v284 = vsel %vm169, %v248, 0.0
      %v285 = vadd.f32 %v283, %v284
      %v286 = vsel %vm169, %v249, 0.0
      %v287 = vadd.f32 %v285, %v286
      %v288 = vsel %vm169, %v250, 0.0
      %v289 = vadd.f32 %v287, %v288
      %v290 = vsel %vm169, %v251, 0.0
      %v291 = vadd.f32 %v289, %v290
      %v292 = vsel %vm169, %v252, 0.0
      %v293 = vadd.f32 %v291, %v292
      %v294 = vsel %vm169, %v253, 0.0
      %v295 = vadd.f32 %v293, %v294
      %v296 = vsel %vm169, %v254, 0.0
      %v297 = vadd.f32 %v295, %v296
      %v298 = vsel %vm169, %v255, 0.0
      %v299 = vadd.f32 %v297, %v298
      %v300 = vsel %vm169, %v256, 0.0
      %v301 = vadd.f32 %v299, %v300
      %v302 = vsel %vm169, %v257, 0.0
      %v303 = vadd.f32 %v301, %v302
      %v304 = vsel %vm169, %v258, 0.0
      %v305 = vadd.f32 %v303, %v304
      %v306 = vsel %vm169, %v259, 0.0
      %v307 = vadd.f32 %v305, %v306
      %v308 = vsel %vm169, %v260, 0.0
      %v309 = vadd.f32 %v307, %v308
      %v310 = vsel %vm169, %v261, 0.0
      %v311 = vadd.f32 %v309, %v310
      %v312 = vsel %vm169, %v262, 0.0
      %v313 = vadd.f32 %v311, %v312
      %v314 = vsel %vm169, %v263, 0.0
      %v315 = vadd.f32 %v313, %v314
      %v316 = vsel %vm169, %v264, 0.0
      %v317 = vadd.f32 %v315, %v316
      %v318 = vsel %vm169, %v265, 0.0
      %v319 = vadd.f32 %v317, %v318
      %v320 = vsel %vm169, %v266, 0.0
      %v321 = vadd.f32 %v319, %v320
      %v322 = vsel %vm169, %v267, 0.0
      %v323 = vadd.f32 %v321, %v322
      %v324 = vsel %vm169, %v268, 0.0
      %v325 = vadd.f32 %v323, %v324
      %v326 = vsel %vm169, %v269, 0.0
      %v327 = vadd.f32 %v325, %v326
      %v328 = vsel %vm169, %v270, 0.0
      %v329 = vadd.f32 %v327, %v328
      %v330 = vsel %vm169, %v271, 0.0
      %v331 = vadd.f32 %v329, %v330
      %v332 = vsel %vm169, %v272, 0.0
      %v333 = vadd.f32 %v331, %v332
      %v334 = vsel %vm169, %v273, 0.0
      %v335 = vadd.f32 %v333, %v334
      %v336 = vsel %vm169, %v274, 0.0
      %v337 = vadd.f32 %v335, %v336
      %v338 = vrot.slane %v337, 4
      %v339 = vadd.f32 %v337, %v338
      %v340 = vrot.slane %v339, 2
      %v341 = vadd.f32 %v339, %v340
      %v342 = vrot.slane %v341, 1
      %v343 = vadd.f32 %v341, %v342
      %v344 = vadd.f32 %v242, %v343
      %345 = vst.msk [vmem:[%s2] sm:$0x1] %vm240, %v344
      // Predicated region
      $region29: #{bottleneck_forward.8} parent=23 // pred_check
        %p346 = pneg %p53
      $region30: #{bottleneck_forward.8} parent=23 // pred_check_branch
        %348 = sbr.rel (%p346) target = $region32
      $region31: #{bottleneck_forward.8} parent=23 // pred_region
        _
      $region32: #{bottleneck_forward.8} parent=23 // pred_fallthru
        _
      // Predicated region
      $region33: #{bottleneck_forward.8} parent=23 // pred_check
        %p349 = pneg %p74
      $region34: #{bottleneck_forward.8} parent=23 // pred_check_branch
        %351 = sbr.rel (%p349) target = $region36
      $region35: #{bottleneck_forward.8} parent=23 // pred_region
        _
      $region36: #{bottleneck_forward.8} parent=23 // pred_fallthru
        _
      // Predicated region
      $region37: #{bottleneck_forward.8} parent=23 // pred_check
        %p352 = pneg %p53
      $region38: #{bottleneck_forward.8} parent=23 // pred_check_branch
        %354 = sbr.rel (%p352) target = $region40
      $region39: #{bottleneck_forward.8} parent=23 // pred_region
        _
      $region40: #{bottleneck_forward.8} parent=23 // pred_fallthru
        _
      // Predicated region
      $region41: #{bottleneck_forward.8} parent=23 // pred_check
        %p355 = pneg %p74
      $region42: #{bottleneck_forward.8} parent=23 // pred_check_branch
        %357 = sbr.rel (%p355) target = $region44
      $region43: #{bottleneck_forward.8} parent=23 // pred_region
        _
      $region44: #{bottleneck_forward.8} parent=23 // pred_fallthru
        _
    $region24: #{bottleneck_forward.8} parent=5 // pred_fallthru
      _
    %p358 = scmp.le.s32.totalorder 2, %s9
    // Predicated region
    $region45: #{bottleneck_forward.8} parent=5 // pred_check
      %p359 = pneg %p358
    $region46: #{bottleneck_forward.8} parent=5 // pred_check_branch
      %361 = sbr.rel (%p359) target = $region48
    $region47: #{bottleneck_forward.8} parent=5 // pred_region
      %s362 = ssub.s32 %s9, 2
    $region48: #{bottleneck_forward.8} parent=5 // pred_fallthru
      _
  $region6: #{bottleneck_forward.8} parent=0 // loop_footer
    %s13 = sadd.s32 1, %s9
  $region7: #{bottleneck_forward.8} parent=0 // loop_footer_branch
    %8 = sbr.rel target = $region3
  $region8: #{bottleneck_forward.8} parent=0 // loop_exit
    _

// kernel: bottleneck_forward.7
$region0: #{bottleneck_forward.7}
  #allocation0 [shape = 'u32[]', space=smem, size = 0x4, offset = 0x4, fixed_abs, tag = 'smem constant byte address 0x4 - core index']
  #allocation1 [shape = 'u32[144,128]{1,0:T(1,128)}', space=vmem, size = 0x12000, scoped, tag = 'internal scratch']
  %s0 = inlined_call_operand.vmem [shape: f32[1,4], index: 0, kind: input, shape index: {}]
  %s1 = inlined_call_operand.vmem [shape: f32[1,4], index: 1, kind: input, shape index: {}]
  %s2 = inlined_call_operand.vmem [shape: f32[3,16,18,1], index: 2, kind: input, shape index: {}]
  %s3 = inlined_call_operand.vmem [shape: f32[6,16,18,4], index: 3, kind: input, shape index: {}]
  %s4 = inlined_call_operand.vmem [shape: bf16[36,128], index: 4, kind: input, shape index: {}]
  %s5 = inlined_call_operand.vmem [shape: f32[1,128], index: 5, kind: input, shape index: {}]
  %s6 = inlined_call_operand.vmem [shape: f32[2,256,128], index: 6, kind: output, shape index: {}]
  %s7 = sld [smem:[#allocation0]]
  $region133: #{bottleneck_forward.7} parent=0
    _
  %s9 = ssub.s32 1, %s7
  %s10 = scalar_select 0, %s9, %s7
  $region1: #{bottleneck_forward.7} parent=0
    #allocation2 [shape = 'u8[589824]{0}', space=vmem, size = 0x90000, scoped, tag = 'input window, operand 2']
    #allocation3 [shape = 'u8[589824]{0}', space=vmem, size = 0x90000, scoped, tag = 'input window, operand 3']
    loop: start=0, step=1, limit=6
    $region2: #{bottleneck_forward.7} parent=1 // loop_pre_header
      _
    $region3: #{bottleneck_forward.7} parent=1 // loop_header
      %s12 = sphi 0, %s16
      %p13 = scmp.ge.s32.totalorder %s12, 6
      %s19 = sphi 0, %s31
      %s20 = sphi 0, %s27
      %s21 = sphi 0, %s19
      %s22 = sphi 0, %s20
      %s23 = sphi 0, %s21
      %s24 = sphi 0, %s22
      %s32 = sphi 0, %s32
      %s34 = sphi 0, %s32
      %s35 = sphi 0, %s34
      %s49 = sphi 0, %s35
      %s53 = sphi 0, %s53
      %s55 = sphi 0, %s53
      %s56 = sphi 0, %s55
      %s70 = sphi 0, %s56
      %s76 = sphi 0, %s78
      %s79 = sphi 0, %s76
      %s80 = sphi 0, %s79
      %s96 = sphi 0, %s80
      %s104 = sphi 0, %s106
      %s107 = sphi 0, %s104
      %s108 = sphi 0, %s107
      %s124 = sphi 0, %s108
      %s128 = sphi 0, %s128
      %s130 = sphi 0, %s128
      %s131 = sphi 0, %s130
      %s145 = sphi 0, %s131
      %s149 = sphi 0, %s149
      %s151 = sphi 0, %s149
      %s152 = sphi 0, %s151
      %s166 = sphi 0, %s152
      %s174 = sphi 0, %s176
      %s177 = sphi 0, %s174
      %s178 = sphi 0, %s177
      %s194 = sphi 0, %s178
    $region4: #{bottleneck_forward.7} parent=1 // loop_header_branch
      %15 = sbr.rel (%p13) target = $region8
    $region5: #{bottleneck_forward.7} parent=1 // loop_body
      %s17 = ssub.s32 %s12, 1
      %s18 = ssub.s32 %s12, 2
      %s25 = sadd.s32 1, %s20
      %p26 = scmp.ge.s32.totalorder %s25, 2
      %s27 = scalar_select %p26, 0, %s25
      %s28 = sadd.s32 1, %s19
      %s29 = scalar_select %p26, %s28, %s19
      %p30 = scmp.ge.s32.totalorder %s29, 2
      %s31 = scalar_select %p30, 0, %s29
      %s33 = sadd.s32 %s32, 1
      %p36 = scmp.eq.s32.totalorder %s12, 3
      %p37 = scmp.ne.s32.totalorder %s32, %s34
      %p38 = scmp.eq.s32.totalorder %s12, 0
      %p39 = por %p37, %p38
      %p40 = scmp.ne.s32.totalorder %s32, %s34
      %p41 = scmp.eq.s32.totalorder %s17, 3
      %p42 = por %p40, %p41
      %p43 = scmp.ne.s32.totalorder %s34, %s35
      %p44 = scmp.eq.s32.totalorder %s17, 0
      %p45 = por %p43, %p44
      %p46 = scmp.ne.s32.totalorder %s34, %s35
      %p47 = scmp.eq.s32.totalorder %s18, 3
      %p48 = por %p46, %p47
      %p50 = scmp.ne.s32.totalorder %s35, %s49
      %p51 = scmp.eq.s32.totalorder %s18, 0
      %p52 = por %p50, %p51
      %s54 = sadd.s32 %s53, 1
      %p57 = scmp.eq.s32.totalorder %s12, 3
      %p58 = scmp.ne.s32.totalorder %s53, %s55
      %p59 = scmp.eq.s32.totalorder %s12, 0
      %p60 = por %p58, %p59
      %p61 = scmp.ne.s32.totalorder %s53, %s55
      %p62 = scmp.eq.s32.totalorder %s17, 3
      %p63 = por %p61, %p62
      %p64 = scmp.ne.s32.totalorder %s55, %s56
      %p65 = scmp.eq.s32.totalorder %s17, 0
      %p66 = por %p64, %p65
      %p67 = scmp.ne.s32.totalorder %s55, %s56
      %p68 = scmp.eq.s32.totalorder %s18, 3
      %p69 = por %p67, %p68
      %p71 = scmp.ne.s32.totalorder %s56, %s70
      %p72 = scmp.eq.s32.totalorder %s18, 0
      %p73 = por %p71, %p72
      %s74 = ssub.s32 %s20, %s27
      %p75 = scmp.eq.s32.totalorder %s74, 0
      %s77 = sadd.s32 %s76, 1
      %s78 = scalar_select %p75, %s76, %s77
      %p81 = pneg %p75
      %p82 = scmp.eq.s32.totalorder %s12, 3
      %p83 = por %p81, %p82
      %p84 = scmp.ne.s32.totalorder %s76, %s79
      %p85 = scmp.eq.s32.totalorder %s12, 0
      %p86 = por %p84, %p85
      %p87 = scmp.ne.s32.totalorder %s76, %s79
      %p88 = scmp.eq.s32.totalorder %s17, 3
      %p89 = por %p87, %p88
      %p90 = scmp.ne.s32.totalorder %s79, %s80
      %p91 = scmp.eq.s32.totalorder %s17, 0
      %p92 = por %p90, %p91
      %p93 = scmp.ne.s32.totalorder %s79, %s80
      %p94 = scmp.eq.s32.totalorder %s18, 3
      %p95 = por %p93, %p94
      %p97 = scmp.ne.s32.totalorder %s80, %s96
      %p98 = scmp.eq.s32.totalorder %s18, 0
      %p99 = por %p97, %p98
      %s100 = ssub.s32 %s19, %s31
      %s101 = ssub.s32 %s20, %s27
      %s102 = sor.u32 %s100, %s101
      %p103 = scmp.eq.s32.totalorder %s102, 0
      %s105 = sadd.s32 %s104, 1
      %s106 = scalar_select %p103, %s104, %s105
      %p109 = pneg %p103
      %p110 = scmp.eq.s32.totalorder %s12, 3
      %p111 = por %p109, %p110
      %p112 = scmp.ne.s32.totalorder %s104, %s107
      %p113 = scmp.eq.s32.totalorder %s12, 0
      %p114 = por %p112, %p113
      %p115 = scmp.ne.s32.totalorder %s104, %s107
      %p116 = scmp.eq.s32.totalorder %s17, 3
      %p117 = por %p115, %p116
      %p118 = scmp.ne.s32.totalorder %s107, %s108
      %p119 = scmp.eq.s32.totalorder %s17, 0
      %p120 = por %p118, %p119
      %p121 = scmp.ne.s32.totalorder %s107, %s108
      %p122 = scmp.eq.s32.totalorder %s18, 3
      %p123 = por %p121, %p122
      %p125 = scmp.ne.s32.totalorder %s108, %s124
      %p126 = scmp.eq.s32.totalorder %s18, 0
      %p127 = por %p125, %p126
      %s129 = sadd.s32 %s128, 1
      %p132 = scmp.eq.s32.totalorder %s12, 3
      %p133 = scmp.ne.s32.totalorder %s128, %s130
      %p134 = scmp.eq.s32.totalorder %s12, 0
      %p135 = por %p133, %p134
      %p136 = scmp.ne.s32.totalorder %s128, %s130
      %p137 = scmp.eq.s32.totalorder %s17, 3
      %p138 = por %p136, %p137
      %p139 = scmp.ne.s32.totalorder %s130, %s131
      %p140 = scmp.eq.s32.totalorder %s17, 0
      %p141 = por %p139, %p140
      %p142 = scmp.ne.s32.totalorder %s130, %s131
      %p143 = scmp.eq.s32.totalorder %s18, 3
      %p144 = por %p142, %p143
      %p146 = scmp.ne.s32.totalorder %s131, %s145
      %p147 = scmp.eq.s32.totalorder %s18, 0
      %p148 = por %p146, %p147
      %s150 = sadd.s32 %s149, 1
      %p153 = scmp.eq.s32.totalorder %s12, 3
      %p154 = scmp.ne.s32.totalorder %s149, %s151
      %p155 = scmp.eq.s32.totalorder %s12, 0
      %p156 = por %p154, %p155
      %p157 = scmp.ne.s32.totalorder %s149, %s151
      %p158 = scmp.eq.s32.totalorder %s17, 3
      %p159 = por %p157, %p158
      %p160 = scmp.ne.s32.totalorder %s151, %s152
      %p161 = scmp.eq.s32.totalorder %s17, 0
      %p162 = por %p160, %p161
      %p163 = scmp.ne.s32.totalorder %s151, %s152
      %p164 = scmp.eq.s32.totalorder %s18, 3
      %p165 = por %p163, %p164
      %p167 = scmp.ne.s32.totalorder %s152, %s166
      %p168 = scmp.eq.s32.totalorder %s18, 0
      %p169 = por %p167, %p168
      %s170 = ssub.s32 %s19, %s31
      %s171 = ssub.s32 %s20, %s27
      %s172 = sor.u32 %s170, %s171
      %p173 = scmp.eq.s32.totalorder %s172, 0
      %s175 = sadd.s32 %s174, 1
      %s176 = scalar_select %p173, %s174, %s175
      %p179 = pneg %p173
      %p180 = scmp.eq.s32.totalorder %s12, 3
      %p181 = por %p179, %p180
      %p182 = scmp.ne.s32.totalorder %s174, %s177
      %p183 = scmp.eq.s32.totalorder %s12, 0
      %p184 = por %p182, %p183
      %p185 = scmp.ne.s32.totalorder %s174, %s177
      %p186 = scmp.eq.s32.totalorder %s17, 3
      %p187 = por %p185, %p186
      %p188 = scmp.ne.s32.totalorder %s177, %s178
      %p189 = scmp.eq.s32.totalorder %s17, 0
      %p190 = por %p188, %p189
      %p191 = scmp.ne.s32.totalorder %s177, %s178
      %p192 = scmp.eq.s32.totalorder %s18, 3
      %p193 = por %p191, %p192
      %p195 = scmp.ne.s32.totalorder %s178, %s194
      %p196 = scmp.eq.s32.totalorder %s18, 0
      %p197 = por %p195, %p196
      %p198 = scmp.le.s32.totalorder 1, %s12
      %p199 = scmp.lt.s32.totalorder %s12, 5
      %p200 = pnand %p198, %p199
      %p201 = pneg %p200
      // Predicated region
      $region9: #{bottleneck_forward.7} parent=5 // pred_check
        _
      $region10: #{bottleneck_forward.7} parent=5 // pred_check_branch
        %203 = sbr.rel (%p200) target = $region12
      $region11: #{bottleneck_forward.7} parent=5 // pred_region
        %s204 = ssub.s32 %s12, 1
        // Predicated region
        $region13: #{bottleneck_forward.7} parent=11 // pred_check
          %p205 = pneg %p45
        $region14: #{bottleneck_forward.7} parent=11 // pred_check_branch
          %207 = sbr.rel (%p205) target = $region16
        $region15: #{bottleneck_forward.7} parent=11 // pred_region
          _
        $region16: #{bottleneck_forward.7} parent=11 // pred_fallthru
          _
        // Predicated region
        $region17: #{bottleneck_forward.7} parent=11 // pred_check
          %p208 = pneg %p66
        $region18: #{bottleneck_forward.7} parent=11 // pred_check_branch
          %210 = sbr.rel (%p208) target = $region20
        $region19: #{bottleneck_forward.7} parent=11 // pred_region
          _
        $region20: #{bottleneck_forward.7} parent=11 // pred_fallthru
          _
        // Predicated region
        $region21: #{bottleneck_forward.7} parent=11 // pred_check
          %p211 = pneg %p141
        $region22: #{bottleneck_forward.7} parent=11 // pred_check_branch
          %213 = sbr.rel (%p211) target = $region24
        $region23: #{bottleneck_forward.7} parent=11 // pred_region
          _
        $region24: #{bottleneck_forward.7} parent=11 // pred_fallthru
          _
        // Predicated region
        $region25: #{bottleneck_forward.7} parent=11 // pred_check
          %p214 = pneg %p162
        $region26: #{bottleneck_forward.7} parent=11 // pred_check_branch
          %216 = sbr.rel (%p214) target = $region28
        $region27: #{bottleneck_forward.7} parent=11 // pred_region
          _
        $region28: #{bottleneck_forward.7} parent=11 // pred_fallthru
          _
      $region12: #{bottleneck_forward.7} parent=5 // pred_fallthru
        _
      %p217 = scmp.lt.s32.totalorder %s12, 4
      // Predicated region
      $region29: #{bottleneck_forward.7} parent=5 // pred_check
        %p218 = pneg %p217
      $region30: #{bottleneck_forward.7} parent=5 // pred_check_branch
        %220 = sbr.rel (%p218) target = $region32
      $region31: #{bottleneck_forward.7} parent=5 // pred_region
        // Predicated region
        $region33: #{bottleneck_forward.7} parent=31 // pred_check
          %p221 = pneg %p86
        $region34: #{bottleneck_forward.7} parent=31 // pred_check_branch
          %223 = sbr.rel (%p221) target = $region36
        $region35: #{bottleneck_forward.7} parent=31 // pred_region
          %s224 = sand.u32 %s76, 1
          %s225 = sand.u32 %s76, 1
          %s226 = smul.addr %s225, 576
          %s227 = scalar_lea.vmem [#allocation2], %s226
          %s228 = smul.u32 8, %s20
          %s229 = smul.addr %s228, 3
          %s230 = smul.addr %s229, 8
          %s231 = scalar_lea.vmem %s2, %s230
          // Predicated region
          $region37: #{bottleneck_forward.7} parent=35 // pred_check
            _
          $region38: #{bottleneck_forward.7} parent=35 // pred_check_branch
            %233 = sbr.rel (0) target = $region40
          $region39: #{bottleneck_forward.7} parent=35 // pred_region
            // Predicated region
            $region41: #{bottleneck_forward.7} parent=39 // pred_check
              _
            $region42: #{bottleneck_forward.7} parent=39 // pred_check_branch
              %235 = sbr.rel (0) target = $region44
            $region43: #{bottleneck_forward.7} parent=39 // pred_region
              // Predicated region
              $region56: #{bottleneck_forward.7} parent=43 // pred_check
                _
              $region57: #{bottleneck_forward.7} parent=43 // pred_check_branch
                %392 = sbr.rel (0) target = $region59
              $region58: #{bottleneck_forward.7} parent=43 // pred_region
                loop: start=0, step=1, limit=1
                $region60: #{bottleneck_forward.7} parent=58 // loop_pre_header
                  _
                $region61: #{bottleneck_forward.7} parent=58 // loop_header
                  %s394 = sphi 0, %s398
                  %p395 = scmp.ge.s32.totalorder %s394, 1
                  %s399 = sphi %s231, %s231
                  %s400 = sphi %s227, %s227
                $region62: #{bottleneck_forward.7} parent=58 // loop_header_branch
                  %397 = sbr.rel (%p395) target = $region66
                $region63: #{bottleneck_forward.7} parent=58 // loop_body
                  %v401 = vld [vmem:[%s399] sm:$0xff]
                  %402 = vst [vmem:[%s400] sm:$0xff] %v401
                  %v403 = vld [vmem:[%s399 + $0x8] sm:$0xff]
                  %404 = vst [vmem:[%s400 + $0x8] sm:$0xff] %v403
                  %v405 = vld [vmem:[%s399 + $0x10] sm:$0xff]
                  %406 = vst [vmem:[%s400 + $0x10] sm:$0xff] %v405
                  %v407 = vld [vmem:[%s399 + $0x18] sm:$0xff]
                  %408 = vst [vmem:[%s400 + $0x18] sm:$0xff] %v407
                  %v409 = vld [vmem:[%s399 + $0x20] sm:$0xff]
                  %410 = vst [vmem:[%s400 + $0x20] sm:$0xff] %v409
                  %v411 = vld [vmem:[%s399 + $0x28] sm:$0xff]
                  %412 = vst [vmem:[%s400 + $0x28] sm:$0xff] %v411
                  %v413 = vld [vmem:[%s399 + $0x30] sm:$0xff]
                  %414 = vst [vmem:[%s400 + $0x30] sm:$0xff] %v413
                  %v415 = vld [vmem:[%s399 + $0x38] sm:$0xff]
                  %416 = vst [vmem:[%s400 + $0x38] sm:$0xff] %v415
                  %v417 = vld [vmem:[%s399 + $0x40] sm:$0xff]
                  %418 = vst [vmem:[%s400 + $0x40] sm:$0xff] %v417
                  %v419 = vld [vmem:[%s399 + $0x48] sm:$0xff]
                  %420 = vst [vmem:[%s400 + $0x48] sm:$0xff] %v419
                  %v421 = vld [vmem:[%s399 + $0x50] sm:$0xff]
                  %422 = vst [vmem:[%s400 + $0x50] sm:$0xff] %v421
                  %v423 = vld [vmem:[%s399 + $0x58] sm:$0xff]
                  %424 = vst [vmem:[%s400 + $0x58] sm:$0xff] %v423
                  %v425 = vld [vmem:[%s399 + $0x60] sm:$0xff]
                  %426 = vst [vmem:[%s400 + $0x60] sm:$0xff] %v425
                  %v427 = vld [vmem:[%s399 + $0x68] sm:$0xff]
                  %428 = vst [vmem:[%s400 + $0x68] sm:$0xff] %v427
                  %v429 = vld [vmem:[%s399 + $0x70] sm:$0xff]
                  %430 = vst [vmem:[%s400 + $0x70] sm:$0xff] %v429
                  %v431 = vld [vmem:[%s399 + $0x78] sm:$0xff]
                  %432 = vst [vmem:[%s400 + $0x78] sm:$0xff] %v431
                  %v433 = vld [vmem:[%s399 + $0x80] sm:$0xff]
                  %434 = vst [vmem:[%s400 + $0x80] sm:$0xff] %v433
                  %v435 = vld [vmem:[%s399 + $0x88] sm:$0xff]
                  %436 = vst [vmem:[%s400 + $0x88] sm:$0xff] %v435
                  %v437 = vld [vmem:[%s399 + $0x90] sm:$0xff]
                  %438 = vst [vmem:[%s400 + $0x90] sm:$0xff] %v437
                  %v439 = vld [vmem:[%s399 + $0x98] sm:$0xff]
                  %440 = vst [vmem:[%s400 + $0x98] sm:$0xff] %v439
                  %v441 = vld [vmem:[%s399 + $0xa0] sm:$0xff]
                  %442 = vst [vmem:[%s400 + $0xa0] sm:$0xff] %v441
                  %v443 = vld [vmem:[%s399 + $0xa8] sm:$0xff]
                  %444 = vst [vmem:[%s400 + $0xa8] sm:$0xff] %v443
                  %v445 = vld [vmem:[%s399 + $0xb0] sm:$0xff]
                  %446 = vst [vmem:[%s400 + $0xb0] sm:$0xff] %v445
                  %v447 = vld [vmem:[%s399 + $0xb8] sm:$0xff]
                  %448 = vst [vmem:[%s400 + $0xb8] sm:$0xff] %v447
                  %v449 = vld [vmem:[%s399 + $0x180] sm:$0xff]
                  %450 = vst [vmem:[%s400 + $0xc0] sm:$0xff] %v449
                  %v451 = vld [vmem:[%s399 + $0x188] sm:$0xff]
                  %452 = vst [vmem:[%s400 + $0xc8] sm:$0xff] %v451
                  %v453 = vld [vmem:[%s399 + $0x190] sm:$0xff]
                  %454 = vst [vmem:[%s400 + $0xd0] sm:$0xff] %v453
                  %v455 = vld [vmem:[%s399 + $0x198] sm:$0xff]
                  %456 = vst [vmem:[%s400 + $0xd8] sm:$0xff] %v455
                  %v457 = vld [vmem:[%s399 + $0x1a0] sm:$0xff]
                  %458 = vst [vmem:[%s400 + $0xe0] sm:$0xff] %v457
                  %v459 = vld [vmem:[%s399 + $0x1a8] sm:$0xff]
                  %460 = vst [vmem:[%s400 + $0xe8] sm:$0xff] %v459
                  %v461 = vld [vmem:[%s399 + $0x1b0] sm:$0xff]
                  %462 = vst [vmem:[%s400 + $0xf0] sm:$0xff] %v461
                  %v463 = vld [vmem:[%s399 + $0x1b8] sm:$0xff]
                  %464 = vst [vmem:[%s400 + $0xf8] sm:$0xff] %v463
                  %v465 = vld [vmem:[%s399 + $0x1c0] sm:$0xff]
                  %466 = vst [vmem:[%s400 + $0x100] sm:$0xff] %v465
                  %v467 = vld [vmem:[%s399 + $0x1c8] sm:$0xff]
                  %468 = vst [vmem:[%s400 + $0x108] sm:$0xff] %v467
                  %v469 = vld [vmem:[%s399 + $0x1d0] sm:$0xff]
                  %470 = vst [vmem:[%s400 + $0x110] sm:$0xff] %v469
                  %v471 = vld [vmem:[%s399 + $0x1d8] sm:$0xff]
                  %472 = vst [vmem:[%s400 + $0x118] sm:$0xff] %v471
                  %v473 = vld [vmem:[%s399 + $0x1e0] sm:$0xff]
                  %474 = vst [vmem:[%s400 + $0x120] sm:$0xff] %v473
                  %v475 = vld [vmem:[%s399 + $0x1e8] sm:$0xff]
                  %476 = vst [vmem:[%s400 + $0x128] sm:$0xff] %v475
                  %v477 = vld [vmem:[%s399 + $0x1f0] sm:$0xff]
                  %478 = vst [vmem:[%s400 + $0x130] sm:$0xff] %v477
                  %v479 = vld [vmem:[%s399 + $0x1f8] sm:$0xff]
                  %480 = vst [vmem:[%s400 + $0x138] sm:$0xff] %v479
                  %v481 = vld [vmem:[%s399 + $0x200] sm:$0xff]
                  %482 = vst [vmem:[%s400 + $0x140] sm:$0xff] %v481
                  %v483 = vld [vmem:[%s399 + $0x208] sm:$0xff]
                  %484 = vst [vmem:[%s400 + $0x148] sm:$0xff] %v483
                  %v485 = vld [vmem:[%s399 + $0x210] sm:$0xff]
                  %486 = vst [vmem:[%s400 + $0x150] sm:$0xff] %v485
                  %v487 = vld [vmem:[%s399 + $0x218] sm:$0xff]
                  %488 = vst [vmem:[%s400 + $0x158] sm:$0xff] %v487
                  %v489 = vld [vmem:[%s399 + $0x220] sm:$0xff]
                  %490 = vst [vmem:[%s400 + $0x160] sm:$0xff] %v489
                  %v491 = vld [vmem:[%s399 + $0x228] sm:$0xff]
                  %492 = vst [vmem:[%s400 + $0x168] sm:$0xff] %v491
                  %v493 = vld [vmem:[%s399 + $0x230] sm:$0xff]
                  %494 = vst [vmem:[%s400 + $0x170] sm:$0xff] %v493
                  %v495 = vld [vmem:[%s399 + $0x238] sm:$0xff]
                  %496 = vst [vmem:[%s400 + $0x178] sm:$0xff] %v495
                  %v497 = vld [vmem:[%s399 + $0x300] sm:$0xff]
                  %498 = vst [vmem:[%s400 + $0x180] sm:$0xff] %v497
                  %v499 = vld [vmem:[%s399 + $0x308] sm:$0xff]
                  %500 = vst [vmem:[%s400 + $0x188] sm:$0xff] %v499
                  %v501 = vld [vmem:[%s399 + $0x310] sm:$0xff]
                  %502 = vst [vmem:[%s400 + $0x190] sm:$0xff] %v501
                  %v503 = vld [vmem:[%s399 + $0x318] sm:$0xff]
                  %504 = vst [vmem:[%s400 + $0x198] sm:$0xff] %v503
                  %v505 = vld [vmem:[%s399 + $0x320] sm:$0xff]
                  %506 = vst [vmem:[%s400 + $0x1a0] sm:$0xff] %v505
                  %v507 = vld [vmem:[%s399 + $0x328] sm:$0xff]
                  %508 = vst [vmem:[%s400 + $0x1a8] sm:$0xff] %v507
                  %v509 = vld [vmem:[%s399 + $0x330] sm:$0xff]
                  %510 = vst [vmem:[%s400 + $0x1b0] sm:$0xff] %v509
                  %v511 = vld [vmem:[%s399 + $0x338] sm:$0xff]
                  %512 = vst [vmem:[%s400 + $0x1b8] sm:$0xff] %v511
                  %v513 = vld [vmem:[%s399 + $0x340] sm:$0xff]
                  %514 = vst [vmem:[%s400 + $0x1c0] sm:$0xff] %v513
                  %v515 = vld [vmem:[%s399 + $0x348] sm:$0xff]
                  %516 = vst [vmem:[%s400 + $0x1c8] sm:$0xff] %v515
                  %v517 = vld [vmem:[%s399 + $0x350] sm:$0xff]
                  %518 = vst [vmem:[%s400 + $0x1d0] sm:$0xff] %v517
                  %v519 = vld [vmem:[%s399 + $0x358] sm:$0xff]
                  %520 = vst [vmem:[%s400 + $0x1d8] sm:$0xff] %v519
                  %v521 = vld [vmem:[%s399 + $0x360] sm:$0xff]
                  %522 = vst [vmem:[%s400 + $0x1e0] sm:$0xff] %v521
                  %v523 = vld [vmem:[%s399 + $0x368] sm:$0xff]
                  %524 = vst [vmem:[%s400 + $0x1e8] sm:$0xff] %v523
                  %v525 = vld [vmem:[%s399 + $0x370] sm:$0xff]
                  %526 = vst [vmem:[%s400 + $0x1f0] sm:$0xff] %v525
                  %v527 = vld [vmem:[%s399 + $0x378] sm:$0xff]
                  %528 = vst [vmem:[%s400 + $0x1f8] sm:$0xff] %v527
                  %v529 = vld [vmem:[%s399 + $0x380] sm:$0xff]
                  %530 = vst [vmem:[%s400 + $0x200] sm:$0xff] %v529
                  %v531 = vld [vmem:[%s399 + $0x388] sm:$0xff]
                  %532 = vst [vmem:[%s400 + $0x208] sm:$0xff] %v531
                  %v533 = vld [vmem:[%s399 + $0x390] sm:$0xff]
                  %534 = vst [vmem:[%s400 + $0x210] sm:$0xff] %v533
                  %v535 = vld [vmem:[%s399 + $0x398] sm:$0xff]
                  %536 = vst [vmem:[%s400 + $0x218] sm:$0xff] %v535
                  %v537 = vld [vmem:[%s399 + $0x3a0] sm:$0xff]
                  %538 = vst [vmem:[%s400 + $0x220] sm:$0xff] %v537
                  %v539 = vld [vmem:[%s399 + $0x3a8] sm:$0xff]
                  %540 = vst [vmem:[%s400 + $0x228] sm:$0xff] %v539
                  %v541 = vld [vmem:[%s399 + $0x3b0] sm:$0xff]
                  %542 = vst [vmem:[%s400 + $0x230] sm:$0xff] %v541
                  %v543 = vld [vmem:[%s399 + $0x3b8] sm:$0xff]
                  %544 = vst [vmem:[%s400 + $0x238] sm:$0xff] %v543
                $region64: #{bottleneck_forward.7} parent=58 // loop_footer
                  %s398 = sadd.s32 1, %s394
                $region65: #{bottleneck_forward.7} parent=58 // loop_footer_branch
                  %393 = sbr.rel target = $region61
                $region66: #{bottleneck_forward.7} parent=58 // loop_exit
                  _
              $region59: #{bottleneck_forward.7} parent=43 // pred_fallthru
                _
              // Predicated region
              $region67: #{bottleneck_forward.7} parent=43 // pred_check
                _
              $region68: #{bottleneck_forward.7} parent=43 // pred_check_branch
                %546 = sbr.rel target = $region70
              $region69: #{bottleneck_forward.7} parent=43 // pred_region
                _
              $region70: #{bottleneck_forward.7} parent=43 // pred_fallthru
                _
            $region44: #{bottleneck_forward.7} parent=39 // pred_fallthru
              _
            // Predicated region
            $region45: #{bottleneck_forward.7} parent=39 // pred_check
              _
            $region46: #{bottleneck_forward.7} parent=39 // pred_check_branch
              %237 = sbr.rel target = $region48
            $region47: #{bottleneck_forward.7} parent=39 // pred_region
              loop: start=0, step=1, limit=1
              $region49: #{bottleneck_forward.7} parent=47 // loop_pre_header
                _
              $region50: #{bottleneck_forward.7} parent=47 // loop_header
                %s240 = sphi 0, %s244
                %p241 = scmp.ge.s32.totalorder %s240, 1
                %s245 = sphi %s231, %s231
                %s246 = sphi %s227, %s227
              $region51: #{bottleneck_forward.7} parent=47 // loop_header_branch
                %243 = sbr.rel (%p241) target = $region55
              $region52: #{bottleneck_forward.7} parent=47 // loop_body
                %v247 = vld [vmem:[%s245] sm:$0xff]
                %248 = vst [vmem:[%s246] sm:$0xff] %v247
                %v249 = vld [vmem:[%s245 + $0x8] sm:$0xff]
                %250 = vst [vmem:[%s246 + $0x8] sm:$0xff] %v249
                %v251 = vld [vmem:[%s245 + $0x10] sm:$0xff]
                %252 = vst [vmem:[%s246 + $0x10] sm:$0xff] %v251
                %v253 = vld [vmem:[%s245 + $0x18] sm:$0xff]
                %254 = vst [vmem:[%s246 + $0x18] sm:$0xff] %v253
                %v255 = vld [vmem:[%s245 + $0x20] sm:$0xff]
                %256 = vst [vmem:[%s246 + $0x20] sm:$0xff] %v255
                %v257 = vld [vmem:[%s245 + $0x28] sm:$0xff]
                %258 = vst [vmem:[%s246 + $0x28] sm:$0xff] %v257
                %v259 = vld [vmem:[%s245 + $0x30] sm:$0xff]
                %260 = vst [vmem:[%s246 + $0x30] sm:$0xff] %v259
                %v261 = vld [vmem:[%s245 + $0x38] sm:$0xff]
                %262 = vst [vmem:[%s246 + $0x38] sm:$0xff] %v261
                %v263 = vld [vmem:[%s245 + $0x40] sm:$0xff]
                %264 = vst [vmem:[%s246 + $0x40] sm:$0xff] %v263
                %v265 = vld [vmem:[%s245 + $0x48] sm:$0xff]
                %266 = vst [vmem:[%s246 + $0x48] sm:$0xff] %v265
                %v267 = vld [vmem:[%s245 + $0x50] sm:$0xff]
                %268 = vst [vmem:[%s246 + $0x50] sm:$0xff] %v267
                %v269 = vld [vmem:[%s245 + $0x58] sm:$0xff]
                %270 = vst [vmem:[%s246 + $0x58] sm:$0xff] %v269
                %v271 = vld [vmem:[%s245 + $0x60] sm:$0xff]
                %272 = vst [vmem:[%s246 + $0x60] sm:$0xff] %v271
                %v273 = vld [vmem:[%s245 + $0x68] sm:$0xff]
                %274 = vst [vmem:[%s246 + $0x68] sm:$0xff] %v273
                %v275 = vld [vmem:[%s245 + $0x70] sm:$0xff]
                %276 = vst [vmem:[%s246 + $0x70] sm:$0xff] %v275
                %v277 = vld [vmem:[%s245 + $0x78] sm:$0xff]
                %278 = vst [vmem:[%s246 + $0x78] sm:$0xff] %v277
                %v279 = vld [vmem:[%s245 + $0x80] sm:$0xff]
                %280 = vst [vmem:[%s246 + $0x80] sm:$0xff] %v279
                %v281 = vld [vmem:[%s245 + $0x88] sm:$0xff]
                %282 = vst [vmem:[%s246 + $0x88] sm:$0xff] %v281
                %v283 = vld [vmem:[%s245 + $0x90] sm:$0xff]
                %284 = vst [vmem:[%s246 + $0x90] sm:$0xff] %v283
                %v285 = vld [vmem:[%s245 + $0x98] sm:$0xff]
                %286 = vst [vmem:[%s246 + $0x98] sm:$0xff] %v285
                %v287 = vld [vmem:[%s245 + $0xa0] sm:$0xff]
                %288 = vst [vmem:[%s246 + $0xa0] sm:$0xff] %v287
                %v289 = vld [vmem:[%s245 + $0xa8] sm:$0xff]
                %290 = vst [vmem:[%s246 + $0xa8] sm:$0xff] %v289
                %v291 = vld [vmem:[%s245 + $0xb0] sm:$0xff]
                %292 = vst [vmem:[%s246 + $0xb0] sm:$0xff] %v291
                %v293 = vld [vmem:[%s245 + $0xb8] sm:$0xff]
                %294 = vst [vmem:[%s246 + $0xb8] sm:$0xff] %v293
                %v295 = vld [vmem:[%s245 + $0x180] sm:$0xff]
                %296 = vst [vmem:[%s246 + $0xc0] sm:$0xff] %v295
                %v297 = vld [vmem:[%s245 + $0x188] sm:$0xff]
                %298 = vst [vmem:[%s246 + $0xc8] sm:$0xff] %v297
                %v299 = vld [vmem:[%s245 + $0x190] sm:$0xff]
                %300 = vst [vmem:[%s246 + $0xd0] sm:$0xff] %v299
                %v301 = vld [vmem:[%s245 + $0x198] sm:$0xff]
                %302 = vst [vmem:[%s246 + $0xd8] sm:$0xff] %v301
                %v303 = vld [vmem:[%s245 + $0x1a0] sm:$0xff]
                %304 = vst [vmem:[%s246 + $0xe0] sm:$0xff] %v303
                %v305 = vld [vmem:[%s245 + $0x1a8] sm:$0xff]
                %306 = vst [vmem:[%s246 + $0xe8] sm:$0xff] %v305
                %v307 = vld [vmem:[%s245 + $0x1b0] sm:$0xff]
                %308 = vst [vmem:[%s246 + $0xf0] sm:$0xff] %v307
                %v309 = vld [vmem:[%s245 + $0x1b8] sm:$0xff]
                %310 = vst [vmem:[%s246 + $0xf8] sm:$0xff] %v309
                %v311 = vld [vmem:[%s245 + $0x1c0] sm:$0xff]
                %312 = vst [vmem:[%s246 + $0x100] sm:$0xff] %v311
                %v313 = vld [vmem:[%s245 + $0x1c8] sm:$0xff]
                %314 = vst [vmem:[%s246 + $0x108] sm:$0xff] %v313
                %v315 = vld [vmem:[%s245 + $0x1d0] sm:$0xff]
                %316 = vst [vmem:[%s246 + $0x110] sm:$0xff] %v315
                %v317 = vld [vmem:[%s245 + $0x1d8] sm:$0xff]
                %318 = vst [vmem:[%s246 + $0x118] sm:$0xff] %v317
                %v319 = vld [vmem:[%s245 + $0x1e0] sm:$0xff]
                %320 = vst [vmem:[%s246 + $0x120] sm:$0xff] %v319
                %v321 = vld [vmem:[%s245 + $0x1e8] sm:$0xff]
                %322 = vst [vmem:[%s246 + $0x128] sm:$0xff] %v321
                %v323 = vld [vmem:[%s245 + $0x1f0] sm:$0xff]
                %324 = vst [vmem:[%s246 + $0x130] sm:$0xff] %v323
                %v325 = vld [vmem:[%s245 + $0x1f8] sm:$0xff]
                %326 = vst [vmem:[%s246 + $0x138] sm:$0xff] %v325
                %v327 = vld [vmem:[%s245 + $0x200] sm:$0xff]
                %328 = vst [vmem:[%s246 + $0x140] sm:$0xff] %v327
                %v329 = vld [vmem:[%s245 + $0x208] sm:$0xff]
                %330 = vst [vmem:[%s246 + $0x148] sm:$0xff] %v329
                %v331 = vld [vmem:[%s245 + $0x210] sm:$0xff]
                %332 = vst [vmem:[%s246 + $0x150] sm:$0xff] %v331
                %v333 = vld [vmem:[%s245 + $0x218] sm:$0xff]
                %334 = vst [vmem:[%s246 + $0x158] sm:$0xff] %v333
                %v335 = vld [vmem:[%s245 + $0x220] sm:$0xff]
                %336 = vst [vmem:[%s246 + $0x160] sm:$0xff] %v335
                %v337 = vld [vmem:[%s245 + $0x228] sm:$0xff]
                %338 = vst [vmem:[%s246 + $0x168] sm:$0xff] %v337
                %v339 = vld [vmem:[%s245 + $0x230] sm:$0xff]
                %340 = vst [vmem:[%s246 + $0x170] sm:$0xff] %v339
                %v341 = vld [vmem:[%s245 + $0x238] sm:$0xff]
                %342 = vst [vmem:[%s246 + $0x178] sm:$0xff] %v341
                %v343 = vld [vmem:[%s245 + $0x300] sm:$0xff]
                %344 = vst [vmem:[%s246 + $0x180] sm:$0xff] %v343
                %v345 = vld [vmem:[%s245 + $0x308] sm:$0xff]
                %346 = vst [vmem:[%s246 + $0x188] sm:$0xff] %v345
                %v347 = vld [vmem:[%s245 + $0x310] sm:$0xff]
                %348 = vst [vmem:[%s246 + $0x190] sm:$0xff] %v347
                %v349 = vld [vmem:[%s245 + $0x318] sm:$0xff]
                %350 = vst [vmem:[%s246 + $0x198] sm:$0xff] %v349
                %v351 = vld [vmem:[%s245 + $0x320] sm:$0xff]
                %352 = vst [vmem:[%s246 + $0x1a0] sm:$0xff] %v351
                %v353 = vld [vmem:[%s245 + $0x328] sm:$0xff]
                %354 = vst [vmem:[%s246 + $0x1a8] sm:$0xff] %v353
                %v355 = vld [vmem:[%s245 + $0x330] sm:$0xff]
                %356 = vst [vmem:[%s246 + $0x1b0] sm:$0xff] %v355
                %v357 = vld [vmem:[%s245 + $0x338] sm:$0xff]
                %358 = vst [vmem:[%s246 + $0x1b8] sm:$0xff] %v357
                %v359 = vld [vmem:[%s245 + $0x340] sm:$0xff]
                %360 = vst [vmem:[%s246 + $0x1c0] sm:$0xff] %v359
                %v361 = vld [vmem:[%s245 + $0x348] sm:$0xff]
                %362 = vst [vmem:[%s246 + $0x1c8] sm:$0xff] %v361
                %v363 = vld [vmem:[%s245 + $0x350] sm:$0xff]
                %364 = vst [vmem:[%s246 + $0x1d0] sm:$0xff] %v363
                %v365 = vld [vmem:[%s245 + $0x358] sm:$0xff]
                %366 = vst [vmem:[%s246 + $0x1d8] sm:$0xff] %v365
                %v367 = vld [vmem:[%s245 + $0x360] sm:$0xff]
                %368 = vst [vmem:[%s246 + $0x1e0] sm:$0xff] %v367
                %v369 = vld [vmem:[%s245 + $0x368] sm:$0xff]
                %370 = vst [vmem:[%s246 + $0x1e8] sm:$0xff] %v369
                %v371 = vld [vmem:[%s245 + $0x370] sm:$0xff]
                %372 = vst [vmem:[%s246 + $0x1f0] sm:$0xff] %v371
                %v373 = vld [vmem:[%s245 + $0x378] sm:$0xff]
                %374 = vst [vmem:[%s246 + $0x1f8] sm:$0xff] %v373
                %v375 = vld [vmem:[%s245 + $0x380] sm:$0xff]
                %376 = vst [vmem:[%s246 + $0x200] sm:$0xff] %v375
                %v377 = vld [vmem:[%s245 + $0x388] sm:$0xff]
                %378 = vst [vmem:[%s246 + $0x208] sm:$0xff] %v377
                %v379 = vld [vmem:[%s245 + $0x390] sm:$0xff]
                %380 = vst [vmem:[%s246 + $0x210] sm:$0xff] %v379
                %v381 = vld [vmem:[%s245 + $0x398] sm:$0xff]
                %382 = vst [vmem:[%s246 + $0x218] sm:$0xff] %v381
                %v383 = vld [vmem:[%s245 + $0x3a0] sm:$0xff]
                %384 = vst [vmem:[%s246 + $0x220] sm:$0xff] %v383
                %v385 = vld [vmem:[%s245 + $0x3a8] sm:$0xff]
                %386 = vst [vmem:[%s246 + $0x228] sm:$0xff] %v385
                %v387 = vld [vmem:[%s245 + $0x3b0] sm:$0xff]
                %388 = vst [vmem:[%s246 + $0x230] sm:$0xff] %v387
                %v389 = vld [vmem:[%s245 + $0x3b8] sm:$0xff]
                %390 = vst [vmem:[%s246 + $0x238] sm:$0xff] %v389
              $region53: #{bottleneck_forward.7} parent=47 // loop_footer
                %s244 = sadd.s32 1, %s240
              $region54: #{bottleneck_forward.7} parent=47 // loop_footer_branch
                %239 = sbr.rel target = $region50
              $region55: #{bottleneck_forward.7} parent=47 // loop_exit
                _
            $region48: #{bottleneck_forward.7} parent=39 // pred_fallthru
              _
          $region40: #{bottleneck_forward.7} parent=35 // pred_fallthru
            _
          %547 = vnop
        $region36: #{bottleneck_forward.7} parent=31 // pred_fallthru
          _
        // Predicated region
        $region71: #{bottleneck_forward.7} parent=31 // pred_check
          %p548 = pneg %p114
        $region72: #{bottleneck_forward.7} parent=31 // pred_check_branch
          %550 = sbr.rel (%p548) target = $region74
        $region73: #{bottleneck_forward.7} parent=31 // pred_region
          %s551 = sand.u32 %s104, 1
          %s552 = sand.u32 %s104, 1
          %s553 = smul.addr %s552, 576
          %s554 = scalar_lea.vmem [#allocation3], %s553
          %s555 = smul.u32 3, %s19
          %s556 = smul.u32 8, %s20
          %s557 = smul.addr %s556, 3
          %s558 = smul.addr %s555, 48
          %s559 = sadd.s32 %s557, %s558
          %s560 = smul.addr %s559, 8
          %s561 = scalar_lea.vmem %s3, %s560
          // Predicated region
          $region75: #{bottleneck_forward.7} parent=73 // pred_check
            _
          $region76: #{bottleneck_forward.7} parent=73 // pred_check_branch
            %563 = sbr.rel (0) target = $region78
          $region77: #{bottleneck_forward.7} parent=73 // pred_region
            // Predicated region
            $region79: #{bottleneck_forward.7} parent=77 // pred_check
              _
            $region80: #{bottleneck_forward.7} parent=77 // pred_check_branch
              %565 = sbr.rel (0) target = $region82
            $region81: #{bottleneck_forward.7} parent=77 // pred_region
              // Predicated region
              $region94: #{bottleneck_forward.7} parent=81 // pred_check
                _
              $region95: #{bottleneck_forward.7} parent=81 // pred_check_branch
                %722 = sbr.rel (0) target = $region97
              $region96: #{bottleneck_forward.7} parent=81 // pred_region
                loop: start=0, step=1, limit=1
                $region98: #{bottleneck_forward.7} parent=96 // loop_pre_header
                  _
                $region99: #{bottleneck_forward.7} parent=96 // loop_header
                  %s724 = sphi 0, %s728
                  %p725 = scmp.ge.s32.totalorder %s724, 1
                  %s729 = sphi %s561, %s561
                  %s730 = sphi %s554, %s554
                $region100: #{bottleneck_forward.7} parent=96 // loop_header_branch
                  %727 = sbr.rel (%p725) target = $region104
                $region101: #{bottleneck_forward.7} parent=96 // loop_body
                  %v731 = vld [vmem:[%s729] sm:$0xff]
                  %732 = vst [vmem:[%s730] sm:$0xff] %v731
                  %v733 = vld [vmem:[%s729 + $0x8] sm:$0xff]
                  %734 = vst [vmem:[%s730 + $0x8] sm:$0xff] %v733
                  %v735 = vld [vmem:[%s729 + $0x10] sm:$0xff]
                  %736 = vst [vmem:[%s730 + $0x10] sm:$0xff] %v735
                  %v737 = vld [vmem:[%s729 + $0x18] sm:$0xff]
                  %738 = vst [vmem:[%s730 + $0x18] sm:$0xff] %v737
                  %v739 = vld [vmem:[%s729 + $0x20] sm:$0xff]
                  %740 = vst [vmem:[%s730 + $0x20] sm:$0xff] %v739
                  %v741 = vld [vmem:[%s729 + $0x28] sm:$0xff]
                  %742 = vst [vmem:[%s730 + $0x28] sm:$0xff] %v741
                  %v743 = vld [vmem:[%s729 + $0x30] sm:$0xff]
                  %744 = vst [vmem:[%s730 + $0x30] sm:$0xff] %v743
                  %v745 = vld [vmem:[%s729 + $0x38] sm:$0xff]
                  %746 = vst [vmem:[%s730 + $0x38] sm:$0xff] %v745
                  %v747 = vld [vmem:[%s729 + $0x40] sm:$0xff]
                  %748 = vst [vmem:[%s730 + $0x40] sm:$0xff] %v747
                  %v749 = vld [vmem:[%s729 + $0x48] sm:$0xff]
                  %750 = vst [vmem:[%s730 + $0x48] sm:$0xff] %v749
                  %v751 = vld [vmem:[%s729 + $0x50] sm:$0xff]
                  %752 = vst [vmem:[%s730 + $0x50] sm:$0xff] %v751
                  %v753 = vld [vmem:[%s729 + $0x58] sm:$0xff]
                  %754 = vst [vmem:[%s730 + $0x58] sm:$0xff] %v753
                  %v755 = vld [vmem:[%s729 + $0x60] sm:$0xff]
                  %756 = vst [vmem:[%s730 + $0x60] sm:$0xff] %v755
                  %v757 = vld [vmem:[%s729 + $0x68] sm:$0xff]
                  %758 = vst [vmem:[%s730 + $0x68] sm:$0xff] %v757
                  %v759 = vld [vmem:[%s729 + $0x70] sm:$0xff]
                  %760 = vst [vmem:[%s730 + $0x70] sm:$0xff] %v759
                  %v761 = vld [vmem:[%s729 + $0x78] sm:$0xff]
                  %762 = vst [vmem:[%s730 + $0x78] sm:$0xff] %v761
                  %v763 = vld [vmem:[%s729 + $0x80] sm:$0xff]
                  %764 = vst [vmem:[%s730 + $0x80] sm:$0xff] %v763
                  %v765 = vld [vmem:[%s729 + $0x88] sm:$0xff]
                  %766 = vst [vmem:[%s730 + $0x88] sm:$0xff] %v765
                  %v767 = vld [vmem:[%s729 + $0x90] sm:$0xff]
                  %768 = vst [vmem:[%s730 + $0x90] sm:$0xff] %v767
                  %v769 = vld [vmem:[%s729 + $0x98] sm:$0xff]
                  %770 = vst [vmem:[%s730 + $0x98] sm:$0xff] %v769
                  %v771 = vld [vmem:[%s729 + $0xa0] sm:$0xff]
                  %772 = vst [vmem:[%s730 + $0xa0] sm:$0xff] %v771
                  %v773 = vld [vmem:[%s729 + $0xa8] sm:$0xff]
                  %774 = vst [vmem:[%s730 + $0xa8] sm:$0xff] %v773
                  %v775 = vld [vmem:[%s729 + $0xb0] sm:$0xff]
                  %776 = vst [vmem:[%s730 + $0xb0] sm:$0xff] %v775
                  %v777 = vld [vmem:[%s729 + $0xb8] sm:$0xff]
                  %778 = vst [vmem:[%s730 + $0xb8] sm:$0xff] %v777
                  %v779 = vld [vmem:[%s729 + $0x180] sm:$0xff]
                  %780 = vst [vmem:[%s730 + $0xc0] sm:$0xff] %v779
                  %v781 = vld [vmem:[%s729 + $0x188] sm:$0xff]
                  %782 = vst [vmem:[%s730 + $0xc8] sm:$0xff] %v781
                  %v783 = vld [vmem:[%s729 + $0x190] sm:$0xff]
                  %784 = vst [vmem:[%s730 + $0xd0] sm:$0xff] %v783
                  %v785 = vld [vmem:[%s729 + $0x198] sm:$0xff]
                  %786 = vst [vmem:[%s730 + $0xd8] sm:$0xff] %v785
                  %v787 = vld [vmem:[%s729 + $0x1a0] sm:$0xff]
                  %788 = vst [vmem:[%s730 + $0xe0] sm:$0xff] %v787
                  %v789 = vld [vmem:[%s729 + $0x1a8] sm:$0xff]
                  %790 = vst [vmem:[%s730 + $0xe8] sm:$0xff] %v789
                  %v791 = vld [vmem:[%s729 + $0x1b0] sm:$0xff]
                  %792 = vst [vmem:[%s730 + $0xf0] sm:$0xff] %v791
                  %v793 = vld [vmem:[%s729 + $0x1b8] sm:$0xff]
                  %794 = vst [vmem:[%s730 + $0xf8] sm:$0xff] %v793
                  %v795 = vld [vmem:[%s729 + $0x1c0] sm:$0xff]
                  %796 = vst [vmem:[%s730 + $0x100] sm:$0xff] %v795
                  %v797 = vld [vmem:[%s729 + $0x1c8] sm:$0xff]
                  %798 = vst [vmem:[%s730 + $0x108] sm:$0xff] %v797
                  %v799 = vld [vmem:[%s729 + $0x1d0] sm:$0xff]
                  %800 = vst [vmem:[%s730 + $0x110] sm:$0xff] %v799
                  %v801 = vld [vmem:[%s729 + $0x1d8] sm:$0xff]
                  %802 = vst [vmem:[%s730 + $0x118] sm:$0xff] %v801
                  %v803 = vld [vmem:[%s729 + $0x1e0] sm:$0xff]
                  %804 = vst [vmem:[%s730 + $0x120] sm:$0xff] %v803
                  %v805 = vld [vmem:[%s729 + $0x1e8] sm:$0xff]
                  %806 = vst [vmem:[%s730 + $0x128] sm:$0xff] %v805
                  %v807 = vld [vmem:[%s729 + $0x1f0] sm:$0xff]
                  %808 = vst [vmem:[%s730 + $0x130] sm:$0xff] %v807
                  %v809 = vld [vmem:[%s729 + $0x1f8] sm:$0xff]
                  %810 = vst [vmem:[%s730 + $0x138] sm:$0xff] %v809
                  %v811 = vld [vmem:[%s729 + $0x200] sm:$0xff]
                  %812 = vst [vmem:[%s730 + $0x140] sm:$0xff] %v811
                  %v813 = vld [vmem:[%s729 + $0x208] sm:$0xff]
                  %814 = vst [vmem:[%s730 + $0x148] sm:$0xff] %v813
                  %v815 = vld [vmem:[%s729 + $0x210] sm:$0xff]
                  %816 = vst [vmem:[%s730 + $0x150] sm:$0xff] %v815
                  %v817 = vld [vmem:[%s729 + $0x218] sm:$0xff]
                  %818 = vst [vmem:[%s730 + $0x158] sm:$0xff] %v817
                  %v819 = vld [vmem:[%s729 + $0x220] sm:$0xff]
                  %820 = vst [vmem:[%s730 + $0x160] sm:$0xff] %v819
                  %v821 = vld [vmem:[%s729 + $0x228] sm:$0xff]
                  %822 = vst [vmem:[%s730 + $0x168] sm:$0xff] %v821
                  %v823 = vld [vmem:[%s729 + $0x230] sm:$0xff]
                  %824 = vst [vmem:[%s730 + $0x170] sm:$0xff] %v823
                  %v825 = vld [vmem:[%s729 + $0x238] sm:$0xff]
                  %826 = vst [vmem:[%s730 + $0x178] sm:$0xff] %v825
                  %v827 = vld [vmem:[%s729 + $0x300] sm:$0xff]
                  %828 = vst [vmem:[%s730 + $0x180] sm:$0xff] %v827
                  %v829 = vld [vmem:[%s729 + $0x308] sm:$0xff]
                  %830 = vst [vmem:[%s730 + $0x188] sm:$0xff] %v829
                  %v831 = vld [vmem:[%s729 + $0x310] sm:$0xff]
                  %832 = vst [vmem:[%s730 + $0x190] sm:$0xff] %v831
                  %v833 = vld [vmem:[%s729 + $0x318] sm:$0xff]
                  %834 = vst [vmem:[%s730 + $0x198] sm:$0xff] %v833
                  %v835 = vld [vmem:[%s729 + $0x320] sm:$0xff]
                  %836 = vst [vmem:[%s730 + $0x1a0] sm:$0xff] %v835
                  %v837 = vld [vmem:[%s729 + $0x328] sm:$0xff]
                  %838 = vst [vmem:[%s730 + $0x1a8] sm:$0xff] %v837
                  %v839 = vld [vmem:[%s729 + $0x330] sm:$0xff]
                  %840 = vst [vmem:[%s730 + $0x1b0] sm:$0xff] %v839
                  %v841 = vld [vmem:[%s729 + $0x338] sm:$0xff]
                  %842 = vst [vmem:[%s730 + $0x1b8] sm:$0xff] %v841
                  %v843 = vld [vmem:[%s729 + $0x340] sm:$0xff]
                  %844 = vst [vmem:[%s730 + $0x1c0] sm:$0xff] %v843
                  %v845 = vld [vmem:[%s729 + $0x348] sm:$0xff]
                  %846 = vst [vmem:[%s730 + $0x1c8] sm:$0xff] %v845
                  %v847 = vld [vmem:[%s729 + $0x350] sm:$0xff]
                  %848 = vst [vmem:[%s730 + $0x1d0] sm:$0xff] %v847
                  %v849 = vld [vmem:[%s729 + $0x358] sm:$0xff]
                  %850 = vst [vmem:[%s730 + $0x1d8] sm:$0xff] %v849
                  %v851 = vld [vmem:[%s729 + $0x360] sm:$0xff]
                  %852 = vst [vmem:[%s730 + $0x1e0] sm:$0xff] %v851
                  %v853 = vld [vmem:[%s729 + $0x368] sm:$0xff]
                  %854 = vst [vmem:[%s730 + $0x1e8] sm:$0xff] %v853
                  %v855 = vld [vmem:[%s729 + $0x370] sm:$0xff]
                  %856 = vst [vmem:[%s730 + $0x1f0] sm:$0xff] %v855
                  %v857 = vld [vmem:[%s729 + $0x378] sm:$0xff]
                  %858 = vst [vmem:[%s730 + $0x1f8] sm:$0xff] %v857
                  %v859 = vld [vmem:[%s729 + $0x380] sm:$0xff]
                  %860 = vst [vmem:[%s730 + $0x200] sm:$0xff] %v859
                  %v861 = vld [vmem:[%s729 + $0x388] sm:$0xff]
                  %862 = vst [vmem:[%s730 + $0x208] sm:$0xff] %v861
                  %v863 = vld [vmem:[%s729 + $0x390] sm:$0xff]
                  %864 = vst [vmem:[%s730 + $0x210] sm:$0xff] %v863
                  %v865 = vld [vmem:[%s729 + $0x398] sm:$0xff]
                  %866 = vst [vmem:[%s730 + $0x218] sm:$0xff] %v865
                  %v867 = vld [vmem:[%s729 + $0x3a0] sm:$0xff]
                  %868 = vst [vmem:[%s730 + $0x220] sm:$0xff] %v867
                  %v869 = vld [vmem:[%s729 + $0x3a8] sm:$0xff]
                  %870 = vst [vmem:[%s730 + $0x228] sm:$0xff] %v869
                  %v871 = vld [vmem:[%s729 + $0x3b0] sm:$0xff]
                  %872 = vst [vmem:[%s730 + $0x230] sm:$0xff] %v871
                  %v873 = vld [vmem:[%s729 + $0x3b8] sm:$0xff]
                  %874 = vst [vmem:[%s730 + $0x238] sm:$0xff] %v873
                $region102: #{bottleneck_forward.7} parent=96 // loop_footer
                  %s728 = sadd.s32 1, %s724
                $region103: #{bottleneck_forward.7} parent=96 // loop_footer_branch
                  %723 = sbr.rel target = $region99
                $region104: #{bottleneck_forward.7} parent=96 // loop_exit
                  _
              $region97: #{bottleneck_forward.7} parent=81 // pred_fallthru
                _
              // Predicated region
              $region105: #{bottleneck_forward.7} parent=81 // pred_check
                _
              $region106: #{bottleneck_forward.7} parent=81 // pred_check_branch
                %876 = sbr.rel target = $region108
              $region107: #{bottleneck_forward.7} parent=81 // pred_region
                _
              $region108: #{bottleneck_forward.7} parent=81 // pred_fallthru
                _
            $region82: #{bottleneck_forward.7} parent=77 // pred_fallthru
              _
            // Predicated region
            $region83: #{bottleneck_forward.7} parent=77 // pred_check
              _
            $region84: #{bottleneck_forward.7} parent=77 // pred_check_branch
              %567 = sbr.rel target = $region86
            $region85: #{bottleneck_forward.7} parent=77 // pred_region
              loop: start=0, step=1, limit=1
              $region87: #{bottleneck_forward.7} parent=85 // loop_pre_header
                _
              $region88: #{bottleneck_forward.7} parent=85 // loop_header
                %s570 = sphi 0, %s574
                %p571 = scmp.ge.s32.totalorder %s570, 1
                %s575 = sphi %s561, %s561
                %s576 = sphi %s554, %s554
              $region89: #{bottleneck_forward.7} parent=85 // loop_header_branch
                %573 = sbr.rel (%p571) target = $region93
              $region90: #{bottleneck_forward.7} parent=85 // loop_body
                %v577 = vld [vmem:[%s575] sm:$0xff]
                %578 = vst [vmem:[%s576] sm:$0xff] %v577
                %v579 = vld [vmem:[%s575 + $0x8] sm:$0xff]
                %580 = vst [vmem:[%s576 + $0x8] sm:$0xff] %v579
                %v581 = vld [vmem:[%s575 + $0x10] sm:$0xff]
                %582 = vst [vmem:[%s576 + $0x10] sm:$0xff] %v581
                %v583 = vld [vmem:[%s575 + $0x18] sm:$0xff]
                %584 = vst [vmem:[%s576 + $0x18] sm:$0xff] %v583
                %v585 = vld [vmem:[%s575 + $0x20] sm:$0xff]
                %586 = vst [vmem:[%s576 + $0x20] sm:$0xff] %v585
                %v587 = vld [vmem:[%s575 + $0x28] sm:$0xff]
                %588 = vst [vmem:[%s576 + $0x28] sm:$0xff] %v587
                %v589 = vld [vmem:[%s575 + $0x30] sm:$0xff]
                %590 = vst [vmem:[%s576 + $0x30] sm:$0xff] %v589
                %v591 = vld [vmem:[%s575 + $0x38] sm:$0xff]
                %592 = vst [vmem:[%s576 + $0x38] sm:$0xff] %v591
                %v593 = vld [vmem:[%s575 + $0x40] sm:$0xff]
                %594 = vst [vmem:[%s576 + $0x40] sm:$0xff] %v593
                %v595 = vld [vmem:[%s575 + $0x48] sm:$0xff]
                %596 = vst [vmem:[%s576 + $0x48] sm:$0xff] %v595
                %v597 = vld [vmem:[%s575 + $0x50] sm:$0xff]
                %598 = vst [vmem:[%s576 + $0x50] sm:$0xff] %v597
                %v599 = vld [vmem:[%s575 + $0x58] sm:$0xff]
                %600 = vst [vmem:[%s576 + $0x58] sm:$0xff] %v599
                %v601 = vld [vmem:[%s575 + $0x60] sm:$0xff]
                %602 = vst [vmem:[%s576 + $0x60] sm:$0xff] %v601
                %v603 = vld [vmem:[%s575 + $0x68] sm:$0xff]
                %604 = vst [vmem:[%s576 + $0x68] sm:$0xff] %v603
                %v605 = vld [vmem:[%s575 + $0x70] sm:$0xff]
                %606 = vst [vmem:[%s576 + $0x70] sm:$0xff] %v605
                %v607 = vld [vmem:[%s575 + $0x78] sm:$0xff]
                %608 = vst [vmem:[%s576 + $0x78] sm:$0xff] %v607
                %v609 = vld [vmem:[%s575 + $0x80] sm:$0xff]
                %610 = vst [vmem:[%s576 + $0x80] sm:$0xff] %v609
                %v611 = vld [vmem:[%s575 + $0x88] sm:$0xff]
                %612 = vst [vmem:[%s576 + $0x88] sm:$0xff] %v611
                %v613 = vld [vmem:[%s575 + $0x90] sm:$0xff]
                %614 = vst [vmem:[%s576 + $0x90] sm:$0xff] %v613
                %v615 = vld [vmem:[%s575 + $0x98] sm:$0xff]
                %616 = vst [vmem:[%s576 + $0x98] sm:$0xff] %v615
                %v617 = vld [vmem:[%s575 + $0xa0] sm:$0xff]
                %618 = vst [vmem:[%s576 + $0xa0] sm:$0xff] %v617
                %v619 = vld [vmem:[%s575 + $0xa8] sm:$0xff]
                %620 = vst [vmem:[%s576 + $0xa8] sm:$0xff] %v619
                %v621 = vld [vmem:[%s575 + $0xb0] sm:$0xff]
                %622 = vst [vmem:[%s576 + $0xb0] sm:$0xff] %v621
                %v623 = vld [vmem:[%s575 + $0xb8] sm:$0xff]
                %624 = vst [vmem:[%s576 + $0xb8] sm:$0xff] %v623
                %v625 = vld [vmem:[%s575 + $0x180] sm:$0xff]
                %626 = vst [vmem:[%s576 + $0xc0] sm:$0xff] %v625
                %v627 = vld [vmem:[%s575 + $0x188] sm:$0xff]
                %628 = vst [vmem:[%s576 + $0xc8] sm:$0xff] %v627
                %v629 = vld [vmem:[%s575 + $0x190] sm:$0xff]
                %630 = vst [vmem:[%s576 + $0xd0] sm:$0xff] %v629
                %v631 = vld [vmem:[%s575 + $0x198] sm:$0xff]
                %632 = vst [vmem:[%s576 + $0xd8] sm:$0xff] %v631
                %v633 = vld [vmem:[%s575 + $0x1a0] sm:$0xff]
                %634 = vst [vmem:[%s576 + $0xe0] sm:$0xff] %v633
                %v635 = vld [vmem:[%s575 + $0x1a8] sm:$0xff]
                %636 = vst [vmem:[%s576 + $0xe8] sm:$0xff] %v635
                %v637 = vld [vmem:[%s575 + $0x1b0] sm:$0xff]
                %638 = vst [vmem:[%s576 + $0xf0] sm:$0xff] %v637
                %v639 = vld [vmem:[%s575 + $0x1b8] sm:$0xff]
                %640 = vst [vmem:[%s576 + $0xf8] sm:$0xff] %v639
                %v641 = vld [vmem:[%s575 + $0x1c0] sm:$0xff]
                %642 = vst [vmem:[%s576 + $0x100] sm:$0xff] %v641
                %v643 = vld [vmem:[%s575 + $0x1c8] sm:$0xff]
                %644 = vst [vmem:[%s576 + $0x108] sm:$0xff] %v643
                %v645 = vld [vmem:[%s575 + $0x1d0] sm:$0xff]
                %646 = vst [vmem:[%s576 + $0x110] sm:$0xff] %v645
                %v647 = vld [vmem:[%s575 + $0x1d8] sm:$0xff]
                %648 = vst [vmem:[%s576 + $0x118] sm:$0xff] %v647
                %v649 = vld [vmem:[%s575 + $0x1e0] sm:$0xff]
                %650 = vst [vmem:[%s576 + $0x120] sm:$0xff] %v649
                %v651 = vld [vmem:[%s575 + $0x1e8] sm:$0xff]
                %652 = vst [vmem:[%s576 + $0x128] sm:$0xff] %v651
                %v653 = vld [vmem:[%s575 + $0x1f0] sm:$0xff]
                %654 = vst [vmem:[%s576 + $0x130] sm:$0xff] %v653
                %v655 = vld [vmem:[%s575 + $0x1f8] sm:$0xff]
                %656 = vst [vmem:[%s576 + $0x138] sm:$0xff] %v655
                %v657 = vld [vmem:[%s575 + $0x200] sm:$0xff]
                %658 = vst [vmem:[%s576 + $0x140] sm:$0xff] %v657
                %v659 = vld [vmem:[%s575 + $0x208] sm:$0xff]
                %660 = vst [vmem:[%s576 + $0x148] sm:$0xff] %v659
                %v661 = vld [vmem:[%s575 + $0x210] sm:$0xff]
                %662 = vst [vmem:[%s576 + $0x150] sm:$0xff] %v661
                %v663 = vld [vmem:[%s575 + $0x218] sm:$0xff]
                %664 = vst [vmem:[%s576 + $0x158] sm:$0xff] %v663
                %v665 = vld [vmem:[%s575 + $0x220] sm:$0xff]
                %666 = vst [vmem:[%s576 + $0x160] sm:$0xff] %v665
                %v667 = vld [vmem:[%s575 + $0x228] sm:$0xff]
                %668 = vst [vmem:[%s576 + $0x168] sm:$0xff] %v667
                %v669 = vld [vmem:[%s575 + $0x230] sm:$0xff]
                %670 = vst [vmem:[%s576 + $0x170] sm:$0xff] %v669
                %v671 = vld [vmem:[%s575 + $0x238] sm:$0xff]
                %672 = vst [vmem:[%s576 + $0x178] sm:$0xff] %v671
                %v673 = vld [vmem:[%s575 + $0x300] sm:$0xff]
                %674 = vst [vmem:[%s576 + $0x180] sm:$0xff] %v673
                %v675 = vld [vmem:[%s575 + $0x308] sm:$0xff]
                %676 = vst [vmem:[%s576 + $0x188] sm:$0xff] %v675
                %v677 = vld [vmem:[%s575 + $0x310] sm:$0xff]
                %678 = vst [vmem:[%s576 + $0x190] sm:$0xff] %v677
                %v679 = vld [vmem:[%s575 + $0x318] sm:$0xff]
                %680 = vst [vmem:[%s576 + $0x198] sm:$0xff] %v679
                %v681 = vld [vmem:[%s575 + $0x320] sm:$0xff]
                %682 = vst [vmem:[%s576 + $0x1a0] sm:$0xff] %v681
                %v683 = vld [vmem:[%s575 + $0x328] sm:$0xff]
                %684 = vst [vmem:[%s576 + $0x1a8] sm:$0xff] %v683
                %v685 = vld [vmem:[%s575 + $0x330] sm:$0xff]
                %686 = vst [vmem:[%s576 + $0x1b0] sm:$0xff] %v685
                %v687 = vld [vmem:[%s575 + $0x338] sm:$0xff]
                %688 = vst [vmem:[%s576 + $0x1b8] sm:$0xff] %v687
                %v689 = vld [vmem:[%s575 + $0x340] sm:$0xff]
                %690 = vst [vmem:[%s576 + $0x1c0] sm:$0xff] %v689
                %v691 = vld [vmem:[%s575 + $0x348] sm:$0xff]
                %692 = vst [vmem:[%s576 + $0x1c8] sm:$0xff] %v691
                %v693 = vld [vmem:[%s575 + $0x350] sm:$0xff]
                %694 = vst [vmem:[%s576 + $0x1d0] sm:$0xff] %v693
                %v695 = vld [vmem:[%s575 + $0x358] sm:$0xff]
                %696 = vst [vmem:[%s576 + $0x1d8] sm:$0xff] %v695
                %v697 = vld [vmem:[%s575 + $0x360] sm:$0xff]
                %698 = vst [vmem:[%s576 + $0x1e0] sm:$0xff] %v697
                %v699 = vld [vmem:[%s575 + $0x368] sm:$0xff]
                %700 = vst [vmem:[%s576 + $0x1e8] sm:$0xff] %v699
                %v701 = vld [vmem:[%s575 + $0x370] sm:$0xff]
                %702 = vst [vmem:[%s576 + $0x1f0] sm:$0xff] %v701
                %v703 = vld [vmem:[%s575 + $0x378] sm:$0xff]
                %704 = vst [vmem:[%s576 + $0x1f8] sm:$0xff] %v703
                %v705 = vld [vmem:[%s575 + $0x380] sm:$0xff]
                %706 = vst [vmem:[%s576 + $0x200] sm:$0xff] %v705
                %v707 = vld [vmem:[%s575 + $0x388] sm:$0xff]
                %708 = vst [vmem:[%s576 + $0x208] sm:$0xff] %v707
                %v709 = vld [vmem:[%s575 + $0x390] sm:$0xff]
                %710 = vst [vmem:[%s576 + $0x210] sm:$0xff] %v709
                %v711 = vld [vmem:[%s575 + $0x398] sm:$0xff]
                %712 = vst [vmem:[%s576 + $0x218] sm:$0xff] %v711
                %v713 = vld [vmem:[%s575 + $0x3a0] sm:$0xff]
                %714 = vst [vmem:[%s576 + $0x220] sm:$0xff] %v713
                %v715 = vld [vmem:[%s575 + $0x3a8] sm:$0xff]
                %716 = vst [vmem:[%s576 + $0x228] sm:$0xff] %v715
                %v717 = vld [vmem:[%s575 + $0x3b0] sm:$0xff]
                %718 = vst [vmem:[%s576 + $0x230] sm:$0xff] %v717
                %v719 = vld [vmem:[%s575 + $0x3b8] sm:$0xff]
                %720 = vst [vmem:[%s576 + $0x238] sm:$0xff] %v719
              $region91: #{bottleneck_forward.7} parent=85 // loop_footer
                %s574 = sadd.s32 1, %s570
              $region92: #{bottleneck_forward.7} parent=85 // loop_footer_branch
                %569 = sbr.rel target = $region88
              $region93: #{bottleneck_forward.7} parent=85 // loop_exit
                _
            $region86: #{bottleneck_forward.7} parent=77 // pred_fallthru
              _
          $region78: #{bottleneck_forward.7} parent=73 // pred_fallthru
            _
          %877 = vnop
        $region74: #{bottleneck_forward.7} parent=31 // pred_fallthru
          _
      $region32: #{bottleneck_forward.7} parent=5 // pred_fallthru
        _
      %p878 = scmp.le.s32.totalorder 1, %s12
      %p879 = scmp.lt.s32.totalorder %s12, 5
      %p880 = pnand %p878, %p879
      %p881 = pneg %p880
      // Predicated region
      $region109: #{bottleneck_forward.7} parent=5 // pred_check
        _
      $region110: #{bottleneck_forward.7} parent=5 // pred_check_branch
        %883 = sbr.rel (%p880) target = $region112
      $region111: #{bottleneck_forward.7} parent=5 // pred_region
        %s884 = ssub.s32 %s12, 1
        %s885 = sand.u32 %s79, 1
        %s886 = sand.u32 %s79, 1
        %s887 = smul.addr %s886, 576
        %s888 = scalar_lea.vmem [#allocation2], %s887
        // Predicated region
        $region113: #{bottleneck_forward.7} parent=111 // pred_check
          %p889 = pneg %p92
        $region114: #{bottleneck_forward.7} parent=111 // pred_check_branch
          %891 = sbr.rel (%p889) target = $region116
        $region115: #{bottleneck_forward.7} parent=111 // pred_region
          _
        $region116: #{bottleneck_forward.7} parent=111 // pred_fallthru
          _
        %s892 = sand.u32 %s107, 1
        %s893 = sand.u32 %s107, 1
        %s894 = smul.addr %s893, 576
        %s895 = scalar_lea.vmem [#allocation3], %s894
        // Predicated region
        $region117: #{bottleneck_forward.7} parent=111 // pred_check
          %p896 = pneg %p120
        $region118: #{bottleneck_forward.7} parent=111 // pred_check_branch
          %898 = sbr.rel (%p896) target = $region120
        $region119: #{bottleneck_forward.7} parent=111 // pred_region
          _
        $region120: #{bottleneck_forward.7} parent=111 // pred_fallthru
          _
        %p899 = pneg %p45
        %p900 = pneg %p42
        %p901 = pneg %p66
        %p902 = pneg %p63
        %s903 = sand.u32 %s79, 1
        %s904 = sand.u32 %s79, 1
        %s905 = smul.addr %s904, 576
        %s906 = scalar_lea.vmem [#allocation2], %s905
        %p907 = pneg %p92
        %p908 = pneg %p89
        %s909 = sand.u32 %s107, 1
        %s910 = sand.u32 %s107, 1
        %s911 = smul.addr %s910, 576
        %s912 = scalar_lea.vmem [#allocation3], %s911
        %p913 = pneg %p120
        %p914 = pneg %p117
        %p915 = pneg %p141
        %p916 = pneg %p138
        %p917 = pneg %p162
        %p918 = pneg %p159
        %p919 = pneg %p190
        %p920 = pneg %p187
        %s921 = smul.u32 16, %s22
        %p922 = scmp.lt.s32.totalorder %s21, 1
        %s923 = scalar_select %p922, %s21, 1
        %p924 = scmp.lt.s32.totalorder %s921, 31
        %s925 = scalar_select %p924, %s921, 31
        %s926 = smul.addr %s923, 32
        %s927 = sadd.s32 %s925, %s926
        %s928 = smul.addr %s927, 8
        %s929 = scalar_lea.vmem %s6, %s928
        %s930 = smul.u32 8, %s22
        %s931 = smul.u32 3, %s21
        %s932 = smul.u32 8, %s22
        %s933 = smul.u32 16, %s22
        %p934 = scmp.lt.s32.totalorder %s21, 1
        %s935 = scalar_select %p934, %s21, 1
        %p936 = scmp.lt.s32.totalorder %s933, 31
        %s937 = scalar_select %p936, %s933, 31
        %s938 = smul.addr %s935, 32
        %s939 = sadd.s32 %s937, %s938
        %s940 = smul.addr %s939, 8
        %s941 = scalar_lea.vmem %s6, %s940
        %s942 = smul.u32 16, %s22
        %v944 = vld [vmem:[%s0] sm:$0x1]
        %v945 = vld [vmem:[%s1] sm:$0x1]
        %v946 = vld [vmem:[%s895] sm:$0xff]
        %v947 = vld [vmem:[%s895 + $0x8] sm:$0xff]
        %v948 = vld [vmem:[%s895 + $0x10] sm:$0x3]
        %v949 = vld [vmem:[%s895 + $0x18] sm:$0xff]
        %v950 = vld [vmem:[%s895 + $0x20] sm:$0xff]
        %v951 = vld [vmem:[%s895 + $0x28] sm:$0x3]
        %v952 = vld [vmem:[%s895 + $0x30] sm:$0xff]
        %v953 = vld [vmem:[%s895 + $0x38] sm:$0xff]
        %v954 = vld [vmem:[%s895 + $0x40] sm:$0x3]
        %v955 = vld [vmem:[%s895 + $0x48] sm:$0xff]
        %v956 = vld [vmem:[%s895 + $0x50] sm:$0xff]
        %v957 = vld [vmem:[%s895 + $0x58] sm:$0x3]
        %v958 = vld [vmem:[%s895 + $0x60] sm:$0xff]
        %v959 = vld [vmem:[%s895 + $0x68] sm:$0xff]
        %v960 = vld [vmem:[%s895 + $0x70] sm:$0x3]
        %v961 = vld [vmem:[%s895 + $0x78] sm:$0xff]
        %v962 = vld [vmem:[%s895 + $0x80] sm:$0xff]
        %v963 = vld [vmem:[%s895 + $0x88] sm:$0x3]
        %v964 = vld [vmem:[%s895 + $0x90] sm:$0xff]
        %v965 = vld [vmem:[%s895 + $0x98] sm:$0xff]
        %v966 = vld [vmem:[%s895 + $0xa0] sm:$0x3]
        %v967 = vld [vmem:[%s895 + $0xa8] sm:$0xff]
        %v968 = vld [vmem:[%s895 + $0xb0] sm:$0xff]
        %v969 = vld [vmem:[%s895 + $0xb8] sm:$0x3]
        %v971 = vlaneseq
        %v972 = vshrl.u32 %v971, 7
        %v973 = vsub.s32 0, %v972
        %v974 = vrot.slane %v944, %v973
        %v976 = vmul.f32 %v946, %v974
        %v977 = vmul.f32 %v947, %v974
        %v978 = vmul.f32 %v948, %v974
        %v979 = vmul.f32 %v949, %v974
        %v980 = vmul.f32 %v950, %v974
        %v981 = vmul.f32 %v951, %v974
        %v982 = vmul.f32 %v952, %v974
        %v983 = vmul.f32 %v953, %v974
        %v984 = vmul.f32 %v954, %v974
        %v985 = vmul.f32 %v955, %v974
        %v986 = vmul.f32 %v956, %v974
        %v987 = vmul.f32 %v957, %v974
        %v988 = vmul.f32 %v958, %v974
        %v989 = vmul.f32 %v959, %v974
        %v990 = vmul.f32 %v960, %v974
        %v991 = vmul.f32 %v961, %v974
        %v992 = vmul.f32 %v962, %v974
        %v993 = vmul.f32 %v963, %v974
        %v994 = vmul.f32 %v964, %v974
        %v995 = vmul.f32 %v965, %v974
        %v996 = vmul.f32 %v966, %v974
        %v997 = vmul.f32 %v967, %v974
        %v998 = vmul.f32 %v968, %v974
        %v999 = vmul.f32 %v969, %v974
        %v1001 = vlaneseq
        %v1002 = vshrl.u32 %v1001, 7
        %v1003 = vsub.s32 0, %v1002
        %v1004 = vrot.slane %v945, %v1003
        %v1006 = vadd.f32 %v976, %v1004
        %v1007 = vadd.f32 %v977, %v1004
        %v1008 = vadd.f32 %v978, %v1004
        %v1009 = vadd.f32 %v979, %v1004
        %v1010 = vadd.f32 %v980, %v1004
        %v1011 = vadd.f32 %v981, %v1004
        %v1012 = vadd.f32 %v982, %v1004
        %v1013 = vadd.f32 %v983, %v1004
        %v1014 = vadd.f32 %v984, %v1004
        %v1015 = vadd.f32 %v985, %v1004
        %v1016 = vadd.f32 %v986, %v1004
        %v1017 = vadd.f32 %v987, %v1004
        %v1018 = vadd.f32 %v988, %v1004
        %v1019 = vadd.f32 %v989, %v1004
        %v1020 = vadd.f32 %v990, %v1004
        %v1021 = vadd.f32 %v991, %v1004
        %v1022 = vadd.f32 %v992, %v1004
        %v1023 = vadd.f32 %v993, %v1004
        %v1024 = vadd.f32 %v994, %v1004
        %v1025 = vadd.f32 %v995, %v1004
        %v1026 = vadd.f32 %v996, %v1004
        %v1027 = vadd.f32 %v997, %v1004
        %v1028 = vadd.f32 %v998, %v1004
        %v1029 = vadd.f32 %v999, %v1004
        %v1030 = vmax.f32 %v1006, 0.0
        %v1031 = vmax.f32 %v1007, 0.0
        %v1032 = vmax.f32 %v1008, 0.0
        %v1033 = vmax.f32 %v1009, 0.0
        %v1034 = vmax.f32 %v1010, 0.0
        %v1035 = vmax.f32 %v1011, 0.0
        %v1036 = vmax.f32 %v1012, 0.0
        %v1037 = vmax.f32 %v1013, 0.0
        %v1038 = vmax.f32 %v1014, 0.0
        %v1039 = vmax.f32 %v1015, 0.0
        %v1040 = vmax.f32 %v1016, 0.0
        %v1041 = vmax.f32 %v1017, 0.0
        %v1042 = vmax.f32 %v1018, 0.0
        %v1043 = vmax.f32 %v1019, 0.0
        %v1044 = vmax.f32 %v1020, 0.0
        %v1045 = vmax.f32 %v1021, 0.0
        %v1046 = vmax.f32 %v1022, 0.0
        %v1047 = vmax.f32 %v1023, 0.0
        %v1048 = vmax.f32 %v1024, 0.0
        %v1049 = vmax.f32 %v1025, 0.0
        %v1050 = vmax.f32 %v1026, 0.0
        %v1051 = vmax.f32 %v1027, 0.0
        %v1052 = vmax.f32 %v1028, 0.0
        %v1053 = vmax.f32 %v1029, 0.0
        %v1054 = vld [vmem:[%s888] sm:$0xff]
        %v1055 = vld [vmem:[%s888 + $0x8] sm:$0xff]
        %v1056 = vld [vmem:[%s888 + $0x10] sm:$0x3]
        %v1057 = vld [vmem:[%s888 + $0x18] sm:$0xff]
        %v1058 = vld [vmem:[%s888 + $0x20] sm:$0xff]
        %v1059 = vld [vmem:[%s888 + $0x28] sm:$0x3]
        %v1060 = vld [vmem:[%s888 + $0x30] sm:$0xff]
        %v1061 = vld [vmem:[%s888 + $0x38] sm:$0xff]
        %v1062 = vld [vmem:[%s888 + $0x40] sm:$0x3]
        %v1063 = vld [vmem:[%s888 + $0x48] sm:$0xff]
        %v1064 = vld [vmem:[%s888 + $0x50] sm:$0xff]
        %v1065 = vld [vmem:[%s888 + $0x58] sm:$0x3]
        %v1066 = vld [vmem:[%s888 + $0x60] sm:$0xff]
        %v1067 = vld [vmem:[%s888 + $0x68] sm:$0xff]
        %v1068 = vld [vmem:[%s888 + $0x70] sm:$0x3]
        %v1069 = vld [vmem:[%s888 + $0x78] sm:$0xff]
        %v1070 = vld [vmem:[%s888 + $0x80] sm:$0xff]
        %v1071 = vld [vmem:[%s888 + $0x88] sm:$0x3]
        %v1072 = vld [vmem:[%s888 + $0x90] sm:$0xff]
        %v1073 = vld [vmem:[%s888 + $0x98] sm:$0xff]
        %v1074 = vld [vmem:[%s888 + $0xa0] sm:$0x3]
        %v1075 = vld [vmem:[%s888 + $0xa8] sm:$0xff]
        %v1076 = vld [vmem:[%s888 + $0xb0] sm:$0xff]
        %v1077 = vld [vmem:[%s888 + $0xb8] sm:$0x3]
        %1079 = vset.pattern.permute.xlu0 0
        %1080 = vperm.xlu0 %1079, %v1054
        %v1081 = vpop.permute.xlu0 %1080
        %1084 = vset.pattern.permute.xlu0 0
        %1085 = vperm.xlu0 %1084, %v1055
        %v1086 = vpop.permute.xlu0 %1085
        %1089 = vset.pattern.permute.xlu0 0
        %1090 = vperm.xlu0 %1089, %v1056
        %v1091 = vpop.permute.xlu0 %1090
        %1094 = vset.pattern.permute.xlu0 0
        %1095 = vperm.xlu0 %1094, %v1057
        %v1096 = vpop.permute.xlu0 %1095
        %1099 = vset.pattern.permute.xlu0 0
        %1100 = vperm.xlu0 %1099, %v1058
        %v1101 = vpop.permute.xlu0 %1100
        %1104 = vset.pattern.permute.xlu0 0
        %1105 = vperm.xlu0 %1104, %v1059
        %v1106 = vpop.permute.xlu0 %1105
        %1109 = vset.pattern.permute.xlu0 0
        %1110 = vperm.xlu0 %1109, %v1060
        %v1111 = vpop.permute.xlu0 %1110
        %1114 = vset.pattern.permute.xlu0 0
        %1115 = vperm.xlu0 %1114, %v1061
        %v1116 = vpop.permute.xlu0 %1115
        %1119 = vset.pattern.permute.xlu0 0
        %1120 = vperm.xlu0 %1119, %v1062
        %v1121 = vpop.permute.xlu0 %1120
        %1124 = vset.pattern.permute.xlu0 0
        %1125 = vperm.xlu0 %1124, %v1063
        %v1126 = vpop.permute.xlu0 %1125
        %1129 = vset.pattern.permute.xlu0 0
        %1130 = vperm.xlu0 %1129, %v1064
        %v1131 = vpop.permute.xlu0 %1130
        %1134 = vset.pattern.permute.xlu0 0
        %1135 = vperm.xlu0 %1134, %v1065
        %v1136 = vpop.permute.xlu0 %1135
        %1139 = vset.pattern.permute.xlu0 0
        %1140 = vperm.xlu0 %1139, %v1066
        %v1141 = vpop.permute.xlu0 %1140
        %1144 = vset.pattern.permute.xlu0 0
        %1145 = vperm.xlu0 %1144, %v1067
        %v1146 = vpop.permute.xlu0 %1145
        %1149 = vset.pattern.permute.xlu0 0
        %1150 = vperm.xlu0 %1149, %v1068
        %v1151 = vpop.permute.xlu0 %1150
        %1154 = vset.pattern.permute.xlu0 0
        %1155 = vperm.xlu0 %1154, %v1069
        %v1156 = vpop.permute.xlu0 %1155
        %1159 = vset.pattern.permute.xlu0 0
        %1160 = vperm.xlu0 %1159, %v1070
        %v1161 = vpop.permute.xlu0 %1160
        %1164 = vset.pattern.permute.xlu0 0
        %1165 = vperm.xlu0 %1164, %v1071
        %v1166 = vpop.permute.xlu0 %1165
        %1169 = vset.pattern.permute.xlu0 0
        %1170 = vperm.xlu0 %1169, %v1072
        %v1171 = vpop.permute.xlu0 %1170
        %1174 = vset.pattern.permute.xlu0 0
        %1175 = vperm.xlu0 %1174, %v1073
        %v1176 = vpop.permute.xlu0 %1175
        %1179 = vset.pattern.permute.xlu0 0
        %1180 = vperm.xlu0 %1179, %v1074
        %v1181 = vpop.permute.xlu0 %1180
        %1184 = vset.pattern.permute.xlu0 0
        %1185 = vperm.xlu0 %1184, %v1075
        %v1186 = vpop.permute.xlu0 %1185
        %1189 = vset.pattern.permute.xlu0 0
        %1190 = vperm.xlu0 %1189, %v1076
        %v1191 = vpop.permute.xlu0 %1190
        %1194 = vset.pattern.permute.xlu0 0
        %1195 = vperm.xlu0 %1194, %v1077
        %v1196 = vpop.permute.xlu0 %1195
        %v1198 = vmul.f32 %v1030, %v1081
        %v1199 = vmul.f32 %v1031, %v1086
        %v1200 = vmul.f32 %v1032, %v1091
        %v1201 = vmul.f32 %v1033, %v1096
        %v1202 = vmul.f32 %v1034, %v1101
        %v1203 = vmul.f32 %v1035, %v1106
        %v1204 = vmul.f32 %v1036, %v1111
        %v1205 = vmul.f32 %v1037, %v1116
        %v1206 = vmul.f32 %v1038, %v1121
        %v1207 = vmul.f32 %v1039, %v1126
        %v1208 = vmul.f32 %v1040, %v1131
        %v1209 = vmul.f32 %v1041, %v1136
        %v1210 = vmul.f32 %v1042, %v1141
        %v1211 = vmul.f32 %v1043, %v1146
        %v1212 = vmul.f32 %v1044, %v1151
        %v1213 = vmul.f32 %v1045, %v1156
        %v1214 = vmul.f32 %v1046, %v1161
        %v1215 = vmul.f32 %v1047, %v1166
        %v1216 = vmul.f32 %v1048, %v1171
        %v1217 = vmul.f32 %v1049, %v1176
        %v1218 = vmul.f32 %v1050, %v1181
        %v1219 = vmul.f32 %v1051, %v1186
        %v1220 = vmul.f32 %v1052, %v1191
        %v1221 = vmul.f32 %v1053, %v1196
        %v1222 = vpack.c.bf16 %v1199, %v1198
        %v1223 = vpack.c.bf16 %v1200, %v1200
        %v1224 = vpack.c.bf16 %v1202, %v1201
        %v1225 = vpack.c.bf16 %v1203, %v1203
        %v1226 = vpack.c.bf16 %v1205, %v1204
        %v1227 = vpack.c.bf16 %v1206, %v1206
        %v1228 = vpack.c.bf16 %v1208, %v1207
        %v1229 = vpack.c.bf16 %v1209, %v1209
        %v1230 = vpack.c.bf16 %v1211, %v1210
        %v1231 = vpack.c.bf16 %v1212, %v1212
        %v1232 = vpack.c.bf16 %v1214, %v1213
        %v1233 = vpack.c.bf16 %v1215, %v1215
        %v1234 = vpack.c.bf16 %v1217, %v1216
        %v1235 = vpack.c.bf16 %v1218, %v1218
        %v1236 = vpack.c.bf16 %v1220, %v1219
        %v1237 = vpack.c.bf16 %v1221, %v1221
        %s1238 = scalar_lea.vmem %s895, 192 [#allocation3]
        %v1239 = vld [vmem:[%s1238] sm:$0xff]
        %v1240 = vld [vmem:[%s1238 + $0x8] sm:$0xff]
        %v1241 = vld [vmem:[%s1238 + $0x10] sm:$0x3]
        %v1242 = vld [vmem:[%s1238 + $0x18] sm:$0xff]
        %v1243 = vld [vmem:[%s1238 + $0x20] sm:$0xff]
        %v1244 = vld [vmem:[%s1238 + $0x28] sm:$0x3]
        %v1245 = vld [vmem:[%s1238 + $0x30] sm:$0xff]
        %v1246 = vld [vmem:[%s1238 + $0x38] sm:$0xff]
        %v1247 = vld [vmem:[%s1238 + $0x40] sm:$0x3]
        %v1248 = vld [vmem:[%s1238 + $0x48] sm:$0xff]
        %v1249 = vld [vmem:[%s1238 + $0x50] sm:$0xff]
        %v1250 = vld [vmem:[%s1238 + $0x58] sm:$0x3]
        %v1251 = vld [vmem:[%s1238 + $0x60] sm:$0xff]
        %v1252 = vld [vmem:[%s1238 + $0x68] sm:$0xff]
        %v1253 = vld [vmem:[%s1238 + $0x70] sm:$0x3]
        %v1254 = vld [vmem:[%s1238 + $0x78] sm:$0xff]
        %v1255 = vld [vmem:[%s1238 + $0x80] sm:$0xff]
        %v1256 = vld [vmem:[%s1238 + $0x88] sm:$0x3]
        %v1257 = vld [vmem:[%s1238 + $0x90] sm:$0xff]
        %v1258 = vld [vmem:[%s1238 + $0x98] sm:$0xff]
        %v1259 = vld [vmem:[%s1238 + $0xa0] sm:$0x3]
        %v1260 = vld [vmem:[%s1238 + $0xa8] sm:$0xff]
        %v1261 = vld [vmem:[%s1238 + $0xb0] sm:$0xff]
        %v1262 = vld [vmem:[%s1238 + $0xb8] sm:$0x3]
        %v1263 = vmul.f32 %v1239, %v974
        %v1264 = vmul.f32 %v1240, %v974
        %v1265 = vmul.f32 %v1241, %v974
        %v1266 = vmul.f32 %v1242, %v974
        %v1267 = vmul.f32 %v1243, %v974
        %v1268 = vmul.f32 %v1244, %v974
        %v1269 = vmul.f32 %v1245, %v974
        %v1270 = vmul.f32 %v1246, %v974
        %v1271 = vmul.f32 %v1247, %v974
        %v1272 = vmul.f32 %v1248, %v974
        %v1273 = vmul.f32 %v1249, %v974
        %v1274 = vmul.f32 %v1250, %v974
        %v1275 = vmul.f32 %v1251, %v974
        %v1276 = vmul.f32 %v1252, %v974
        %v1277 = vmul.f32 %v1253, %v974
        %v1278 = vmul.f32 %v1254, %v974
        %v1279 = vmul.f32 %v1255, %v974
        %v1280 = vmul.f32 %v1256, %v974
        %v1281 = vmul.f32 %v1257, %v974
        %v1282 = vmul.f32 %v1258, %v974
        %v1283 = vmul.f32 %v1259, %v974
        %v1284 = vmul.f32 %v1260, %v974
        %v1285 = vmul.f32 %v1261, %v974
        %v1286 = vmul.f32 %v1262, %v974
        %v1287 = vadd.f32 %v1263, %v1004
        %v1288 = vadd.f32 %v1264, %v1004
        %v1289 = vadd.f32 %v1265, %v1004
        %v1290 = vadd.f32 %v1266, %v1004
        %v1291 = vadd.f32 %v1267, %v1004
        %v1292 = vadd.f32 %v1268, %v1004
        %v1293 = vadd.f32 %v1269, %v1004
        %v1294 = vadd.f32 %v1270, %v1004
        %v1295 = vadd.f32 %v1271, %v1004
        %v1296 = vadd.f32 %v1272, %v1004
        %v1297 = vadd.f32 %v1273, %v1004
        %v1298 = vadd.f32 %v1274, %v1004
        %v1299 = vadd.f32 %v1275, %v1004
        %v1300 = vadd.f32 %v1276, %v1004
        %v1301 = vadd.f32 %v1277, %v1004
        %v1302 = vadd.f32 %v1278, %v1004
        %v1303 = vadd.f32 %v1279, %v1004
        %v1304 = vadd.f32 %v1280, %v1004
        %v1305 = vadd.f32 %v1281, %v1004
        %v1306 = vadd.f32 %v1282, %v1004
        %v1307 = vadd.f32 %v1283, %v1004
        %v1308 = vadd.f32 %v1284, %v1004
        %v1309 = vadd.f32 %v1285, %v1004
        %v1310 = vadd.f32 %v1286, %v1004
        %v1311 = vmax.f32 %v1287, 0.0
        %v1312 = vmax.f32 %v1288, 0.0
        %v1313 = vmax.f32 %v1289, 0.0
        %v1314 = vmax.f32 %v1290, 0.0
        %v1315 = vmax.f32 %v1291, 0.0
        %v1316 = vmax.f32 %v1292, 0.0
        %v1317 = vmax.f32 %v1293, 0.0
        %v1318 = vmax.f32 %v1294, 0.0
        %v1319 = vmax.f32 %v1295, 0.0
        %v1320 = vmax.f32 %v1296, 0.0
        %v1321 = vmax.f32 %v1297, 0.0
        %v1322 = vmax.f32 %v1298, 0.0
        %v1323 = vmax.f32 %v1299, 0.0
        %v1324 = vmax.f32 %v1300, 0.0
        %v1325 = vmax.f32 %v1301, 0.0
        %v1326 = vmax.f32 %v1302, 0.0
        %v1327 = vmax.f32 %v1303, 0.0
        %v1328 = vmax.f32 %v1304, 0.0
        %v1329 = vmax.f32 %v1305, 0.0
        %v1330 = vmax.f32 %v1306, 0.0
        %v1331 = vmax.f32 %v1307, 0.0
        %v1332 = vmax.f32 %v1308, 0.0
        %v1333 = vmax.f32 %v1309, 0.0
        %v1334 = vmax.f32 %v1310, 0.0
        %s1335 = scalar_lea.vmem %s888, 192 [#allocation2]
        %v1336 = vld [vmem:[%s1335] sm:$0xff]
        %v1337 = vld [vmem:[%s1335 + $0x8] sm:$0xff]
        %v1338 = vld [vmem:[%s1335 + $0x10] sm:$0x3]
        %v1339 = vld [vmem:[%s1335 + $0x18] sm:$0xff]
        %v1340 = vld [vmem:[%s1335 + $0x20] sm:$0xff]
        %v1341 = vld [vmem:[%s1335 + $0x28] sm:$0x3]
        %v1342 = vld [vmem:[%s1335 + $0x30] sm:$0xff]
        %v1343 = vld [vmem:[%s1335 + $0x38] sm:$0xff]
        %v1344 = vld [vmem:[%s1335 + $0x40] sm:$0x3]
        %v1345 = vld [vmem:[%s1335 + $0x48] sm:$0xff]
        %v1346 = vld [vmem:[%s1335 + $0x50] sm:$0xff]
        %v1347 = vld [vmem:[%s1335 + $0x58] sm:$0x3]
        %v1348 = vld [vmem:[%s1335 + $0x60] sm:$0xff]
        %v1349 = vld [vmem:[%s1335 + $0x68] sm:$0xff]
        %v1350 = vld [vmem:[%s1335 + $0x70] sm:$0x3]
        %v1351 = vld [vmem:[%s1335 + $0x78] sm:$0xff]
        %v1352 = vld [vmem:[%s1335 + $0x80] sm:$0xff]
        %v1353 = vld [vmem:[%s1335 + $0x88] sm:$0x3]
        %v1354 = vld [vmem:[%s1335 + $0x90] sm:$0xff]
        %v1355 = vld [vmem:[%s1335 + $0x98] sm:$0xff]
        %v1356 = vld [vmem:[%s1335 + $0xa0] sm:$0x3]
        %v1357 = vld [vmem:[%s1335 + $0xa8] sm:$0xff]
        %v1358 = vld [vmem:[%s1335 + $0xb0] sm:$0xff]
        %v1359 = vld [vmem:[%s1335 + $0xb8] sm:$0x3]
        %1361 = vset.pattern.permute.xlu0 0
        %1362 = vperm.xlu0 %1361, %v1336
        %v1363 = vpop.permute.xlu0 %1362
        %1366 = vset.pattern.permute.xlu0 0
        %1367 = vperm.xlu0 %1366, %v1337
        %v1368 = vpop.permute.xlu0 %1367
        %1371 = vset.pattern.permute.xlu0 0
        %1372 = vperm.xlu0 %1371, %v1338
        %v1373 = vpop.permute.xlu0 %1372
        %1376 = vset.pattern.permute.xlu0 0
        %1377 = vperm.xlu0 %1376, %v1339
        %v1378 = vpop.permute.xlu0 %1377
        %1381 = vset.pattern.permute.xlu0 0
        %1382 = vperm.xlu0 %1381, %v1340
        %v1383 = vpop.permute.xlu0 %1382
        %1386 = vset.pattern.permute.xlu0 0
        %1387 = vperm.xlu0 %1386, %v1341
        %v1388 = vpop.permute.xlu0 %1387
        %1391 = vset.pattern.permute.xlu0 0
        %1392 = vperm.xlu0 %1391, %v1342
        %v1393 = vpop.permute.xlu0 %1392
        %1396 = vset.pattern.permute.xlu0 0
        %1397 = vperm.xlu0 %1396, %v1343
        %v1398 = vpop.permute.xlu0 %1397
        %1401 = vset.pattern.permute.xlu0 0
        %1402 = vperm.xlu0 %1401, %v1344
        %v1403 = vpop.permute.xlu0 %1402
        %1406 = vset.pattern.permute.xlu0 0
        %1407 = vperm.xlu0 %1406, %v1345
        %v1408 = vpop.permute.xlu0 %1407
        %1411 = vset.pattern.permute.xlu0 0
        %1412 = vperm.xlu0 %1411, %v1346
        %v1413 = vpop.permute.xlu0 %1412
        %1416 = vset.pattern.permute.xlu0 0
        %1417 = vperm.xlu0 %1416, %v1347
        %v1418 = vpop.permute.xlu0 %1417
        %1421 = vset.pattern.permute.xlu0 0
        %1422 = vperm.xlu0 %1421, %v1348
        %v1423 = vpop.permute.xlu0 %1422
        %1426 = vset.pattern.permute.xlu0 0
        %1427 = vperm.xlu0 %1426, %v1349
        %v1428 = vpop.permute.xlu0 %1427
        %1431 = vset.pattern.permute.xlu0 0
        %1432 = vperm.xlu0 %1431, %v1350
        %v1433 = vpop.permute.xlu0 %1432
        %1436 = vset.pattern.permute.xlu0 0
        %1437 = vperm.xlu0 %1436, %v1351
        %v1438 = vpop.permute.xlu0 %1437
        %1441 = vset.pattern.permute.xlu0 0
        %1442 = vperm.xlu0 %1441, %v1352
        %v1443 = vpop.permute.xlu0 %1442
        %1446 = vset.pattern.permute.xlu0 0
        %1447 = vperm.xlu0 %1446, %v1353
        %v1448 = vpop.permute.xlu0 %1447
        %1451 = vset.pattern.permute.xlu0 0
        %1452 = vperm.xlu0 %1451, %v1354
        %v1453 = vpop.permute.xlu0 %1452
        %1456 = vset.pattern.permute.xlu0 0
        %1457 = vperm.xlu0 %1456, %v1355
        %v1458 = vpop.permute.xlu0 %1457
        %1461 = vset.pattern.permute.xlu0 0
        %1462 = vperm.xlu0 %1461, %v1356
        %v1463 = vpop.permute.xlu0 %1462
        %1466 = vset.pattern.permute.xlu0 0
        %1467 = vperm.xlu0 %1466, %v1357
        %v1468 = vpop.permute.xlu0 %1467
        %1471 = vset.pattern.permute.xlu0 0
        %1472 = vperm.xlu0 %1471, %v1358
        %v1473 = vpop.permute.xlu0 %1472
        %1476 = vset.pattern.permute.xlu0 0
        %1477 = vperm.xlu0 %1476, %v1359
        %v1478 = vpop.permute.xlu0 %1477
        %v1480 = vmul.f32 %v1311, %v1363
        %v1481 = vmul.f32 %v1312, %v1368
        %v1482 = vmul.f32 %v1313, %v1373
        %v1483 = vmul.f32 %v1314, %v1378
        %v1484 = vmul.f32 %v1315, %v1383
        %v1485 = vmul.f32 %v1316, %v1388
        %v1486 = vmul.f32 %v1317, %v1393
        %v1487 = vmul.f32 %v1318, %v1398
        %v1488 = vmul.f32 %v1319, %v1403
        %v1489 = vmul.f32 %v1320, %v1408
        %v1490 = vmul.f32 %v1321, %v1413
        %v1491 = vmul.f32 %v1322, %v1418
        %v1492 = vmul.f32 %v1323, %v1423
        %v1493 = vmul.f32 %v1324, %v1428
        %v1494 = vmul.f32 %v1325, %v1433
        %v1495 = vmul.f32 %v1326, %v1438
        %v1496 = vmul.f32 %v1327, %v1443
        %v1497 = vmul.f32 %v1328, %v1448
        %v1498 = vmul.f32 %v1329, %v1453
        %v1499 = vmul.f32 %v1330, %v1458
        %v1500 = vmul.f32 %v1331, %v1463
        %v1501 = vmul.f32 %v1332, %v1468
        %v1502 = vmul.f32 %v1333, %v1473
        %v1503 = vmul.f32 %v1334, %v1478
        %v1504 = vpack.c.bf16 %v1481, %v1480
        %v1505 = vpack.c.bf16 %v1482, %v1482
        %v1506 = vpack.c.bf16 %v1484, %v1483
        %v1507 = vpack.c.bf16 %v1485, %v1485
        %v1508 = vpack.c.bf16 %v1487, %v1486
        %v1509 = vpack.c.bf16 %v1488, %v1488
        %v1510 = vpack.c.bf16 %v1490, %v1489
        %v1511 = vpack.c.bf16 %v1491, %v1491
        %v1512 = vpack.c.bf16 %v1493, %v1492
        %v1513 = vpack.c.bf16 %v1494, %v1494
        %v1514 = vpack.c.bf16 %v1496, %v1495
        %v1515 = vpack.c.bf16 %v1497, %v1497
        %v1516 = vpack.c.bf16 %v1499, %v1498
        %v1517 = vpack.c.bf16 %v1500, %v1500
        %v1518 = vpack.c.bf16 %v1502, %v1501
        %v1519 = vpack.c.bf16 %v1503, %v1503
        %s1520 = scalar_lea.vmem %s895, 384 [#allocation3]
        %v1521 = vld [vmem:[%s1520] sm:$0xff]
        %v1522 = vld [vmem:[%s1520 + $0x8] sm:$0xff]
        %v1523 = vld [vmem:[%s1520 + $0x10] sm:$0x3]
        %v1524 = vld [vmem:[%s1520 + $0x18] sm:$0xff]
        %v1525 = vld [vmem:[%s1520 + $0x20] sm:$0xff]
        %v1526 = vld [vmem:[%s1520 + $0x28] sm:$0x3]
        %v1527 = vld [vmem:[%s1520 + $0x30] sm:$0xff]
        %v1528 = vld [vmem:[%s1520 + $0x38] sm:$0xff]
        %v1529 = vld [vmem:[%s1520 + $0x40] sm:$0x3]
        %v1530 = vld [vmem:[%s1520 + $0x48] sm:$0xff]
        %v1531 = vld [vmem:[%s1520 + $0x50] sm:$0xff]
        %v1532 = vld [vmem:[%s1520 + $0x58] sm:$0x3]
        %v1533 = vld [vmem:[%s1520 + $0x60] sm:$0xff]
        %v1534 = vld [vmem:[%s1520 + $0x68] sm:$0xff]
        %v1535 = vld [vmem:[%s1520 + $0x70] sm:$0x3]
        %v1536 = vld [vmem:[%s1520 + $0x78] sm:$0xff]
        %v1537 = vld [vmem:[%s1520 + $0x80] sm:$0xff]
        %v1538 = vld [vmem:[%s1520 + $0x88] sm:$0x3]
        %v1539 = vld [vmem:[%s1520 + $0x90] sm:$0xff]
        %v1540 = vld [vmem:[%s1520 + $0x98] sm:$0xff]
        %v1541 = vld [vmem:[%s1520 + $0xa0] sm:$0x3]
        %v1542 = vld [vmem:[%s1520 + $0xa8] sm:$0xff]
        %v1543 = vld [vmem:[%s1520 + $0xb0] sm:$0xff]
        %v1544 = vld [vmem:[%s1520 + $0xb8] sm:$0x3]
        %v1545 = vmul.f32 %v1521, %v974
        %v1546 = vmul.f32 %v1522, %v974
        %v1547 = vmul.f32 %v1523, %v974
        %v1548 = vmul.f32 %v1524, %v974
        %v1549 = vmul.f32 %v1525, %v974
        %v1550 = vmul.f32 %v1526, %v974
        %v1551 = vmul.f32 %v1527, %v974
        %v1552 = vmul.f32 %v1528, %v974
        %v1553 = vmul.f32 %v1529, %v974
        %v1554 = vmul.f32 %v1530, %v974
        %v1555 = vmul.f32 %v1531, %v974
        %v1556 = vmul.f32 %v1532, %v974
        %v1557 = vmul.f32 %v1533, %v974
        %v1558 = vmul.f32 %v1534, %v974
        %v1559 = vmul.f32 %v1535, %v974
        %v1560 = vmul.f32 %v1536, %v974
        %v1561 = vmul.f32 %v1537, %v974
        %v1562 = vmul.f32 %v1538, %v974
        %v1563 = vmul.f32 %v1539, %v974
        %v1564 = vmul.f32 %v1540, %v974
        %v1565 = vmul.f32 %v1541, %v974
        %v1566 = vmul.f32 %v1542, %v974
        %v1567 = vmul.f32 %v1543, %v974
        %v1568 = vmul.f32 %v1544, %v974
        %v1569 = vadd.f32 %v1545, %v1004
        %v1570 = vadd.f32 %v1546, %v1004
        %v1571 = vadd.f32 %v1547, %v1004
        %v1572 = vadd.f32 %v1548, %v1004
        %v1573 = vadd.f32 %v1549, %v1004
        %v1574 = vadd.f32 %v1550, %v1004
        %v1575 = vadd.f32 %v1551, %v1004
        %v1576 = vadd.f32 %v1552, %v1004
        %v1577 = vadd.f32 %v1553, %v1004
        %v1578 = vadd.f32 %v1554, %v1004
        %v1579 = vadd.f32 %v1555, %v1004
        %v1580 = vadd.f32 %v1556, %v1004
        %v1581 = vadd.f32 %v1557, %v1004
        %v1582 = vadd.f32 %v1558, %v1004
        %v1583 = vadd.f32 %v1559, %v1004
        %v1584 = vadd.f32 %v1560, %v1004
        %v1585 = vadd.f32 %v1561, %v1004
        %v1586 = vadd.f32 %v1562, %v1004
        %v1587 = vadd.f32 %v1563, %v1004
        %v1588 = vadd.f32 %v1564, %v1004
        %v1589 = vadd.f32 %v1565, %v1004
        %v1590 = vadd.f32 %v1566, %v1004
        %v1591 = vadd.f32 %v1567, %v1004
        %v1592 = vadd.f32 %v1568, %v1004
        %v1593 = vmax.f32 %v1569, 0.0
        %v1594 = vmax.f32 %v1570, 0.0
        %v1595 = vmax.f32 %v1571, 0.0
        %v1596 = vmax.f32 %v1572, 0.0
        %v1597 = vmax.f32 %v1573, 0.0
        %v1598 = vmax.f32 %v1574, 0.0
        %v1599 = vmax.f32 %v1575, 0.0
        %v1600 = vmax.f32 %v1576, 0.0
        %v1601 = vmax.f32 %v1577, 0.0
        %v1602 = vmax.f32 %v1578, 0.0
        %v1603 = vmax.f32 %v1579, 0.0
        %v1604 = vmax.f32 %v1580, 0.0
        %v1605 = vmax.f32 %v1581, 0.0
        %v1606 = vmax.f32 %v1582, 0.0
        %v1607 = vmax.f32 %v1583, 0.0
        %v1608 = vmax.f32 %v1584, 0.0
        %v1609 = vmax.f32 %v1585, 0.0
        %v1610 = vmax.f32 %v1586, 0.0
        %v1611 = vmax.f32 %v1587, 0.0
        %v1612 = vmax.f32 %v1588, 0.0
        %v1613 = vmax.f32 %v1589, 0.0
        %v1614 = vmax.f32 %v1590, 0.0
        %v1615 = vmax.f32 %v1591, 0.0
        %v1616 = vmax.f32 %v1592, 0.0
        %s1617 = scalar_lea.vmem %s888, 384 [#allocation2]
        %v1618 = vld [vmem:[%s1617] sm:$0xff]
        %v1619 = vld [vmem:[%s1617 + $0x8] sm:$0xff]
        %v1620 = vld [vmem:[%s1617 + $0x10] sm:$0x3]
        %v1621 = vld [vmem:[%s1617 + $0x18] sm:$0xff]
        %v1622 = vld [vmem:[%s1617 + $0x20] sm:$0xff]
        %v1623 = vld [vmem:[%s1617 + $0x28] sm:$0x3]
        %v1624 = vld [vmem:[%s1617 + $0x30] sm:$0xff]
        %v1625 = vld [vmem:[%s1617 + $0x38] sm:$0xff]
        %v1626 = vld [vmem:[%s1617 + $0x40] sm:$0x3]
        %v1627 = vld [vmem:[%s1617 + $0x48] sm:$0xff]
        %v1628 = vld [vmem:[%s1617 + $0x50] sm:$0xff]
        %v1629 = vld [vmem:[%s1617 + $0x58] sm:$0x3]
        %v1630 = vld [vmem:[%s1617 + $0x60] sm:$0xff]
        %v1631 = vld [vmem:[%s1617 + $0x68] sm:$0xff]
        %v1632 = vld [vmem:[%s1617 + $0x70] sm:$0x3]
        %v1633 = vld [vmem:[%s1617 + $0x78] sm:$0xff]
        %v1634 = vld [vmem:[%s1617 + $0x80] sm:$0xff]
        %v1635 = vld [vmem:[%s1617 + $0x88] sm:$0x3]
        %v1636 = vld [vmem:[%s1617 + $0x90] sm:$0xff]
        %v1637 = vld [vmem:[%s1617 + $0x98] sm:$0xff]
        %v1638 = vld [vmem:[%s1617 + $0xa0] sm:$0x3]
        %v1639 = vld [vmem:[%s1617 + $0xa8] sm:$0xff]
        %v1640 = vld [vmem:[%s1617 + $0xb0] sm:$0xff]
        %v1641 = vld [vmem:[%s1617 + $0xb8] sm:$0x3]
        %1643 = vset.pattern.permute.xlu0 0
        %1644 = vperm.xlu0 %1643, %v1618
        %v1645 = vpop.permute.xlu0 %1644
        %1648 = vset.pattern.permute.xlu0 0
        %1649 = vperm.xlu0 %1648, %v1619
        %v1650 = vpop.permute.xlu0 %1649
        %1653 = vset.pattern.permute.xlu0 0
        %1654 = vperm.xlu0 %1653, %v1620
        %v1655 = vpop.permute.xlu0 %1654
        %1658 = vset.pattern.permute.xlu0 0
        %1659 = vperm.xlu0 %1658, %v1621
        %v1660 = vpop.permute.xlu0 %1659
        %1663 = vset.pattern.permute.xlu0 0
        %1664 = vperm.xlu0 %1663, %v1622
        %v1665 = vpop.permute.xlu0 %1664
        %1668 = vset.pattern.permute.xlu0 0
        %1669 = vperm.xlu0 %1668, %v1623
        %v1670 = vpop.permute.xlu0 %1669
        %1673 = vset.pattern.permute.xlu0 0
        %1674 = vperm.xlu0 %1673, %v1624
        %v1675 = vpop.permute.xlu0 %1674
        %1678 = vset.pattern.permute.xlu0 0
        %1679 = vperm.xlu0 %1678, %v1625
        %v1680 = vpop.permute.xlu0 %1679
        %1683 = vset.pattern.permute.xlu0 0
        %1684 = vperm.xlu0 %1683, %v1626
        %v1685 = vpop.permute.xlu0 %1684
        %1688 = vset.pattern.permute.xlu0 0
        %1689 = vperm.xlu0 %1688, %v1627
        %v1690 = vpop.permute.xlu0 %1689
        %1693 = vset.pattern.permute.xlu0 0
        %1694 = vperm.xlu0 %1693, %v1628
        %v1695 = vpop.permute.xlu0 %1694
        %1698 = vset.pattern.permute.xlu0 0
        %1699 = vperm.xlu0 %1698, %v1629
        %v1700 = vpop.permute.xlu0 %1699
        %1703 = vset.pattern.permute.xlu0 0
        %1704 = vperm.xlu0 %1703, %v1630
        %v1705 = vpop.permute.xlu0 %1704
        %1708 = vset.pattern.permute.xlu0 0
        %1709 = vperm.xlu0 %1708, %v1631
        %v1710 = vpop.permute.xlu0 %1709
        %1713 = vset.pattern.permute.xlu0 0
        %1714 = vperm.xlu0 %1713, %v1632
        %v1715 = vpop.permute.xlu0 %1714
        %1718 = vset.pattern.permute.xlu0 0
        %1719 = vperm.xlu0 %1718, %v1633
        %v1720 = vpop.permute.xlu0 %1719
        %1723 = vset.pattern.permute.xlu0 0
        %1724 = vperm.xlu0 %1723, %v1634
        %v1725 = vpop.permute.xlu0 %1724
        %1728 = vset.pattern.permute.xlu0 0
        %1729 = vperm.xlu0 %1728, %v1635
        %v1730 = vpop.permute.xlu0 %1729
        %1733 = vset.pattern.permute.xlu0 0
        %1734 = vperm.xlu0 %1733, %v1636
        %v1735 = vpop.permute.xlu0 %1734
        %1738 = vset.pattern.permute.xlu0 0
        %1739 = vperm.xlu0 %1738, %v1637
        %v1740 = vpop.permute.xlu0 %1739
        %1743 = vset.pattern.permute.xlu0 0
        %1744 = vperm.xlu0 %1743, %v1638
        %v1745 = vpop.permute.xlu0 %1744
        %1748 = vset.pattern.permute.xlu0 0
        %1749 = vperm.xlu0 %1748, %v1639
        %v1750 = vpop.permute.xlu0 %1749
        %1753 = vset.pattern.permute.xlu0 0
        %1754 = vperm.xlu0 %1753, %v1640
        %v1755 = vpop.permute.xlu0 %1754
        %1758 = vset.pattern.permute.xlu0 0
        %1759 = vperm.xlu0 %1758, %v1641
        %v1760 = vpop.permute.xlu0 %1759
        %v1762 = vmul.f32 %v1593, %v1645
        %v1763 = vmul.f32 %v1594, %v1650
        %v1764 = vmul.f32 %v1595, %v1655
        %v1765 = vmul.f32 %v1596, %v1660
        %v1766 = vmul.f32 %v1597, %v1665
        %v1767 = vmul.f32 %v1598, %v1670
        %v1768 = vmul.f32 %v1599, %v1675
        %v1769 = vmul.f32 %v1600, %v1680
        %v1770 = vmul.f32 %v1601, %v1685
        %v1771 = vmul.f32 %v1602, %v1690
        %v1772 = vmul.f32 %v1603, %v1695
        %v1773 = vmul.f32 %v1604, %v1700
        %v1774 = vmul.f32 %v1605, %v1705
        %v1775 = vmul.f32 %v1606, %v1710
        %v1776 = vmul.f32 %v1607, %v1715
        %v1777 = vmul.f32 %v1608, %v1720
        %v1778 = vmul.f32 %v1609, %v1725
        %v1779 = vmul.f32 %v1610, %v1730
        %v1780 = vmul.f32 %v1611, %v1735
        %v1781 = vmul.f32 %v1612, %v1740
        %v1782 = vmul.f32 %v1613, %v1745
        %v1783 = vmul.f32 %v1614, %v1750
        %v1784 = vmul.f32 %v1615, %v1755
        %v1785 = vmul.f32 %v1616, %v1760
        %v1786 = vpack.c.bf16 %v1763, %v1762
        %v1787 = vpack.c.bf16 %v1764, %v1764
        %v1788 = vpack.c.bf16 %v1766, %v1765
        %v1789 = vpack.c.bf16 %v1767, %v1767
        %v1790 = vpack.c.bf16 %v1769, %v1768
        %v1791 = vpack.c.bf16 %v1770, %v1770
        %v1792 = vpack.c.bf16 %v1772, %v1771
        %v1793 = vpack.c.bf16 %v1773, %v1773
        %v1794 = vpack.c.bf16 %v1775, %v1774
        %v1795 = vpack.c.bf16 %v1776, %v1776
        %v1796 = vpack.c.bf16 %v1778, %v1777
        %v1797 = vpack.c.bf16 %v1779, %v1779
        %v1798 = vpack.c.bf16 %v1781, %v1780
        %v1799 = vpack.c.bf16 %v1782, %v1782
        %v1800 = vpack.c.bf16 %v1784, %v1783
        %v1801 = vpack.c.bf16 %v1785, %v1785
        %vm1802 = vsmask.f32 7424
        %v1804 = vshrl.u32 %v1222, 16
        %v1806 = vshll.u32 %v1222, 16
        %v1808 = vrot.slane %v1806, 1
        %v1809 = vor.u32 %v1804, %v1808
        %v1811 = vshll.u32 %v1223, 16
        %v1813 = vrot.slane %v1811, 1
        %v1814 = vsel %vm1802, %v1809, %v1813
        %v1816 = vshrl.u32 %v1224, 16
        %v1818 = vshll.u32 %v1224, 16
        %v1820 = vrot.slane %v1818, 1
        %v1821 = vor.u32 %v1816, %v1820
        %v1823 = vshll.u32 %v1225, 16
        %v1825 = vrot.slane %v1823, 1
        %v1826 = vsel %vm1802, %v1821, %v1825
        %v1828 = vshrl.u32 %v1226, 16
        %v1830 = vshll.u32 %v1226, 16
        %v1832 = vrot.slane %v1830, 1
        %v1833 = vor.u32 %v1828, %v1832
        %v1835 = vshll.u32 %v1227, 16
        %v1837 = vrot.slane %v1835, 1
        %v1838 = vsel %vm1802, %v1833, %v1837
        %v1840 = vshrl.u32 %v1228, 16
        %v1842 = vshll.u32 %v1228, 16
        %v1844 = vrot.slane %v1842, 1
        %v1845 = vor.u32 %v1840, %v1844
        %v1847 = vshll.u32 %v1229, 16
        %v1849 = vrot.slane %v1847, 1
        %v1850 = vsel %vm1802, %v1845, %v1849
        %v1852 = vshrl.u32 %v1230, 16
        %v1854 = vshll.u32 %v1230, 16
        %v1856 = vrot.slane %v1854, 1
        %v1857 = vor.u32 %v1852, %v1856
        %v1859 = vshll.u32 %v1231, 16
        %v1861 = vrot.slane %v1859, 1
        %v1862 = vsel %vm1802, %v1857, %v1861
        %v1864 = vshrl.u32 %v1232, 16
        %v1866 = vshll.u32 %v1232, 16
        %v1868 = vrot.slane %v1866, 1
        %v1869 = vor.u32 %v1864, %v1868
        %v1871 = vshll.u32 %v1233, 16
        %v1873 = vrot.slane %v1871, 1
        %v1874 = vsel %vm1802, %v1869, %v1873
        %v1876 = vshrl.u32 %v1234, 16
        %v1878 = vshll.u32 %v1234, 16
        %v1880 = vrot.slane %v1878, 1
        %v1881 = vor.u32 %v1876, %v1880
        %v1883 = vshll.u32 %v1235, 16
        %v1885 = vrot.slane %v1883, 1
        %v1886 = vsel %vm1802, %v1881, %v1885
        %v1888 = vshrl.u32 %v1236, 16
        %v1890 = vshll.u32 %v1236, 16
        %v1892 = vrot.slane %v1890, 1
        %v1893 = vor.u32 %v1888, %v1892
        %v1895 = vshll.u32 %v1237, 16
        %v1897 = vrot.slane %v1895, 1
        %v1898 = vsel %vm1802, %v1893, %v1897
        %1899 = vrot.lane.b32.xlu0 %v1814, 4
        %v1900 = vpop.permute.xlu0 %1899
        %1901 = vrot.lane.b32.xlu0 %v1826, 4
        %v1902 = vpop.permute.xlu0 %1901
        %1903 = vrot.lane.b32.xlu0 %v1838, 4
        %v1904 = vpop.permute.xlu0 %1903
        %1905 = vrot.lane.b32.xlu0 %v1850, 4
        %v1906 = vpop.permute.xlu0 %1905
        %1907 = vrot.lane.b32.xlu0 %v1862, 4
        %v1908 = vpop.permute.xlu0 %1907
        %1909 = vrot.lane.b32.xlu0 %v1874, 4
        %v1910 = vpop.permute.xlu0 %1909
        %1911 = vrot.lane.b32.xlu0 %v1886, 4
        %v1912 = vpop.permute.xlu0 %1911
        %1913 = vrot.lane.b32.xlu0 %v1898, 4
        %v1914 = vpop.permute.xlu0 %1913
        %vm1931 = vcmask 1046528
        %v1932 = vrot.slane %v1222, 1
        %v1933 = vrot.slane %v1223, 1
        %v1934 = vsel %vm1931, %v1932, %v1933
        %v1935 = vrot.slane %v1224, 1
        %v1936 = vrot.slane %v1225, 1
        %v1937 = vsel %vm1931, %v1935, %v1936
        %v1938 = vrot.slane %v1226, 1
        %v1939 = vrot.slane %v1227, 1
        %v1940 = vsel %vm1931, %v1938, %v1939
        %v1941 = vrot.slane %v1228, 1
        %v1942 = vrot.slane %v1229, 1
        %v1943 = vsel %vm1931, %v1941, %v1942
        %v1944 = vrot.slane %v1230, 1
        %v1945 = vrot.slane %v1231, 1
        %v1946 = vsel %vm1931, %v1944, %v1945
        %v1947 = vrot.slane %v1232, 1
        %v1948 = vrot.slane %v1233, 1
        %v1949 = vsel %vm1931, %v1947, %v1948
        %v1950 = vrot.slane %v1234, 1
        %v1951 = vrot.slane %v1235, 1
        %v1952 = vsel %vm1931, %v1950, %v1951
        %v1953 = vrot.slane %v1236, 1
        %v1954 = vrot.slane %v1237, 1
        %v1955 = vsel %vm1931, %v1953, %v1954
        %1956 = vrot.lane.b32.xlu0 %v1934, 8
        %v1957 = vpop.permute.xlu0 %1956
        %1958 = vrot.lane.b32.xlu0 %v1937, 8
        %v1959 = vpop.permute.xlu0 %1958
        %1960 = vrot.lane.b32.xlu0 %v1940, 8
        %v1961 = vpop.permute.xlu0 %1960
        %1962 = vrot.lane.b32.xlu0 %v1943, 8
        %v1963 = vpop.permute.xlu0 %1962
        %1964 = vrot.lane.b32.xlu0 %v1946, 8
        %v1965 = vpop.permute.xlu0 %1964
        %1966 = vrot.lane.b32.xlu0 %v1949, 8
        %v1967 = vpop.permute.xlu0 %1966
        %1968 = vrot.lane.b32.xlu0 %v1952, 8
        %v1969 = vpop.permute.xlu0 %1968
        %1970 = vrot.lane.b32.xlu0 %v1955, 8
        %v1971 = vpop.permute.xlu0 %1970
        %1980 = vrot.lane.b32.xlu0 %v1504, 12
        %v1981 = vpop.permute.xlu0 %1980
        %1982 = vrot.lane.b32.xlu0 %v1506, 12
        %v1983 = vpop.permute.xlu0 %1982
        %1984 = vrot.lane.b32.xlu0 %v1508, 12
        %v1985 = vpop.permute.xlu0 %1984
        %1986 = vrot.lane.b32.xlu0 %v1510, 12
        %v1987 = vpop.permute.xlu0 %1986
        %1988 = vrot.lane.b32.xlu0 %v1512, 12
        %v1989 = vpop.permute.xlu0 %1988
        %1990 = vrot.lane.b32.xlu0 %v1514, 12
        %v1991 = vpop.permute.xlu0 %1990
        %1992 = vrot.lane.b32.xlu0 %v1516, 12
        %v1993 = vpop.permute.xlu0 %1992
        %1994 = vrot.lane.b32.xlu0 %v1518, 12
        %v1995 = vpop.permute.xlu0 %1994
        %v1997 = vshrl.u32 %v1504, 16
        %v1999 = vshll.u32 %v1504, 16
        %v2001 = vrot.slane %v1999, 1
        %v2002 = vor.u32 %v1997, %v2001
        %v2004 = vshll.u32 %v1505, 16
        %v2006 = vrot.slane %v2004, 1
        %v2007 = vsel %vm1802, %v2002, %v2006
        %v2009 = vshrl.u32 %v1506, 16
        %v2011 = vshll.u32 %v1506, 16
        %v2013 = vrot.slane %v2011, 1
        %v2014 = vor.u32 %v2009, %v2013
        %v2016 = vshll.u32 %v1507, 16
        %v2018 = vrot.slane %v2016, 1
        %v2019 = vsel %vm1802, %v2014, %v2018
        %v2021 = vshrl.u32 %v1508, 16
        %v2023 = vshll.u32 %v1508, 16
        %v2025 = vrot.slane %v2023, 1
        %v2026 = vor.u32 %v2021, %v2025
        %v2028 = vshll.u32 %v1509, 16
        %v2030 = vrot.slane %v2028, 1
        %v2031 = vsel %vm1802, %v2026, %v2030
        %v2033 = vshrl.u32 %v1510, 16
        %v2035 = vshll.u32 %v1510, 16
        %v2037 = vrot.slane %v2035, 1
        %v2038 = vor.u32 %v2033, %v2037
        %v2040 = vshll.u32 %v1511, 16
        %v2042 = vrot.slane %v2040, 1
        %v2043 = vsel %vm1802, %v2038, %v2042
        %v2045 = vshrl.u32 %v1512, 16
        %v2047 = vshll.u32 %v1512, 16
        %v2049 = vrot.slane %v2047, 1
        %v2050 = vor.u32 %v2045, %v2049
        %v2052 = vshll.u32 %v1513, 16
        %v2054 = vrot.slane %v2052, 1
        %v2055 = vsel %vm1802, %v2050, %v2054
        %v2057 = vshrl.u32 %v1514, 16
        %v2059 = vshll.u32 %v1514, 16
        %v2061 = vrot.slane %v2059, 1
        %v2062 = vor.u32 %v2057, %v2061
        %v2064 = vshll.u32 %v1515, 16
        %v2066 = vrot.slane %v2064, 1
        %v2067 = vsel %vm1802, %v2062, %v2066
        %v2069 = vshrl.u32 %v1516, 16
        %v2071 = vshll.u32 %v1516, 16
        %v2073 = vrot.slane %v2071, 1
        %v2074 = vor.u32 %v2069, %v2073
        %v2076 = vshll.u32 %v1517, 16
        %v2078 = vrot.slane %v2076, 1
        %v2079 = vsel %vm1802, %v2074, %v2078
        %v2081 = vshrl.u32 %v1518, 16
        %v2083 = vshll.u32 %v1518, 16
        %v2085 = vrot.slane %v2083, 1
        %v2086 = vor.u32 %v2081, %v2085
        %v2088 = vshll.u32 %v1519, 16
        %v2090 = vrot.slane %v2088, 1
        %v2091 = vsel %vm1802, %v2086, %v2090
        %2092 = vrot.lane.b32.xlu0 %v2007, 16
        %v2093 = vpop.permute.xlu0 %2092
        %2094 = vrot.lane.b32.xlu0 %v2019, 16
        %v2095 = vpop.permute.xlu0 %2094
        %2096 = vrot.lane.b32.xlu0 %v2031, 16
        %v2097 = vpop.permute.xlu0 %2096
        %2098 = vrot.lane.b32.xlu0 %v2043, 16
        %v2099 = vpop.permute.xlu0 %2098
        %2100 = vrot.lane.b32.xlu0 %v2055, 16
        %v2101 = vpop.permute.xlu0 %2100
        %2102 = vrot.lane.b32.xlu0 %v2067, 16
        %v2103 = vpop.permute.xlu0 %2102
        %2104 = vrot.lane.b32.xlu0 %v2079, 16
        %v2105 = vpop.permute.xlu0 %2104
        %2106 = vrot.lane.b32.xlu0 %v2091, 16
        %v2107 = vpop.permute.xlu0 %2106
        %v2116 = vrot.slane %v1504, 1
        %v2117 = vrot.slane %v1505, 1
        %v2118 = vsel %vm1931, %v2116, %v2117
        %v2119 = vrot.slane %v1506, 1
        %v2120 = vrot.slane %v1507, 1
        %v2121 = vsel %vm1931, %v2119, %v2120
        %v2122 = vrot.slane %v1508, 1
        %v2123 = vrot.slane %v1509, 1
        %v2124 = vsel %vm1931, %v2122, %v2123
        %v2125 = vrot.slane %v1510, 1
        %v2126 = vrot.slane %v1511, 1
        %v2127 = vsel %vm1931, %v2125, %v2126
        %v2128 = vrot.slane %v1512, 1
        %v2129 = vrot.slane %v1513, 1
        %v2130 = vsel %vm1931, %v2128, %v2129
        %v2131 = vrot.slane %v1514, 1
        %v2132 = vrot.slane %v1515, 1
        %v2133 = vsel %vm1931, %v2131, %v2132
        %v2134 = vrot.slane %v1516, 1
        %v2135 = vrot.slane %v1517, 1
        %v2136 = vsel %vm1931, %v2134, %v2135
        %v2137 = vrot.slane %v1518, 1
        %v2138 = vrot.slane %v1519, 1
        %v2139 = vsel %vm1931, %v2137, %v2138
        %2140 = vrot.lane.b32.xlu0 %v2118, 20
        %v2141 = vpop.permute.xlu0 %2140
        %2142 = vrot.lane.b32.xlu0 %v2121, 20
        %v2143 = vpop.permute.xlu0 %2142
        %2144 = vrot.lane.b32.xlu0 %v2124, 20
        %v2145 = vpop.permute.xlu0 %2144
        %2146 = vrot.lane.b32.xlu0 %v2127, 20
        %v2147 = vpop.permute.xlu0 %2146
        %2148 = vrot.lane.b32.xlu0 %v2130, 20
        %v2149 = vpop.permute.xlu0 %2148
        %2150 = vrot.lane.b32.xlu0 %v2133, 20
        %v2151 = vpop.permute.xlu0 %2150
        %2152 = vrot.lane.b32.xlu0 %v2136, 20
        %v2153 = vpop.permute.xlu0 %2152
        %2154 = vrot.lane.b32.xlu0 %v2139, 20
        %v2155 = vpop.permute.xlu0 %2154
        %2164 = vrot.lane.b32.xlu0 %v1786, 24
        %v2165 = vpop.permute.xlu0 %2164
        %2166 = vrot.lane.b32.xlu0 %v1788, 24
        %v2167 = vpop.permute.xlu0 %2166
        %2168 = vrot.lane.b32.xlu0 %v1790, 24
        %v2169 = vpop.permute.xlu0 %2168
        %2170 = vrot.lane.b32.xlu0 %v1792, 24
        %v2171 = vpop.permute.xlu0 %2170
        %2172 = vrot.lane.b32.xlu0 %v1794, 24
        %v2173 = vpop.permute.xlu0 %2172
        %2174 = vrot.lane.b32.xlu0 %v1796, 24
        %v2175 = vpop.permute.xlu0 %2174
        %2176 = vrot.lane.b32.xlu0 %v1798, 24
        %v2177 = vpop.permute.xlu0 %2176
        %2178 = vrot.lane.b32.xlu0 %v1800, 24
        %v2179 = vpop.permute.xlu0 %2178
        %v2181 = vshrl.u32 %v1786, 16
        %v2183 = vshll.u32 %v1786, 16
        %v2185 = vrot.slane %v2183, 1
        %v2186 = vor.u32 %v2181, %v2185
        %v2188 = vshll.u32 %v1787, 16
        %v2190 = vrot.slane %v2188, 1
        %v2191 = vsel %vm1802, %v2186, %v2190
        %v2193 = vshrl.u32 %v1788, 16
        %v2195 = vshll.u32 %v1788, 16
        %v2197 = vrot.slane %v2195, 1
        %v2198 = vor.u32 %v2193, %v2197
        %v2200 = vshll.u32 %v1789, 16
        %v2202 = vrot.slane %v2200, 1
        %v2203 = vsel %vm1802, %v2198, %v2202
        %v2205 = vshrl.u32 %v1790, 16
        %v2207 = vshll.u32 %v1790, 16
        %v2209 = vrot.slane %v2207, 1
        %v2210 = vor.u32 %v2205, %v2209
        %v2212 = vshll.u32 %v1791, 16
        %v2214 = vrot.slane %v2212, 1
        %v2215 = vsel %vm1802, %v2210, %v2214
        %v2217 = vshrl.u32 %v1792, 16
        %v2219 = vshll.u32 %v1792, 16
        %v2221 = vrot.slane %v2219, 1
        %v2222 = vor.u32 %v2217, %v2221
        %v2224 = vshll.u32 %v1793, 16
        %v2226 = vrot.slane %v2224, 1
        %v2227 = vsel %vm1802, %v2222, %v2226
        %v2229 = vshrl.u32 %v1794, 16
        %v2231 = vshll.u32 %v1794, 16
        %v2233 = vrot.slane %v2231, 1
        %v2234 = vor.u32 %v2229, %v2233
        %v2236 = vshll.u32 %v1795, 16
        %v2238 = vrot.slane %v2236, 1
        %v2239 = vsel %vm1802, %v2234, %v2238
        %v2241 = vshrl.u32 %v1796, 16
        %v2243 = vshll.u32 %v1796, 16
        %v2245 = vrot.slane %v2243, 1
        %v2246 = vor.u32 %v2241, %v2245
        %v2248 = vshll.u32 %v1797, 16
        %v2250 = vrot.slane %v2248, 1
        %v2251 = vsel %vm1802, %v2246, %v2250
        %v2253 = vshrl.u32 %v1798, 16
        %v2255 = vshll.u32 %v1798, 16
        %v2257 = vrot.slane %v2255, 1
        %v2258 = vor.u32 %v2253, %v2257
        %v2260 = vshll.u32 %v1799, 16
        %v2262 = vrot.slane %v2260, 1
        %v2263 = vsel %vm1802, %v2258, %v2262
        %v2265 = vshrl.u32 %v1800, 16
        %v2267 = vshll.u32 %v1800, 16
        %v2269 = vrot.slane %v2267, 1
        %v2270 = vor.u32 %v2265, %v2269
        %v2272 = vshll.u32 %v1801, 16
        %v2274 = vrot.slane %v2272, 1
        %v2275 = vsel %vm1802, %v2270, %v2274
        %2276 = vrot.lane.b32.xlu0 %v2191, 28
        %v2277 = vpop.permute.xlu0 %2276
        %2278 = vrot.lane.b32.xlu0 %v2203, 28
        %v2279 = vpop.permute.xlu0 %2278
        %2280 = vrot.lane.b32.xlu0 %v2215, 28
        %v2281 = vpop.permute.xlu0 %2280
        %2282 = vrot.lane.b32.xlu0 %v2227, 28
        %v2283 = vpop.permute.xlu0 %2282
        %2284 = vrot.lane.b32.xlu0 %v2239, 28
        %v2285 = vpop.permute.xlu0 %2284
        %2286 = vrot.lane.b32.xlu0 %v2251, 28
        %v2287 = vpop.permute.xlu0 %2286
        %2288 = vrot.lane.b32.xlu0 %v2263, 28
        %v2289 = vpop.permute.xlu0 %2288
        %2290 = vrot.lane.b32.xlu0 %v2275, 28
        %v2291 = vpop.permute.xlu0 %2290
        %v2300 = vrot.slane %v1786, 1
        %v2301 = vrot.slane %v1787, 1
        %v2302 = vsel %vm1931, %v2300, %v2301
        %v2303 = vrot.slane %v1788, 1
        %v2304 = vrot.slane %v1789, 1
        %v2305 = vsel %vm1931, %v2303, %v2304
        %v2306 = vrot.slane %v1790, 1
        %v2307 = vrot.slane %v1791, 1
        %v2308 = vsel %vm1931, %v2306, %v2307
        %v2309 = vrot.slane %v1792, 1
        %v2310 = vrot.slane %v1793, 1
        %v2311 = vsel %vm1931, %v2309, %v2310
        %v2312 = vrot.slane %v1794, 1
        %v2313 = vrot.slane %v1795, 1
        %v2314 = vsel %vm1931, %v2312, %v2313
        %v2315 = vrot.slane %v1796, 1
        %v2316 = vrot.slane %v1797, 1
        %v2317 = vsel %vm1931, %v2315, %v2316
        %v2318 = vrot.slane %v1798, 1
        %v2319 = vrot.slane %v1799, 1
        %v2320 = vsel %vm1931, %v2318, %v2319
        %v2321 = vrot.slane %v1800, 1
        %v2322 = vrot.slane %v1801, 1
        %v2323 = vsel %vm1931, %v2321, %v2322
        %2324 = vrot.lane.b32.xlu0 %v2302, 32
        %v2325 = vpop.permute.xlu0 %2324
        %2326 = vrot.lane.b32.xlu0 %v2305, 32
        %v2327 = vpop.permute.xlu0 %2326
        %2328 = vrot.lane.b32.xlu0 %v2308, 32
        %v2329 = vpop.permute.xlu0 %2328
        %2330 = vrot.lane.b32.xlu0 %v2311, 32
        %v2331 = vpop.permute.xlu0 %2330
        %2332 = vrot.lane.b32.xlu0 %v2314, 32
        %v2333 = vpop.permute.xlu0 %2332
        %2334 = vrot.lane.b32.xlu0 %v2317, 32
        %v2335 = vpop.permute.xlu0 %2334
        %2336 = vrot.lane.b32.xlu0 %v2320, 32
        %v2337 = vpop.permute.xlu0 %2336
        %2338 = vrot.lane.b32.xlu0 %v2323, 32
        %v2339 = vpop.permute.xlu0 %2338
        %vm2340 = vcmask 31744
        %v2342 = vsel %vm2340, %v1222, %v1900
        %v2344 = vsel %vm2340, %v1224, %v1902
        %v2346 = vsel %vm2340, %v1226, %v1904
        %v2348 = vsel %vm2340, %v1228, %v1906
        %v2350 = vsel %vm2340, %v1230, %v1908
        %v2352 = vsel %vm2340, %v1232, %v1910
        %v2354 = vsel %vm2340, %v1234, %v1912
        %v2356 = vsel %vm2340, %v1236, %v1914
        %vm2357 = vcmask 64512
        %v2359 = vsel %vm2357, %v2342, %v1957
        %v2361 = vsel %vm2357, %v2344, %v1959
        %v2363 = vsel %vm2357, %v2346, %v1961
        %v2365 = vsel %vm2357, %v2348, %v1963
        %v2367 = vsel %vm2357, %v2350, %v1965
        %v2369 = vsel %vm2357, %v2352, %v1967
        %v2371 = vsel %vm2357, %v2354, %v1969
        %v2373 = vsel %vm2357, %v2356, %v1971
        %vm2374 = vcmask 97280
        %v2376 = vsel %vm2374, %v2359, %v1981
        %v2378 = vsel %vm2374, %v2361, %v1983
        %v2380 = vsel %vm2374, %v2363, %v1985
        %v2382 = vsel %vm2374, %v2365, %v1987
        %v2384 = vsel %vm2374, %v2367, %v1989
        %v2386 = vsel %vm2374, %v2369, %v1991
        %v2388 = vsel %vm2374, %v2371, %v1993
        %v2390 = vsel %vm2374, %v2373, %v1995
        %vm2391 = vcmask 130048
        %v2393 = vsel %vm2391, %v2376, %v2093
        %v2395 = vsel %vm2391, %v2378, %v2095
        %v2397 = vsel %vm2391, %v2380, %v2097
        %v2399 = vsel %vm2391, %v2382, %v2099
        %v2401 = vsel %vm2391, %v2384, %v2101
        %v2403 = vsel %vm2391, %v2386, %v2103
        %v2405 = vsel %vm2391, %v2388, %v2105
        %v2407 = vsel %vm2391, %v2390, %v2107
        %vm2408 = vcmask 162816
        %v2410 = vsel %vm2408, %v2393, %v2141
        %v2412 = vsel %vm2408, %v2395, %v2143
        %v2414 = vsel %vm2408, %v2397, %v2145
        %v2416 = vsel %vm2408, %v2399, %v2147
        %v2418 = vsel %vm2408, %v2401, %v2149
        %v2420 = vsel %vm2408, %v2403, %v2151
        %v2422 = vsel %vm2408, %v2405, %v2153
        %v2424 = vsel %vm2408, %v2407, %v2155
        %vm2425 = vcmask 195584
        %v2427 = vsel %vm2425, %v2410, %v2165
        %v2429 = vsel %vm2425, %v2412, %v2167
        %v2431 = vsel %vm2425, %v2414, %v2169
        %v2433 = vsel %vm2425, %v2416, %v2171
        %v2435 = vsel %vm2425, %v2418, %v2173
        %v2437 = vsel %vm2425, %v2420, %v2175
        %v2439 = vsel %vm2425, %v2422, %v2177
        %v2441 = vsel %vm2425, %v2424, %v2179
        %vm2442 = vcmask 228352
        %v2444 = vsel %vm2442, %v2427, %v2277
        %v2446 = vsel %vm2442, %v2429, %v2279
        %v2448 = vsel %vm2442, %v2431, %v2281
        %v2450 = vsel %vm2442, %v2433, %v2283
        %v2452 = vsel %vm2442, %v2435, %v2285
        %v2454 = vsel %vm2442, %v2437, %v2287
        %v2456 = vsel %vm2442, %v2439, %v2289
        %v2458 = vsel %vm2442, %v2441, %v2291
        %vm2459 = vcmask 261120
        %v2461 = vsel %vm2459, %v2444, %v2325
        %v2463 = vsel %vm2459, %v2446, %v2327
        %v2465 = vsel %vm2459, %v2448, %v2329
        %v2467 = vsel %vm2459, %v2450, %v2331
        %v2469 = vsel %vm2459, %v2452, %v2333
        %v2471 = vsel %vm2459, %v2454, %v2335
        %v2473 = vsel %vm2459, %v2456, %v2337
        %v2475 = vsel %vm2459, %v2458, %v2339
        %v2476 = vld [vmem:[%s4] sm:$0xf]
        %v2477 = vld [vmem:[%s4 + $0x4] sm:$0xf]
        %v2478 = vld [vmem:[%s4 + $0x8] sm:$0xf]
        %v2479 = vld [vmem:[%s4 + $0xc] sm:$0xf]
        %v2480 = vld [vmem:[%s4 + $0x10] sm:$0x3]
        %v2481 = vld [vmem:[%s5] sm:$0x1]
        %v2483 = vlaneseq
        %v2484 = vshrl.u32 %v2483, 7
        %v2485 = vsub.s32 0, %v2484
        %v2486 = vrot.slane %v2481, %v2485
        %v2493 = vunpack.c.l.b16 %v2476
        %v2494 = vunpack.c.l.b16 %v2477
        %v2495 = vunpack.c.l.b16 %v2478
        %v2496 = vunpack.c.l.b16 %v2479
        %v2497 = vunpack.c.l.b16 %v2480
        %v2498 = vpack.c.b16 %v2494, %v2493
        %v2499 = vpack.c.b16 %v2496, %v2495
        %v2500 = vpack.c.b16 %v2497, %v2497
        %vm2503 = vcmask 293888
        %v2504 = vsel %vm2503, %v2461, 0
        %v2506 = vsel %vm2503, %v2463, 0
        %v2508 = vsel %vm2503, %v2465, 0
        %v2510 = vsel %vm2503, %v2467, 0
        %v2512 = vsel %vm2503, %v2469, 0
        %v2514 = vsel %vm2503, %v2471, 0
        %v2516 = vsel %vm2503, %v2473, 0
        %v2518 = vsel %vm2503, %v2475, 0
        %vm2520 = vcmask 1041408
        %v2522 = vsel %vm2520, %v2500, 0
        %2524 = vmatprep.subr.bf16.mxu0 0
        %2525 = vmatpush1.bf16.msra.mxu0 %v2498
        %2526 = vmatprep.subr.bf16.mxu0 0
        %2527 = vmatpush1.bf16.msra.mxu0 %v2499
        %2528 = vmatprep.subr.bf16.mxu0 0
        %2529 = vmatpush1.bf16.msra.mxu0 %v2522
        %2530 = vmatprep.subr.bf16.mxu0 0
        %2531 = vmatpush1.bf16.msra.mxu0 0
        %2532 = vmatprep.subr.bf16.mxu0 0
        %2533 = vmatpush1.bf16.msra.mxu0 0
        %2534 = vmatprep.subr.bf16.mxu0 0
        %2535 = vmatpush1.bf16.msra.mxu0 0
        %2536 = vmatprep.subr.bf16.mxu0 0
        %2537 = vmatpush1.bf16.msra.mxu0 0
        %2538 = vmatprep.subr.bf16.mxu0 0
        %2539 = vmatpush1.bf16.msra.mxu0 0
        %2540 = vmatprep.subr.bf16.mxu0 0
        %2541 = vmatpush1.bf16.msra.mxu0 0
        %2542 = vmatprep.subr.bf16.mxu0 0
        %2543 = vmatpush1.bf16.msra.mxu0 0
        %2544 = vmatprep.subr.bf16.mxu0 0
        %2545 = vmatpush1.bf16.msra.mxu0 0
        %2546 = vmatprep.subr.bf16.mxu0 0
        %2547 = vmatpush1.bf16.msra.mxu0 0
        %2548 = vmatprep.subr.bf16.mxu0 0
        %2549 = vmatpush1.bf16.msra.mxu0 0
        %2550 = vmatprep.subr.bf16.mxu0 0
        %2551 = vmatpush1.bf16.msra.mxu0 0
        %2552 = vmatprep.subr.bf16.mxu0 0
        %2553 = vmatpush1.bf16.msra.mxu0 0
        %2554 = vmatprep.subr.bf16.mxu0 0
        %2555 = vmatpush1.bf16.msra.mxu0 0
        %2556 = vmatprep.mubr.bf16.mxu0 0
        %2557 = vmatmul.mubr.bf16.gmra.mrb[0].mxu0 %v2504
        %v2558 = vpop.f32.mrb[0].mxu0
        %v2559 = vadd.f32 %v2486, %v2558
        %v2560 = vpop.f32.mrb[0].mxu0
        %v2561 = vpop.f32.mrb[0].mxu0
        %v2562 = vadd.f32 %v2486, %v2561
        %v2563 = vpop.f32.mrb[0].mxu0
        %2564 = vmatprep.mubr.bf16.mxu0 0
        %2565 = vmatmul.mubr.bf16.gmra.mrb[0].mxu0 %v2506
        %v2566 = vpop.f32.mrb[0].mxu0
        %v2567 = vadd.f32 %v2486, %v2566
        %v2568 = vpop.f32.mrb[0].mxu0
        %v2569 = vpop.f32.mrb[0].mxu0
        %v2570 = vadd.f32 %v2486, %v2569
        %v2571 = vpop.f32.mrb[0].mxu0
        %2572 = vmatprep.mubr.bf16.mxu0 0
        %2573 = vmatmul.mubr.bf16.gmra.mrb[0].mxu0 %v2508
        %v2574 = vpop.f32.mrb[0].mxu0
        %v2575 = vadd.f32 %v2486, %v2574
        %v2576 = vpop.f32.mrb[0].mxu0
        %v2577 = vpop.f32.mrb[0].mxu0
        %v2578 = vadd.f32 %v2486, %v2577
        %v2579 = vpop.f32.mrb[0].mxu0
        %2580 = vmatprep.mubr.bf16.mxu0 0
        %2581 = vmatmul.mubr.bf16.gmra.mrb[0].mxu0 %v2510
        %v2582 = vpop.f32.mrb[0].mxu0
        %v2583 = vadd.f32 %v2486, %v2582
        %v2584 = vpop.f32.mrb[0].mxu0
        %v2585 = vpop.f32.mrb[0].mxu0
        %v2586 = vadd.f32 %v2486, %v2585
        %v2587 = vpop.f32.mrb[0].mxu0
        %2588 = vmatprep.mubr.bf16.mxu0 0
        %2589 = vmatmul.mubr.bf16.gmra.mrb[0].mxu0 %v2512
        %v2590 = vpop.f32.mrb[0].mxu0
        %v2591 = vadd.f32 %v2486, %v2590
        %v2592 = vpop.f32.mrb[0].mxu0
        %v2593 = vpop.f32.mrb[0].mxu0
        %v2594 = vadd.f32 %v2486, %v2593
        %v2595 = vpop.f32.mrb[0].mxu0
        %2596 = vmatprep.mubr.bf16.mxu0 0
        %2597 = vmatmul.mubr.bf16.gmra.mrb[0].mxu0 %v2514
        %v2598 = vpop.f32.mrb[0].mxu0
        %v2599 = vadd.f32 %v2486, %v2598
        %v2600 = vpop.f32.mrb[0].mxu0
        %v2601 = vpop.f32.mrb[0].mxu0
        %v2602 = vadd.f32 %v2486, %v2601
        %v2603 = vpop.f32.mrb[0].mxu0
        %2604 = vmatprep.mubr.bf16.mxu0 0
        %2605 = vmatmul.mubr.bf16.gmra.mrb[0].mxu0 %v2516
        %v2606 = vpop.f32.mrb[0].mxu0
        %v2607 = vadd.f32 %v2486, %v2606
        %v2608 = vpop.f32.mrb[0].mxu0
        %v2609 = vpop.f32.mrb[0].mxu0
        %v2610 = vadd.f32 %v2486, %v2609
        %v2611 = vpop.f32.mrb[0].mxu0
        %2612 = vmatprep.mubr.bf16.mxu0 0
        %2613 = vmatmul.mubr.bf16.gmra.mrb[0].mxu0 %v2518
        %v2614 = vpop.f32.mrb[0].mxu0
        %v2615 = vadd.f32 %v2486, %v2614
        %v2616 = vpop.f32.mrb[0].mxu0
        %v2617 = vpop.f32.mrb[0].mxu0
        %v2618 = vadd.f32 %v2486, %v2617
        %v2619 = vpop.f32.mrb[0].mxu0
        %2620 = vdwg.mxu0
        %2621 = vst [vmem:[%s941] sm:$0xff] %v2559
        %2622 = vst [vmem:[%s941 + $0x8] sm:$0xff] %v2562
        %2623 = vst [vmem:[%s941 + $0x10] sm:$0xff] %v2567
        %2624 = vst [vmem:[%s941 + $0x18] sm:$0xff] %v2570
        %2625 = vst [vmem:[%s941 + $0x20] sm:$0xff] %v2575
        %2626 = vst [vmem:[%s941 + $0x28] sm:$0xff] %v2578
        %2627 = vst [vmem:[%s941 + $0x30] sm:$0xff] %v2583
        %2628 = vst [vmem:[%s941 + $0x38] sm:$0xff] %v2586
        %2629 = vst [vmem:[%s941 + $0x40] sm:$0xff] %v2591
        %2630 = vst [vmem:[%s941 + $0x48] sm:$0xff] %v2594
        %2631 = vst [vmem:[%s941 + $0x50] sm:$0xff] %v2599
        %2632 = vst [vmem:[%s941 + $0x58] sm:$0xff] %v2602
        %2633 = vst [vmem:[%s941 + $0x60] sm:$0xff] %v2607
        %2634 = vst [vmem:[%s941 + $0x68] sm:$0xff] %v2610
        %2635 = vst [vmem:[%s941 + $0x70] sm:$0xff] %v2615
        %2636 = vst [vmem:[%s941 + $0x78] sm:$0xff] %v2618
        %s2637 = smul.u32 16, %s22
        %p2638 = scmp.lt.s32.totalorder %s21, 1
        %s2639 = scalar_select %p2638, %s21, 1
        %p2640 = scmp.lt.s32.totalorder %s2637, 31
        %s2641 = scalar_select %p2640, %s2637, 31
        %s2642 = smul.addr %s2639, 32
        %s2643 = sadd.s32 %s2641, %s2642
        %s2644 = smul.addr %s2643, 8
        %s2645 = scalar_lea.vmem %s6, %s2644
        // Predicated region
        $region121: #{bottleneck_forward.7} parent=111 // pred_check
          %p2646 = pneg %p187
        $region122: #{bottleneck_forward.7} parent=111 // pred_check_branch
          %2648 = sbr.rel (%p2646) target = $region124
        $region123: #{bottleneck_forward.7} parent=111 // pred_region
          %s2649 = smul.u32 16, %s22
        $region124: #{bottleneck_forward.7} parent=111 // pred_fallthru
          _
      $region112: #{bottleneck_forward.7} parent=5 // pred_fallthru
        _
      %p2650 = scmp.le.s32.totalorder 2, %s12
      // Predicated region
      $region125: #{bottleneck_forward.7} parent=5 // pred_check
        %p2651 = pneg %p2650
      $region126: #{bottleneck_forward.7} parent=5 // pred_check_branch
        %2653 = sbr.rel (%p2651) target = $region128
      $region127: #{bottleneck_forward.7} parent=5 // pred_region
        %s2654 = ssub.s32 %s12, 2
        // Predicated region
        $region129: #{bottleneck_forward.7} parent=127 // pred_check
          %p2655 = pneg %p193
        $region130: #{bottleneck_forward.7} parent=127 // pred_check_branch
          %2657 = sbr.rel (%p2655) target = $region132
        $region131: #{bottleneck_forward.7} parent=127 // pred_region
          %s2658 = smul.u32 16, %s24
          %p2659 = scmp.lt.s32.totalorder %s23, 1
          %s2660 = scalar_select %p2659, %s23, 1
          %p2661 = scmp.lt.s32.totalorder %s2658, 31
          %s2662 = scalar_select %p2661, %s2658, 31
          %s2663 = smul.addr %s2660, 32
          %s2664 = sadd.s32 %s2662, %s2663
          %s2665 = smul.addr %s2664, 8
          %s2666 = scalar_lea.vmem %s6, %s2665
        $region132: #{bottleneck_forward.7} parent=127 // pred_fallthru
          _
      $region128: #{bottleneck_forward.7} parent=5 // pred_fallthru
        _
    $region6: #{bottleneck_forward.7} parent=1 // loop_footer
      %s16 = sadd.s32 1, %s12
    $region7: #{bottleneck_forward.7} parent=1 // loop_footer_branch
      %11 = sbr.rel target = $region3
    $region8: #{bottleneck_forward.7} parent=1 // loop_exit
      _

// kernel: bottleneck_forward.9
$region0: #{bottleneck_forward.9}
  #allocation0 [shape = 'u32[]', space=smem, size = 0x4, offset = 0x4, fixed_abs, tag = 'smem constant byte address 0x4 - core index']
  #allocation1 [shape = 'u32[144,128]{1,0:T(1,128)}', space=vmem, size = 0x12000, scoped, tag = 'internal scratch']
  %s0 = inlined_call_operand.vmem [shape: f32[1,8], index: 0, kind: input, shape index: {}]
  %s1 = inlined_call_operand.vmem [shape: f32[1,8], index: 1, kind: input, shape index: {}]
  %s2 = inlined_call_operand.vmem [shape: f32[3,16,18,1], index: 2, kind: input, shape index: {}]
  %s3 = inlined_call_operand.vmem [shape: f32[6,16,18,8], index: 3, kind: input, shape index: {}]
  %s4 = inlined_call_operand.vmem [shape: bf16[72,128], index: 4, kind: input, shape index: {}]
  %s5 = inlined_call_operand.vmem [shape: f32[1,128], index: 5, kind: input, shape index: {}]
  %s6 = inlined_call_operand.vmem [shape: f32[2,256,128], index: 6, kind: output, shape index: {}]
  %s7 = sld [smem:[#allocation0]]
  $region133: #{bottleneck_forward.9} parent=0
    _
  %s9 = ssub.s32 1, %s7
  %s10 = scalar_select 0, %s9, %s7
  $region1: #{bottleneck_forward.9} parent=0
    #allocation2 [shape = 'u8[589824]{0}', space=vmem, size = 0x90000, scoped, tag = 'input window, operand 2']
    #allocation3 [shape = 'u8[589824]{0}', space=vmem, size = 0x90000, scoped, tag = 'input window, operand 3']
    loop: start=0, step=1, limit=6
    $region2: #{bottleneck_forward.9} parent=1 // loop_pre_header
      _
    $region3: #{bottleneck_forward.9} parent=1 // loop_header
      %s12 = sphi 0, %s16
      %p13 = scmp.ge.s32.totalorder %s12, 6
      %s19 = sphi 0, %s31
      %s20 = sphi 0, %s27
      %s21 = sphi 0, %s19
      %s22 = sphi 0, %s20
      %s23 = sphi 0, %s21
      %s24 = sphi 0, %s22
      %s32 = sphi 0, %s32
      %s34 = sphi 0, %s32
      %s35 = sphi 0, %s34
      %s49 = sphi 0, %s35
      %s53 = sphi 0, %s53
      %s55 = sphi 0, %s53
      %s56 = sphi 0, %s55
      %s70 = sphi 0, %s56
      %s76 = sphi 0, %s78
      %s79 = sphi 0, %s76
      %s80 = sphi 0, %s79
      %s96 = sphi 0, %s80
      %s104 = sphi 0, %s106
      %s107 = sphi 0, %s104
      %s108 = sphi 0, %s107
      %s124 = sphi 0, %s108
      %s128 = sphi 0, %s128
      %s130 = sphi 0, %s128
      %s131 = sphi 0, %s130
      %s145 = sphi 0, %s131
      %s149 = sphi 0, %s149
      %s151 = sphi 0, %s149
      %s152 = sphi 0, %s151
      %s166 = sphi 0, %s152
      %s174 = sphi 0, %s176
      %s177 = sphi 0, %s174
      %s178 = sphi 0, %s177
      %s194 = sphi 0, %s178
    $region4: #{bottleneck_forward.9} parent=1 // loop_header_branch
      %15 = sbr.rel (%p13) target = $region8
    $region5: #{bottleneck_forward.9} parent=1 // loop_body
      %s17 = ssub.s32 %s12, 1
      %s18 = ssub.s32 %s12, 2
      %s25 = sadd.s32 1, %s20
      %p26 = scmp.ge.s32.totalorder %s25, 2
      %s27 = scalar_select %p26, 0, %s25
      %s28 = sadd.s32 1, %s19
      %s29 = scalar_select %p26, %s28, %s19
      %p30 = scmp.ge.s32.totalorder %s29, 2
      %s31 = scalar_select %p30, 0, %s29
      %s33 = sadd.s32 %s32, 1
      %p36 = scmp.eq.s32.totalorder %s12, 3
      %p37 = scmp.ne.s32.totalorder %s32, %s34
      %p38 = scmp.eq.s32.totalorder %s12, 0
      %p39 = por %p37, %p38
      %p40 = scmp.ne.s32.totalorder %s32, %s34
      %p41 = scmp.eq.s32.totalorder %s17, 3
      %p42 = por %p40, %p41
      %p43 = scmp.ne.s32.totalorder %s34, %s35
      %p44 = scmp.eq.s32.totalorder %s17, 0
      %p45 = por %p43, %p44
      %p46 = scmp.ne.s32.totalorder %s34, %s35
      %p47 = scmp.eq.s32.totalorder %s18, 3
      %p48 = por %p46, %p47
      %p50 = scmp.ne.s32.totalorder %s35, %s49
      %p51 = scmp.eq.s32.totalorder %s18, 0
      %p52 = por %p50, %p51
      %s54 = sadd.s32 %s53, 1
      %p57 = scmp.eq.s32.totalorder %s12, 3
      %p58 = scmp.ne.s32.totalorder %s53, %s55
      %p59 = scmp.eq.s32.totalorder %s12, 0
      %p60 = por %p58, %p59
      %p61 = scmp.ne.s32.totalorder %s53, %s55
      %p62 = scmp.eq.s32.totalorder %s17, 3
      %p63 = por %p61, %p62
      %p64 = scmp.ne.s32.totalorder %s55, %s56
      %p65 = scmp.eq.s32.totalorder %s17, 0
      %p66 = por %p64, %p65
      %p67 = scmp.ne.s32.totalorder %s55, %s56
      %p68 = scmp.eq.s32.totalorder %s18, 3
      %p69 = por %p67, %p68
      %p71 = scmp.ne.s32.totalorder %s56, %s70
      %p72 = scmp.eq.s32.totalorder %s18, 0
      %p73 = por %p71, %p72
      %s74 = ssub.s32 %s20, %s27
      %p75 = scmp.eq.s32.totalorder %s74, 0
      %s77 = sadd.s32 %s76, 1
      %s78 = scalar_select %p75, %s76, %s77
      %p81 = pneg %p75
      %p82 = scmp.eq.s32.totalorder %s12, 3
      %p83 = por %p81, %p82
      %p84 = scmp.ne.s32.totalorder %s76, %s79
      %p85 = scmp.eq.s32.totalorder %s12, 0
      %p86 = por %p84, %p85
      %p87 = scmp.ne.s32.totalorder %s76, %s79
      %p88 = scmp.eq.s32.totalorder %s17, 3
      %p89 = por %p87, %p88
      %p90 = scmp.ne.s32.totalorder %s79, %s80
      %p91 = scmp.eq.s32.totalorder %s17, 0
      %p92 = por %p90, %p91
      %p93 = scmp.ne.s32.totalorder %s79, %s80
      %p94 = scmp.eq.s32.totalorder %s18, 3
      %p95 = por %p93, %p94
      %p97 = scmp.ne.s32.totalorder %s80, %s96
      %p98 = scmp.eq.s32.totalorder %s18, 0
      %p99 = por %p97, %p98
      %s100 = ssub.s32 %s19, %s31
      %s101 = ssub.s32 %s20, %s27
      %s102 = sor.u32 %s100, %s101
      %p103 = scmp.eq.s32.totalorder %s102, 0
      %s105 = sadd.s32 %s104, 1
      %s106 = scalar_select %p103, %s104, %s105
      %p109 = pneg %p103
      %p110 = scmp.eq.s32.totalorder %s12, 3
      %p111 = por %p109, %p110
      %p112 = scmp.ne.s32.totalorder %s104, %s107
      %p113 = scmp.eq.s32.totalorder %s12, 0
      %p114 = por %p112, %p113
      %p115 = scmp.ne.s32.totalorder %s104, %s107
      %p116 = scmp.eq.s32.totalorder %s17, 3
      %p117 = por %p115, %p116
      %p118 = scmp.ne.s32.totalorder %s107, %s108
      %p119 = scmp.eq.s32.totalorder %s17, 0
      %p120 = por %p118, %p119
      %p121 = scmp.ne.s32.totalorder %s107, %s108
      %p122 = scmp.eq.s32.totalorder %s18, 3
      %p123 = por %p121, %p122
      %p125 = scmp.ne.s32.totalorder %s108, %s124
      %p126 = scmp.eq.s32.totalorder %s18, 0
      %p127 = por %p125, %p126
      %s129 = sadd.s32 %s128, 1
      %p132 = scmp.eq.s32.totalorder %s12, 3
      %p133 = scmp.ne.s32.totalorder %s128, %s130
      %p134 = scmp.eq.s32.totalorder %s12, 0
      %p135 = por %p133, %p134
      %p136 = scmp.ne.s32.totalorder %s128, %s130
      %p137 = scmp.eq.s32.totalorder %s17, 3
      %p138 = por %p136, %p137
      %p139 = scmp.ne.s32.totalorder %s130, %s131
      %p140 = scmp.eq.s32.totalorder %s17, 0
      %p141 = por %p139, %p140
      %p142 = scmp.ne.s32.totalorder %s130, %s131
      %p143 = scmp.eq.s32.totalorder %s18, 3
      %p144 = por %p142, %p143
      %p146 = scmp.ne.s32.totalorder %s131, %s145
      %p147 = scmp.eq.s32.totalorder %s18, 0
      %p148 = por %p146, %p147
      %s150 = sadd.s32 %s149, 1
      %p153 = scmp.eq.s32.totalorder %s12, 3
      %p154 = scmp.ne.s32.totalorder %s149, %s151
      %p155 = scmp.eq.s32.totalorder %s12, 0
      %p156 = por %p154, %p155
      %p157 = scmp.ne.s32.totalorder %s149, %s151
      %p158 = scmp.eq.s32.totalorder %s17, 3
      %p159 = por %p157, %p158
      %p160 = scmp.ne.s32.totalorder %s151, %s152
      %p161 = scmp.eq.s32.totalorder %s17, 0
      %p162 = por %p160, %p161
      %p163 = scmp.ne.s32.totalorder %s151, %s152
      %p164 = scmp.eq.s32.totalorder %s18, 3
      %p165 = por %p163, %p164
      %p167 = scmp.ne.s32.totalorder %s152, %s166
      %p168 = scmp.eq.s32.totalorder %s18, 0
      %p169 = por %p167, %p168
      %s170 = ssub.s32 %s19, %s31
      %s171 = ssub.s32 %s20, %s27
      %s172 = sor.u32 %s170, %s171
      %p173 = scmp.eq.s32.totalorder %s172, 0
      %s175 = sadd.s32 %s174, 1
      %s176 = scalar_select %p173, %s174, %s175
      %p179 = pneg %p173
      %p180 = scmp.eq.s32.totalorder %s12, 3
      %p181 = por %p179, %p180
      %p182 = scmp.ne.s32.totalorder %s174, %s177
      %p183 = scmp.eq.s32.totalorder %s12, 0
      %p184 = por %p182, %p183
      %p185 = scmp.ne.s32.totalorder %s174, %s177
      %p186 = scmp.eq.s32.totalorder %s17, 3
      %p187 = por %p185, %p186
      %p188 = scmp.ne.s32.totalorder %s177, %s178
      %p189 = scmp.eq.s32.totalorder %s17, 0
      %p190 = por %p188, %p189
      %p191 = scmp.ne.s32.totalorder %s177, %s178
      %p192 = scmp.eq.s32.totalorder %s18, 3
      %p193 = por %p191, %p192
      %p195 = scmp.ne.s32.totalorder %s178, %s194
      %p196 = scmp.eq.s32.totalorder %s18, 0
      %p197 = por %p195, %p196
      %p198 = scmp.le.s32.totalorder 1, %s12
      %p199 = scmp.lt.s32.totalorder %s12, 5
      %p200 = pnand %p198, %p199
      %p201 = pneg %p200
      // Predicated region
      $region9: #{bottleneck_forward.9} parent=5 // pred_check
        _
      $region10: #{bottleneck_forward.9} parent=5 // pred_check_branch
        %203 = sbr.rel (%p200) target = $region12
      $region11: #{bottleneck_forward.9} parent=5 // pred_region
        %s204 = ssub.s32 %s12, 1
        // Predicated region
        $region13: #{bottleneck_forward.9} parent=11 // pred_check
          %p205 = pneg %p45
        $region14: #{bottleneck_forward.9} parent=11 // pred_check_branch
          %207 = sbr.rel (%p205) target = $region16
        $region15: #{bottleneck_forward.9} parent=11 // pred_region
          _
        $region16: #{bottleneck_forward.9} parent=11 // pred_fallthru
          _
        // Predicated region
        $region17: #{bottleneck_forward.9} parent=11 // pred_check
          %p208 = pneg %p66
        $region18: #{bottleneck_forward.9} parent=11 // pred_check_branch
          %210 = sbr.rel (%p208) target = $region20
        $region19: #{bottleneck_forward.9} parent=11 // pred_region
          _
        $region20: #{bottleneck_forward.9} parent=11 // pred_fallthru
          _
        // Predicated region
        $region21: #{bottleneck_forward.9} parent=11 // pred_check
          %p211 = pneg %p141
        $region22: #{bottleneck_forward.9} parent=11 // pred_check_branch
          %213 = sbr.rel (%p211) target = $region24
        $region23: #{bottleneck_forward.9} parent=11 // pred_region
          _
        $region24: #{bottleneck_forward.9} parent=11 // pred_fallthru
          _
        // Predicated region
        $region25: #{bottleneck_forward.9} parent=11 // pred_check
          %p214 = pneg %p162
        $region26: #{bottleneck_forward.9} parent=11 // pred_check_branch
          %216 = sbr.rel (%p214) target = $region28
        $region27: #{bottleneck_forward.9} parent=11 // pred_region
          _
        $region28: #{bottleneck_forward.9} parent=11 // pred_fallthru
          _
      $region12: #{bottleneck_forward.9} parent=5 // pred_fallthru
        _
      %p217 = scmp.lt.s32.totalorder %s12, 4
      // Predicated region
      $region29: #{bottleneck_forward.9} parent=5 // pred_check
        %p218 = pneg %p217
      $region30: #{bottleneck_forward.9} parent=5 // pred_check_branch
        %220 = sbr.rel (%p218) target = $region32
      $region31: #{bottleneck_forward.9} parent=5 // pred_region
        // Predicated region
        $region33: #{bottleneck_forward.9} parent=31 // pred_check
          %p221 = pneg %p86
        $region34: #{bottleneck_forward.9} parent=31 // pred_check_branch
          %223 = sbr.rel (%p221) target = $region36
        $region35: #{bottleneck_forward.9} parent=31 // pred_region
          %s224 = sand.u32 %s76, 1
          %s225 = sand.u32 %s76, 1
          %s226 = smul.addr %s225, 576
          %s227 = scalar_lea.vmem [#allocation2], %s226
          %s228 = smul.u32 8, %s20
          %s229 = smul.addr %s228, 3
          %s230 = smul.addr %s229, 8
          %s231 = scalar_lea.vmem %s2, %s230
          // Predicated region
          $region37: #{bottleneck_forward.9} parent=35 // pred_check
            _
          $region38: #{bottleneck_forward.9} parent=35 // pred_check_branch
            %233 = sbr.rel (0) target = $region40
          $region39: #{bottleneck_forward.9} parent=35 // pred_region
            // Predicated region
            $region41: #{bottleneck_forward.9} parent=39 // pred_check
              _
            $region42: #{bottleneck_forward.9} parent=39 // pred_check_branch
              %235 = sbr.rel (0) target = $region44
            $region43: #{bottleneck_forward.9} parent=39 // pred_region
              // Predicated region
              $region56: #{bottleneck_forward.9} parent=43 // pred_check
                _
              $region57: #{bottleneck_forward.9} parent=43 // pred_check_branch
                %392 = sbr.rel (0) target = $region59
              $region58: #{bottleneck_forward.9} parent=43 // pred_region
                loop: start=0, step=1, limit=1
                $region60: #{bottleneck_forward.9} parent=58 // loop_pre_header
                  _
                $region61: #{bottleneck_forward.9} parent=58 // loop_header
                  %s394 = sphi 0, %s398
                  %p395 = scmp.ge.s32.totalorder %s394, 1
                  %s399 = sphi %s231, %s231
                  %s400 = sphi %s227, %s227
                $region62: #{bottleneck_forward.9} parent=58 // loop_header_branch
                  %397 = sbr.rel (%p395) target = $region66
                $region63: #{bottleneck_forward.9} parent=58 // loop_body
                  %v401 = vld [vmem:[%s399] sm:$0xff]
                  %402 = vst [vmem:[%s400] sm:$0xff] %v401
                  %v403 = vld [vmem:[%s399 + $0x8] sm:$0xff]
                  %404 = vst [vmem:[%s400 + $0x8] sm:$0xff] %v403
                  %v405 = vld [vmem:[%s399 + $0x10] sm:$0xff]
                  %406 = vst [vmem:[%s400 + $0x10] sm:$0xff] %v405
                  %v407 = vld [vmem:[%s399 + $0x18] sm:$0xff]
                  %408 = vst [vmem:[%s400 + $0x18] sm:$0xff] %v407
                  %v409 = vld [vmem:[%s399 + $0x20] sm:$0xff]
                  %410 = vst [vmem:[%s400 + $0x20] sm:$0xff] %v409
                  %v411 = vld [vmem:[%s399 + $0x28] sm:$0xff]
                  %412 = vst [vmem:[%s400 + $0x28] sm:$0xff] %v411
                  %v413 = vld [vmem:[%s399 + $0x30] sm:$0xff]
                  %414 = vst [vmem:[%s400 + $0x30] sm:$0xff] %v413
                  %v415 = vld [vmem:[%s399 + $0x38] sm:$0xff]
                  %416 = vst [vmem:[%s400 + $0x38] sm:$0xff] %v415
                  %v417 = vld [vmem:[%s399 + $0x40] sm:$0xff]
                  %418 = vst [vmem:[%s400 + $0x40] sm:$0xff] %v417
                  %v419 = vld [vmem:[%s399 + $0x48] sm:$0xff]
                  %420 = vst [vmem:[%s400 + $0x48] sm:$0xff] %v419
                  %v421 = vld [vmem:[%s399 + $0x50] sm:$0xff]
                  %422 = vst [vmem:[%s400 + $0x50] sm:$0xff] %v421
                  %v423 = vld [vmem:[%s399 + $0x58] sm:$0xff]
                  %424 = vst [vmem:[%s400 + $0x58] sm:$0xff] %v423
                  %v425 = vld [vmem:[%s399 + $0x60] sm:$0xff]
                  %426 = vst [vmem:[%s400 + $0x60] sm:$0xff] %v425
                  %v427 = vld [vmem:[%s399 + $0x68] sm:$0xff]
                  %428 = vst [vmem:[%s400 + $0x68] sm:$0xff] %v427
                  %v429 = vld [vmem:[%s399 + $0x70] sm:$0xff]
                  %430 = vst [vmem:[%s400 + $0x70] sm:$0xff] %v429
                  %v431 = vld [vmem:[%s399 + $0x78] sm:$0xff]
                  %432 = vst [vmem:[%s400 + $0x78] sm:$0xff] %v431
                  %v433 = vld [vmem:[%s399 + $0x80] sm:$0xff]
                  %434 = vst [vmem:[%s400 + $0x80] sm:$0xff] %v433
                  %v435 = vld [vmem:[%s399 + $0x88] sm:$0xff]
                  %436 = vst [vmem:[%s400 + $0x88] sm:$0xff] %v435
                  %v437 = vld [vmem:[%s399 + $0x90] sm:$0xff]
                  %438 = vst [vmem:[%s400 + $0x90] sm:$0xff] %v437
                  %v439 = vld [vmem:[%s399 + $0x98] sm:$0xff]
                  %440 = vst [vmem:[%s400 + $0x98] sm:$0xff] %v439
                  %v441 = vld [vmem:[%s399 + $0xa0] sm:$0xff]
                  %442 = vst [vmem:[%s400 + $0xa0] sm:$0xff] %v441
                  %v443 = vld [vmem:[%s399 + $0xa8] sm:$0xff]
                  %444 = vst [vmem:[%s400 + $0xa8] sm:$0xff] %v443
                  %v445 = vld [vmem:[%s399 + $0xb0] sm:$0xff]
                  %446 = vst [vmem:[%s400 + $0xb0] sm:$0xff] %v445
                  %v447 = vld [vmem:[%s399 + $0xb8] sm:$0xff]
                  %448 = vst [vmem:[%s400 + $0xb8] sm:$0xff] %v447
                  %v449 = vld [vmem:[%s399 + $0x180] sm:$0xff]
                  %450 = vst [vmem:[%s400 + $0xc0] sm:$0xff] %v449
                  %v451 = vld [vmem:[%s399 + $0x188] sm:$0xff]
                  %452 = vst [vmem:[%s400 + $0xc8] sm:$0xff] %v451
                  %v453 = vld [vmem:[%s399 + $0x190] sm:$0xff]
                  %454 = vst [vmem:[%s400 + $0xd0] sm:$0xff] %v453
                  %v455 = vld [vmem:[%s399 + $0x198] sm:$0xff]
                  %456 = vst [vmem:[%s400 + $0xd8] sm:$0xff] %v455
                  %v457 = vld [vmem:[%s399 + $0x1a0] sm:$0xff]
                  %458 = vst [vmem:[%s400 + $0xe0] sm:$0xff] %v457
                  %v459 = vld [vmem:[%s399 + $0x1a8] sm:$0xff]
                  %460 = vst [vmem:[%s400 + $0xe8] sm:$0xff] %v459
                  %v461 = vld [vmem:[%s399 + $0x1b0] sm:$0xff]
                  %462 = vst [vmem:[%s400 + $0xf0] sm:$0xff] %v461
                  %v463 = vld [vmem:[%s399 + $0x1b8] sm:$0xff]
                  %464 = vst [vmem:[%s400 + $0xf8] sm:$0xff] %v463
                  %v465 = vld [vmem:[%s399 + $0x1c0] sm:$0xff]
                  %466 = vst [vmem:[%s400 + $0x100] sm:$0xff] %v465
                  %v467 = vld [vmem:[%s399 + $0x1c8] sm:$0xff]
                  %468 = vst [vmem:[%s400 + $0x108] sm:$0xff] %v467
                  %v469 = vld [vmem:[%s399 + $0x1d0] sm:$0xff]
                  %470 = vst [vmem:[%s400 + $0x110] sm:$0xff] %v469
                  %v471 = vld [vmem:[%s399 + $0x1d8] sm:$0xff]
                  %472 = vst [vmem:[%s400 + $0x118] sm:$0xff] %v471
                  %v473 = vld [vmem:[%s399 + $0x1e0] sm:$0xff]
                  %474 = vst [vmem:[%s400 + $0x120] sm:$0xff] %v473
                  %v475 = vld [vmem:[%s399 + $0x1e8] sm:$0xff]
                  %476 = vst [vmem:[%s400 + $0x128] sm:$0xff] %v475
                  %v477 = vld [vmem:[%s399 + $0x1f0] sm:$0xff]
                  %478 = vst [vmem:[%s400 + $0x130] sm:$0xff] %v477
                  %v479 = vld [vmem:[%s399 + $0x1f8] sm:$0xff]
                  %480 = vst [vmem:[%s400 + $0x138] sm:$0xff] %v479
                  %v481 = vld [vmem:[%s399 + $0x200] sm:$0xff]
                  %482 = vst [vmem:[%s400 + $0x140] sm:$0xff] %v481
                  %v483 = vld [vmem:[%s399 + $0x208] sm:$0xff]
                  %484 = vst [vmem:[%s400 + $0x148] sm:$0xff] %v483
                  %v485 = vld [vmem:[%s399 + $0x210] sm:$0xff]
                  %486 = vst [vmem:[%s400 + $0x150] sm:$0xff] %v485
                  %v487 = vld [vmem:[%s399 + $0x218] sm:$0xff]
                  %488 = vst [vmem:[%s400 + $0x158] sm:$0xff] %v487
                  %v489 = vld [vmem:[%s399 + $0x220] sm:$0xff]
                  %490 = vst [vmem:[%s400 + $0x160] sm:$0xff] %v489
                  %v491 = vld [vmem:[%s399 + $0x228] sm:$0xff]
                  %492 = vst [vmem:[%s400 + $0x168] sm:$0xff] %v491
                  %v493 = vld [vmem:[%s399 + $0x230] sm:$0xff]
                  %494 = vst [vmem:[%s400 + $0x170] sm:$0xff] %v493
                  %v495 = vld [vmem:[%s399 + $0x238] sm:$0xff]
                  %496 = vst [vmem:[%s400 + $0x178] sm:$0xff] %v495
                  %v497 = vld [vmem:[%s399 + $0x300] sm:$0xff]
                  %498 = vst [vmem:[%s400 + $0x180] sm:$0xff] %v497
                  %v499 = vld [vmem:[%s399 + $0x308] sm:$0xff]
                  %500 = vst [vmem:[%s400 + $0x188] sm:$0xff] %v499
                  %v501 = vld [vmem:[%s399 + $0x310] sm:$0xff]
                  %502 = vst [vmem:[%s400 + $0x190] sm:$0xff] %v501
                  %v503 = vld [vmem:[%s399 + $0x318] sm:$0xff]
                  %504 = vst [vmem:[%s400 + $0x198] sm:$0xff] %v503
                  %v505 = vld [vmem:[%s399 + $0x320] sm:$0xff]
                  %506 = vst [vmem:[%s400 + $0x1a0] sm:$0xff] %v505
                  %v507 = vld [vmem:[%s399 + $0x328] sm:$0xff]
                  %508 = vst [vmem:[%s400 + $0x1a8] sm:$0xff] %v507
                  %v509 = vld [vmem:[%s399 + $0x330] sm:$0xff]
                  %510 = vst [vmem:[%s400 + $0x1b0] sm:$0xff] %v509
                  %v511 = vld [vmem:[%s399 + $0x338] sm:$0xff]
                  %512 = vst [vmem:[%s400 + $0x1b8] sm:$0xff] %v511
                  %v513 = vld [vmem:[%s399 + $0x340] sm:$0xff]
                  %514 = vst [vmem:[%s400 + $0x1c0] sm:$0xff] %v513
                  %v515 = vld [vmem:[%s399 + $0x348] sm:$0xff]
                  %516 = vst [vmem:[%s400 + $0x1c8] sm:$0xff] %v515
                  %v517 = vld [vmem:[%s399 + $0x350] sm:$0xff]
                  %518 = vst [vmem:[%s400 + $0x1d0] sm:$0xff] %v517
                  %v519 = vld [vmem:[%s399 + $0x358] sm:$0xff]
                  %520 = vst [vmem:[%s400 + $0x1d8] sm:$0xff] %v519
                  %v521 = vld [vmem:[%s399 + $0x360] sm:$0xff]
                  %522 = vst [vmem:[%s400 + $0x1e0] sm:$0xff] %v521
                  %v523 = vld [vmem:[%s399 + $0x368] sm:$0xff]
                  %524 = vst [vmem:[%s400 + $0x1e8] sm:$0xff] %v523
                  %v525 = vld [vmem:[%s399 + $0x370] sm:$0xff]
                  %526 = vst [vmem:[%s400 + $0x1f0] sm:$0xff] %v525
                  %v527 = vld [vmem:[%s399 + $0x378] sm:$0xff]
                  %528 = vst [vmem:[%s400 + $0x1f8] sm:$0xff] %v527
                  %v529 = vld [vmem:[%s399 + $0x380] sm:$0xff]
                  %530 = vst [vmem:[%s400 + $0x200] sm:$0xff] %v529
                  %v531 = vld [vmem:[%s399 + $0x388] sm:$0xff]
                  %532 = vst [vmem:[%s400 + $0x208] sm:$0xff] %v531
                  %v533 = vld [vmem:[%s399 + $0x390] sm:$0xff]
                  %534 = vst [vmem:[%s400 + $0x210] sm:$0xff] %v533
                  %v535 = vld [vmem:[%s399 + $0x398] sm:$0xff]
                  %536 = vst [vmem:[%s400 + $0x218] sm:$0xff] %v535
                  %v537 = vld [vmem:[%s399 + $0x3a0] sm:$0xff]
                  %538 = vst [vmem:[%s400 + $0x220] sm:$0xff] %v537
                  %v539 = vld [vmem:[%s399 + $0x3a8] sm:$0xff]
                  %540 = vst [vmem:[%s400 + $0x228] sm:$0xff] %v539
                  %v541 = vld [vmem:[%s399 + $0x3b0] sm:$0xff]
                  %542 = vst [vmem:[%s400 + $0x230] sm:$0xff] %v541
                  %v543 = vld [vmem:[%s399 + $0x3b8] sm:$0xff]
                  %544 = vst [vmem:[%s400 + $0x238] sm:$0xff] %v543
                $region64: #{bottleneck_forward.9} parent=58 // loop_footer
                  %s398 = sadd.s32 1, %s394
                $region65: #{bottleneck_forward.9} parent=58 // loop_footer_branch
                  %393 = sbr.rel target = $region61
                $region66: #{bottleneck_forward.9} parent=58 // loop_exit
                  _
              $region59: #{bottleneck_forward.9} parent=43 // pred_fallthru
                _
              // Predicated region
              $region67: #{bottleneck_forward.9} parent=43 // pred_check
                _
              $region68: #{bottleneck_forward.9} parent=43 // pred_check_branch
                %546 = sbr.rel target = $region70
              $region69: #{bottleneck_forward.9} parent=43 // pred_region
                _
              $region70: #{bottleneck_forward.9} parent=43 // pred_fallthru
                _
            $region44: #{bottleneck_forward.9} parent=39 // pred_fallthru
              _
            // Predicated region
            $region45: #{bottleneck_forward.9} parent=39 // pred_check
              _
            $region46: #{bottleneck_forward.9} parent=39 // pred_check_branch
              %237 = sbr.rel target = $region48
            $region47: #{bottleneck_forward.9} parent=39 // pred_region
              loop: start=0, step=1, limit=1
              $region49: #{bottleneck_forward.9} parent=47 // loop_pre_header
                _
              $region50: #{bottleneck_forward.9} parent=47 // loop_header
                %s240 = sphi 0, %s244
                %p241 = scmp.ge.s32.totalorder %s240, 1
                %s245 = sphi %s231, %s231
                %s246 = sphi %s227, %s227
              $region51: #{bottleneck_forward.9} parent=47 // loop_header_branch
                %243 = sbr.rel (%p241) target = $region55
              $region52: #{bottleneck_forward.9} parent=47 // loop_body
                %v247 = vld [vmem:[%s245] sm:$0xff]
                %248 = vst [vmem:[%s246] sm:$0xff] %v247
                %v249 = vld [vmem:[%s245 + $0x8] sm:$0xff]
                %250 = vst [vmem:[%s246 + $0x8] sm:$0xff] %v249
                %v251 = vld [vmem:[%s245 + $0x10] sm:$0xff]
                %252 = vst [vmem:[%s246 + $0x10] sm:$0xff] %v251
                %v253 = vld [vmem:[%s245 + $0x18] sm:$0xff]
                %254 = vst [vmem:[%s246 + $0x18] sm:$0xff] %v253
                %v255 = vld [vmem:[%s245 + $0x20] sm:$0xff]
                %256 = vst [vmem:[%s246 + $0x20] sm:$0xff] %v255
                %v257 = vld [vmem:[%s245 + $0x28] sm:$0xff]
                %258 = vst [vmem:[%s246 + $0x28] sm:$0xff] %v257
                %v259 = vld [vmem:[%s245 + $0x30] sm:$0xff]
                %260 = vst [vmem:[%s246 + $0x30] sm:$0xff] %v259
                %v261 = vld [vmem:[%s245 + $0x38] sm:$0xff]
                %262 = vst [vmem:[%s246 + $0x38] sm:$0xff] %v261
                %v263 = vld [vmem:[%s245 + $0x40] sm:$0xff]
                %264 = vst [vmem:[%s246 + $0x40] sm:$0xff] %v263
                %v265 = vld [vmem:[%s245 + $0x48] sm:$0xff]
                %266 = vst [vmem:[%s246 + $0x48] sm:$0xff] %v265
                %v267 = vld [vmem:[%s245 + $0x50] sm:$0xff]
                %268 = vst [vmem:[%s246 + $0x50] sm:$0xff] %v267
                %v269 = vld [vmem:[%s245 + $0x58] sm:$0xff]
                %270 = vst [vmem:[%s246 + $0x58] sm:$0xff] %v269
                %v271 = vld [vmem:[%s245 + $0x60] sm:$0xff]
                %272 = vst [vmem:[%s246 + $0x60] sm:$0xff] %v271
                %v273 = vld [vmem:[%s245 + $0x68] sm:$0xff]
                %274 = vst [vmem:[%s246 + $0x68] sm:$0xff] %v273
                %v275 = vld [vmem:[%s245 + $0x70] sm:$0xff]
                %276 = vst [vmem:[%s246 + $0x70] sm:$0xff] %v275
                %v277 = vld [vmem:[%s245 + $0x78] sm:$0xff]
                %278 = vst [vmem:[%s246 + $0x78] sm:$0xff] %v277
                %v279 = vld [vmem:[%s245 + $0x80] sm:$0xff]
                %280 = vst [vmem:[%s246 + $0x80] sm:$0xff] %v279
                %v281 = vld [vmem:[%s245 + $0x88] sm:$0xff]
                %282 = vst [vmem:[%s246 + $0x88] sm:$0xff] %v281
                %v283 = vld [vmem:[%s245 + $0x90] sm:$0xff]
                %284 = vst [vmem:[%s246 + $0x90] sm:$0xff] %v283
                %v285 = vld [vmem:[%s245 + $0x98] sm:$0xff]
                %286 = vst [vmem:[%s246 + $0x98] sm:$0xff] %v285
                %v287 = vld [vmem:[%s245 + $0xa0] sm:$0xff]
                %288 = vst [vmem:[%s246 + $0xa0] sm:$0xff] %v287
                %v289 = vld [vmem:[%s245 + $0xa8] sm:$0xff]
                %290 = vst [vmem:[%s246 + $0xa8] sm:$0xff] %v289
                %v291 = vld [vmem:[%s245 + $0xb0] sm:$0xff]
                %292 = vst [vmem:[%s246 + $0xb0] sm:$0xff] %v291
                %v293 = vld [vmem:[%s245 + $0xb8] sm:$0xff]
                %294 = vst [vmem:[%s246 + $0xb8] sm:$0xff] %v293
                %v295 = vld [vmem:[%s245 + $0x180] sm:$0xff]
                %296 = vst [vmem:[%s246 + $0xc0] sm:$0xff] %v295
                %v297 = vld [vmem:[%s245 + $0x188] sm:$0xff]
                %298 = vst [vmem:[%s246 + $0xc8] sm:$0xff] %v297
                %v299 = vld [vmem:[%s245 + $0x190] sm:$0xff]
                %300 = vst [vmem:[%s246 + $0xd0] sm:$0xff] %v299
                %v301 = vld [vmem:[%s245 + $0x198] sm:$0xff]
                %302 = vst [vmem:[%s246 + $0xd8] sm:$0xff] %v301
                %v303 = vld [vmem:[%s245 + $0x1a0] sm:$0xff]
                %304 = vst [vmem:[%s246 + $0xe0] sm:$0xff] %v303
                %v305 = vld [vmem:[%s245 + $0x1a8] sm:$0xff]
                %306 = vst [vmem:[%s246 + $0xe8] sm:$0xff] %v305
                %v307 = vld [vmem:[%s245 + $0x1b0] sm:$0xff]
                %308 = vst [vmem:[%s246 + $0xf0] sm:$0xff] %v307
                %v309 = vld [vmem:[%s245 + $0x1b8] sm:$0xff]
                %310 = vst [vmem:[%s246 + $0xf8] sm:$0xff] %v309
                %v311 = vld [vmem:[%s245 + $0x1c0] sm:$0xff]
                %312 = vst [vmem:[%s246 + $0x100] sm:$0xff] %v311
                %v313 = vld [vmem:[%s245 + $0x1c8] sm:$0xff]
                %314 = vst [vmem:[%s246 + $0x108] sm:$0xff] %v313
                %v315 = vld [vmem:[%s245 + $0x1d0] sm:$0xff]
                %316 = vst [vmem:[%s246 + $0x110] sm:$0xff] %v315
                %v317 = vld [vmem:[%s245 + $0x1d8] sm:$0xff]
                %318 = vst [vmem:[%s246 + $0x118] sm:$0xff] %v317
                %v319 = vld [vmem:[%s245 + $0x1e0] sm:$0xff]
                %320 = vst [vmem:[%s246 + $0x120] sm:$0xff] %v319
                %v321 = vld [vmem:[%s245 + $0x1e8] sm:$0xff]
                %322 = vst [vmem:[%s246 + $0x128] sm:$0xff] %v321
                %v323 = vld [vmem:[%s245 + $0x1f0] sm:$0xff]
                %324 = vst [vmem:[%s246 + $0x130] sm:$0xff] %v323
                %v325 = vld [vmem:[%s245 + $0x1f8] sm:$0xff]
                %326 = vst [vmem:[%s246 + $0x138] sm:$0xff] %v325
                %v327 = vld [vmem:[%s245 + $0x200] sm:$0xff]
                %328 = vst [vmem:[%s246 + $0x140] sm:$0xff] %v327
                %v329 = vld [vmem:[%s245 + $0x208] sm:$0xff]
                %330 = vst [vmem:[%s246 + $0x148] sm:$0xff] %v329
                %v331 = vld [vmem:[%s245 + $0x210] sm:$0xff]
                %332 = vst [vmem:[%s246 + $0x150] sm:$0xff] %v331
                %v333 = vld [vmem:[%s245 + $0x218] sm:$0xff]
                %334 = vst [vmem:[%s246 + $0x158] sm:$0xff] %v333
                %v335 = vld [vmem:[%s245 + $0x220] sm:$0xff]
                %336 = vst [vmem:[%s246 + $0x160] sm:$0xff] %v335
                %v337 = vld [vmem:[%s245 + $0x228] sm:$0xff]
                %338 = vst [vmem:[%s246 + $0x168] sm:$0xff] %v337
                %v339 = vld [vmem:[%s245 + $0x230] sm:$0xff]
                %340 = vst [vmem:[%s246 + $0x170] sm:$0xff] %v339
                %v341 = vld [vmem:[%s245 + $0x238] sm:$0xff]
                %342 = vst [vmem:[%s246 + $0x178] sm:$0xff] %v341
                %v343 = vld [vmem:[%s245 + $0x300] sm:$0xff]
                %344 = vst [vmem:[%s246 + $0x180] sm:$0xff] %v343
                %v345 = vld [vmem:[%s245 + $0x308] sm:$0xff]
                %346 = vst [vmem:[%s246 + $0x188] sm:$0xff] %v345
                %v347 = vld [vmem:[%s245 + $0x310] sm:$0xff]
                %348 = vst [vmem:[%s246 + $0x190] sm:$0xff] %v347
                %v349 = vld [vmem:[%s245 + $0x318] sm:$0xff]
                %350 = vst [vmem:[%s246 + $0x198] sm:$0xff] %v349
                %v351 = vld [vmem:[%s245 + $0x320] sm:$0xff]
                %352 = vst [vmem:[%s246 + $0x1a0] sm:$0xff] %v351
                %v353 = vld [vmem:[%s245 + $0x328] sm:$0xff]
                %354 = vst [vmem:[%s246 + $0x1a8] sm:$0xff] %v353
                %v355 = vld [vmem:[%s245 + $0x330] sm:$0xff]
                %356 = vst [vmem:[%s246 + $0x1b0] sm:$0xff] %v355
                %v357 = vld [vmem:[%s245 + $0x338] sm:$0xff]
                %358 = vst [vmem:[%s246 + $0x1b8] sm:$0xff] %v357
                %v359 = vld [vmem:[%s245 + $0x340] sm:$0xff]
                %360 = vst [vmem:[%s246 + $0x1c0] sm:$0xff] %v359
                %v361 = vld [vmem:[%s245 + $0x348] sm:$0xff]
                %362 = vst [vmem:[%s246 + $0x1c8] sm:$0xff] %v361
                %v363 = vld [vmem:[%s245 + $0x350] sm:$0xff]
                %364 = vst [vmem:[%s246 + $0x1d0] sm:$0xff] %v363
                %v365 = vld [vmem:[%s245 + $0x358] sm:$0xff]
                %366 = vst [vmem:[%s246 + $0x1d8] sm:$0xff] %v365
                %v367 = vld [vmem:[%s245 + $0x360] sm:$0xff]
                %368 = vst [vmem:[%s246 + $0x1e0] sm:$0xff] %v367
                %v369 = vld [vmem:[%s245 + $0x368] sm:$0xff]
                %370 = vst [vmem:[%s246 + $0x1e8] sm:$0xff] %v369
                %v371 = vld [vmem:[%s245 + $0x370] sm:$0xff]
                %372 = vst [vmem:[%s246 + $0x1f0] sm:$0xff] %v371
                %v373 = vld [vmem:[%s245 + $0x378] sm:$0xff]
                %374 = vst [vmem:[%s246 + $0x1f8] sm:$0xff] %v373
                %v375 = vld [vmem:[%s245 + $0x380] sm:$0xff]
                %376 = vst [vmem:[%s246 + $0x200] sm:$0xff] %v375
                %v377 = vld [vmem:[%s245 + $0x388] sm:$0xff]
                %378 = vst [vmem:[%s246 + $0x208] sm:$0xff] %v377
                %v379 = vld [vmem:[%s245 + $0x390] sm:$0xff]
                %380 = vst [vmem:[%s246 + $0x210] sm:$0xff] %v379
                %v381 = vld [vmem:[%s245 + $0x398] sm:$0xff]
                %382 = vst [vmem:[%s246 + $0x218] sm:$0xff] %v381
                %v383 = vld [vmem:[%s245 + $0x3a0] sm:$0xff]
                %384 = vst [vmem:[%s246 + $0x220] sm:$0xff] %v383
                %v385 = vld [vmem:[%s245 + $0x3a8] sm:$0xff]
                %386 = vst [vmem:[%s246 + $0x228] sm:$0xff] %v385
                %v387 = vld [vmem:[%s245 + $0x3b0] sm:$0xff]
                %388 = vst [vmem:[%s246 + $0x230] sm:$0xff] %v387
                %v389 = vld [vmem:[%s245 + $0x3b8] sm:$0xff]
                %390 = vst [vmem:[%s246 + $0x238] sm:$0xff] %v389
              $region53: #{bottleneck_forward.9} parent=47 // loop_footer
                %s244 = sadd.s32 1, %s240
              $region54: #{bottleneck_forward.9} parent=47 // loop_footer_branch
                %239 = sbr.rel target = $region50
              $region55: #{bottleneck_forward.9} parent=47 // loop_exit
                _
            $region48: #{bottleneck_forward.9} parent=39 // pred_fallthru
              _
          $region40: #{bottleneck_forward.9} parent=35 // pred_fallthru
            _
          %547 = vnop
        $region36: #{bottleneck_forward.9} parent=31 // pred_fallthru
          _
        // Predicated region
        $region71: #{bottleneck_forward.9} parent=31 // pred_check
          %p548 = pneg %p114
        $region72: #{bottleneck_forward.9} parent=31 // pred_check_branch
          %550 = sbr.rel (%p548) target = $region74
        $region73: #{bottleneck_forward.9} parent=31 // pred_region
          %s551 = sand.u32 %s104, 1
          %s552 = sand.u32 %s104, 1
          %s553 = smul.addr %s552, 576
          %s554 = scalar_lea.vmem [#allocation3], %s553
          %s555 = smul.u32 3, %s19
          %s556 = smul.u32 8, %s20
          %s557 = smul.addr %s556, 3
          %s558 = smul.addr %s555, 48
          %s559 = sadd.s32 %s557, %s558
          %s560 = smul.addr %s559, 8
          %s561 = scalar_lea.vmem %s3, %s560
          // Predicated region
          $region75: #{bottleneck_forward.9} parent=73 // pred_check
            _
          $region76: #{bottleneck_forward.9} parent=73 // pred_check_branch
            %563 = sbr.rel (0) target = $region78
          $region77: #{bottleneck_forward.9} parent=73 // pred_region
            // Predicated region
            $region79: #{bottleneck_forward.9} parent=77 // pred_check
              _
            $region80: #{bottleneck_forward.9} parent=77 // pred_check_branch
              %565 = sbr.rel (0) target = $region82
            $region81: #{bottleneck_forward.9} parent=77 // pred_region
              // Predicated region
              $region94: #{bottleneck_forward.9} parent=81 // pred_check
                _
              $region95: #{bottleneck_forward.9} parent=81 // pred_check_branch
                %722 = sbr.rel (0) target = $region97
              $region96: #{bottleneck_forward.9} parent=81 // pred_region
                loop: start=0, step=1, limit=1
                $region98: #{bottleneck_forward.9} parent=96 // loop_pre_header
                  _
                $region99: #{bottleneck_forward.9} parent=96 // loop_header
                  %s724 = sphi 0, %s728
                  %p725 = scmp.ge.s32.totalorder %s724, 1
                  %s729 = sphi %s561, %s561
                  %s730 = sphi %s554, %s554
                $region100: #{bottleneck_forward.9} parent=96 // loop_header_branch
                  %727 = sbr.rel (%p725) target = $region104
                $region101: #{bottleneck_forward.9} parent=96 // loop_body
                  %v731 = vld [vmem:[%s729] sm:$0xff]
                  %732 = vst [vmem:[%s730] sm:$0xff] %v731
                  %v733 = vld [vmem:[%s729 + $0x8] sm:$0xff]
                  %734 = vst [vmem:[%s730 + $0x8] sm:$0xff] %v733
                  %v735 = vld [vmem:[%s729 + $0x10] sm:$0xff]
                  %736 = vst [vmem:[%s730 + $0x10] sm:$0xff] %v735
                  %v737 = vld [vmem:[%s729 + $0x18] sm:$0xff]
                  %738 = vst [vmem:[%s730 + $0x18] sm:$0xff] %v737
                  %v739 = vld [vmem:[%s729 + $0x20] sm:$0xff]
                  %740 = vst [vmem:[%s730 + $0x20] sm:$0xff] %v739
                  %v741 = vld [vmem:[%s729 + $0x28] sm:$0xff]
                  %742 = vst [vmem:[%s730 + $0x28] sm:$0xff] %v741
                  %v743 = vld [vmem:[%s729 + $0x30] sm:$0xff]
                  %744 = vst [vmem:[%s730 + $0x30] sm:$0xff] %v743
                  %v745 = vld [vmem:[%s729 + $0x38] sm:$0xff]
                  %746 = vst [vmem:[%s730 + $0x38] sm:$0xff] %v745
                  %v747 = vld [vmem:[%s729 + $0x40] sm:$0xff]
                  %748 = vst [vmem:[%s730 + $0x40] sm:$0xff] %v747
                  %v749 = vld [vmem:[%s729 + $0x48] sm:$0xff]
                  %750 = vst [vmem:[%s730 + $0x48] sm:$0xff] %v749
                  %v751 = vld [vmem:[%s729 + $0x50] sm:$0xff]
                  %752 = vst [vmem:[%s730 + $0x50] sm:$0xff] %v751
                  %v753 = vld [vmem:[%s729 + $0x58] sm:$0xff]
                  %754 = vst [vmem:[%s730 + $0x58] sm:$0xff] %v753
                  %v755 = vld [vmem:[%s729 + $0x60] sm:$0xff]
                  %756 = vst [vmem:[%s730 + $0x60] sm:$0xff] %v755
                  %v757 = vld [vmem:[%s729 + $0x68] sm:$0xff]
                  %758 = vst [vmem:[%s730 + $0x68] sm:$0xff] %v757
                  %v759 = vld [vmem:[%s729 + $0x70] sm:$0xff]
                  %760 = vst [vmem:[%s730 + $0x70] sm:$0xff] %v759
                  %v761 = vld [vmem:[%s729 + $0x78] sm:$0xff]
                  %762 = vst [vmem:[%s730 + $0x78] sm:$0xff] %v761
                  %v763 = vld [vmem:[%s729 + $0x80] sm:$0xff]
                  %764 = vst [vmem:[%s730 + $0x80] sm:$0xff] %v763
                  %v765 = vld [vmem:[%s729 + $0x88] sm:$0xff]
                  %766 = vst [vmem:[%s730 + $0x88] sm:$0xff] %v765
                  %v767 = vld [vmem:[%s729 + $0x90] sm:$0xff]
                  %768 = vst [vmem:[%s730 + $0x90] sm:$0xff] %v767
                  %v769 = vld [vmem:[%s729 + $0x98] sm:$0xff]
                  %770 = vst [vmem:[%s730 + $0x98] sm:$0xff] %v769
                  %v771 = vld [vmem:[%s729 + $0xa0] sm:$0xff]
                  %772 = vst [vmem:[%s730 + $0xa0] sm:$0xff] %v771
                  %v773 = vld [vmem:[%s729 + $0xa8] sm:$0xff]
                  %774 = vst [vmem:[%s730 + $0xa8] sm:$0xff] %v773
                  %v775 = vld [vmem:[%s729 + $0xb0] sm:$0xff]
                  %776 = vst [vmem:[%s730 + $0xb0] sm:$0xff] %v775
                  %v777 = vld [vmem:[%s729 + $0xb8] sm:$0xff]
                  %778 = vst [vmem:[%s730 + $0xb8] sm:$0xff] %v777
                  %v779 = vld [vmem:[%s729 + $0x180] sm:$0xff]
                  %780 = vst [vmem:[%s730 + $0xc0] sm:$0xff] %v779
                  %v781 = vld [vmem:[%s729 + $0x188] sm:$0xff]
                  %782 = vst [vmem:[%s730 + $0xc8] sm:$0xff] %v781
                  %v783 = vld [vmem:[%s729 + $0x190] sm:$0xff]
                  %784 = vst [vmem:[%s730 + $0xd0] sm:$0xff] %v783
                  %v785 = vld [vmem:[%s729 + $0x198] sm:$0xff]
                  %786 = vst [vmem:[%s730 + $0xd8] sm:$0xff] %v785
                  %v787 = vld [vmem:[%s729 + $0x1a0] sm:$0xff]
                  %788 = vst [vmem:[%s730 + $0xe0] sm:$0xff] %v787
                  %v789 = vld [vmem:[%s729 + $0x1a8] sm:$0xff]
                  %790 = vst [vmem:[%s730 + $0xe8] sm:$0xff] %v789
                  %v791 = vld [vmem:[%s729 + $0x1b0] sm:$0xff]
                  %792 = vst [vmem:[%s730 + $0xf0] sm:$0xff] %v791
                  %v793 = vld [vmem:[%s729 + $0x1b8] sm:$0xff]
                  %794 = vst [vmem:[%s730 + $0xf8] sm:$0xff] %v793
                  %v795 = vld [vmem:[%s729 + $0x1c0] sm:$0xff]
                  %796 = vst [vmem:[%s730 + $0x100] sm:$0xff] %v795
                  %v797 = vld [vmem:[%s729 + $0x1c8] sm:$0xff]
                  %798 = vst [vmem:[%s730 + $0x108] sm:$0xff] %v797
                  %v799 = vld [vmem:[%s729 + $0x1d0] sm:$0xff]
                  %800 = vst [vmem:[%s730 + $0x110] sm:$0xff] %v799
                  %v801 = vld [vmem:[%s729 + $0x1d8] sm:$0xff]
                  %802 = vst [vmem:[%s730 + $0x118] sm:$0xff] %v801
                  %v803 = vld [vmem:[%s729 + $0x1e0] sm:$0xff]
                  %804 = vst [vmem:[%s730 + $0x120] sm:$0xff] %v803
                  %v805 = vld [vmem:[%s729 + $0x1e8] sm:$0xff]
                  %806 = vst [vmem:[%s730 + $0x128] sm:$0xff] %v805
                  %v807 = vld [vmem:[%s729 + $0x1f0] sm:$0xff]
                  %808 = vst [vmem:[%s730 + $0x130] sm:$0xff] %v807
                  %v809 = vld [vmem:[%s729 + $0x1f8] sm:$0xff]
                  %810 = vst [vmem:[%s730 + $0x138] sm:$0xff] %v809
                  %v811 = vld [vmem:[%s729 + $0x200] sm:$0xff]
                  %812 = vst [vmem:[%s730 + $0x140] sm:$0xff] %v811
                  %v813 = vld [vmem:[%s729 + $0x208] sm:$0xff]
                  %814 = vst [vmem:[%s730 + $0x148] sm:$0xff] %v813
                  %v815 = vld [vmem:[%s729 + $0x210] sm:$0xff]
                  %816 = vst [vmem:[%s730 + $0x150] sm:$0xff] %v815
                  %v817 = vld [vmem:[%s729 + $0x218] sm:$0xff]
                  %818 = vst [vmem:[%s730 + $0x158] sm:$0xff] %v817
                  %v819 = vld [vmem:[%s729 + $0x220] sm:$0xff]
                  %820 = vst [vmem:[%s730 + $0x160] sm:$0xff] %v819
                  %v821 = vld [vmem:[%s729 + $0x228] sm:$0xff]
                  %822 = vst [vmem:[%s730 + $0x168] sm:$0xff] %v821
                  %v823 = vld [vmem:[%s729 + $0x230] sm:$0xff]
                  %824 = vst [vmem:[%s730 + $0x170] sm:$0xff] %v823
                  %v825 = vld [vmem:[%s729 + $0x238] sm:$0xff]
                  %826 = vst [vmem:[%s730 + $0x178] sm:$0xff] %v825
                  %v827 = vld [vmem:[%s729 + $0x300] sm:$0xff]
                  %828 = vst [vmem:[%s730 + $0x180] sm:$0xff] %v827
                  %v829 = vld [vmem:[%s729 + $0x308] sm:$0xff]
                  %830 = vst [vmem:[%s730 + $0x188] sm:$0xff] %v829
                  %v831 = vld [vmem:[%s729 + $0x310] sm:$0xff]
                  %832 = vst [vmem:[%s730 + $0x190] sm:$0xff] %v831
                  %v833 = vld [vmem:[%s729 + $0x318] sm:$0xff]
                  %834 = vst [vmem:[%s730 + $0x198] sm:$0xff] %v833
                  %v835 = vld [vmem:[%s729 + $0x320] sm:$0xff]
                  %836 = vst [vmem:[%s730 + $0x1a0] sm:$0xff] %v835
                  %v837 = vld [vmem:[%s729 + $0x328] sm:$0xff]
                  %838 = vst [vmem:[%s730 + $0x1a8] sm:$0xff] %v837
                  %v839 = vld [vmem:[%s729 + $0x330] sm:$0xff]
                  %840 = vst [vmem:[%s730 + $0x1b0] sm:$0xff] %v839
                  %v841 = vld [vmem:[%s729 + $0x338] sm:$0xff]
                  %842 = vst [vmem:[%s730 + $0x1b8] sm:$0xff] %v841
                  %v843 = vld [vmem:[%s729 + $0x340] sm:$0xff]
                  %844 = vst [vmem:[%s730 + $0x1c0] sm:$0xff] %v843
                  %v845 = vld [vmem:[%s729 + $0x348] sm:$0xff]
                  %846 = vst [vmem:[%s730 + $0x1c8] sm:$0xff] %v845
                  %v847 = vld [vmem:[%s729 + $0x350] sm:$0xff]
                  %848 = vst [vmem:[%s730 + $0x1d0] sm:$0xff] %v847
                  %v849 = vld [vmem:[%s729 + $0x358] sm:$0xff]
                  %850 = vst [vmem:[%s730 + $0x1d8] sm:$0xff] %v849
                  %v851 = vld [vmem:[%s729 + $0x360] sm:$0xff]
                  %852 = vst [vmem:[%s730 + $0x1e0] sm:$0xff] %v851
                  %v853 = vld [vmem:[%s729 + $0x368] sm:$0xff]
                  %854 = vst [vmem:[%s730 + $0x1e8] sm:$0xff] %v853
                  %v855 = vld [vmem:[%s729 + $0x370] sm:$0xff]
                  %856 = vst [vmem:[%s730 + $0x1f0] sm:$0xff] %v855
                  %v857 = vld [vmem:[%s729 + $0x378] sm:$0xff]
                  %858 = vst [vmem:[%s730 + $0x1f8] sm:$0xff] %v857
                  %v859 = vld [vmem:[%s729 + $0x380] sm:$0xff]
                  %860 = vst [vmem:[%s730 + $0x200] sm:$0xff] %v859
                  %v861 = vld [vmem:[%s729 + $0x388] sm:$0xff]
                  %862 = vst [vmem:[%s730 + $0x208] sm:$0xff] %v861
                  %v863 = vld [vmem:[%s729 + $0x390] sm:$0xff]
                  %864 = vst [vmem:[%s730 + $0x210] sm:$0xff] %v863
                  %v865 = vld [vmem:[%s729 + $0x398] sm:$0xff]
                  %866 = vst [vmem:[%s730 + $0x218] sm:$0xff] %v865
                  %v867 = vld [vmem:[%s729 + $0x3a0] sm:$0xff]
                  %868 = vst [vmem:[%s730 + $0x220] sm:$0xff] %v867
                  %v869 = vld [vmem:[%s729 + $0x3a8] sm:$0xff]
                  %870 = vst [vmem:[%s730 + $0x228] sm:$0xff] %v869
                  %v871 = vld [vmem:[%s729 + $0x3b0] sm:$0xff]
                  %872 = vst [vmem:[%s730 + $0x230] sm:$0xff] %v871
                  %v873 = vld [vmem:[%s729 + $0x3b8] sm:$0xff]
                  %874 = vst [vmem:[%s730 + $0x238] sm:$0xff] %v873
                $region102: #{bottleneck_forward.9} parent=96 // loop_footer
                  %s728 = sadd.s32 1, %s724
                $region103: #{bottleneck_forward.9} parent=96 // loop_footer_branch
                  %723 = sbr.rel target = $region99
                $region104: #{bottleneck_forward.9} parent=96 // loop_exit
                  _
              $region97: #{bottleneck_forward.9} parent=81 // pred_fallthru
                _
              // Predicated region
              $region105: #{bottleneck_forward.9} parent=81 // pred_check
                _
              $region106: #{bottleneck_forward.9} parent=81 // pred_check_branch
                %876 = sbr.rel target = $region108
              $region107: #{bottleneck_forward.9} parent=81 // pred_region
                _
              $region108: #{bottleneck_forward.9} parent=81 // pred_fallthru
                _
            $region82: #{bottleneck_forward.9} parent=77 // pred_fallthru
              _
            // Predicated region
            $region83: #{bottleneck_forward.9} parent=77 // pred_check
              _
            $region84: #{bottleneck_forward.9} parent=77 // pred_check_branch
              %567 = sbr.rel target = $region86
            $region85: #{bottleneck_forward.9} parent=77 // pred_region
              loop: start=0, step=1, limit=1
              $region87: #{bottleneck_forward.9} parent=85 // loop_pre_header
                _
              $region88: #{bottleneck_forward.9} parent=85 // loop_header
                %s570 = sphi 0, %s574
                %p571 = scmp.ge.s32.totalorder %s570, 1
                %s575 = sphi %s561, %s561
                %s576 = sphi %s554, %s554
              $region89: #{bottleneck_forward.9} parent=85 // loop_header_branch
                %573 = sbr.rel (%p571) target = $region93
              $region90: #{bottleneck_forward.9} parent=85 // loop_body
                %v577 = vld [vmem:[%s575] sm:$0xff]
                %578 = vst [vmem:[%s576] sm:$0xff] %v577
                %v579 = vld [vmem:[%s575 + $0x8] sm:$0xff]
                %580 = vst [vmem:[%s576 + $0x8] sm:$0xff] %v579
                %v581 = vld [vmem:[%s575 + $0x10] sm:$0xff]
                %582 = vst [vmem:[%s576 + $0x10] sm:$0xff] %v581
                %v583 = vld [vmem:[%s575 + $0x18] sm:$0xff]
                %584 = vst [vmem:[%s576 + $0x18] sm:$0xff] %v583
                %v585 = vld [vmem:[%s575 + $0x20] sm:$0xff]
                %586 = vst [vmem:[%s576 + $0x20] sm:$0xff] %v585
                %v587 = vld [vmem:[%s575 + $0x28] sm:$0xff]
                %588 = vst [vmem:[%s576 + $0x28] sm:$0xff] %v587
                %v589 = vld [vmem:[%s575 + $0x30] sm:$0xff]
                %590 = vst [vmem:[%s576 + $0x30] sm:$0xff] %v589
                %v591 = vld [vmem:[%s575 + $0x38] sm:$0xff]
                %592 = vst [vmem:[%s576 + $0x38] sm:$0xff] %v591
                %v593 = vld [vmem:[%s575 + $0x40] sm:$0xff]
                %594 = vst [vmem:[%s576 + $0x40] sm:$0xff] %v593
                %v595 = vld [vmem:[%s575 + $0x48] sm:$0xff]
                %596 = vst [vmem:[%s576 + $0x48] sm:$0xff] %v595
                %v597 = vld [vmem:[%s575 + $0x50] sm:$0xff]
                %598 = vst [vmem:[%s576 + $0x50] sm:$0xff] %v597
                %v599 = vld [vmem:[%s575 + $0x58] sm:$0xff]
                %600 = vst [vmem:[%s576 + $0x58] sm:$0xff] %v599
                %v601 = vld [vmem:[%s575 + $0x60] sm:$0xff]
                %602 = vst [vmem:[%s576 + $0x60] sm:$0xff] %v601
                %v603 = vld [vmem:[%s575 + $0x68] sm:$0xff]
                %604 = vst [vmem:[%s576 + $0x68] sm:$0xff] %v603
                %v605 = vld [vmem:[%s575 + $0x70] sm:$0xff]
                %606 = vst [vmem:[%s576 + $0x70] sm:$0xff] %v605
                %v607 = vld [vmem:[%s575 + $0x78] sm:$0xff]
                %608 = vst [vmem:[%s576 + $0x78] sm:$0xff] %v607
                %v609 = vld [vmem:[%s575 + $0x80] sm:$0xff]
                %610 = vst [vmem:[%s576 + $0x80] sm:$0xff] %v609
                %v611 = vld [vmem:[%s575 + $0x88] sm:$0xff]
                %612 = vst [vmem:[%s576 + $0x88] sm:$0xff] %v611
                %v613 = vld [vmem:[%s575 + $0x90] sm:$0xff]
                %614 = vst [vmem:[%s576 + $0x90] sm:$0xff] %v613
                %v615 = vld [vmem:[%s575 + $0x98] sm:$0xff]
                %616 = vst [vmem:[%s576 + $0x98] sm:$0xff] %v615
                %v617 = vld [vmem:[%s575 + $0xa0] sm:$0xff]
                %618 = vst [vmem:[%s576 + $0xa0] sm:$0xff] %v617
                %v619 = vld [vmem:[%s575 + $0xa8] sm:$0xff]
                %620 = vst [vmem:[%s576 + $0xa8] sm:$0xff] %v619
                %v621 = vld [vmem:[%s575 + $0xb0] sm:$0xff]
                %622 = vst [vmem:[%s576 + $0xb0] sm:$0xff] %v621
                %v623 = vld [vmem:[%s575 + $0xb8] sm:$0xff]
                %624 = vst [vmem:[%s576 + $0xb8] sm:$0xff] %v623
                %v625 = vld [vmem:[%s575 + $0x180] sm:$0xff]
                %626 = vst [vmem:[%s576 + $0xc0] sm:$0xff] %v625
                %v627 = vld [vmem:[%s575 + $0x188] sm:$0xff]
                %628 = vst [vmem:[%s576 + $0xc8] sm:$0xff] %v627
                %v629 = vld [vmem:[%s575 + $0x190] sm:$0xff]
                %630 = vst [vmem:[%s576 + $0xd0] sm:$0xff] %v629
                %v631 = vld [vmem:[%s575 + $0x198] sm:$0xff]
                %632 = vst [vmem:[%s576 + $0xd8] sm:$0xff] %v631
                %v633 = vld [vmem:[%s575 + $0x1a0] sm:$0xff]
                %634 = vst [vmem:[%s576 + $0xe0] sm:$0xff] %v633
                %v635 = vld [vmem:[%s575 + $0x1a8] sm:$0xff]
                %636 = vst [vmem:[%s576 + $0xe8] sm:$0xff] %v635
                %v637 = vld [vmem:[%s575 + $0x1b0] sm:$0xff]
                %638 = vst [vmem:[%s576 + $0xf0] sm:$0xff] %v637
                %v639 = vld [vmem:[%s575 + $0x1b8] sm:$0xff]
                %640 = vst [vmem:[%s576 + $0xf8] sm:$0xff] %v639
                %v641 = vld [vmem:[%s575 + $0x1c0] sm:$0xff]
                %642 = vst [vmem:[%s576 + $0x100] sm:$0xff] %v641
                %v643 = vld [vmem:[%s575 + $0x1c8] sm:$0xff]
                %644 = vst [vmem:[%s576 + $0x108] sm:$0xff] %v643
                %v645 = vld [vmem:[%s575 + $0x1d0] sm:$0xff]
                %646 = vst [vmem:[%s576 + $0x110] sm:$0xff] %v645
                %v647 = vld [vmem:[%s575 + $0x1d8] sm:$0xff]
                %648 = vst [vmem:[%s576 + $0x118] sm:$0xff] %v647
                %v649 = vld [vmem:[%s575 + $0x1e0] sm:$0xff]
                %650 = vst [vmem:[%s576 + $0x120] sm:$0xff] %v649
                %v651 = vld [vmem:[%s575 + $0x1e8] sm:$0xff]
                %652 = vst [vmem:[%s576 + $0x128] sm:$0xff] %v651
                %v653 = vld [vmem:[%s575 + $0x1f0] sm:$0xff]
                %654 = vst [vmem:[%s576 + $0x130] sm:$0xff] %v653
                %v655 = vld [vmem:[%s575 + $0x1f8] sm:$0xff]
                %656 = vst [vmem:[%s576 + $0x138] sm:$0xff] %v655
                %v657 = vld [vmem:[%s575 + $0x200] sm:$0xff]
                %658 = vst [vmem:[%s576 + $0x140] sm:$0xff] %v657
                %v659 = vld [vmem:[%s575 + $0x208] sm:$0xff]
                %660 = vst [vmem:[%s576 + $0x148] sm:$0xff] %v659
                %v661 = vld [vmem:[%s575 + $0x210] sm:$0xff]
                %662 = vst [vmem:[%s576 + $0x150] sm:$0xff] %v661
                %v663 = vld [vmem:[%s575 + $0x218] sm:$0xff]
                %664 = vst [vmem:[%s576 + $0x158] sm:$0xff] %v663
                %v665 = vld [vmem:[%s575 + $0x220] sm:$0xff]
                %666 = vst [vmem:[%s576 + $0x160] sm:$0xff] %v665
                %v667 = vld [vmem:[%s575 + $0x228] sm:$0xff]
                %668 = vst [vmem:[%s576 + $0x168] sm:$0xff] %v667
                %v669 = vld [vmem:[%s575 + $0x230] sm:$0xff]
                %670 = vst [vmem:[%s576 + $0x170] sm:$0xff] %v669
                %v671 = vld [vmem:[%s575 + $0x238] sm:$0xff]
                %672 = vst [vmem:[%s576 + $0x178] sm:$0xff] %v671
                %v673 = vld [vmem:[%s575 + $0x300] sm:$0xff]
                %674 = vst [vmem:[%s576 + $0x180] sm:$0xff] %v673
                %v675 = vld [vmem:[%s575 + $0x308] sm:$0xff]
                %676 = vst [vmem:[%s576 + $0x188] sm:$0xff] %v675
                %v677 = vld [vmem:[%s575 + $0x310] sm:$0xff]
                %678 = vst [vmem:[%s576 + $0x190] sm:$0xff] %v677
                %v679 = vld [vmem:[%s575 + $0x318] sm:$0xff]
                %680 = vst [vmem:[%s576 + $0x198] sm:$0xff] %v679
                %v681 = vld [vmem:[%s575 + $0x320] sm:$0xff]
                %682 = vst [vmem:[%s576 + $0x1a0] sm:$0xff] %v681
                %v683 = vld [vmem:[%s575 + $0x328] sm:$0xff]
                %684 = vst [vmem:[%s576 + $0x1a8] sm:$0xff] %v683
                %v685 = vld [vmem:[%s575 + $0x330] sm:$0xff]
                %686 = vst [vmem:[%s576 + $0x1b0] sm:$0xff] %v685
                %v687 = vld [vmem:[%s575 + $0x338] sm:$0xff]
                %688 = vst [vmem:[%s576 + $0x1b8] sm:$0xff] %v687
                %v689 = vld [vmem:[%s575 + $0x340] sm:$0xff]
                %690 = vst [vmem:[%s576 + $0x1c0] sm:$0xff] %v689
                %v691 = vld [vmem:[%s575 + $0x348] sm:$0xff]
                %692 = vst [vmem:[%s576 + $0x1c8] sm:$0xff] %v691
                %v693 = vld [vmem:[%s575 + $0x350] sm:$0xff]
                %694 = vst [vmem:[%s576 + $0x1d0] sm:$0xff] %v693
                %v695 = vld [vmem:[%s575 + $0x358] sm:$0xff]
                %696 = vst [vmem:[%s576 + $0x1d8] sm:$0xff] %v695
                %v697 = vld [vmem:[%s575 + $0x360] sm:$0xff]
                %698 = vst [vmem:[%s576 + $0x1e0] sm:$0xff] %v697
                %v699 = vld [vmem:[%s575 + $0x368] sm:$0xff]
                %700 = vst [vmem:[%s576 + $0x1e8] sm:$0xff] %v699
                %v701 = vld [vmem:[%s575 + $0x370] sm:$0xff]
                %702 = vst [vmem:[%s576 + $0x1f0] sm:$0xff] %v701
                %v703 = vld [vmem:[%s575 + $0x378] sm:$0xff]
                %704 = vst [vmem:[%s576 + $0x1f8] sm:$0xff] %v703
                %v705 = vld [vmem:[%s575 + $0x380] sm:$0xff]
                %706 = vst [vmem:[%s576 + $0x200] sm:$0xff] %v705
                %v707 = vld [vmem:[%s575 + $0x388] sm:$0xff]
                %708 = vst [vmem:[%s576 + $0x208] sm:$0xff] %v707
                %v709 = vld [vmem:[%s575 + $0x390] sm:$0xff]
                %710 = vst [vmem:[%s576 + $0x210] sm:$0xff] %v709
                %v711 = vld [vmem:[%s575 + $0x398] sm:$0xff]
                %712 = vst [vmem:[%s576 + $0x218] sm:$0xff] %v711
                %v713 = vld [vmem:[%s575 + $0x3a0] sm:$0xff]
                %714 = vst [vmem:[%s576 + $0x220] sm:$0xff] %v713
                %v715 = vld [vmem:[%s575 + $0x3a8] sm:$0xff]
                %716 = vst [vmem:[%s576 + $0x228] sm:$0xff] %v715
                %v717 = vld [vmem:[%s575 + $0x3b0] sm:$0xff]
                %718 = vst [vmem:[%s576 + $0x230] sm:$0xff] %v717
                %v719 = vld [vmem:[%s575 + $0x3b8] sm:$0xff]
                %720 = vst [vmem:[%s576 + $0x238] sm:$0xff] %v719
              $region91: #{bottleneck_forward.9} parent=85 // loop_footer
                %s574 = sadd.s32 1, %s570
              $region92: #{bottleneck_forward.9} parent=85 // loop_footer_branch
                %569 = sbr.rel target = $region88
              $region93: #{bottleneck_forward.9} parent=85 // loop_exit
                _
            $region86: #{bottleneck_forward.9} parent=77 // pred_fallthru
              _
          $region78: #{bottleneck_forward.9} parent=73 // pred_fallthru
            _
          %877 = vnop
        $region74: #{bottleneck_forward.9} parent=31 // pred_fallthru
          _
      $region32: #{bottleneck_forward.9} parent=5 // pred_fallthru
        _
      %p878 = scmp.le.s32.totalorder 1, %s12
      %p879 = scmp.lt.s32.totalorder %s12, 5
      %p880 = pnand %p878, %p879
      %p881 = pneg %p880
      // Predicated region
      $region109: #{bottleneck_forward.9} parent=5 // pred_check
        _
      $region110: #{bottleneck_forward.9} parent=5 // pred_check_branch
        %883 = sbr.rel (%p880) target = $region112
      $region111: #{bottleneck_forward.9} parent=5 // pred_region
        %s884 = ssub.s32 %s12, 1
        %s885 = sand.u32 %s79, 1
        %s886 = sand.u32 %s79, 1
        %s887 = smul.addr %s886, 576
        %s888 = scalar_lea.vmem [#allocation2], %s887
        // Predicated region
        $region113: #{bottleneck_forward.9} parent=111 // pred_check
          %p889 = pneg %p92
        $region114: #{bottleneck_forward.9} parent=111 // pred_check_branch
          %891 = sbr.rel (%p889) target = $region116
        $region115: #{bottleneck_forward.9} parent=111 // pred_region
          _
        $region116: #{bottleneck_forward.9} parent=111 // pred_fallthru
          _
        %s892 = sand.u32 %s107, 1
        %s893 = sand.u32 %s107, 1
        %s894 = smul.addr %s893, 576
        %s895 = scalar_lea.vmem [#allocation3], %s894
        // Predicated region
        $region117: #{bottleneck_forward.9} parent=111 // pred_check
          %p896 = pneg %p120
        $region118: #{bottleneck_forward.9} parent=111 // pred_check_branch
          %898 = sbr.rel (%p896) target = $region120
        $region119: #{bottleneck_forward.9} parent=111 // pred_region
          _
        $region120: #{bottleneck_forward.9} parent=111 // pred_fallthru
          _
        %p899 = pneg %p45
        %p900 = pneg %p42
        %p901 = pneg %p66
        %p902 = pneg %p63
        %s903 = sand.u32 %s79, 1
        %s904 = sand.u32 %s79, 1
        %s905 = smul.addr %s904, 576
        %s906 = scalar_lea.vmem [#allocation2], %s905
        %p907 = pneg %p92
        %p908 = pneg %p89
        %s909 = sand.u32 %s107, 1
        %s910 = sand.u32 %s107, 1
        %s911 = smul.addr %s910, 576
        %s912 = scalar_lea.vmem [#allocation3], %s911
        %p913 = pneg %p120
        %p914 = pneg %p117
        %p915 = pneg %p141
        %p916 = pneg %p138
        %p917 = pneg %p162
        %p918 = pneg %p159
        %p919 = pneg %p190
        %p920 = pneg %p187
        %s921 = smul.u32 16, %s22
        %p922 = scmp.lt.s32.totalorder %s21, 1
        %s923 = scalar_select %p922, %s21, 1
        %p924 = scmp.lt.s32.totalorder %s921, 31
        %s925 = scalar_select %p924, %s921, 31
        %s926 = smul.addr %s923, 32
        %s927 = sadd.s32 %s925, %s926
        %s928 = smul.addr %s927, 8
        %s929 = scalar_lea.vmem %s6, %s928
        %s930 = smul.u32 8, %s22
        %s931 = smul.u32 3, %s21
        %s932 = smul.u32 8, %s22
        %s933 = smul.u32 16, %s22
        %p934 = scmp.lt.s32.totalorder %s21, 1
        %s935 = scalar_select %p934, %s21, 1
        %p936 = scmp.lt.s32.totalorder %s933, 31
        %s937 = scalar_select %p936, %s933, 31
        %s938 = smul.addr %s935, 32
        %s939 = sadd.s32 %s937, %s938
        %s940 = smul.addr %s939, 8
        %s941 = scalar_lea.vmem %s6, %s940
        %s942 = smul.u32 16, %s22
        %v944 = vld [vmem:[%s0] sm:$0x1]
        %v945 = vld [vmem:[%s1] sm:$0x1]
        %v946 = vld [vmem:[%s895] sm:$0xff]
        %v947 = vld [vmem:[%s895 + $0x8] sm:$0xff]
        %v948 = vld [vmem:[%s895 + $0x10] sm:$0x3]
        %v949 = vld [vmem:[%s895 + $0x18] sm:$0xff]
        %v950 = vld [vmem:[%s895 + $0x20] sm:$0xff]
        %v951 = vld [vmem:[%s895 + $0x28] sm:$0x3]
        %v952 = vld [vmem:[%s895 + $0x30] sm:$0xff]
        %v953 = vld [vmem:[%s895 + $0x38] sm:$0xff]
        %v954 = vld [vmem:[%s895 + $0x40] sm:$0x3]
        %v955 = vld [vmem:[%s895 + $0x48] sm:$0xff]
        %v956 = vld [vmem:[%s895 + $0x50] sm:$0xff]
        %v957 = vld [vmem:[%s895 + $0x58] sm:$0x3]
        %v958 = vld [vmem:[%s895 + $0x60] sm:$0xff]
        %v959 = vld [vmem:[%s895 + $0x68] sm:$0xff]
        %v960 = vld [vmem:[%s895 + $0x70] sm:$0x3]
        %v961 = vld [vmem:[%s895 + $0x78] sm:$0xff]
        %v962 = vld [vmem:[%s895 + $0x80] sm:$0xff]
        %v963 = vld [vmem:[%s895 + $0x88] sm:$0x3]
        %v964 = vld [vmem:[%s895 + $0x90] sm:$0xff]
        %v965 = vld [vmem:[%s895 + $0x98] sm:$0xff]
        %v966 = vld [vmem:[%s895 + $0xa0] sm:$0x3]
        %v967 = vld [vmem:[%s895 + $0xa8] sm:$0xff]
        %v968 = vld [vmem:[%s895 + $0xb0] sm:$0xff]
        %v969 = vld [vmem:[%s895 + $0xb8] sm:$0x3]
        %v971 = vlaneseq
        %v972 = vshrl.u32 %v971, 7
        %v973 = vsub.s32 0, %v972
        %v974 = vrot.slane %v944, %v973
        %v976 = vmul.f32 %v946, %v974
        %v977 = vmul.f32 %v947, %v974
        %v978 = vmul.f32 %v948, %v974
        %v979 = vmul.f32 %v949, %v974
        %v980 = vmul.f32 %v950, %v974
        %v981 = vmul.f32 %v951, %v974
        %v982 = vmul.f32 %v952, %v974
        %v983 = vmul.f32 %v953, %v974
        %v984 = vmul.f32 %v954, %v974
        %v985 = vmul.f32 %v955, %v974
        %v986 = vmul.f32 %v956, %v974
        %v987 = vmul.f32 %v957, %v974
        %v988 = vmul.f32 %v958, %v974
        %v989 = vmul.f32 %v959, %v974
        %v990 = vmul.f32 %v960, %v974
        %v991 = vmul.f32 %v961, %v974
        %v992 = vmul.f32 %v962, %v974
        %v993 = vmul.f32 %v963, %v974
        %v994 = vmul.f32 %v964, %v974
        %v995 = vmul.f32 %v965, %v974
        %v996 = vmul.f32 %v966, %v974
        %v997 = vmul.f32 %v967, %v974
        %v998 = vmul.f32 %v968, %v974
        %v999 = vmul.f32 %v969, %v974
        %v1001 = vlaneseq
        %v1002 = vshrl.u32 %v1001, 7
        %v1003 = vsub.s32 0, %v1002
        %v1004 = vrot.slane %v945, %v1003
        %v1006 = vadd.f32 %v976, %v1004
        %v1007 = vadd.f32 %v977, %v1004
        %v1008 = vadd.f32 %v978, %v1004
        %v1009 = vadd.f32 %v979, %v1004
        %v1010 = vadd.f32 %v980, %v1004
        %v1011 = vadd.f32 %v981, %v1004
        %v1012 = vadd.f32 %v982, %v1004
        %v1013 = vadd.f32 %v983, %v1004
        %v1014 = vadd.f32 %v984, %v1004
        %v1015 = vadd.f32 %v985, %v1004
        %v1016 = vadd.f32 %v986, %v1004
        %v1017 = vadd.f32 %v987, %v1004
        %v1018 = vadd.f32 %v988, %v1004
        %v1019 = vadd.f32 %v989, %v1004
        %v1020 = vadd.f32 %v990, %v1004
        %v1021 = vadd.f32 %v991, %v1004
        %v1022 = vadd.f32 %v992, %v1004
        %v1023 = vadd.f32 %v993, %v1004
        %v1024 = vadd.f32 %v994, %v1004
        %v1025 = vadd.f32 %v995, %v1004
        %v1026 = vadd.f32 %v996, %v1004
        %v1027 = vadd.f32 %v997, %v1004
        %v1028 = vadd.f32 %v998, %v1004
        %v1029 = vadd.f32 %v999, %v1004
        %v1030 = vmax.f32 %v1006, 0.0
        %v1031 = vmax.f32 %v1007, 0.0
        %v1032 = vmax.f32 %v1008, 0.0
        %v1033 = vmax.f32 %v1009, 0.0
        %v1034 = vmax.f32 %v1010, 0.0
        %v1035 = vmax.f32 %v1011, 0.0
        %v1036 = vmax.f32 %v1012, 0.0
        %v1037 = vmax.f32 %v1013, 0.0
        %v1038 = vmax.f32 %v1014, 0.0
        %v1039 = vmax.f32 %v1015, 0.0
        %v1040 = vmax.f32 %v1016, 0.0
        %v1041 = vmax.f32 %v1017, 0.0
        %v1042 = vmax.f32 %v1018, 0.0
        %v1043 = vmax.f32 %v1019, 0.0
        %v1044 = vmax.f32 %v1020, 0.0
        %v1045 = vmax.f32 %v1021, 0.0
        %v1046 = vmax.f32 %v1022, 0.0
        %v1047 = vmax.f32 %v1023, 0.0
        %v1048 = vmax.f32 %v1024, 0.0
        %v1049 = vmax.f32 %v1025, 0.0
        %v1050 = vmax.f32 %v1026, 0.0
        %v1051 = vmax.f32 %v1027, 0.0
        %v1052 = vmax.f32 %v1028, 0.0
        %v1053 = vmax.f32 %v1029, 0.0
        %v1054 = vld [vmem:[%s888] sm:$0xff]
        %v1055 = vld [vmem:[%s888 + $0x8] sm:$0xff]
        %v1056 = vld [vmem:[%s888 + $0x10] sm:$0x3]
        %v1057 = vld [vmem:[%s888 + $0x18] sm:$0xff]
        %v1058 = vld [vmem:[%s888 + $0x20] sm:$0xff]
        %v1059 = vld [vmem:[%s888 + $0x28] sm:$0x3]
        %v1060 = vld [vmem:[%s888 + $0x30] sm:$0xff]
        %v1061 = vld [vmem:[%s888 + $0x38] sm:$0xff]
        %v1062 = vld [vmem:[%s888 + $0x40] sm:$0x3]
        %v1063 = vld [vmem:[%s888 + $0x48] sm:$0xff]
        %v1064 = vld [vmem:[%s888 + $0x50] sm:$0xff]
        %v1065 = vld [vmem:[%s888 + $0x58] sm:$0x3]
        %v1066 = vld [vmem:[%s888 + $0x60] sm:$0xff]
        %v1067 = vld [vmem:[%s888 + $0x68] sm:$0xff]
        %v1068 = vld [vmem:[%s888 + $0x70] sm:$0x3]
        %v1069 = vld [vmem:[%s888 + $0x78] sm:$0xff]
        %v1070 = vld [vmem:[%s888 + $0x80] sm:$0xff]
        %v1071 = vld [vmem:[%s888 + $0x88] sm:$0x3]
        %v1072 = vld [vmem:[%s888 + $0x90] sm:$0xff]
        %v1073 = vld [vmem:[%s888 + $0x98] sm:$0xff]
        %v1074 = vld [vmem:[%s888 + $0xa0] sm:$0x3]
        %v1075 = vld [vmem:[%s888 + $0xa8] sm:$0xff]
        %v1076 = vld [vmem:[%s888 + $0xb0] sm:$0xff]
        %v1077 = vld [vmem:[%s888 + $0xb8] sm:$0x3]
        %1079 = vset.pattern.permute.xlu0 0
        %1080 = vperm.xlu0 %1079, %v1054
        %v1081 = vpop.permute.xlu0 %1080
        %1084 = vset.pattern.permute.xlu0 0
        %1085 = vperm.xlu0 %1084, %v1055
        %v1086 = vpop.permute.xlu0 %1085
        %1089 = vset.pattern.permute.xlu0 0
        %1090 = vperm.xlu0 %1089, %v1056
        %v1091 = vpop.permute.xlu0 %1090
        %1094 = vset.pattern.permute.xlu0 0
        %1095 = vperm.xlu0 %1094, %v1057
        %v1096 = vpop.permute.xlu0 %1095
        %1099 = vset.pattern.permute.xlu0 0
        %1100 = vperm.xlu0 %1099, %v1058
        %v1101 = vpop.permute.xlu0 %1100
        %1104 = vset.pattern.permute.xlu0 0
        %1105 = vperm.xlu0 %1104, %v1059
        %v1106 = vpop.permute.xlu0 %1105
        %1109 = vset.pattern.permute.xlu0 0
        %1110 = vperm.xlu0 %1109, %v1060
        %v1111 = vpop.permute.xlu0 %1110
        %1114 = vset.pattern.permute.xlu0 0
        %1115 = vperm.xlu0 %1114, %v1061
        %v1116 = vpop.permute.xlu0 %1115
        %1119 = vset.pattern.permute.xlu0 0
        %1120 = vperm.xlu0 %1119, %v1062
        %v1121 = vpop.permute.xlu0 %1120
        %1124 = vset.pattern.permute.xlu0 0
        %1125 = vperm.xlu0 %1124, %v1063
        %v1126 = vpop.permute.xlu0 %1125
        %1129 = vset.pattern.permute.xlu0 0
        %1130 = vperm.xlu0 %1129, %v1064
        %v1131 = vpop.permute.xlu0 %1130
        %1134 = vset.pattern.permute.xlu0 0
        %1135 = vperm.xlu0 %1134, %v1065
        %v1136 = vpop.permute.xlu0 %1135
        %1139 = vset.pattern.permute.xlu0 0
        %1140 = vperm.xlu0 %1139, %v1066
        %v1141 = vpop.permute.xlu0 %1140
        %1144 = vset.pattern.permute.xlu0 0
        %1145 = vperm.xlu0 %1144, %v1067
        %v1146 = vpop.permute.xlu0 %1145
        %1149 = vset.pattern.permute.xlu0 0
        %1150 = vperm.xlu0 %1149, %v1068
        %v1151 = vpop.permute.xlu0 %1150
        %1154 = vset.pattern.permute.xlu0 0
        %1155 = vperm.xlu0 %1154, %v1069
        %v1156 = vpop.permute.xlu0 %1155
        %1159 = vset.pattern.permute.xlu0 0
        %1160 = vperm.xlu0 %1159, %v1070
        %v1161 = vpop.permute.xlu0 %1160
        %1164 = vset.pattern.permute.xlu0 0
        %1165 = vperm.xlu0 %1164, %v1071
        %v1166 = vpop.permute.xlu0 %1165
        %1169 = vset.pattern.permute.xlu0 0
        %1170 = vperm.xlu0 %1169, %v1072
        %v1171 = vpop.permute.xlu0 %1170
        %1174 = vset.pattern.permute.xlu0 0
        %1175 = vperm.xlu0 %1174, %v1073
        %v1176 = vpop.permute.xlu0 %1175
        %1179 = vset.pattern.permute.xlu0 0
        %1180 = vperm.xlu0 %1179, %v1074
        %v1181 = vpop.permute.xlu0 %1180
        %1184 = vset.pattern.permute.xlu0 0
        %1185 = vperm.xlu0 %1184, %v1075
        %v1186 = vpop.permute.xlu0 %1185
        %1189 = vset.pattern.permute.xlu0 0
        %1190 = vperm.xlu0 %1189, %v1076
        %v1191 = vpop.permute.xlu0 %1190
        %1194 = vset.pattern.permute.xlu0 0
        %1195 = vperm.xlu0 %1194, %v1077
        %v1196 = vpop.permute.xlu0 %1195
        %v1198 = vmul.f32 %v1030, %v1081
        %v1199 = vmul.f32 %v1031, %v1086
        %v1200 = vmul.f32 %v1032, %v1091
        %v1201 = vmul.f32 %v1033, %v1096
        %v1202 = vmul.f32 %v1034, %v1101
        %v1203 = vmul.f32 %v1035, %v1106
        %v1204 = vmul.f32 %v1036, %v1111
        %v1205 = vmul.f32 %v1037, %v1116
        %v1206 = vmul.f32 %v1038, %v1121
        %v1207 = vmul.f32 %v1039, %v1126
        %v1208 = vmul.f32 %v1040, %v1131
        %v1209 = vmul.f32 %v1041, %v1136
        %v1210 = vmul.f32 %v1042, %v1141
        %v1211 = vmul.f32 %v1043, %v1146
        %v1212 = vmul.f32 %v1044, %v1151
        %v1213 = vmul.f32 %v1045, %v1156
        %v1214 = vmul.f32 %v1046, %v1161
        %v1215 = vmul.f32 %v1047, %v1166
        %v1216 = vmul.f32 %v1048, %v1171
        %v1217 = vmul.f32 %v1049, %v1176
        %v1218 = vmul.f32 %v1050, %v1181
        %v1219 = vmul.f32 %v1051, %v1186
        %v1220 = vmul.f32 %v1052, %v1191
        %v1221 = vmul.f32 %v1053, %v1196
        %v1222 = vpack.c.bf16 %v1199, %v1198
        %v1223 = vpack.c.bf16 %v1200, %v1200
        %v1224 = vpack.c.bf16 %v1202, %v1201
        %v1225 = vpack.c.bf16 %v1203, %v1203
        %v1226 = vpack.c.bf16 %v1205, %v1204
        %v1227 = vpack.c.bf16 %v1206, %v1206
        %v1228 = vpack.c.bf16 %v1208, %v1207
        %v1229 = vpack.c.bf16 %v1209, %v1209
        %v1230 = vpack.c.bf16 %v1211, %v1210
        %v1231 = vpack.c.bf16 %v1212, %v1212
        %v1232 = vpack.c.bf16 %v1214, %v1213
        %v1233 = vpack.c.bf16 %v1215, %v1215
        %v1234 = vpack.c.bf16 %v1217, %v1216
        %v1235 = vpack.c.bf16 %v1218, %v1218
        %v1236 = vpack.c.bf16 %v1220, %v1219
        %v1237 = vpack.c.bf16 %v1221, %v1221
        %s1238 = scalar_lea.vmem %s895, 192 [#allocation3]
        %v1239 = vld [vmem:[%s1238] sm:$0xff]
        %v1240 = vld [vmem:[%s1238 + $0x8] sm:$0xff]
        %v1241 = vld [vmem:[%s1238 + $0x10] sm:$0x3]
        %v1242 = vld [vmem:[%s1238 + $0x18] sm:$0xff]
        %v1243 = vld [vmem:[%s1238 + $0x20] sm:$0xff]
        %v1244 = vld [vmem:[%s1238 + $0x28] sm:$0x3]
        %v1245 = vld [vmem:[%s1238 + $0x30] sm:$0xff]
        %v1246 = vld [vmem:[%s1238 + $0x38] sm:$0xff]
        %v1247 = vld [vmem:[%s1238 + $0x40] sm:$0x3]
        %v1248 = vld [vmem:[%s1238 + $0x48] sm:$0xff]
        %v1249 = vld [vmem:[%s1238 + $0x50] sm:$0xff]
        %v1250 = vld [vmem:[%s1238 + $0x58] sm:$0x3]
        %v1251 = vld [vmem:[%s1238 + $0x60] sm:$0xff]
        %v1252 = vld [vmem:[%s1238 + $0x68] sm:$0xff]
        %v1253 = vld [vmem:[%s1238 + $0x70] sm:$0x3]
        %v1254 = vld [vmem:[%s1238 + $0x78] sm:$0xff]
        %v1255 = vld [vmem:[%s1238 + $0x80] sm:$0xff]
        %v1256 = vld [vmem:[%s1238 + $0x88] sm:$0x3]
        %v1257 = vld [vmem:[%s1238 + $0x90] sm:$0xff]
        %v1258 = vld [vmem:[%s1238 + $0x98] sm:$0xff]
        %v1259 = vld [vmem:[%s1238 + $0xa0] sm:$0x3]
        %v1260 = vld [vmem:[%s1238 + $0xa8] sm:$0xff]
        %v1261 = vld [vmem:[%s1238 + $0xb0] sm:$0xff]
        %v1262 = vld [vmem:[%s1238 + $0xb8] sm:$0x3]
        %v1263 = vmul.f32 %v1239, %v974
        %v1264 = vmul.f32 %v1240, %v974
        %v1265 = vmul.f32 %v1241, %v974
        %v1266 = vmul.f32 %v1242, %v974
        %v1267 = vmul.f32 %v1243, %v974
        %v1268 = vmul.f32 %v1244, %v974
        %v1269 = vmul.f32 %v1245, %v974
        %v1270 = vmul.f32 %v1246, %v974
        %v1271 = vmul.f32 %v1247, %v974
        %v1272 = vmul.f32 %v1248, %v974
        %v1273 = vmul.f32 %v1249, %v974
        %v1274 = vmul.f32 %v1250, %v974
        %v1275 = vmul.f32 %v1251, %v974
        %v1276 = vmul.f32 %v1252, %v974
        %v1277 = vmul.f32 %v1253, %v974
        %v1278 = vmul.f32 %v1254, %v974
        %v1279 = vmul.f32 %v1255, %v974
        %v1280 = vmul.f32 %v1256, %v974
        %v1281 = vmul.f32 %v1257, %v974
        %v1282 = vmul.f32 %v1258, %v974
        %v1283 = vmul.f32 %v1259, %v974
        %v1284 = vmul.f32 %v1260, %v974
        %v1285 = vmul.f32 %v1261, %v974
        %v1286 = vmul.f32 %v1262, %v974
        %v1287 = vadd.f32 %v1263, %v1004
        %v1288 = vadd.f32 %v1264, %v1004
        %v1289 = vadd.f32 %v1265, %v1004
        %v1290 = vadd.f32 %v1266, %v1004
        %v1291 = vadd.f32 %v1267, %v1004
        %v1292 = vadd.f32 %v1268, %v1004
        %v1293 = vadd.f32 %v1269, %v1004
        %v1294 = vadd.f32 %v1270, %v1004
        %v1295 = vadd.f32 %v1271, %v1004
        %v1296 = vadd.f32 %v1272, %v1004
        %v1297 = vadd.f32 %v1273, %v1004
        %v1298 = vadd.f32 %v1274, %v1004
        %v1299 = vadd.f32 %v1275, %v1004
        %v1300 = vadd.f32 %v1276, %v1004
        %v1301 = vadd.f32 %v1277, %v1004
        %v1302 = vadd.f32 %v1278, %v1004
        %v1303 = vadd.f32 %v1279, %v1004
        %v1304 = vadd.f32 %v1280, %v1004
        %v1305 = vadd.f32 %v1281, %v1004
        %v1306 = vadd.f32 %v1282, %v1004
        %v1307 = vadd.f32 %v1283, %v1004
        %v1308 = vadd.f32 %v1284, %v1004
        %v1309 = vadd.f32 %v1285, %v1004
        %v1310 = vadd.f32 %v1286, %v1004
        %v1311 = vmax.f32 %v1287, 0.0
        %v1312 = vmax.f32 %v1288, 0.0
        %v1313 = vmax.f32 %v1289, 0.0
        %v1314 = vmax.f32 %v1290, 0.0
        %v1315 = vmax.f32 %v1291, 0.0
        %v1316 = vmax.f32 %v1292, 0.0
        %v1317 = vmax.f32 %v1293, 0.0
        %v1318 = vmax.f32 %v1294, 0.0
        %v1319 = vmax.f32 %v1295, 0.0
        %v1320 = vmax.f32 %v1296, 0.0
        %v1321 = vmax.f32 %v1297, 0.0
        %v1322 = vmax.f32 %v1298, 0.0
        %v1323 = vmax.f32 %v1299, 0.0
        %v1324 = vmax.f32 %v1300, 0.0
        %v1325 = vmax.f32 %v1301, 0.0
        %v1326 = vmax.f32 %v1302, 0.0
        %v1327 = vmax.f32 %v1303, 0.0
        %v1328 = vmax.f32 %v1304, 0.0
        %v1329 = vmax.f32 %v1305, 0.0
        %v1330 = vmax.f32 %v1306, 0.0
        %v1331 = vmax.f32 %v1307, 0.0
        %v1332 = vmax.f32 %v1308, 0.0
        %v1333 = vmax.f32 %v1309, 0.0
        %v1334 = vmax.f32 %v1310, 0.0
        %s1335 = scalar_lea.vmem %s888, 192 [#allocation2]
        %v1336 = vld [vmem:[%s1335] sm:$0xff]
        %v1337 = vld [vmem:[%s1335 + $0x8] sm:$0xff]
        %v1338 = vld [vmem:[%s1335 + $0x10] sm:$0x3]
        %v1339 = vld [vmem:[%s1335 + $0x18] sm:$0xff]
        %v1340 = vld [vmem:[%s1335 + $0x20] sm:$0xff]
        %v1341 = vld [vmem:[%s1335 + $0x28] sm:$0x3]
        %v1342 = vld [vmem:[%s1335 + $0x30] sm:$0xff]
        %v1343 = vld [vmem:[%s1335 + $0x38] sm:$0xff]
        %v1344 = vld [vmem:[%s1335 + $0x40] sm:$0x3]
        %v1345 = vld [vmem:[%s1335 + $0x48] sm:$0xff]
        %v1346 = vld [vmem:[%s1335 + $0x50] sm:$0xff]
        %v1347 = vld [vmem:[%s1335 + $0x58] sm:$0x3]
        %v1348 = vld [vmem:[%s1335 + $0x60] sm:$0xff]
        %v1349 = vld [vmem:[%s1335 + $0x68] sm:$0xff]
        %v1350 = vld [vmem:[%s1335 + $0x70] sm:$0x3]
        %v1351 = vld [vmem:[%s1335 + $0x78] sm:$0xff]
        %v1352 = vld [vmem:[%s1335 + $0x80] sm:$0xff]
        %v1353 = vld [vmem:[%s1335 + $0x88] sm:$0x3]
        %v1354 = vld [vmem:[%s1335 + $0x90] sm:$0xff]
        %v1355 = vld [vmem:[%s1335 + $0x98] sm:$0xff]
        %v1356 = vld [vmem:[%s1335 + $0xa0] sm:$0x3]
        %v1357 = vld [vmem:[%s1335 + $0xa8] sm:$0xff]
        %v1358 = vld [vmem:[%s1335 + $0xb0] sm:$0xff]
        %v1359 = vld [vmem:[%s1335 + $0xb8] sm:$0x3]
        %1361 = vset.pattern.permute.xlu0 0
        %1362 = vperm.xlu0 %1361, %v1336
        %v1363 = vpop.permute.xlu0 %1362
        %1366 = vset.pattern.permute.xlu0 0
        %1367 = vperm.xlu0 %1366, %v1337
        %v1368 = vpop.permute.xlu0 %1367
        %1371 = vset.pattern.permute.xlu0 0
        %1372 = vperm.xlu0 %1371, %v1338
        %v1373 = vpop.permute.xlu0 %1372
        %1376 = vset.pattern.permute.xlu0 0
        %1377 = vperm.xlu0 %1376, %v1339
        %v1378 = vpop.permute.xlu0 %1377
        %1381 = vset.pattern.permute.xlu0 0
        %1382 = vperm.xlu0 %1381, %v1340
        %v1383 = vpop.permute.xlu0 %1382
        %1386 = vset.pattern.permute.xlu0 0
        %1387 = vperm.xlu0 %1386, %v1341
        %v1388 = vpop.permute.xlu0 %1387
        %1391 = vset.pattern.permute.xlu0 0
        %1392 = vperm.xlu0 %1391, %v1342
        %v1393 = vpop.permute.xlu0 %1392
        %1396 = vset.pattern.permute.xlu0 0
        %1397 = vperm.xlu0 %1396, %v1343
        %v1398 = vpop.permute.xlu0 %1397
        %1401 = vset.pattern.permute.xlu0 0
        %1402 = vperm.xlu0 %1401, %v1344
        %v1403 = vpop.permute.xlu0 %1402
        %1406 = vset.pattern.permute.xlu0 0
        %1407 = vperm.xlu0 %1406, %v1345
        %v1408 = vpop.permute.xlu0 %1407
        %1411 = vset.pattern.permute.xlu0 0
        %1412 = vperm.xlu0 %1411, %v1346
        %v1413 = vpop.permute.xlu0 %1412
        %1416 = vset.pattern.permute.xlu0 0
        %1417 = vperm.xlu0 %1416, %v1347
        %v1418 = vpop.permute.xlu0 %1417
        %1421 = vset.pattern.permute.xlu0 0
        %1422 = vperm.xlu0 %1421, %v1348
        %v1423 = vpop.permute.xlu0 %1422
        %1426 = vset.pattern.permute.xlu0 0
        %1427 = vperm.xlu0 %1426, %v1349
        %v1428 = vpop.permute.xlu0 %1427
        %1431 = vset.pattern.permute.xlu0 0
        %1432 = vperm.xlu0 %1431, %v1350
        %v1433 = vpop.permute.xlu0 %1432
        %1436 = vset.pattern.permute.xlu0 0
        %1437 = vperm.xlu0 %1436, %v1351
        %v1438 = vpop.permute.xlu0 %1437
        %1441 = vset.pattern.permute.xlu0 0
        %1442 = vperm.xlu0 %1441, %v1352
        %v1443 = vpop.permute.xlu0 %1442
        %1446 = vset.pattern.permute.xlu0 0
        %1447 = vperm.xlu0 %1446, %v1353
        %v1448 = vpop.permute.xlu0 %1447
        %1451 = vset.pattern.permute.xlu0 0
        %1452 = vperm.xlu0 %1451, %v1354
        %v1453 = vpop.permute.xlu0 %1452
        %1456 = vset.pattern.permute.xlu0 0
        %1457 = vperm.xlu0 %1456, %v1355
        %v1458 = vpop.permute.xlu0 %1457
        %1461 = vset.pattern.permute.xlu0 0
        %1462 = vperm.xlu0 %1461, %v1356
        %v1463 = vpop.permute.xlu0 %1462
        %1466 = vset.pattern.permute.xlu0 0
        %1467 = vperm.xlu0 %1466, %v1357
        %v1468 = vpop.permute.xlu0 %1467
        %1471 = vset.pattern.permute.xlu0 0
        %1472 = vperm.xlu0 %1471, %v1358
        %v1473 = vpop.permute.xlu0 %1472
        %1476 = vset.pattern.permute.xlu0 0
        %1477 = vperm.xlu0 %1476, %v1359
        %v1478 = vpop.permute.xlu0 %1477
        %v1480 = vmul.f32 %v1311, %v1363
        %v1481 = vmul.f32 %v1312, %v1368
        %v1482 = vmul.f32 %v1313, %v1373
        %v1483 = vmul.f32 %v1314, %v1378
        %v1484 = vmul.f32 %v1315, %v1383
        %v1485 = vmul.f32 %v1316, %v1388
        %v1486 = vmul.f32 %v1317, %v1393
        %v1487 = vmul.f32 %v1318, %v1398
        %v1488 = vmul.f32 %v1319, %v1403
        %v1489 = vmul.f32 %v1320, %v1408
        %v1490 = vmul.f32 %v1321, %v1413
        %v1491 = vmul.f32 %v1322, %v1418
        %v1492 = vmul.f32 %v1323, %v1423
        %v1493 = vmul.f32 %v1324, %v1428
        %v1494 = vmul.f32 %v1325, %v1433
        %v1495 = vmul.f32 %v1326, %v1438
        %v1496 = vmul.f32 %v1327, %v1443
        %v1497 = vmul.f32 %v1328, %v1448
        %v1498 = vmul.f32 %v1329, %v1453
        %v1499 = vmul.f32 %v1330, %v1458
        %v1500 = vmul.f32 %v1331, %v1463
        %v1501 = vmul.f32 %v1332, %v1468
        %v1502 = vmul.f32 %v1333, %v1473
        %v1503 = vmul.f32 %v1334, %v1478
        %v1504 = vpack.c.bf16 %v1481, %v1480
        %v1505 = vpack.c.bf16 %v1482, %v1482
        %v1506 = vpack.c.bf16 %v1484, %v1483
        %v1507 = vpack.c.bf16 %v1485, %v1485
        %v1508 = vpack.c.bf16 %v1487, %v1486
        %v1509 = vpack.c.bf16 %v1488, %v1488
        %v1510 = vpack.c.bf16 %v1490, %v1489
        %v1511 = vpack.c.bf16 %v1491, %v1491
        %v1512 = vpack.c.bf16 %v1493, %v1492
        %v1513 = vpack.c.bf16 %v1494, %v1494
        %v1514 = vpack.c.bf16 %v1496, %v1495
        %v1515 = vpack.c.bf16 %v1497, %v1497
        %v1516 = vpack.c.bf16 %v1499, %v1498
        %v1517 = vpack.c.bf16 %v1500, %v1500
        %v1518 = vpack.c.bf16 %v1502, %v1501
        %v1519 = vpack.c.bf16 %v1503, %v1503
        %s1520 = scalar_lea.vmem %s895, 384 [#allocation3]
        %v1521 = vld [vmem:[%s1520] sm:$0xff]
        %v1522 = vld [vmem:[%s1520 + $0x8] sm:$0xff]
        %v1523 = vld [vmem:[%s1520 + $0x10] sm:$0x3]
        %v1524 = vld [vmem:[%s1520 + $0x18] sm:$0xff]
        %v1525 = vld [vmem:[%s1520 + $0x20] sm:$0xff]
        %v1526 = vld [vmem:[%s1520 + $0x28] sm:$0x3]
        %v1527 = vld [vmem:[%s1520 + $0x30] sm:$0xff]
        %v1528 = vld [vmem:[%s1520 + $0x38] sm:$0xff]
        %v1529 = vld [vmem:[%s1520 + $0x40] sm:$0x3]
        %v1530 = vld [vmem:[%s1520 + $0x48] sm:$0xff]
        %v1531 = vld [vmem:[%s1520 + $0x50] sm:$0xff]
        %v1532 = vld [vmem:[%s1520 + $0x58] sm:$0x3]
        %v1533 = vld [vmem:[%s1520 + $0x60] sm:$0xff]
        %v1534 = vld [vmem:[%s1520 + $0x68] sm:$0xff]
        %v1535 = vld [vmem:[%s1520 + $0x70] sm:$0x3]
        %v1536 = vld [vmem:[%s1520 + $0x78] sm:$0xff]
        %v1537 = vld [vmem:[%s1520 + $0x80] sm:$0xff]
        %v1538 = vld [vmem:[%s1520 + $0x88] sm:$0x3]
        %v1539 = vld [vmem:[%s1520 + $0x90] sm:$0xff]
        %v1540 = vld [vmem:[%s1520 + $0x98] sm:$0xff]
        %v1541 = vld [vmem:[%s1520 + $0xa0] sm:$0x3]
        %v1542 = vld [vmem:[%s1520 + $0xa8] sm:$0xff]
        %v1543 = vld [vmem:[%s1520 + $0xb0] sm:$0xff]
        %v1544 = vld [vmem:[%s1520 + $0xb8] sm:$0x3]
        %v1545 = vmul.f32 %v1521, %v974
        %v1546 = vmul.f32 %v1522, %v974
        %v1547 = vmul.f32 %v1523, %v974
        %v1548 = vmul.f32 %v1524, %v974
        %v1549 = vmul.f32 %v1525, %v974
        %v1550 = vmul.f32 %v1526, %v974
        %v1551 = vmul.f32 %v1527, %v974
        %v1552 = vmul.f32 %v1528, %v974
        %v1553 = vmul.f32 %v1529, %v974
        %v1554 = vmul.f32 %v1530, %v974
        %v1555 = vmul.f32 %v1531, %v974
        %v1556 = vmul.f32 %v1532, %v974
        %v1557 = vmul.f32 %v1533, %v974
        %v1558 = vmul.f32 %v1534, %v974
        %v1559 = vmul.f32 %v1535, %v974
        %v1560 = vmul.f32 %v1536, %v974
        %v1561 = vmul.f32 %v1537, %v974
        %v1562 = vmul.f32 %v1538, %v974
        %v1563 = vmul.f32 %v1539, %v974
        %v1564 = vmul.f32 %v1540, %v974
        %v1565 = vmul.f32 %v1541, %v974
        %v1566 = vmul.f32 %v1542, %v974
        %v1567 = vmul.f32 %v1543, %v974
        %v1568 = vmul.f32 %v1544, %v974
        %v1569 = vadd.f32 %v1545, %v1004
        %v1570 = vadd.f32 %v1546, %v1004
        %v1571 = vadd.f32 %v1547, %v1004
        %v1572 = vadd.f32 %v1548, %v1004
        %v1573 = vadd.f32 %v1549, %v1004
        %v1574 = vadd.f32 %v1550, %v1004
        %v1575 = vadd.f32 %v1551, %v1004
        %v1576 = vadd.f32 %v1552, %v1004
        %v1577 = vadd.f32 %v1553, %v1004
        %v1578 = vadd.f32 %v1554, %v1004
        %v1579 = vadd.f32 %v1555, %v1004
        %v1580 = vadd.f32 %v1556, %v1004
        %v1581 = vadd.f32 %v1557, %v1004
        %v1582 = vadd.f32 %v1558, %v1004
        %v1583 = vadd.f32 %v1559, %v1004
        %v1584 = vadd.f32 %v1560, %v1004
        %v1585 = vadd.f32 %v1561, %v1004
        %v1586 = vadd.f32 %v1562, %v1004
        %v1587 = vadd.f32 %v1563, %v1004
        %v1588 = vadd.f32 %v1564, %v1004
        %v1589 = vadd.f32 %v1565, %v1004
        %v1590 = vadd.f32 %v1566, %v1004
        %v1591 = vadd.f32 %v1567, %v1004
        %v1592 = vadd.f32 %v1568, %v1004
        %v1593 = vmax.f32 %v1569, 0.0
        %v1594 = vmax.f32 %v1570, 0.0
        %v1595 = vmax.f32 %v1571, 0.0
        %v1596 = vmax.f32 %v1572, 0.0
        %v1597 = vmax.f32 %v1573, 0.0
        %v1598 = vmax.f32 %v1574, 0.0
        %v1599 = vmax.f32 %v1575, 0.0
        %v1600 = vmax.f32 %v1576, 0.0
        %v1601 = vmax.f32 %v1577, 0.0
        %v1602 = vmax.f32 %v1578, 0.0
        %v1603 = vmax.f32 %v1579, 0.0
        %v1604 = vmax.f32 %v1580, 0.0
        %v1605 = vmax.f32 %v1581, 0.0
        %v1606 = vmax.f32 %v1582, 0.0
        %v1607 = vmax.f32 %v1583, 0.0
        %v1608 = vmax.f32 %v1584, 0.0
        %v1609 = vmax.f32 %v1585, 0.0
        %v1610 = vmax.f32 %v1586, 0.0
        %v1611 = vmax.f32 %v1587, 0.0
        %v1612 = vmax.f32 %v1588, 0.0
        %v1613 = vmax.f32 %v1589, 0.0
        %v1614 = vmax.f32 %v1590, 0.0
        %v1615 = vmax.f32 %v1591, 0.0
        %v1616 = vmax.f32 %v1592, 0.0
        %s1617 = scalar_lea.vmem %s888, 384 [#allocation2]
        %v1618 = vld [vmem:[%s1617] sm:$0xff]
        %v1619 = vld [vmem:[%s1617 + $0x8] sm:$0xff]
        %v1620 = vld [vmem:[%s1617 + $0x10] sm:$0x3]
        %v1621 = vld [vmem:[%s1617 + $0x18] sm:$0xff]
        %v1622 = vld [vmem:[%s1617 + $0x20] sm:$0xff]
        %v1623 = vld [vmem:[%s1617 + $0x28] sm:$0x3]
        %v1624 = vld [vmem:[%s1617 + $0x30] sm:$0xff]
        %v1625 = vld [vmem:[%s1617 + $0x38] sm:$0xff]
        %v1626 = vld [vmem:[%s1617 + $0x40] sm:$0x3]
        %v1627 = vld [vmem:[%s1617 + $0x48] sm:$0xff]
        %v1628 = vld [vmem:[%s1617 + $0x50] sm:$0xff]
        %v1629 = vld [vmem:[%s1617 + $0x58] sm:$0x3]
        %v1630 = vld [vmem:[%s1617 + $0x60] sm:$0xff]
        %v1631 = vld [vmem:[%s1617 + $0x68] sm:$0xff]
        %v1632 = vld [vmem:[%s1617 + $0x70] sm:$0x3]
        %v1633 = vld [vmem:[%s1617 + $0x78] sm:$0xff]
        %v1634 = vld [vmem:[%s1617 + $0x80] sm:$0xff]
        %v1635 = vld [vmem:[%s1617 + $0x88] sm:$0x3]
        %v1636 = vld [vmem:[%s1617 + $0x90] sm:$0xff]
        %v1637 = vld [vmem:[%s1617 + $0x98] sm:$0xff]
        %v1638 = vld [vmem:[%s1617 + $0xa0] sm:$0x3]
        %v1639 = vld [vmem:[%s1617 + $0xa8] sm:$0xff]
        %v1640 = vld [vmem:[%s1617 + $0xb0] sm:$0xff]
        %v1641 = vld [vmem:[%s1617 + $0xb8] sm:$0x3]
        %1643 = vset.pattern.permute.xlu0 0
        %1644 = vperm.xlu0 %1643, %v1618
        %v1645 = vpop.permute.xlu0 %1644
        %1648 = vset.pattern.permute.xlu0 0
        %1649 = vperm.xlu0 %1648, %v1619
        %v1650 = vpop.permute.xlu0 %1649
        %1653 = vset.pattern.permute.xlu0 0
        %1654 = vperm.xlu0 %1653, %v1620
        %v1655 = vpop.permute.xlu0 %1654
        %1658 = vset.pattern.permute.xlu0 0
        %1659 = vperm.xlu0 %1658, %v1621
        %v1660 = vpop.permute.xlu0 %1659
        %1663 = vset.pattern.permute.xlu0 0
        %1664 = vperm.xlu0 %1663, %v1622
        %v1665 = vpop.permute.xlu0 %1664
        %1668 = vset.pattern.permute.xlu0 0
        %1669 = vperm.xlu0 %1668, %v1623
        %v1670 = vpop.permute.xlu0 %1669
        %1673 = vset.pattern.permute.xlu0 0
        %1674 = vperm.xlu0 %1673, %v1624
        %v1675 = vpop.permute.xlu0 %1674
        %1678 = vset.pattern.permute.xlu0 0
        %1679 = vperm.xlu0 %1678, %v1625
        %v1680 = vpop.permute.xlu0 %1679
        %1683 = vset.pattern.permute.xlu0 0
        %1684 = vperm.xlu0 %1683, %v1626
        %v1685 = vpop.permute.xlu0 %1684
        %1688 = vset.pattern.permute.xlu0 0
        %1689 = vperm.xlu0 %1688, %v1627
        %v1690 = vpop.permute.xlu0 %1689
        %1693 = vset.pattern.permute.xlu0 0
        %1694 = vperm.xlu0 %1693, %v1628
        %v1695 = vpop.permute.xlu0 %1694
        %1698 = vset.pattern.permute.xlu0 0
        %1699 = vperm.xlu0 %1698, %v1629
        %v1700 = vpop.permute.xlu0 %1699
        %1703 = vset.pattern.permute.xlu0 0
        %1704 = vperm.xlu0 %1703, %v1630
        %v1705 = vpop.permute.xlu0 %1704
        %1708 = vset.pattern.permute.xlu0 0
        %1709 = vperm.xlu0 %1708, %v1631
        %v1710 = vpop.permute.xlu0 %1709
        %1713 = vset.pattern.permute.xlu0 0
        %1714 = vperm.xlu0 %1713, %v1632
        %v1715 = vpop.permute.xlu0 %1714
        %1718 = vset.pattern.permute.xlu0 0
        %1719 = vperm.xlu0 %1718, %v1633
        %v1720 = vpop.permute.xlu0 %1719
        %1723 = vset.pattern.permute.xlu0 0
        %1724 = vperm.xlu0 %1723, %v1634
        %v1725 = vpop.permute.xlu0 %1724
        %1728 = vset.pattern.permute.xlu0 0
        %1729 = vperm.xlu0 %1728, %v1635
        %v1730 = vpop.permute.xlu0 %1729
        %1733 = vset.pattern.permute.xlu0 0
        %1734 = vperm.xlu0 %1733, %v1636
        %v1735 = vpop.permute.xlu0 %1734
        %1738 = vset.pattern.permute.xlu0 0
        %1739 = vperm.xlu0 %1738, %v1637
        %v1740 = vpop.permute.xlu0 %1739
        %1743 = vset.pattern.permute.xlu0 0
        %1744 = vperm.xlu0 %1743, %v1638
        %v1745 = vpop.permute.xlu0 %1744
        %1748 = vset.pattern.permute.xlu0 0
        %1749 = vperm.xlu0 %1748, %v1639
        %v1750 = vpop.permute.xlu0 %1749
        %1753 = vset.pattern.permute.xlu0 0
        %1754 = vperm.xlu0 %1753, %v1640
        %v1755 = vpop.permute.xlu0 %1754
        %1758 = vset.pattern.permute.xlu0 0
        %1759 = vperm.xlu0 %1758, %v1641
        %v1760 = vpop.permute.xlu0 %1759
        %v1762 = vmul.f32 %v1593, %v1645
        %v1763 = vmul.f32 %v1594, %v1650
        %v1764 = vmul.f32 %v1595, %v1655
        %v1765 = vmul.f32 %v1596, %v1660
        %v1766 = vmul.f32 %v1597, %v1665
        %v1767 = vmul.f32 %v1598, %v1670
        %v1768 = vmul.f32 %v1599, %v1675
        %v1769 = vmul.f32 %v1600, %v1680
        %v1770 = vmul.f32 %v1601, %v1685
        %v1771 = vmul.f32 %v1602, %v1690
        %v1772 = vmul.f32 %v1603, %v1695
        %v1773 = vmul.f32 %v1604, %v1700
        %v1774 = vmul.f32 %v1605, %v1705
        %v1775 = vmul.f32 %v1606, %v1710
        %v1776 = vmul.f32 %v1607, %v1715
        %v1777 = vmul.f32 %v1608, %v1720
        %v1778 = vmul.f32 %v1609, %v1725
        %v1779 = vmul.f32 %v1610, %v1730
        %v1780 = vmul.f32 %v1611, %v1735
        %v1781 = vmul.f32 %v1612, %v1740
        %v1782 = vmul.f32 %v1613, %v1745
        %v1783 = vmul.f32 %v1614, %v1750
        %v1784 = vmul.f32 %v1615, %v1755
        %v1785 = vmul.f32 %v1616, %v1760
        %v1786 = vpack.c.bf16 %v1763, %v1762
        %v1787 = vpack.c.bf16 %v1764, %v1764
        %v1788 = vpack.c.bf16 %v1766, %v1765
        %v1789 = vpack.c.bf16 %v1767, %v1767
        %v1790 = vpack.c.bf16 %v1769, %v1768
        %v1791 = vpack.c.bf16 %v1770, %v1770
        %v1792 = vpack.c.bf16 %v1772, %v1771
        %v1793 = vpack.c.bf16 %v1773, %v1773
        %v1794 = vpack.c.bf16 %v1775, %v1774
        %v1795 = vpack.c.bf16 %v1776, %v1776
        %v1796 = vpack.c.bf16 %v1778, %v1777
        %v1797 = vpack.c.bf16 %v1779, %v1779
        %v1798 = vpack.c.bf16 %v1781, %v1780
        %v1799 = vpack.c.bf16 %v1782, %v1782
        %v1800 = vpack.c.bf16 %v1784, %v1783
        %v1801 = vpack.c.bf16 %v1785, %v1785
        %vm1802 = vsmask.f32 7424
        %v1804 = vshrl.u32 %v1222, 16
        %v1806 = vshll.u32 %v1222, 16
        %v1808 = vrot.slane %v1806, 1
        %v1809 = vor.u32 %v1804, %v1808
        %v1811 = vshll.u32 %v1223, 16
        %v1813 = vrot.slane %v1811, 1
        %v1814 = vsel %vm1802, %v1809, %v1813
        %v1816 = vshrl.u32 %v1224, 16
        %v1818 = vshll.u32 %v1224, 16
        %v1820 = vrot.slane %v1818, 1
        %v1821 = vor.u32 %v1816, %v1820
        %v1823 = vshll.u32 %v1225, 16
        %v1825 = vrot.slane %v1823, 1
        %v1826 = vsel %vm1802, %v1821, %v1825
        %v1828 = vshrl.u32 %v1226, 16
        %v1830 = vshll.u32 %v1226, 16
        %v1832 = vrot.slane %v1830, 1
        %v1833 = vor.u32 %v1828, %v1832
        %v1835 = vshll.u32 %v1227, 16
        %v1837 = vrot.slane %v1835, 1
        %v1838 = vsel %vm1802, %v1833, %v1837
        %v1840 = vshrl.u32 %v1228, 16
        %v1842 = vshll.u32 %v1228, 16
        %v1844 = vrot.slane %v1842, 1
        %v1845 = vor.u32 %v1840, %v1844
        %v1847 = vshll.u32 %v1229, 16
        %v1849 = vrot.slane %v1847, 1
        %v1850 = vsel %vm1802, %v1845, %v1849
        %v1852 = vshrl.u32 %v1230, 16
        %v1854 = vshll.u32 %v1230, 16
        %v1856 = vrot.slane %v1854, 1
        %v1857 = vor.u32 %v1852, %v1856
        %v1859 = vshll.u32 %v1231, 16
        %v1861 = vrot.slane %v1859, 1
        %v1862 = vsel %vm1802, %v1857, %v1861
        %v1864 = vshrl.u32 %v1232, 16
        %v1866 = vshll.u32 %v1232, 16
        %v1868 = vrot.slane %v1866, 1
        %v1869 = vor.u32 %v1864, %v1868
        %v1871 = vshll.u32 %v1233, 16
        %v1873 = vrot.slane %v1871, 1
        %v1874 = vsel %vm1802, %v1869, %v1873
        %v1876 = vshrl.u32 %v1234, 16
        %v1878 = vshll.u32 %v1234, 16
        %v1880 = vrot.slane %v1878, 1
        %v1881 = vor.u32 %v1876, %v1880
        %v1883 = vshll.u32 %v1235, 16
        %v1885 = vrot.slane %v1883, 1
        %v1886 = vsel %vm1802, %v1881, %v1885
        %v1888 = vshrl.u32 %v1236, 16
        %v1890 = vshll.u32 %v1236, 16
        %v1892 = vrot.slane %v1890, 1
        %v1893 = vor.u32 %v1888, %v1892
        %v1895 = vshll.u32 %v1237, 16
        %v1897 = vrot.slane %v1895, 1
        %v1898 = vsel %vm1802, %v1893, %v1897
        %1899 = vrot.lane.b32.xlu0 %v1814, 8
        %v1900 = vpop.permute.xlu0 %1899
        %1901 = vrot.lane.b32.xlu0 %v1826, 8
        %v1902 = vpop.permute.xlu0 %1901
        %1903 = vrot.lane.b32.xlu0 %v1838, 8
        %v1904 = vpop.permute.xlu0 %1903
        %1905 = vrot.lane.b32.xlu0 %v1850, 8
        %v1906 = vpop.permute.xlu0 %1905
        %1907 = vrot.lane.b32.xlu0 %v1862, 8
        %v1908 = vpop.permute.xlu0 %1907
        %1909 = vrot.lane.b32.xlu0 %v1874, 8
        %v1910 = vpop.permute.xlu0 %1909
        %1911 = vrot.lane.b32.xlu0 %v1886, 8
        %v1912 = vpop.permute.xlu0 %1911
        %1913 = vrot.lane.b32.xlu0 %v1898, 8
        %v1914 = vpop.permute.xlu0 %1913
        %vm1931 = vcmask 1046528
        %v1932 = vrot.slane %v1222, 1
        %v1933 = vrot.slane %v1223, 1
        %v1934 = vsel %vm1931, %v1932, %v1933
        %v1935 = vrot.slane %v1224, 1
        %v1936 = vrot.slane %v1225, 1
        %v1937 = vsel %vm1931, %v1935, %v1936
        %v1938 = vrot.slane %v1226, 1
        %v1939 = vrot.slane %v1227, 1
        %v1940 = vsel %vm1931, %v1938, %v1939
        %v1941 = vrot.slane %v1228, 1
        %v1942 = vrot.slane %v1229, 1
        %v1943 = vsel %vm1931, %v1941, %v1942
        %v1944 = vrot.slane %v1230, 1
        %v1945 = vrot.slane %v1231, 1
        %v1946 = vsel %vm1931, %v1944, %v1945
        %v1947 = vrot.slane %v1232, 1
        %v1948 = vrot.slane %v1233, 1
        %v1949 = vsel %vm1931, %v1947, %v1948
        %v1950 = vrot.slane %v1234, 1
        %v1951 = vrot.slane %v1235, 1
        %v1952 = vsel %vm1931, %v1950, %v1951
        %v1953 = vrot.slane %v1236, 1
        %v1954 = vrot.slane %v1237, 1
        %v1955 = vsel %vm1931, %v1953, %v1954
        %1956 = vrot.lane.b32.xlu0 %v1934, 16
        %v1957 = vpop.permute.xlu0 %1956
        %1958 = vrot.lane.b32.xlu0 %v1937, 16
        %v1959 = vpop.permute.xlu0 %1958
        %1960 = vrot.lane.b32.xlu0 %v1940, 16
        %v1961 = vpop.permute.xlu0 %1960
        %1962 = vrot.lane.b32.xlu0 %v1943, 16
        %v1963 = vpop.permute.xlu0 %1962
        %1964 = vrot.lane.b32.xlu0 %v1946, 16
        %v1965 = vpop.permute.xlu0 %1964
        %1966 = vrot.lane.b32.xlu0 %v1949, 16
        %v1967 = vpop.permute.xlu0 %1966
        %1968 = vrot.lane.b32.xlu0 %v1952, 16
        %v1969 = vpop.permute.xlu0 %1968
        %1970 = vrot.lane.b32.xlu0 %v1955, 16
        %v1971 = vpop.permute.xlu0 %1970
        %1980 = vrot.lane.b32.xlu0 %v1504, 24
        %v1981 = vpop.permute.xlu0 %1980
        %1982 = vrot.lane.b32.xlu0 %v1506, 24
        %v1983 = vpop.permute.xlu0 %1982
        %1984 = vrot.lane.b32.xlu0 %v1508, 24
        %v1985 = vpop.permute.xlu0 %1984
        %1986 = vrot.lane.b32.xlu0 %v1510, 24
        %v1987 = vpop.permute.xlu0 %1986
        %1988 = vrot.lane.b32.xlu0 %v1512, 24
        %v1989 = vpop.permute.xlu0 %1988
        %1990 = vrot.lane.b32.xlu0 %v1514, 24
        %v1991 = vpop.permute.xlu0 %1990
        %1992 = vrot.lane.b32.xlu0 %v1516, 24
        %v1993 = vpop.permute.xlu0 %1992
        %1994 = vrot.lane.b32.xlu0 %v1518, 24
        %v1995 = vpop.permute.xlu0 %1994
        %v1997 = vshrl.u32 %v1504, 16
        %v1999 = vshll.u32 %v1504, 16
        %v2001 = vrot.slane %v1999, 1
        %v2002 = vor.u32 %v1997, %v2001
        %v2004 = vshll.u32 %v1505, 16
        %v2006 = vrot.slane %v2004, 1
        %v2007 = vsel %vm1802, %v2002, %v2006
        %v2009 = vshrl.u32 %v1506, 16
        %v2011 = vshll.u32 %v1506, 16
        %v2013 = vrot.slane %v2011, 1
        %v2014 = vor.u32 %v2009, %v2013
        %v2016 = vshll.u32 %v1507, 16
        %v2018 = vrot.slane %v2016, 1
        %v2019 = vsel %vm1802, %v2014, %v2018
        %v2021 = vshrl.u32 %v1508, 16
        %v2023 = vshll.u32 %v1508, 16
        %v2025 = vrot.slane %v2023, 1
        %v2026 = vor.u32 %v2021, %v2025
        %v2028 = vshll.u32 %v1509, 16
        %v2030 = vrot.slane %v2028, 1
        %v2031 = vsel %vm1802, %v2026, %v2030
        %v2033 = vshrl.u32 %v1510, 16
        %v2035 = vshll.u32 %v1510, 16
        %v2037 = vrot.slane %v2035, 1
        %v2038 = vor.u32 %v2033, %v2037
        %v2040 = vshll.u32 %v1511, 16
        %v2042 = vrot.slane %v2040, 1
        %v2043 = vsel %vm1802, %v2038, %v2042
        %v2045 = vshrl.u32 %v1512, 16
        %v2047 = vshll.u32 %v1512, 16
        %v2049 = vrot.slane %v2047, 1
        %v2050 = vor.u32 %v2045, %v2049
        %v2052 = vshll.u32 %v1513, 16
        %v2054 = vrot.slane %v2052, 1
        %v2055 = vsel %vm1802, %v2050, %v2054
        %v2057 = vshrl.u32 %v1514, 16
        %v2059 = vshll.u32 %v1514, 16
        %v2061 = vrot.slane %v2059, 1
        %v2062 = vor.u32 %v2057, %v2061
        %v2064 = vshll.u32 %v1515, 16
        %v2066 = vrot.slane %v2064, 1
        %v2067 = vsel %vm1802, %v2062, %v2066
        %v2069 = vshrl.u32 %v1516, 16
        %v2071 = vshll.u32 %v1516, 16
        %v2073 = vrot.slane %v2071, 1
        %v2074 = vor.u32 %v2069, %v2073
        %v2076 = vshll.u32 %v1517, 16
        %v2078 = vrot.slane %v2076, 1
        %v2079 = vsel %vm1802, %v2074, %v2078
        %v2081 = vshrl.u32 %v1518, 16
        %v2083 = vshll.u32 %v1518, 16
        %v2085 = vrot.slane %v2083, 1
        %v2086 = vor.u32 %v2081, %v2085
        %v2088 = vshll.u32 %v1519, 16
        %v2090 = vrot.slane %v2088, 1
        %v2091 = vsel %vm1802, %v2086, %v2090
        %2092 = vrot.lane.b32.xlu0 %v2007, 32
        %v2093 = vpop.permute.xlu0 %2092
        %2094 = vrot.lane.b32.xlu0 %v2019, 32
        %v2095 = vpop.permute.xlu0 %2094
        %2096 = vrot.lane.b32.xlu0 %v2031, 32
        %v2097 = vpop.permute.xlu0 %2096
        %2098 = vrot.lane.b32.xlu0 %v2043, 32
        %v2099 = vpop.permute.xlu0 %2098
        %2100 = vrot.lane.b32.xlu0 %v2055, 32
        %v2101 = vpop.permute.xlu0 %2100
        %2102 = vrot.lane.b32.xlu0 %v2067, 32
        %v2103 = vpop.permute.xlu0 %2102
        %2104 = vrot.lane.b32.xlu0 %v2079, 32
        %v2105 = vpop.permute.xlu0 %2104
        %2106 = vrot.lane.b32.xlu0 %v2091, 32
        %v2107 = vpop.permute.xlu0 %2106
        %v2116 = vrot.slane %v1504, 1
        %v2117 = vrot.slane %v1505, 1
        %v2118 = vsel %vm1931, %v2116, %v2117
        %v2119 = vrot.slane %v1506, 1
        %v2120 = vrot.slane %v1507, 1
        %v2121 = vsel %vm1931, %v2119, %v2120
        %v2122 = vrot.slane %v1508, 1
        %v2123 = vrot.slane %v1509, 1
        %v2124 = vsel %vm1931, %v2122, %v2123
        %v2125 = vrot.slane %v1510, 1
        %v2126 = vrot.slane %v1511, 1
        %v2127 = vsel %vm1931, %v2125, %v2126
        %v2128 = vrot.slane %v1512, 1
        %v2129 = vrot.slane %v1513, 1
        %v2130 = vsel %vm1931, %v2128, %v2129
        %v2131 = vrot.slane %v1514, 1
        %v2132 = vrot.slane %v1515, 1
        %v2133 = vsel %vm1931, %v2131, %v2132
        %v2134 = vrot.slane %v1516, 1
        %v2135 = vrot.slane %v1517, 1
        %v2136 = vsel %vm1931, %v2134, %v2135
        %v2137 = vrot.slane %v1518, 1
        %v2138 = vrot.slane %v1519, 1
        %v2139 = vsel %vm1931, %v2137, %v2138
        %2140 = vrot.lane.b32.xlu0 %v2118, 40
        %v2141 = vpop.permute.xlu0 %2140
        %2142 = vrot.lane.b32.xlu0 %v2121, 40
        %v2143 = vpop.permute.xlu0 %2142
        %2144 = vrot.lane.b32.xlu0 %v2124, 40
        %v2145 = vpop.permute.xlu0 %2144
        %2146 = vrot.lane.b32.xlu0 %v2127, 40
        %v2147 = vpop.permute.xlu0 %2146
        %2148 = vrot.lane.b32.xlu0 %v2130, 40
        %v2149 = vpop.permute.xlu0 %2148
        %2150 = vrot.lane.b32.xlu0 %v2133, 40
        %v2151 = vpop.permute.xlu0 %2150
        %2152 = vrot.lane.b32.xlu0 %v2136, 40
        %v2153 = vpop.permute.xlu0 %2152
        %2154 = vrot.lane.b32.xlu0 %v2139, 40
        %v2155 = vpop.permute.xlu0 %2154
        %2164 = vrot.lane.b32.xlu0 %v1786, 48
        %v2165 = vpop.permute.xlu0 %2164
        %2166 = vrot.lane.b32.xlu0 %v1788, 48
        %v2167 = vpop.permute.xlu0 %2166
        %2168 = vrot.lane.b32.xlu0 %v1790, 48
        %v2169 = vpop.permute.xlu0 %2168
        %2170 = vrot.lane.b32.xlu0 %v1792, 48
        %v2171 = vpop.permute.xlu0 %2170
        %2172 = vrot.lane.b32.xlu0 %v1794, 48
        %v2173 = vpop.permute.xlu0 %2172
        %2174 = vrot.lane.b32.xlu0 %v1796, 48
        %v2175 = vpop.permute.xlu0 %2174
        %2176 = vrot.lane.b32.xlu0 %v1798, 48
        %v2177 = vpop.permute.xlu0 %2176
        %2178 = vrot.lane.b32.xlu0 %v1800, 48
        %v2179 = vpop.permute.xlu0 %2178
        %v2181 = vshrl.u32 %v1786, 16
        %v2183 = vshll.u32 %v1786, 16
        %v2185 = vrot.slane %v2183, 1
        %v2186 = vor.u32 %v2181, %v2185
        %v2188 = vshll.u32 %v1787, 16
        %v2190 = vrot.slane %v2188, 1
        %v2191 = vsel %vm1802, %v2186, %v2190
        %v2193 = vshrl.u32 %v1788, 16
        %v2195 = vshll.u32 %v1788, 16
        %v2197 = vrot.slane %v2195, 1
        %v2198 = vor.u32 %v2193, %v2197
        %v2200 = vshll.u32 %v1789, 16
        %v2202 = vrot.slane %v2200, 1
        %v2203 = vsel %vm1802, %v2198, %v2202
        %v2205 = vshrl.u32 %v1790, 16
        %v2207 = vshll.u32 %v1790, 16
        %v2209 = vrot.slane %v2207, 1
        %v2210 = vor.u32 %v2205, %v2209
        %v2212 = vshll.u32 %v1791, 16
        %v2214 = vrot.slane %v2212, 1
        %v2215 = vsel %vm1802, %v2210, %v2214
        %v2217 = vshrl.u32 %v1792, 16
        %v2219 = vshll.u32 %v1792, 16
        %v2221 = vrot.slane %v2219, 1
        %v2222 = vor.u32 %v2217, %v2221
        %v2224 = vshll.u32 %v1793, 16
        %v2226 = vrot.slane %v2224, 1
        %v2227 = vsel %vm1802, %v2222, %v2226
        %v2229 = vshrl.u32 %v1794, 16
        %v2231 = vshll.u32 %v1794, 16
        %v2233 = vrot.slane %v2231, 1
        %v2234 = vor.u32 %v2229, %v2233
        %v2236 = vshll.u32 %v1795, 16
        %v2238 = vrot.slane %v2236, 1
        %v2239 = vsel %vm1802, %v2234, %v2238
        %v2241 = vshrl.u32 %v1796, 16
        %v2243 = vshll.u32 %v1796, 16
        %v2245 = vrot.slane %v2243, 1
        %v2246 = vor.u32 %v2241, %v2245
        %v2248 = vshll.u32 %v1797, 16
        %v2250 = vrot.slane %v2248, 1
        %v2251 = vsel %vm1802, %v2246, %v2250
        %v2253 = vshrl.u32 %v1798, 16
        %v2255 = vshll.u32 %v1798, 16
        %v2257 = vrot.slane %v2255, 1
        %v2258 = vor.u32 %v2253, %v2257
        %v2260 = vshll.u32 %v1799, 16
        %v2262 = vrot.slane %v2260, 1
        %v2263 = vsel %vm1802, %v2258, %v2262
        %v2265 = vshrl.u32 %v1800, 16
        %v2267 = vshll.u32 %v1800, 16
        %v2269 = vrot.slane %v2267, 1
        %v2270 = vor.u32 %v2265, %v2269
        %v2272 = vshll.u32 %v1801, 16
        %v2274 = vrot.slane %v2272, 1
        %v2275 = vsel %vm1802, %v2270, %v2274
        %2276 = vrot.lane.b32.xlu0 %v2191, 56
        %v2277 = vpop.permute.xlu0 %2276
        %2278 = vrot.lane.b32.xlu0 %v2203, 56
        %v2279 = vpop.permute.xlu0 %2278
        %2280 = vrot.lane.b32.xlu0 %v2215, 56
        %v2281 = vpop.permute.xlu0 %2280
        %2282 = vrot.lane.b32.xlu0 %v2227, 56
        %v2283 = vpop.permute.xlu0 %2282
        %2284 = vrot.lane.b32.xlu0 %v2239, 56
        %v2285 = vpop.permute.xlu0 %2284
        %2286 = vrot.lane.b32.xlu0 %v2251, 56
        %v2287 = vpop.permute.xlu0 %2286
        %2288 = vrot.lane.b32.xlu0 %v2263, 56
        %v2289 = vpop.permute.xlu0 %2288
        %2290 = vrot.lane.b32.xlu0 %v2275, 56
        %v2291 = vpop.permute.xlu0 %2290
        %v2300 = vrot.slane %v1786, 1
        %v2301 = vrot.slane %v1787, 1
        %v2302 = vsel %vm1931, %v2300, %v2301
        %v2303 = vrot.slane %v1788, 1
        %v2304 = vrot.slane %v1789, 1
        %v2305 = vsel %vm1931, %v2303, %v2304
        %v2306 = vrot.slane %v1790, 1
        %v2307 = vrot.slane %v1791, 1
        %v2308 = vsel %vm1931, %v2306, %v2307
        %v2309 = vrot.slane %v1792, 1
        %v2310 = vrot.slane %v1793, 1
        %v2311 = vsel %vm1931, %v2309, %v2310
        %v2312 = vrot.slane %v1794, 1
        %v2313 = vrot.slane %v1795, 1
        %v2314 = vsel %vm1931, %v2312, %v2313
        %v2315 = vrot.slane %v1796, 1
        %v2316 = vrot.slane %v1797, 1
        %v2317 = vsel %vm1931, %v2315, %v2316
        %v2318 = vrot.slane %v1798, 1
        %v2319 = vrot.slane %v1799, 1
        %v2320 = vsel %vm1931, %v2318, %v2319
        %v2321 = vrot.slane %v1800, 1
        %v2322 = vrot.slane %v1801, 1
        %v2323 = vsel %vm1931, %v2321, %v2322
        %2324 = vrot.lane.b32.xlu0 %v2302, 64
        %v2325 = vpop.permute.xlu0 %2324
        %2326 = vrot.lane.b32.xlu0 %v2305, 64
        %v2327 = vpop.permute.xlu0 %2326
        %2328 = vrot.lane.b32.xlu0 %v2308, 64
        %v2329 = vpop.permute.xlu0 %2328
        %2330 = vrot.lane.b32.xlu0 %v2311, 64
        %v2331 = vpop.permute.xlu0 %2330
        %2332 = vrot.lane.b32.xlu0 %v2314, 64
        %v2333 = vpop.permute.xlu0 %2332
        %2334 = vrot.lane.b32.xlu0 %v2317, 64
        %v2335 = vpop.permute.xlu0 %2334
        %2336 = vrot.lane.b32.xlu0 %v2320, 64
        %v2337 = vpop.permute.xlu0 %2336
        %2338 = vrot.lane.b32.xlu0 %v2323, 64
        %v2339 = vpop.permute.xlu0 %2338
        %vm2340 = vcmask 64512
        %v2342 = vsel %vm2340, %v1222, %v1900
        %v2344 = vsel %vm2340, %v1224, %v1902
        %v2346 = vsel %vm2340, %v1226, %v1904
        %v2348 = vsel %vm2340, %v1228, %v1906
        %v2350 = vsel %vm2340, %v1230, %v1908
        %v2352 = vsel %vm2340, %v1232, %v1910
        %v2354 = vsel %vm2340, %v1234, %v1912
        %v2356 = vsel %vm2340, %v1236, %v1914
        %vm2357 = vcmask 130048
        %v2359 = vsel %vm2357, %v2342, %v1957
        %v2361 = vsel %vm2357, %v2344, %v1959
        %v2363 = vsel %vm2357, %v2346, %v1961
        %v2365 = vsel %vm2357, %v2348, %v1963
        %v2367 = vsel %vm2357, %v2350, %v1965
        %v2369 = vsel %vm2357, %v2352, %v1967
        %v2371 = vsel %vm2357, %v2354, %v1969
        %v2373 = vsel %vm2357, %v2356, %v1971
        %vm2374 = vcmask 195584
        %v2376 = vsel %vm2374, %v2359, %v1981
        %v2378 = vsel %vm2374, %v2361, %v1983
        %v2380 = vsel %vm2374, %v2363, %v1985
        %v2382 = vsel %vm2374, %v2365, %v1987
        %v2384 = vsel %vm2374, %v2367, %v1989
        %v2386 = vsel %vm2374, %v2369, %v1991
        %v2388 = vsel %vm2374, %v2371, %v1993
        %v2390 = vsel %vm2374, %v2373, %v1995
        %vm2391 = vcmask 261120
        %v2393 = vsel %vm2391, %v2376, %v2093
        %v2395 = vsel %vm2391, %v2378, %v2095
        %v2397 = vsel %vm2391, %v2380, %v2097
        %v2399 = vsel %vm2391, %v2382, %v2099
        %v2401 = vsel %vm2391, %v2384, %v2101
        %v2403 = vsel %vm2391, %v2386, %v2103
        %v2405 = vsel %vm2391, %v2388, %v2105
        %v2407 = vsel %vm2391, %v2390, %v2107
        %vm2408 = vcmask 326656
        %v2410 = vsel %vm2408, %v2393, %v2141
        %v2412 = vsel %vm2408, %v2395, %v2143
        %v2414 = vsel %vm2408, %v2397, %v2145
        %v2416 = vsel %vm2408, %v2399, %v2147
        %v2418 = vsel %vm2408, %v2401, %v2149
        %v2420 = vsel %vm2408, %v2403, %v2151
        %v2422 = vsel %vm2408, %v2405, %v2153
        %v2424 = vsel %vm2408, %v2407, %v2155
        %vm2425 = vcmask 392192
        %v2427 = vsel %vm2425, %v2410, %v2165
        %v2429 = vsel %vm2425, %v2412, %v2167
        %v2431 = vsel %vm2425, %v2414, %v2169
        %v2433 = vsel %vm2425, %v2416, %v2171
        %v2435 = vsel %vm2425, %v2418, %v2173
        %v2437 = vsel %vm2425, %v2420, %v2175
        %v2439 = vsel %vm2425, %v2422, %v2177
        %v2441 = vsel %vm2425, %v2424, %v2179
        %vm2442 = vcmask 457728
        %v2444 = vsel %vm2442, %v2427, %v2277
        %v2446 = vsel %vm2442, %v2429, %v2279
        %v2448 = vsel %vm2442, %v2431, %v2281
        %v2450 = vsel %vm2442, %v2433, %v2283
        %v2452 = vsel %vm2442, %v2435, %v2285
        %v2454 = vsel %vm2442, %v2437, %v2287
        %v2456 = vsel %vm2442, %v2439, %v2289
        %v2458 = vsel %vm2442, %v2441, %v2291
        %vm2459 = vcmask 523264
        %v2461 = vsel %vm2459, %v2444, %v2325
        %v2463 = vsel %vm2459, %v2446, %v2327
        %v2465 = vsel %vm2459, %v2448, %v2329
        %v2467 = vsel %vm2459, %v2450, %v2331
        %v2469 = vsel %vm2459, %v2452, %v2333
        %v2471 = vsel %vm2459, %v2454, %v2335
        %v2473 = vsel %vm2459, %v2456, %v2337
        %v2475 = vsel %vm2459, %v2458, %v2339
        %v2476 = vld [vmem:[%s4] sm:$0xf]
        %v2477 = vld [vmem:[%s4 + $0x4] sm:$0xf]
        %v2478 = vld [vmem:[%s4 + $0x8] sm:$0xf]
        %v2479 = vld [vmem:[%s4 + $0xc] sm:$0xf]
        %v2480 = vld [vmem:[%s4 + $0x10] sm:$0xf]
        %v2481 = vld [vmem:[%s4 + $0x14] sm:$0xf]
        %v2482 = vld [vmem:[%s4 + $0x18] sm:$0xf]
        %v2483 = vld [vmem:[%s4 + $0x1c] sm:$0xf]
        %v2484 = vld [vmem:[%s4 + $0x20] sm:$0xf]
        %v2485 = vld [vmem:[%s5] sm:$0x1]
        %v2487 = vlaneseq
        %v2488 = vshrl.u32 %v2487, 7
        %v2489 = vsub.s32 0, %v2488
        %v2490 = vrot.slane %v2485, %v2489
        %v2501 = vunpack.c.l.b16 %v2476
        %v2502 = vunpack.c.l.b16 %v2477
        %v2503 = vunpack.c.l.b16 %v2478
        %v2504 = vunpack.c.l.b16 %v2479
        %v2505 = vunpack.c.l.b16 %v2480
        %v2506 = vunpack.c.l.b16 %v2481
        %v2507 = vunpack.c.l.b16 %v2482
        %v2508 = vunpack.c.l.b16 %v2483
        %v2509 = vunpack.c.l.b16 %v2484
        %v2510 = vpack.c.b16 %v2502, %v2501
        %v2511 = vpack.c.b16 %v2504, %v2503
        %v2512 = vpack.c.b16 %v2506, %v2505
        %v2513 = vpack.c.b16 %v2508, %v2507
        %v2514 = vpack.c.b16 %v2509, %v2509
        %vm2519 = vcmask 588800
        %v2520 = vsel %vm2519, %v2461, 0
        %v2522 = vsel %vm2519, %v2463, 0
        %v2524 = vsel %vm2519, %v2465, 0
        %v2526 = vsel %vm2519, %v2467, 0
        %v2528 = vsel %vm2519, %v2469, 0
        %v2530 = vsel %vm2519, %v2471, 0
        %v2532 = vsel %vm2519, %v2473, 0
        %v2534 = vsel %vm2519, %v2475, 0
        %vm2536 = vcmask 1043456
        %v2538 = vsel %vm2536, %v2514, 0
        %2540 = vmatprep.subr.bf16.mxu0 0
        %2541 = vmatpush1.bf16.msra.mxu0 %v2510
        %2542 = vmatprep.subr.bf16.mxu0 0
        %2543 = vmatpush1.bf16.msra.mxu0 %v2511
        %2544 = vmatprep.subr.bf16.mxu0 0
        %2545 = vmatpush1.bf16.msra.mxu0 %v2512
        %2546 = vmatprep.subr.bf16.mxu0 0
        %2547 = vmatpush1.bf16.msra.mxu0 %v2513
        %2548 = vmatprep.subr.bf16.mxu0 0
        %2549 = vmatpush1.bf16.msra.mxu0 %v2538
        %2550 = vmatprep.subr.bf16.mxu0 0
        %2551 = vmatpush1.bf16.msra.mxu0 0
        %2552 = vmatprep.subr.bf16.mxu0 0
        %2553 = vmatpush1.bf16.msra.mxu0 0
        %2554 = vmatprep.subr.bf16.mxu0 0
        %2555 = vmatpush1.bf16.msra.mxu0 0
        %2556 = vmatprep.subr.bf16.mxu0 0
        %2557 = vmatpush1.bf16.msra.mxu0 0
        %2558 = vmatprep.subr.bf16.mxu0 0
        %2559 = vmatpush1.bf16.msra.mxu0 0
        %2560 = vmatprep.subr.bf16.mxu0 0
        %2561 = vmatpush1.bf16.msra.mxu0 0
        %2562 = vmatprep.subr.bf16.mxu0 0
        %2563 = vmatpush1.bf16.msra.mxu0 0
        %2564 = vmatprep.subr.bf16.mxu0 0
        %2565 = vmatpush1.bf16.msra.mxu0 0
        %2566 = vmatprep.subr.bf16.mxu0 0
        %2567 = vmatpush1.bf16.msra.mxu0 0
        %2568 = vmatprep.subr.bf16.mxu0 0
        %2569 = vmatpush1.bf16.msra.mxu0 0
        %2570 = vmatprep.subr.bf16.mxu0 0
        %2571 = vmatpush1.bf16.msra.mxu0 0
        %2572 = vmatprep.mubr.bf16.mxu0 0
        %2573 = vmatmul.mubr.bf16.gmra.mrb[0].mxu0 %v2520
        %v2574 = vpop.f32.mrb[0].mxu0
        %v2575 = vadd.f32 %v2490, %v2574
        %v2576 = vpop.f32.mrb[0].mxu0
        %v2577 = vpop.f32.mrb[0].mxu0
        %v2578 = vadd.f32 %v2490, %v2577
        %v2579 = vpop.f32.mrb[0].mxu0
        %2580 = vmatprep.mubr.bf16.mxu0 0
        %2581 = vmatmul.mubr.bf16.gmra.mrb[0].mxu0 %v2522
        %v2582 = vpop.f32.mrb[0].mxu0
        %v2583 = vadd.f32 %v2490, %v2582
        %v2584 = vpop.f32.mrb[0].mxu0
        %v2585 = vpop.f32.mrb[0].mxu0
        %v2586 = vadd.f32 %v2490, %v2585
        %v2587 = vpop.f32.mrb[0].mxu0
        %2588 = vmatprep.mubr.bf16.mxu0 0
        %2589 = vmatmul.mubr.bf16.gmra.mrb[0].mxu0 %v2524
        %v2590 = vpop.f32.mrb[0].mxu0
        %v2591 = vadd.f32 %v2490, %v2590
        %v2592 = vpop.f32.mrb[0].mxu0
        %v2593 = vpop.f32.mrb[0].mxu0
        %v2594 = vadd.f32 %v2490, %v2593
        %v2595 = vpop.f32.mrb[0].mxu0
        %2596 = vmatprep.mubr.bf16.mxu0 0
        %2597 = vmatmul.mubr.bf16.gmra.mrb[0].mxu0 %v2526
        %v2598 = vpop.f32.mrb[0].mxu0
        %v2599 = vadd.f32 %v2490, %v2598
        %v2600 = vpop.f32.mrb[0].mxu0
        %v2601 = vpop.f32.mrb[0].mxu0
        %v2602 = vadd.f32 %v2490, %v2601
        %v2603 = vpop.f32.mrb[0].mxu0
        %2604 = vmatprep.mubr.bf16.mxu0 0
        %2605 = vmatmul.mubr.bf16.gmra.mrb[0].mxu0 %v2528
        %v2606 = vpop.f32.mrb[0].mxu0
        %v2607 = vadd.f32 %v2490, %v2606
        %v2608 = vpop.f32.mrb[0].mxu0
        %v2609 = vpop.f32.mrb[0].mxu0
        %v2610 = vadd.f32 %v2490, %v2609
        %v2611 = vpop.f32.mrb[0].mxu0
        %2612 = vmatprep.mubr.bf16.mxu0 0
        %2613 = vmatmul.mubr.bf16.gmra.mrb[0].mxu0 %v2530
        %v2614 = vpop.f32.mrb[0].mxu0
        %v2615 = vadd.f32 %v2490, %v2614
        %v2616 = vpop.f32.mrb[0].mxu0
        %v2617 = vpop.f32.mrb[0].mxu0
        %v2618 = vadd.f32 %v2490, %v2617
        %v2619 = vpop.f32.mrb[0].mxu0
        %2620 = vmatprep.mubr.bf16.mxu0 0
        %2621 = vmatmul.mubr.bf16.gmra.mrb[0].mxu0 %v2532
        %v2622 = vpop.f32.mrb[0].mxu0
        %v2623 = vadd.f32 %v2490, %v2622
        %v2624 = vpop.f32.mrb[0].mxu0
        %v2625 = vpop.f32.mrb[0].mxu0
        %v2626 = vadd.f32 %v2490, %v2625
        %v2627 = vpop.f32.mrb[0].mxu0
        %2628 = vmatprep.mubr.bf16.mxu0 0
        %2629 = vmatmul.mubr.bf16.gmra.mrb[0].mxu0 %v2534
        %v2630 = vpop.f32.mrb[0].mxu0
        %v2631 = vadd.f32 %v2490, %v2630
        %v2632 = vpop.f32.mrb[0].mxu0
        %v2633 = vpop.f32.mrb[0].mxu0
        %v2634 = vadd.f32 %v2490, %v2633
        %v2635 = vpop.f32.mrb[0].mxu0
        %2636 = vdwg.mxu0
        %2637 = vst [vmem:[%s941] sm:$0xff] %v2575
        %2638 = vst [vmem:[%s941 + $0x8] sm:$0xff] %v2578
        %2639 = vst [vmem:[%s941 + $0x10] sm:$0xff] %v2583
        %2640 = vst [vmem:[%s941 + $0x18] sm:$0xff] %v2586
        %2641 = vst [vmem:[%s941 + $0x20] sm:$0xff] %v2591
        %2642 = vst [vmem:[%s941 + $0x28] sm:$0xff] %v2594
        %2643 = vst [vmem:[%s941 + $0x30] sm:$0xff] %v2599
        %2644 = vst [vmem:[%s941 + $0x38] sm:$0xff] %v2602
        %2645 = vst [vmem:[%s941 + $0x40] sm:$0xff] %v2607
        %2646 = vst [vmem:[%s941 + $0x48] sm:$0xff] %v2610
        %2647 = vst [vmem:[%s941 + $0x50] sm:$0xff] %v2615
        %2648 = vst [vmem:[%s941 + $0x58] sm:$0xff] %v2618
        %2649 = vst [vmem:[%s941 + $0x60] sm:$0xff] %v2623
        %2650 = vst [vmem:[%s941 + $0x68] sm:$0xff] %v2626
        %2651 = vst [vmem:[%s941 + $0x70] sm:$0xff] %v2631
        %2652 = vst [vmem:[%s941 + $0x78] sm:$0xff] %v2634
        %s2653 = smul.u32 16, %s22
        %p2654 = scmp.lt.s32.totalorder %s21, 1
        %s2655 = scalar_select %p2654, %s21, 1
        %p2656 = scmp.lt.s32.totalorder %s2653, 31
        %s2657 = scalar_select %p2656, %s2653, 31
        %s2658 = smul.addr %s2655, 32
        %s2659 = sadd.s32 %s2657, %s2658
        %s2660 = smul.addr %s2659, 8
        %s2661 = scalar_lea.vmem %s6, %s2660
        // Predicated region
        $region121: #{bottleneck_forward.9} parent=111 // pred_check
          %p2662 = pneg %p187
        $region122: #{bottleneck_forward.9} parent=111 // pred_check_branch
          %2664 = sbr.rel (%p2662) target = $region124
        $region123: #{bottleneck_forward.9} parent=111 // pred_region
          %s2665 = smul.u32 16, %s22
        $region124: #{bottleneck_forward.9} parent=111 // pred_fallthru
          _
      $region112: #{bottleneck_forward.9} parent=5 // pred_fallthru
        _
      %p2666 = scmp.le.s32.totalorder 2, %s12
      // Predicated region
      $region125: #{bottleneck_forward.9} parent=5 // pred_check
        %p2667 = pneg %p2666
      $region126: #{bottleneck_forward.9} parent=5 // pred_check_branch
        %2669 = sbr.rel (%p2667) target = $region128
      $region127: #{bottleneck_forward.9} parent=5 // pred_region
        %s2670 = ssub.s32 %s12, 2
        // Predicated region
        $region129: #{bottleneck_forward.9} parent=127 // pred_check
          %p2671 = pneg %p193
        $region130: #{bottleneck_forward.9} parent=127 // pred_check_branch
          %2673 = sbr.rel (%p2671) target = $region132
        $region131: #{bottleneck_forward.9} parent=127 // pred_region
          %s2674 = smul.u32 16, %s24
          %p2675 = scmp.lt.s32.totalorder %s23, 1
          %s2676 = scalar_select %p2675, %s23, 1
          %p2677 = scmp.lt.s32.totalorder %s2674, 31
          %s2678 = scalar_select %p2677, %s2674, 31
          %s2679 = smul.addr %s2676, 32
          %s2680 = sadd.s32 %s2678, %s2679
          %s2681 = smul.addr %s2680, 8
          %s2682 = scalar_lea.vmem %s6, %s2681
        $region132: #{bottleneck_forward.9} parent=127 // pred_fallthru
          _
      $region128: #{bottleneck_forward.9} parent=5 // pred_fallthru
        _
    $region6: #{bottleneck_forward.9} parent=1 // loop_footer
      %s16 = sadd.s32 1, %s12
    $region7: #{bottleneck_forward.9} parent=1 // loop_footer_branch
      %11 = sbr.rel target = $region3
    $region8: #{bottleneck_forward.9} parent=1 // loop_exit
      _

// kernel: bottleneck_forward.10
$region0: #{bottleneck_forward.10}
  #allocation0 [shape = 'u32[]', space=smem, size = 0x4, offset = 0x4, fixed_abs, tag = 'smem constant byte address 0x4 - core index']
  #allocation1 [shape = 'u32[144,128]{1,0:T(1,128)}', space=vmem, size = 0x12000, scoped, tag = 'internal scratch']
  %s0 = inlined_call_operand.vmem [shape: f32[512,12], index: 0, kind: input, shape index: {}]
  %s1 = inlined_call_operand.vmem [shape: f32[1,12], index: 1, kind: output, shape index: {0}]
  %s2 = inlined_call_operand.vmem [shape: f32[1,12], index: 2, kind: output, shape index: {1}]
  %3 = xla_tuple %s1, %s2
  %s4 = sld [smem:[#allocation0]]
  $region49: #{bottleneck_forward.10} parent=0
    _
  %s6 = ssub.s32 1, %s4
  %s7 = scalar_select 0, %s6, %s4
  loop: start=0, step=1, limit=4
  $region2: #{bottleneck_forward.10} parent=0 // loop_pre_header
    _
  $region3: #{bottleneck_forward.10} parent=0 // loop_header
    %s9 = sphi 0, %s13
    %p10 = scmp.ge.s32.totalorder %s9, 4
    %s19 = sphi 0, %s21
    %s22 = sphi 0, %s19
    %s23 = sphi 0, %s22
    %s39 = sphi 0, %s23
    %s43 = sphi 0, %s43
    %s45 = sphi 0, %s43
    %s46 = sphi 0, %s45
    %s60 = sphi 0, %s46
    %s64 = sphi 0, %s64
    %s66 = sphi 0, %s64
    %s67 = sphi 0, %s66
    %s81 = sphi 0, %s67
  $region4: #{bottleneck_forward.10} parent=0 // loop_header_branch
    %12 = sbr.rel (%p10) target = $region8
  $region5: #{bottleneck_forward.10} parent=0 // loop_body
    %s14 = ssub.s32 %s9, 1
    %s15 = ssub.s32 %s9, 2
    %s16 = sadd.s32 %s9, 1
    %s17 = ssub.s32 %s9, %s16
    %p18 = scmp.eq.s32.totalorder %s17, 0
    %s20 = sadd.s32 %s19, 1
    %s21 = scalar_select %p18, %s19, %s20
    %p24 = pneg %p18
    %p25 = scmp.eq.s32.totalorder %s9, 1
    %p26 = por %p24, %p25
    %p27 = scmp.ne.s32.totalorder %s19, %s22
    %p28 = scmp.eq.s32.totalorder %s9, 0
    %p29 = por %p27, %p28
    %p30 = scmp.ne.s32.totalorder %s19, %s22
    %p31 = scmp.eq.s32.totalorder %s14, 1
    %p32 = por %p30, %p31
    %p33 = scmp.ne.s32.totalorder %s22, %s23
    %p34 = scmp.eq.s32.totalorder %s14, 0
    %p35 = por %p33, %p34
    %p36 = scmp.ne.s32.totalorder %s22, %s23
    %p37 = scmp.eq.s32.totalorder %s15, 1
    %p38 = por %p36, %p37
    %p40 = scmp.ne.s32.totalorder %s23, %s39
    %p41 = scmp.eq.s32.totalorder %s15, 0
    %p42 = por %p40, %p41
    %s44 = sadd.s32 %s43, 1
    %p47 = scmp.eq.s32.totalorder %s9, 1
    %p48 = scmp.ne.s32.totalorder %s43, %s45
    %p49 = scmp.eq.s32.totalorder %s9, 0
    %p50 = por %p48, %p49
    %p51 = scmp.ne.s32.totalorder %s43, %s45
    %p52 = scmp.eq.s32.totalorder %s14, 1
    %p53 = por %p51, %p52
    %p54 = scmp.ne.s32.totalorder %s45, %s46
    %p55 = scmp.eq.s32.totalorder %s14, 0
    %p56 = por %p54, %p55
    %p57 = scmp.ne.s32.totalorder %s45, %s46
    %p58 = scmp.eq.s32.totalorder %s15, 1
    %p59 = por %p57, %p58
    %p61 = scmp.ne.s32.totalorder %s46, %s60
    %p62 = scmp.eq.s32.totalorder %s15, 0
    %p63 = por %p61, %p62
    %s65 = sadd.s32 %s64, 1
    %p68 = scmp.eq.s32.totalorder %s9, 1
    %p69 = scmp.ne.s32.totalorder %s64, %s66
    %p70 = scmp.eq.s32.totalorder %s9, 0
    %p71 = por %p69, %p70
    %p72 = scmp.ne.s32.totalorder %s64, %s66
    %p73 = scmp.eq.s32.totalorder %s14, 1
    %p74 = por %p72, %p73
    %p75 = scmp.ne.s32.totalorder %s66, %s67
    %p76 = scmp.eq.s32.totalorder %s14, 0
    %p77 = por %p75, %p76
    %p78 = scmp.ne.s32.totalorder %s66, %s67
    %p79 = scmp.eq.s32.totalorder %s15, 1
    %p80 = por %p78, %p79
    %p82 = scmp.ne.s32.totalorder %s67, %s81
    %p83 = scmp.eq.s32.totalorder %s15, 0
    %p84 = por %p82, %p83
    %p85 = scmp.le.s32.totalorder 1, %s9
    %p86 = scmp.lt.s32.totalorder %s9, 3
    %p87 = pnand %p85, %p86
    %p88 = pneg %p87
    // Predicated region
    $region9: #{bottleneck_forward.10} parent=5 // pred_check
      _
    $region10: #{bottleneck_forward.10} parent=5 // pred_check_branch
      %90 = sbr.rel (%p87) target = $region12
    $region11: #{bottleneck_forward.10} parent=5 // pred_region
      %s91 = ssub.s32 %s9, 1
    $region12: #{bottleneck_forward.10} parent=5 // pred_fallthru
      _
    %p92 = scmp.lt.s32.totalorder %s9, 2
    // Predicated region
    $region13: #{bottleneck_forward.10} parent=5 // pred_check
      %p93 = pneg %p92
    $region14: #{bottleneck_forward.10} parent=5 // pred_check_branch
      %95 = sbr.rel (%p93) target = $region16
    $region15: #{bottleneck_forward.10} parent=5 // pred_region
      // Predicated region
      $region17: #{bottleneck_forward.10} parent=15 // pred_check
        %p96 = pneg %p29
      $region18: #{bottleneck_forward.10} parent=15 // pred_check_branch
        %98 = sbr.rel (%p96) target = $region20
      $region19: #{bottleneck_forward.10} parent=15 // pred_region
        %s99 = smul.u32 32, %s9
        %p100 = scmp.lt.s32.totalorder %s99, 63
        %s101 = scalar_select %p100, %s99, 63
        %s102 = smul.addr %s101, 8
        %s103 = scalar_lea.vmem %s0, %s102
        %s104 = smul.u32 32, %s9
      $region20: #{bottleneck_forward.10} parent=15 // pred_fallthru
        _
    $region16: #{bottleneck_forward.10} parent=5 // pred_fallthru
      _
    %p105 = scmp.le.s32.totalorder 1, %s9
    %p106 = scmp.lt.s32.totalorder %s9, 3
    %p107 = pnand %p105, %p106
    %p108 = pneg %p107
    // Predicated region
    $region21: #{bottleneck_forward.10} parent=5 // pred_check
      _
    $region22: #{bottleneck_forward.10} parent=5 // pred_check_branch
      %110 = sbr.rel (%p107) target = $region24
    $region23: #{bottleneck_forward.10} parent=5 // pred_region
      %s111 = ssub.s32 %s9, 1
      %s112 = smul.u32 32, %s14
      %p113 = scmp.lt.s32.totalorder %s112, 63
      %s114 = scalar_select %p113, %s112, 63
      %s115 = smul.addr %s114, 8
      %s116 = scalar_lea.vmem %s0, %s115
      %p117 = pneg %p35
      %p118 = pneg %p32
      %p119 = pneg %p56
      %p120 = pneg %p53
      %p121 = pneg %p77
      %p122 = pneg %p74
      %s123 = smul.u32 32, %s14
      %p124 = scmp.lt.s32.totalorder %s123, 63
      %s125 = scalar_select %p124, %s123, 63
      %s126 = smul.addr %s125, 8
      %s127 = scalar_lea.vmem %s0, %s126
      %s128 = smul.u32 32, %s14
      %p129 = scmp.eq.s32.totalorder %s14, 0
      // Predicated region
      $region25: #{bottleneck_forward.10} parent=23 // pred_check
        %p130 = pneg %p129
      $region26: #{bottleneck_forward.10} parent=23 // pred_check_branch
        %132 = sbr.rel (%p130) target = $region28
      $region27: #{bottleneck_forward.10} parent=23 // pred_region
        %vm133 = vcmask 90112
        %134 = vst.msk [vmem:[%s1] sm:$0x1] %vm133, 0.0
        %135 = vst.msk [vmem:[%s2] sm:$0x1] %vm133, 0.0
      $region28: #{bottleneck_forward.10} parent=23 // pred_fallthru
        _
      %v136 = vld [vmem:[%s127] sm:$0xff]
      %v137 = vld [vmem:[%s127 + $0x8] sm:$0xff]
      %v138 = vld [vmem:[%s127 + $0x10] sm:$0xff]
      %v139 = vld [vmem:[%s127 + $0x18] sm:$0xff]
      %v140 = vld [vmem:[%s127 + $0x20] sm:$0xff]
      %v141 = vld [vmem:[%s127 + $0x28] sm:$0xff]
      %v142 = vld [vmem:[%s127 + $0x30] sm:$0xff]
      %v143 = vld [vmem:[%s127 + $0x38] sm:$0xff]
      %v144 = vld [vmem:[%s127 + $0x40] sm:$0xff]
      %v145 = vld [vmem:[%s127 + $0x48] sm:$0xff]
      %v146 = vld [vmem:[%s127 + $0x50] sm:$0xff]
      %v147 = vld [vmem:[%s127 + $0x58] sm:$0xff]
      %v148 = vld [vmem:[%s127 + $0x60] sm:$0xff]
      %v149 = vld [vmem:[%s127 + $0x68] sm:$0xff]
      %v150 = vld [vmem:[%s127 + $0x70] sm:$0xff]
      %v151 = vld [vmem:[%s127 + $0x78] sm:$0xff]
      %v152 = vld [vmem:[%s127 + $0x80] sm:$0xff]
      %v153 = vld [vmem:[%s127 + $0x88] sm:$0xff]
      %v154 = vld [vmem:[%s127 + $0x90] sm:$0xff]
      %v155 = vld [vmem:[%s127 + $0x98] sm:$0xff]
      %v156 = vld [vmem:[%s127 + $0xa0] sm:$0xff]
      %v157 = vld [vmem:[%s127 + $0xa8] sm:$0xff]
      %v158 = vld [vmem:[%s127 + $0xb0] sm:$0xff]
      %v159 = vld [vmem:[%s127 + $0xb8] sm:$0xff]
      %v160 = vld [vmem:[%s127 + $0xc0] sm:$0xff]
      %v161 = vld [vmem:[%s127 + $0xc8] sm:$0xff]
      %v162 = vld [vmem:[%s127 + $0xd0] sm:$0xff]
      %v163 = vld [vmem:[%s127 + $0xd8] sm:$0xff]
      %v164 = vld [vmem:[%s127 + $0xe0] sm:$0xff]
      %v165 = vld [vmem:[%s127 + $0xe8] sm:$0xff]
      %v166 = vld [vmem:[%s127 + $0xf0] sm:$0xff]
      %v167 = vld [vmem:[%s127 + $0xf8] sm:$0xff]
      %v168 = vld [vmem:[%s1] sm:$0x1]
      %vm169 = vcmask 97280
      %v170 = vsel %vm169, %v136, 0.0
      %v171 = vsel %vm169, %v137, 0.0
      %v172 = vadd.f32 %v170, %v171
      %v173 = vsel %vm169, %v138, 0.0
      %v174 = vadd.f32 %v172, %v173
      %v175 = vsel %vm169, %v139, 0.0
      %v176 = vadd.f32 %v174, %v175
      %v177 = vsel %vm169, %v140, 0.0
      %v178 = vadd.f32 %v176, %v177
      %v179 = vsel %vm169, %v141, 0.0
      %v180 = vadd.f32 %v178, %v179
      %v181 = vsel %vm169, %v142, 0.0
      %v182 = vadd.f32 %v180, %v181
      %v183 = vsel %vm169, %v143, 0.0
      %v184 = vadd.f32 %v182, %v183
      %v185 = vsel %vm169, %v144, 0.0
      %v186 = vadd.f32 %v184, %v185
      %v187 = vsel %vm169, %v145, 0.0
      %v188 = vadd.f32 %v186, %v187
      %v189 = vsel %vm169, %v146, 0.0
      %v190 = vadd.f32 %v188, %v189
      %v191 = vsel %vm169, %v147, 0.0
      %v192 = vadd.f32 %v190, %v191
      %v193 = vsel %vm169, %v148, 0.0
      %v194 = vadd.f32 %v192, %v193
      %v195 = vsel %vm169, %v149, 0.0
      %v196 = vadd.f32 %v194, %v195
      %v197 = vsel %vm169, %v150, 0.0
      %v198 = vadd.f32 %v196, %v197
      %v199 = vsel %vm169, %v151, 0.0
      %v200 = vadd.f32 %v198, %v199
      %v201 = vsel %vm169, %v152, 0.0
      %v202 = vadd.f32 %v200, %v201
      %v203 = vsel %vm169, %v153, 0.0
      %v204 = vadd.f32 %v202, %v203
      %v205 = vsel %vm169, %v154, 0.0
      %v206 = vadd.f32 %v204, %v205
      %v207 = vsel %vm169, %v155, 0.0
      %v208 = vadd.f32 %v206, %v207
      %v209 = vsel %vm169, %v156, 0.0
      %v210 = vadd.f32 %v208, %v209
      %v211 = vsel %vm169, %v157, 0.0
      %v212 = vadd.f32 %v210, %v211
      %v213 = vsel %vm169, %v158, 0.0
      %v214 = vadd.f32 %v212, %v213
      %v215 = vsel %vm169, %v159, 0.0
      %v216 = vadd.f32 %v214, %v215
      %v217 = vsel %vm169, %v160, 0.0
      %v218 = vadd.f32 %v216, %v217
      %v219 = vsel %vm169, %v161, 0.0
      %v220 = vadd.f32 %v218, %v219
      %v221 = vsel %vm169, %v162, 0.0
      %v222 = vadd.f32 %v220, %v221
      %v223 = vsel %vm169, %v163, 0.0
      %v224 = vadd.f32 %v222, %v223
      %v225 = vsel %vm169, %v164, 0.0
      %v226 = vadd.f32 %v224, %v225
      %v227 = vsel %vm169, %v165, 0.0
      %v228 = vadd.f32 %v226, %v227
      %v229 = vsel %vm169, %v166, 0.0
      %v230 = vadd.f32 %v228, %v229
      %v231 = vsel %vm169, %v167, 0.0
      %v232 = vadd.f32 %v230, %v231
      %v233 = vrot.slane %v232, 4
      %v234 = vadd.f32 %v232, %v233
      %v235 = vrot.slane %v234, 2
      %v236 = vadd.f32 %v234, %v235
      %v237 = vrot.slane %v236, 1
      %v238 = vadd.f32 %v236, %v237
      %v239 = vadd.f32 %v168, %v238
      %vm240 = vcmask 90112
      %241 = vst.msk [vmem:[%s1] sm:$0x1] %vm240, %v239
      %v242 = vld [vmem:[%s2] sm:$0x1]
      %v243 = vmul.f32 %v136, %v136
      %v244 = vmul.f32 %v137, %v137
      %v245 = vmul.f32 %v138, %v138
      %v246 = vmul.f32 %v139, %v139
      %v247 = vmul.f32 %v140, %v140
      %v248 = vmul.f32 %v141, %v141
      %v249 = vmul.f32 %v142, %v142
      %v250 = vmul.f32 %v143, %v143
      %v251 = vmul.f32 %v144, %v144
      %v252 = vmul.f32 %v145, %v145
      %v253 = vmul.f32 %v146, %v146
      %v254 = vmul.f32 %v147, %v147
      %v255 = vmul.f32 %v148, %v148
      %v256 = vmul.f32 %v149, %v149
      %v257 = vmul.f32 %v150, %v150
      %v258 = vmul.f32 %v151, %v151
      %v259 = vmul.f32 %v152, %v152
      %v260 = vmul.f32 %v153, %v153
      %v261 = vmul.f32 %v154, %v154
      %v262 = vmul.f32 %v155, %v155
      %v263 = vmul.f32 %v156, %v156
      %v264 = vmul.f32 %v157, %v157
      %v265 = vmul.f32 %v158, %v158
      %v266 = vmul.f32 %v159, %v159
      %v267 = vmul.f32 %v160, %v160
      %v268 = vmul.f32 %v161, %v161
      %v269 = vmul.f32 %v162, %v162
      %v270 = vmul.f32 %v163, %v163
      %v271 = vmul.f32 %v164, %v164
      %v272 = vmul.f32 %v165, %v165
      %v273 = vmul.f32 %v166, %v166
      %v274 = vmul.f32 %v167, %v167
      %v275 = vsel %vm169, %v243, 0.0
      %v276 = vsel %vm169, %v244, 0.0
      %v277 = vadd.f32 %v275, %v276
      %v278 = vsel %vm169, %v245, 0.0
      %v279 = vadd.f32 %v277, %v278
      %v280 = vsel %vm169, %v246, 0.0
      %v281 = vadd.f32 %v279, %v280
      %v282 = vsel %vm169, %v247, 0.0
      %v283 = vadd.f32 %v281, %v282
      %v284 = vsel %vm169, %v248, 0.0
      %v285 = vadd.f32 %v283, %v284
      %v286 = vsel %vm169, %v249, 0.0
      %v287 = vadd.f32 %v285, %v286
      %v288 = vsel %vm169, %v250, 0.0
      %v289 = vadd.f32 %v287, %v288
      %v290 = vsel %vm169, %v251, 0.0
      %v291 = vadd.f32 %v289, %v290
      %v292 = vsel %vm169, %v252, 0.0
      %v293 = vadd.f32 %v291, %v292
      %v294 = vsel %vm169, %v253, 0.0
      %v295 = vadd.f32 %v293, %v294
      %v296 = vsel %vm169, %v254, 0.0
      %v297 = vadd.f32 %v295, %v296
      %v298 = vsel %vm169, %v255, 0.0
      %v299 = vadd.f32 %v297, %v298
      %v300 = vsel %vm169, %v256, 0.0
      %v301 = vadd.f32 %v299, %v300
      %v302 = vsel %vm169, %v257, 0.0
      %v303 = vadd.f32 %v301, %v302
      %v304 = vsel %vm169, %v258, 0.0
      %v305 = vadd.f32 %v303, %v304
      %v306 = vsel %vm169, %v259, 0.0
      %v307 = vadd.f32 %v305, %v306
      %v308 = vsel %vm169, %v260, 0.0
      %v309 = vadd.f32 %v307, %v308
      %v310 = vsel %vm169, %v261, 0.0
      %v311 = vadd.f32 %v309, %v310
      %v312 = vsel %vm169, %v262, 0.0
      %v313 = vadd.f32 %v311, %v312
      %v314 = vsel %vm169, %v263, 0.0
      %v315 = vadd.f32 %v313, %v314
      %v316 = vsel %vm169, %v264, 0.0
      %v317 = vadd.f32 %v315, %v316
      %v318 = vsel %vm169, %v265, 0.0
      %v319 = vadd.f32 %v317, %v318
      %v320 = vsel %vm169, %v266, 0.0
      %v321 = vadd.f32 %v319, %v320
      %v322 = vsel %vm169, %v267, 0.0
      %v323 = vadd.f32 %v321, %v322
      %v324 = vsel %vm169, %v268, 0.0
      %v325 = vadd.f32 %v323, %v324
      %v326 = vsel %vm169, %v269, 0.0
      %v327 = vadd.f32 %v325, %v326
      %v328 = vsel %vm169, %v270, 0.0
      %v329 = vadd.f32 %v327, %v328
      %v330 = vsel %vm169, %v271, 0.0
      %v331 = vadd.f32 %v329, %v330
      %v332 = vsel %vm169, %v272, 0.0
      %v333 = vadd.f32 %v331, %v332
      %v334 = vsel %vm169, %v273, 0.0
      %v335 = vadd.f32 %v333, %v334
      %v336 = vsel %vm169, %v274, 0.0
      %v337 = vadd.f32 %v335, %v336
      %v338 = vrot.slane %v337, 4
      %v339 = vadd.f32 %v337, %v338
      %v340 = vrot.slane %v339, 2
      %v341 = vadd.f32 %v339, %v340
      %v342 = vrot.slane %v341, 1
      %v343 = vadd.f32 %v341, %v342
      %v344 = vadd.f32 %v242, %v343
      %345 = vst.msk [vmem:[%s2] sm:$0x1] %vm240, %v344
      // Predicated region
      $region29: #{bottleneck_forward.10} parent=23 // pred_check
        %p346 = pneg %p53
      $region30: #{bottleneck_forward.10} parent=23 // pred_check_branch
        %348 = sbr.rel (%p346) target = $region32
      $region31: #{bottleneck_forward.10} parent=23 // pred_region
        _
      $region32: #{bottleneck_forward.10} parent=23 // pred_fallthru
        _
      // Predicated region
      $region33: #{bottleneck_forward.10} parent=23 // pred_check
        %p349 = pneg %p74
      $region34: #{bottleneck_forward.10} parent=23 // pred_check_branch
        %351 = sbr.rel (%p349) target = $region36
      $region35: #{bottleneck_forward.10} parent=23 // pred_region
        _
      $region36: #{bottleneck_forward.10} parent=23 // pred_fallthru
        _
      // Predicated region
      $region37: #{bottleneck_forward.10} parent=23 // pred_check
        %p352 = pneg %p53
      $region38: #{bottleneck_forward.10} parent=23 // pred_check_branch
        %354 = sbr.rel (%p352) target = $region40
      $region39: #{bottleneck_forward.10} parent=23 // pred_region
        _
      $region40: #{bottleneck_forward.10} parent=23 // pred_fallthru
        _
      // Predicated region
      $region41: #{bottleneck_forward.10} parent=23 // pred_check
        %p355 = pneg %p74
      $region42: #{bottleneck_forward.10} parent=23 // pred_check_branch
        %357 = sbr.rel (%p355) target = $region44
      $region43: #{bottleneck_forward.10} parent=23 // pred_region
        _
      $region44: #{bottleneck_forward.10} parent=23 // pred_fallthru
        _
    $region24: #{bottleneck_forward.10} parent=5 // pred_fallthru
      _
    %p358 = scmp.le.s32.totalorder 2, %s9
    // Predicated region
    $region45: #{bottleneck_forward.10} parent=5 // pred_check
      %p359 = pneg %p358
    $region46: #{bottleneck_forward.10} parent=5 // pred_check_branch
      %361 = sbr.rel (%p359) target = $region48
    $region47: #{bottleneck_forward.10} parent=5 // pred_region
      %s362 = ssub.s32 %s9, 2
    $region48: #{bottleneck_forward.10} parent=5 // pred_fallthru
      _
  $region6: #{bottleneck_forward.10} parent=0 // loop_footer
    %s13 = sadd.s32 1, %s9
  $region7: #{bottleneck_forward.10} parent=0 // loop_footer_branch
    %8 = sbr.rel target = $region3
  $region8: #{bottleneck_forward.10} parent=0 // loop_exit
    _

// kernel: bottleneck_forward.11
$region0: #{bottleneck_forward.11}
  #allocation0 [shape = 'u32[]', space=smem, size = 0x4, offset = 0x4, fixed_abs, tag = 'smem constant byte address 0x4 - core index']
  #allocation1 [shape = 'u32[144,128]{1,0:T(1,128)}', space=vmem, size = 0x12000, scoped, tag = 'internal scratch']
  %s0 = inlined_call_operand.vmem [shape: f32[1,12], index: 0, kind: input, shape index: {}]
  %s1 = inlined_call_operand.vmem [shape: f32[1,12], index: 1, kind: input, shape index: {}]
  %s2 = inlined_call_operand.vmem [shape: f32[3,16,18,1], index: 2, kind: input, shape index: {}]
  %s3 = inlined_call_operand.vmem [shape: f32[6,16,18,12], index: 3, kind: input, shape index: {}]
  %s4 = inlined_call_operand.vmem [shape: bf16[108,128], index: 4, kind: input, shape index: {}]
  %s5 = inlined_call_operand.vmem [shape: f32[1,128], index: 5, kind: input, shape index: {}]
  %s6 = inlined_call_operand.vmem [shape: f32[2,256,128], index: 6, kind: output, shape index: {}]
  %s7 = sld [smem:[#allocation0]]
  $region133: #{bottleneck_forward.11} parent=0
    _
  %s9 = ssub.s32 1, %s7
  %s10 = scalar_select 0, %s9, %s7
  $region1: #{bottleneck_forward.11} parent=0
    #allocation2 [shape = 'u8[589824]{0}', space=vmem, size = 0x90000, scoped, tag = 'input window, operand 2']
    #allocation3 [shape = 'u8[589824]{0}', space=vmem, size = 0x90000, scoped, tag = 'input window, operand 3']
    loop: start=0, step=1, limit=6
    $region2: #{bottleneck_forward.11} parent=1 // loop_pre_header
      _
    $region3: #{bottleneck_forward.11} parent=1 // loop_header
      %s12 = sphi 0, %s16
      %p13 = scmp.ge.s32.totalorder %s12, 6
      %s19 = sphi 0, %s31
      %s20 = sphi 0, %s27
      %s21 = sphi 0, %s19
      %s22 = sphi 0, %s20
      %s23 = sphi 0, %s21
      %s24 = sphi 0, %s22
      %s32 = sphi 0, %s32
      %s34 = sphi 0, %s32
      %s35 = sphi 0, %s34
      %s49 = sphi 0, %s35
      %s53 = sphi 0, %s53
      %s55 = sphi 0, %s53
      %s56 = sphi 0, %s55
      %s70 = sphi 0, %s56
      %s76 = sphi 0, %s78
      %s79 = sphi 0, %s76
      %s80 = sphi 0, %s79
      %s96 = sphi 0, %s80
      %s104 = sphi 0, %s106
      %s107 = sphi 0, %s104
      %s108 = sphi 0, %s107
      %s124 = sphi 0, %s108
      %s128 = sphi 0, %s128
      %s130 = sphi 0, %s128
      %s131 = sphi 0, %s130
      %s145 = sphi 0, %s131
      %s149 = sphi 0, %s149
      %s151 = sphi 0, %s149
      %s152 = sphi 0, %s151
      %s166 = sphi 0, %s152
      %s174 = sphi 0, %s176
      %s177 = sphi 0, %s174
      %s178 = sphi 0, %s177
      %s194 = sphi 0, %s178
    $region4: #{bottleneck_forward.11} parent=1 // loop_header_branch
      %15 = sbr.rel (%p13) target = $region8
    $region5: #{bottleneck_forward.11} parent=1 // loop_body
      %s17 = ssub.s32 %s12, 1
      %s18 = ssub.s32 %s12, 2
      %s25 = sadd.s32 1, %s20
      %p26 = scmp.ge.s32.totalorder %s25, 2
      %s27 = scalar_select %p26, 0, %s25
      %s28 = sadd.s32 1, %s19
      %s29 = scalar_select %p26, %s28, %s19
      %p30 = scmp.ge.s32.totalorder %s29, 2
      %s31 = scalar_select %p30, 0, %s29
      %s33 = sadd.s32 %s32, 1
      %p36 = scmp.eq.s32.totalorder %s12, 3
      %p37 = scmp.ne.s32.totalorder %s32, %s34
      %p38 = scmp.eq.s32.totalorder %s12, 0
      %p39 = por %p37, %p38
      %p40 = scmp.ne.s32.totalorder %s32, %s34
      %p41 = scmp.eq.s32.totalorder %s17, 3
      %p42 = por %p40, %p41
      %p43 = scmp.ne.s32.totalorder %s34, %s35
      %p44 = scmp.eq.s32.totalorder %s17, 0
      %p45 = por %p43, %p44
      %p46 = scmp.ne.s32.totalorder %s34, %s35
      %p47 = scmp.eq.s32.totalorder %s18, 3
      %p48 = por %p46, %p47
      %p50 = scmp.ne.s32.totalorder %s35, %s49
      %p51 = scmp.eq.s32.totalorder %s18, 0
      %p52 = por %p50, %p51
      %s54 = sadd.s32 %s53, 1
      %p57 = scmp.eq.s32.totalorder %s12, 3
      %p58 = scmp.ne.s32.totalorder %s53, %s55
      %p59 = scmp.eq.s32.totalorder %s12, 0
      %p60 = por %p58, %p59
      %p61 = scmp.ne.s32.totalorder %s53, %s55
      %p62 = scmp.eq.s32.totalorder %s17, 3
      %p63 = por %p61, %p62
      %p64 = scmp.ne.s32.totalorder %s55, %s56
      %p65 = scmp.eq.s32.totalorder %s17, 0
      %p66 = por %p64, %p65
      %p67 = scmp.ne.s32.totalorder %s55, %s56
      %p68 = scmp.eq.s32.totalorder %s18, 3
      %p69 = por %p67, %p68
      %p71 = scmp.ne.s32.totalorder %s56, %s70
      %p72 = scmp.eq.s32.totalorder %s18, 0
      %p73 = por %p71, %p72
      %s74 = ssub.s32 %s20, %s27
      %p75 = scmp.eq.s32.totalorder %s74, 0
      %s77 = sadd.s32 %s76, 1
      %s78 = scalar_select %p75, %s76, %s77
      %p81 = pneg %p75
      %p82 = scmp.eq.s32.totalorder %s12, 3
      %p83 = por %p81, %p82
      %p84 = scmp.ne.s32.totalorder %s76, %s79
      %p85 = scmp.eq.s32.totalorder %s12, 0
      %p86 = por %p84, %p85
      %p87 = scmp.ne.s32.totalorder %s76, %s79
      %p88 = scmp.eq.s32.totalorder %s17, 3
      %p89 = por %p87, %p88
      %p90 = scmp.ne.s32.totalorder %s79, %s80
      %p91 = scmp.eq.s32.totalorder %s17, 0
      %p92 = por %p90, %p91
      %p93 = scmp.ne.s32.totalorder %s79, %s80
      %p94 = scmp.eq.s32.totalorder %s18, 3
      %p95 = por %p93, %p94
      %p97 = scmp.ne.s32.totalorder %s80, %s96
      %p98 = scmp.eq.s32.totalorder %s18, 0
      %p99 = por %p97, %p98
      %s100 = ssub.s32 %s19, %s31
      %s101 = ssub.s32 %s20, %s27
      %s102 = sor.u32 %s100, %s101
      %p103 = scmp.eq.s32.totalorder %s102, 0
      %s105 = sadd.s32 %s104, 1
      %s106 = scalar_select %p103, %s104, %s105
      %p109 = pneg %p103
      %p110 = scmp.eq.s32.totalorder %s12, 3
      %p111 = por %p109, %p110
      %p112 = scmp.ne.s32.totalorder %s104, %s107
      %p113 = scmp.eq.s32.totalorder %s12, 0
      %p114 = por %p112, %p113
      %p115 = scmp.ne.s32.totalorder %s104, %s107
      %p116 = scmp.eq.s32.totalorder %s17, 3
      %p117 = por %p115, %p116
      %p118 = scmp.ne.s32.totalorder %s107, %s108
      %p119 = scmp.eq.s32.totalorder %s17, 0
      %p120 = por %p118, %p119
      %p121 = scmp.ne.s32.totalorder %s107, %s108
      %p122 = scmp.eq.s32.totalorder %s18, 3
      %p123 = por %p121, %p122
      %p125 = scmp.ne.s32.totalorder %s108, %s124
      %p126 = scmp.eq.s32.totalorder %s18, 0
      %p127 = por %p125, %p126
      %s129 = sadd.s32 %s128, 1
      %p132 = scmp.eq.s32.totalorder %s12, 3
      %p133 = scmp.ne.s32.totalorder %s128, %s130
      %p134 = scmp.eq.s32.totalorder %s12, 0
      %p135 = por %p133, %p134
      %p136 = scmp.ne.s32.totalorder %s128, %s130
      %p137 = scmp.eq.s32.totalorder %s17, 3
      %p138 = por %p136, %p137
      %p139 = scmp.ne.s32.totalorder %s130, %s131
      %p140 = scmp.eq.s32.totalorder %s17, 0
      %p141 = por %p139, %p140
      %p142 = scmp.ne.s32.totalorder %s130, %s131
      %p143 = scmp.eq.s32.totalorder %s18, 3
      %p144 = por %p142, %p143
      %p146 = scmp.ne.s32.totalorder %s131, %s145
      %p147 = scmp.eq.s32.totalorder %s18, 0
      %p148 = por %p146, %p147
      %s150 = sadd.s32 %s149, 1
      %p153 = scmp.eq.s32.totalorder %s12, 3
      %p154 = scmp.ne.s32.totalorder %s149, %s151
      %p155 = scmp.eq.s32.totalorder %s12, 0
      %p156 = por %p154, %p155
      %p157 = scmp.ne.s32.totalorder %s149, %s151
      %p158 = scmp.eq.s32.totalorder %s17, 3
      %p159 = por %p157, %p158
      %p160 = scmp.ne.s32.totalorder %s151, %s152
      %p161 = scmp.eq.s32.totalorder %s17, 0
      %p162 = por %p160, %p161
      %p163 = scmp.ne.s32.totalorder %s151, %s152
      %p164 = scmp.eq.s32.totalorder %s18, 3
      %p165 = por %p163, %p164
      %p167 = scmp.ne.s32.totalorder %s152, %s166
      %p168 = scmp.eq.s32.totalorder %s18, 0
      %p169 = por %p167, %p168
      %s170 = ssub.s32 %s19, %s31
      %s171 = ssub.s32 %s20, %s27
      %s172 = sor.u32 %s170, %s171
      %p173 = scmp.eq.s32.totalorder %s172, 0
      %s175 = sadd.s32 %s174, 1
      %s176 = scalar_select %p173, %s174, %s175
      %p179 = pneg %p173
      %p180 = scmp.eq.s32.totalorder %s12, 3
      %p181 = por %p179, %p180
      %p182 = scmp.ne.s32.totalorder %s174, %s177
      %p183 = scmp.eq.s32.totalorder %s12, 0
      %p184 = por %p182, %p183
      %p185 = scmp.ne.s32.totalorder %s174, %s177
      %p186 = scmp.eq.s32.totalorder %s17, 3
      %p187 = por %p185, %p186
      %p188 = scmp.ne.s32.totalorder %s177, %s178
      %p189 = scmp.eq.s32.totalorder %s17, 0
      %p190 = por %p188, %p189
      %p191 = scmp.ne.s32.totalorder %s177, %s178
      %p192 = scmp.eq.s32.totalorder %s18, 3
      %p193 = por %p191, %p192
      %p195 = scmp.ne.s32.totalorder %s178, %s194
      %p196 = scmp.eq.s32.totalorder %s18, 0
      %p197 = por %p195, %p196
      %p198 = scmp.le.s32.totalorder 1, %s12
      %p199 = scmp.lt.s32.totalorder %s12, 5
      %p200 = pnand %p198, %p199
      %p201 = pneg %p200
      // Predicated region
      $region9: #{bottleneck_forward.11} parent=5 // pred_check
        _
      $region10: #{bottleneck_forward.11} parent=5 // pred_check_branch
        %203 = sbr.rel (%p200) target = $region12
      $region11: #{bottleneck_forward.11} parent=5 // pred_region
        %s204 = ssub.s32 %s12, 1
        // Predicated region
        $region13: #{bottleneck_forward.11} parent=11 // pred_check
          %p205 = pneg %p45
        $region14: #{bottleneck_forward.11} parent=11 // pred_check_branch
          %207 = sbr.rel (%p205) target = $region16
        $region15: #{bottleneck_forward.11} parent=11 // pred_region
          _
        $region16: #{bottleneck_forward.11} parent=11 // pred_fallthru
          _
        // Predicated region
        $region17: #{bottleneck_forward.11} parent=11 // pred_check
          %p208 = pneg %p66
        $region18: #{bottleneck_forward.11} parent=11 // pred_check_branch
          %210 = sbr.rel (%p208) target = $region20
        $region19: #{bottleneck_forward.11} parent=11 // pred_region
          _
        $region20: #{bottleneck_forward.11} parent=11 // pred_fallthru
          _
        // Predicated region
        $region21: #{bottleneck_forward.11} parent=11 // pred_check
          %p211 = pneg %p141
        $region22: #{bottleneck_forward.11} parent=11 // pred_check_branch
          %213 = sbr.rel (%p211) target = $region24
        $region23: #{bottleneck_forward.11} parent=11 // pred_region
          _
        $region24: #{bottleneck_forward.11} parent=11 // pred_fallthru
          _
        // Predicated region
        $region25: #{bottleneck_forward.11} parent=11 // pred_check
          %p214 = pneg %p162
        $region26: #{bottleneck_forward.11} parent=11 // pred_check_branch
          %216 = sbr.rel (%p214) target = $region28
        $region27: #{bottleneck_forward.11} parent=11 // pred_region
          _
        $region28: #{bottleneck_forward.11} parent=11 // pred_fallthru
          _
      $region12: #{bottleneck_forward.11} parent=5 // pred_fallthru
        _
      %p217 = scmp.lt.s32.totalorder %s12, 4
      // Predicated region
      $region29: #{bottleneck_forward.11} parent=5 // pred_check
        %p218 = pneg %p217
      $region30: #{bottleneck_forward.11} parent=5 // pred_check_branch
        %220 = sbr.rel (%p218) target = $region32
      $region31: #{bottleneck_forward.11} parent=5 // pred_region
        // Predicated region
        $region33: #{bottleneck_forward.11} parent=31 // pred_check
          %p221 = pneg %p86
        $region34: #{bottleneck_forward.11} parent=31 // pred_check_branch
          %223 = sbr.rel (%p221) target = $region36
        $region35: #{bottleneck_forward.11} parent=31 // pred_region
          %s224 = sand.u32 %s76, 1
          %s225 = sand.u32 %s76, 1
          %s226 = smul.addr %s225, 576
          %s227 = scalar_lea.vmem [#allocation2], %s226
          %s228 = smul.u32 8, %s20
          %s229 = smul.addr %s228, 3
          %s230 = smul.addr %s229, 8
          %s231 = scalar_lea.vmem %s2, %s230
          // Predicated region
          $region37: #{bottleneck_forward.11} parent=35 // pred_check
            _
          $region38: #{bottleneck_forward.11} parent=35 // pred_check_branch
            %233 = sbr.rel (0) target = $region40
          $region39: #{bottleneck_forward.11} parent=35 // pred_region
            // Predicated region
            $region41: #{bottleneck_forward.11} parent=39 // pred_check
              _
            $region42: #{bottleneck_forward.11} parent=39 // pred_check_branch
              %235 = sbr.rel (0) target = $region44
            $region43: #{bottleneck_forward.11} parent=39 // pred_region
              // Predicated region
              $region56: #{bottleneck_forward.11} parent=43 // pred_check
                _
              $region57: #{bottleneck_forward.11} parent=43 // pred_check_branch
                %392 = sbr.rel (0) target = $region59
              $region58: #{bottleneck_forward.11} parent=43 // pred_region
                loop: start=0, step=1, limit=1
                $region60: #{bottleneck_forward.11} parent=58 // loop_pre_header
                  _
                $region61: #{bottleneck_forward.11} parent=58 // loop_header
                  %s394 = sphi 0, %s398
                  %p395 = scmp.ge.s32.totalorder %s394, 1
                  %s399 = sphi %s231, %s231
                  %s400 = sphi %s227, %s227
                $region62: #{bottleneck_forward.11} parent=58 // loop_header_branch
                  %397 = sbr.rel (%p395) target = $region66
                $region63: #{bottleneck_forward.11} parent=58 // loop_body
                  %v401 = vld [vmem:[%s399] sm:$0xff]
                  %402 = vst [vmem:[%s400] sm:$0xff] %v401
                  %v403 = vld [vmem:[%s399 + $0x8] sm:$0xff]
                  %404 = vst [vmem:[%s400 + $0x8] sm:$0xff] %v403
                  %v405 = vld [vmem:[%s399 + $0x10] sm:$0xff]
                  %406 = vst [vmem:[%s400 + $0x10] sm:$0xff] %v405
                  %v407 = vld [vmem:[%s399 + $0x18] sm:$0xff]
                  %408 = vst [vmem:[%s400 + $0x18] sm:$0xff] %v407
                  %v409 = vld [vmem:[%s399 + $0x20] sm:$0xff]
                  %410 = vst [vmem:[%s400 + $0x20] sm:$0xff] %v409
                  %v411 = vld [vmem:[%s399 + $0x28] sm:$0xff]
                  %412 = vst [vmem:[%s400 + $0x28] sm:$0xff] %v411
                  %v413 = vld [vmem:[%s399 + $0x30] sm:$0xff]
                  %414 = vst [vmem:[%s400 + $0x30] sm:$0xff] %v413
                  %v415 = vld [vmem:[%s399 + $0x38] sm:$0xff]
                  %416 = vst [vmem:[%s400 + $0x38] sm:$0xff] %v415
                  %v417 = vld [vmem:[%s399 + $0x40] sm:$0xff]
                  %418 = vst [vmem:[%s400 + $0x40] sm:$0xff] %v417
                  %v419 = vld [vmem:[%s399 + $0x48] sm:$0xff]
                  %420 = vst [vmem:[%s400 + $0x48] sm:$0xff] %v419
                  %v421 = vld [vmem:[%s399 + $0x50] sm:$0xff]
                  %422 = vst [vmem:[%s400 + $0x50] sm:$0xff] %v421
                  %v423 = vld [vmem:[%s399 + $0x58] sm:$0xff]
                  %424 = vst [vmem:[%s400 + $0x58] sm:$0xff] %v423
                  %v425 = vld [vmem:[%s399 + $0x60] sm:$0xff]
                  %426 = vst [vmem:[%s400 + $0x60] sm:$0xff] %v425
                  %v427 = vld [vmem:[%s399 + $0x68] sm:$0xff]
                  %428 = vst [vmem:[%s400 + $0x68] sm:$0xff] %v427
                  %v429 = vld [vmem:[%s399 + $0x70] sm:$0xff]
                  %430 = vst [vmem:[%s400 + $0x70] sm:$0xff] %v429
                  %v431 = vld [vmem:[%s399 + $0x78] sm:$0xff]
                  %432 = vst [vmem:[%s400 + $0x78] sm:$0xff] %v431
                  %v433 = vld [vmem:[%s399 + $0x80] sm:$0xff]
                  %434 = vst [vmem:[%s400 + $0x80] sm:$0xff] %v433
                  %v435 = vld [vmem:[%s399 + $0x88] sm:$0xff]
                  %436 = vst [vmem:[%s400 + $0x88] sm:$0xff] %v435
                  %v437 = vld [vmem:[%s399 + $0x90] sm:$0xff]
                  %438 = vst [vmem:[%s400 + $0x90] sm:$0xff] %v437
                  %v439 = vld [vmem:[%s399 + $0x98] sm:$0xff]
                  %440 = vst [vmem:[%s400 + $0x98] sm:$0xff] %v439
                  %v441 = vld [vmem:[%s399 + $0xa0] sm:$0xff]
                  %442 = vst [vmem:[%s400 + $0xa0] sm:$0xff] %v441
                  %v443 = vld [vmem:[%s399 + $0xa8] sm:$0xff]
                  %444 = vst [vmem:[%s400 + $0xa8] sm:$0xff] %v443
                  %v445 = vld [vmem:[%s399 + $0xb0] sm:$0xff]
                  %446 = vst [vmem:[%s400 + $0xb0] sm:$0xff] %v445
                  %v447 = vld [vmem:[%s399 + $0xb8] sm:$0xff]
                  %448 = vst [vmem:[%s400 + $0xb8] sm:$0xff] %v447
                  %v449 = vld [vmem:[%s399 + $0x180] sm:$0xff]
                  %450 = vst [vmem:[%s400 + $0xc0] sm:$0xff] %v449
                  %v451 = vld [vmem:[%s399 + $0x188] sm:$0xff]
                  %452 = vst [vmem:[%s400 + $0xc8] sm:$0xff] %v451
                  %v453 = vld [vmem:[%s399 + $0x190] sm:$0xff]
                  %454 = vst [vmem:[%s400 + $0xd0] sm:$0xff] %v453
                  %v455 = vld [vmem:[%s399 + $0x198] sm:$0xff]
                  %456 = vst [vmem:[%s400 + $0xd8] sm:$0xff] %v455
                  %v457 = vld [vmem:[%s399 + $0x1a0] sm:$0xff]
                  %458 = vst [vmem:[%s400 + $0xe0] sm:$0xff] %v457
                  %v459 = vld [vmem:[%s399 + $0x1a8] sm:$0xff]
                  %460 = vst [vmem:[%s400 + $0xe8] sm:$0xff] %v459
                  %v461 = vld [vmem:[%s399 + $0x1b0] sm:$0xff]
                  %462 = vst [vmem:[%s400 + $0xf0] sm:$0xff] %v461
                  %v463 = vld [vmem:[%s399 + $0x1b8] sm:$0xff]
                  %464 = vst [vmem:[%s400 + $0xf8] sm:$0xff] %v463
                  %v465 = vld [vmem:[%s399 + $0x1c0] sm:$0xff]
                  %466 = vst [vmem:[%s400 + $0x100] sm:$0xff] %v465
                  %v467 = vld [vmem:[%s399 + $0x1c8] sm:$0xff]
                  %468 = vst [vmem:[%s400 + $0x108] sm:$0xff] %v467
                  %v469 = vld [vmem:[%s399 + $0x1d0] sm:$0xff]
                  %470 = vst [vmem:[%s400 + $0x110] sm:$0xff] %v469
                  %v471 = vld [vmem:[%s399 + $0x1d8] sm:$0xff]
                  %472 = vst [vmem:[%s400 + $0x118] sm:$0xff] %v471
                  %v473 = vld [vmem:[%s399 + $0x1e0] sm:$0xff]
                  %474 = vst [vmem:[%s400 + $0x120] sm:$0xff] %v473
                  %v475 = vld [vmem:[%s399 + $0x1e8] sm:$0xff]
                  %476 = vst [vmem:[%s400 + $0x128] sm:$0xff] %v475
                  %v477 = vld [vmem:[%s399 + $0x1f0] sm:$0xff]
                  %478 = vst [vmem:[%s400 + $0x130] sm:$0xff] %v477
                  %v479 = vld [vmem:[%s399 + $0x1f8] sm:$0xff]
                  %480 = vst [vmem:[%s400 + $0x138] sm:$0xff] %v479
                  %v481 = vld [vmem:[%s399 + $0x200] sm:$0xff]
                  %482 = vst [vmem:[%s400 + $0x140] sm:$0xff] %v481
                  %v483 = vld [vmem:[%s399 + $0x208] sm:$0xff]
                  %484 = vst [vmem:[%s400 + $0x148] sm:$0xff] %v483
                  %v485 = vld [vmem:[%s399 + $0x210] sm:$0xff]
                  %486 = vst [vmem:[%s400 + $0x150] sm:$0xff] %v485
                  %v487 = vld [vmem:[%s399 + $0x218] sm:$0xff]
                  %488 = vst [vmem:[%s400 + $0x158] sm:$0xff] %v487
                  %v489 = vld [vmem:[%s399 + $0x220] sm:$0xff]
                  %490 = vst [vmem:[%s400 + $0x160] sm:$0xff] %v489
                  %v491 = vld [vmem:[%s399 + $0x228] sm:$0xff]
                  %492 = vst [vmem:[%s400 + $0x168] sm:$0xff] %v491
                  %v493 = vld [vmem:[%s399 + $0x230] sm:$0xff]
                  %494 = vst [vmem:[%s400 + $0x170] sm:$0xff] %v493
                  %v495 = vld [vmem:[%s399 + $0x238] sm:$0xff]
                  %496 = vst [vmem:[%s400 + $0x178] sm:$0xff] %v495
                  %v497 = vld [vmem:[%s399 + $0x300] sm:$0xff]
                  %498 = vst [vmem:[%s400 + $0x180] sm:$0xff] %v497
                  %v499 = vld [vmem:[%s399 + $0x308] sm:$0xff]
                  %500 = vst [vmem:[%s400 + $0x188] sm:$0xff] %v499
                  %v501 = vld [vmem:[%s399 + $0x310] sm:$0xff]
                  %502 = vst [vmem:[%s400 + $0x190] sm:$0xff] %v501
                  %v503 = vld [vmem:[%s399 + $0x318] sm:$0xff]
                  %504 = vst [vmem:[%s400 + $0x198] sm:$0xff] %v503
                  %v505 = vld [vmem:[%s399 + $0x320] sm:$0xff]
                  %506 = vst [vmem:[%s400 + $0x1a0] sm:$0xff] %v505
                  %v507 = vld [vmem:[%s399 + $0x328] sm:$0xff]
                  %508 = vst [vmem:[%s400 + $0x1a8] sm:$0xff] %v507
                  %v509 = vld [vmem:[%s399 + $0x330] sm:$0xff]
                  %510 = vst [vmem:[%s400 + $0x1b0] sm:$0xff] %v509
                  %v511 = vld [vmem:[%s399 + $0x338] sm:$0xff]
                  %512 = vst [vmem:[%s400 + $0x1b8] sm:$0xff] %v511
                  %v513 = vld [vmem:[%s399 + $0x340] sm:$0xff]
                  %514 = vst [vmem:[%s400 + $0x1c0] sm:$0xff] %v513
                  %v515 = vld [vmem:[%s399 + $0x348] sm:$0xff]
                  %516 = vst [vmem:[%s400 + $0x1c8] sm:$0xff] %v515
                  %v517 = vld [vmem:[%s399 + $0x350] sm:$0xff]
                  %518 = vst [vmem:[%s400 + $0x1d0] sm:$0xff] %v517
                  %v519 = vld [vmem:[%s399 + $0x358] sm:$0xff]
                  %520 = vst [vmem:[%s400 + $0x1d8] sm:$0xff] %v519
                  %v521 = vld [vmem:[%s399 + $0x360] sm:$0xff]
                  %522 = vst [vmem:[%s400 + $0x1e0] sm:$0xff] %v521
                  %v523 = vld [vmem:[%s399 + $0x368] sm:$0xff]
                  %524 = vst [vmem:[%s400 + $0x1e8] sm:$0xff] %v523
                  %v525 = vld [vmem:[%s399 + $0x370] sm:$0xff]
                  %526 = vst [vmem:[%s400 + $0x1f0] sm:$0xff] %v525
                  %v527 = vld [vmem:[%s399 + $0x378] sm:$0xff]
                  %528 = vst [vmem:[%s400 + $0x1f8] sm:$0xff] %v527
                  %v529 = vld [vmem:[%s399 + $0x380] sm:$0xff]
                  %530 = vst [vmem:[%s400 + $0x200] sm:$0xff] %v529
                  %v531 = vld [vmem:[%s399 + $0x388] sm:$0xff]
                  %532 = vst [vmem:[%s400 + $0x208] sm:$0xff] %v531
                  %v533 = vld [vmem:[%s399 + $0x390] sm:$0xff]
                  %534 = vst [vmem:[%s400 + $0x210] sm:$0xff] %v533
                  %v535 = vld [vmem:[%s399 + $0x398] sm:$0xff]
                  %536 = vst [vmem:[%s400 + $0x218] sm:$0xff] %v535
                  %v537 = vld [vmem:[%s399 + $0x3a0] sm:$0xff]
                  %538 = vst [vmem:[%s400 + $0x220] sm:$0xff] %v537
                  %v539 = vld [vmem:[%s399 + $0x3a8] sm:$0xff]
                  %540 = vst [vmem:[%s400 + $0x228] sm:$0xff] %v539
                  %v541 = vld [vmem:[%s399 + $0x3b0] sm:$0xff]
                  %542 = vst [vmem:[%s400 + $0x230] sm:$0xff] %v541
                  %v543 = vld [vmem:[%s399 + $0x3b8] sm:$0xff]
                  %544 = vst [vmem:[%s400 + $0x238] sm:$0xff] %v543
                $region64: #{bottleneck_forward.11} parent=58 // loop_footer
                  %s398 = sadd.s32 1, %s394
                $region65: #{bottleneck_forward.11} parent=58 // loop_footer_branch
                  %393 = sbr.rel target = $region61
                $region66: #{bottleneck_forward.11} parent=58 // loop_exit
                  _
              $region59: #{bottleneck_forward.11} parent=43 // pred_fallthru
                _
              // Predicated region
              $region67: #{bottleneck_forward.11} parent=43 // pred_check
                _
              $region68: #{bottleneck_forward.11} parent=43 // pred_check_branch
                %546 = sbr.rel target = $region70
              $region69: #{bottleneck_forward.11} parent=43 // pred_region
                _
              $region70: #{bottleneck_forward.11} parent=43 // pred_fallthru
                _
            $region44: #{bottleneck_forward.11} parent=39 // pred_fallthru
              _
            // Predicated region
            $region45: #{bottleneck_forward.11} parent=39 // pred_check
              _
            $region46: #{bottleneck_forward.11} parent=39 // pred_check_branch
              %237 = sbr.rel target = $region48
            $region47: #{bottleneck_forward.11} parent=39 // pred_region
              loop: start=0, step=1, limit=1
              $region49: #{bottleneck_forward.11} parent=47 // loop_pre_header
                _
              $region50: #{bottleneck_forward.11} parent=47 // loop_header
                %s240 = sphi 0, %s244
                %p241 = scmp.ge.s32.totalorder %s240, 1
                %s245 = sphi %s231, %s231
                %s246 = sphi %s227, %s227
              $region51: #{bottleneck_forward.11} parent=47 // loop_header_branch
                %243 = sbr.rel (%p241) target = $region55
              $region52: #{bottleneck_forward.11} parent=47 // loop_body
                %v247 = vld [vmem:[%s245] sm:$0xff]
                %248 = vst [vmem:[%s246] sm:$0xff] %v247
                %v249 = vld [vmem:[%s245 + $0x8] sm:$0xff]
                %250 = vst [vmem:[%s246 + $0x8] sm:$0xff] %v249
                %v251 = vld [vmem:[%s245 + $0x10] sm:$0xff]
                %252 = vst [vmem:[%s246 + $0x10] sm:$0xff] %v251
                %v253 = vld [vmem:[%s245 + $0x18] sm:$0xff]
                %254 = vst [vmem:[%s246 + $0x18] sm:$0xff] %v253
                %v255 = vld [vmem:[%s245 + $0x20] sm:$0xff]
                %256 = vst [vmem:[%s246 + $0x20] sm:$0xff] %v255
                %v257 = vld [vmem:[%s245 + $0x28] sm:$0xff]
                %258 = vst [vmem:[%s246 + $0x28] sm:$0xff] %v257
                %v259 = vld [vmem:[%s245 + $0x30] sm:$0xff]
                %260 = vst [vmem:[%s246 + $0x30] sm:$0xff] %v259
                %v261 = vld [vmem:[%s245 + $0x38] sm:$0xff]
                %262 = vst [vmem:[%s246 + $0x38] sm:$0xff] %v261
                %v263 = vld [vmem:[%s245 + $0x40] sm:$0xff]
                %264 = vst [vmem:[%s246 + $0x40] sm:$0xff] %v263
                %v265 = vld [vmem:[%s245 + $0x48] sm:$0xff]
                %266 = vst [vmem:[%s246 + $0x48] sm:$0xff] %v265
                %v267 = vld [vmem:[%s245 + $0x50] sm:$0xff]
                %268 = vst [vmem:[%s246 + $0x50] sm:$0xff] %v267
                %v269 = vld [vmem:[%s245 + $0x58] sm:$0xff]
                %270 = vst [vmem:[%s246 + $0x58] sm:$0xff] %v269
                %v271 = vld [vmem:[%s245 + $0x60] sm:$0xff]
                %272 = vst [vmem:[%s246 + $0x60] sm:$0xff] %v271
                %v273 = vld [vmem:[%s245 + $0x68] sm:$0xff]
                %274 = vst [vmem:[%s246 + $0x68] sm:$0xff] %v273
                %v275 = vld [vmem:[%s245 + $0x70] sm:$0xff]
                %276 = vst [vmem:[%s246 + $0x70] sm:$0xff] %v275
                %v277 = vld [vmem:[%s245 + $0x78] sm:$0xff]
                %278 = vst [vmem:[%s246 + $0x78] sm:$0xff] %v277
                %v279 = vld [vmem:[%s245 + $0x80] sm:$0xff]
                %280 = vst [vmem:[%s246 + $0x80] sm:$0xff] %v279
                %v281 = vld [vmem:[%s245 + $0x88] sm:$0xff]
                %282 = vst [vmem:[%s246 + $0x88] sm:$0xff] %v281
                %v283 = vld [vmem:[%s245 + $0x90] sm:$0xff]
                %284 = vst [vmem:[%s246 + $0x90] sm:$0xff] %v283
                %v285 = vld [vmem:[%s245 + $0x98] sm:$0xff]
                %286 = vst [vmem:[%s246 + $0x98] sm:$0xff] %v285
                %v287 = vld [vmem:[%s245 + $0xa0] sm:$0xff]
                %288 = vst [vmem:[%s246 + $0xa0] sm:$0xff] %v287
                %v289 = vld [vmem:[%s245 + $0xa8] sm:$0xff]
                %290 = vst [vmem:[%s246 + $0xa8] sm:$0xff] %v289
                %v291 = vld [vmem:[%s245 + $0xb0] sm:$0xff]
                %292 = vst [vmem:[%s246 + $0xb0] sm:$0xff] %v291
                %v293 = vld [vmem:[%s245 + $0xb8] sm:$0xff]
                %294 = vst [vmem:[%s246 + $0xb8] sm:$0xff] %v293
                %v295 = vld [vmem:[%s245 + $0x180] sm:$0xff]
                %296 = vst [vmem:[%s246 + $0xc0] sm:$0xff] %v295
                %v297 = vld [vmem:[%s245 + $0x188] sm:$0xff]
                %298 = vst [vmem:[%s246 + $0xc8] sm:$0xff] %v297
                %v299 = vld [vmem:[%s245 + $0x190] sm:$0xff]
                %300 = vst [vmem:[%s246 + $0xd0] sm:$0xff] %v299
                %v301 = vld [vmem:[%s245 + $0x198] sm:$0xff]
                %302 = vst [vmem:[%s246 + $0xd8] sm:$0xff] %v301
                %v303 = vld [vmem:[%s245 + $0x1a0] sm:$0xff]
                %304 = vst [vmem:[%s246 + $0xe0] sm:$0xff] %v303
                %v305 = vld [vmem:[%s245 + $0x1a8] sm:$0xff]
                %306 = vst [vmem:[%s246 + $0xe8] sm:$0xff] %v305
                %v307 = vld [vmem:[%s245 + $0x1b0] sm:$0xff]
                %308 = vst [vmem:[%s246 + $0xf0] sm:$0xff] %v307
                %v309 = vld [vmem:[%s245 + $0x1b8] sm:$0xff]
                %310 = vst [vmem:[%s246 + $0xf8] sm:$0xff] %v309
                %v311 = vld [vmem:[%s245 + $0x1c0] sm:$0xff]
                %312 = vst [vmem:[%s246 + $0x100] sm:$0xff] %v311
                %v313 = vld [vmem:[%s245 + $0x1c8] sm:$0xff]
                %314 = vst [vmem:[%s246 + $0x108] sm:$0xff] %v313
                %v315 = vld [vmem:[%s245 + $0x1d0] sm:$0xff]
                %316 = vst [vmem:[%s246 + $0x110] sm:$0xff] %v315
                %v317 = vld [vmem:[%s245 + $0x1d8] sm:$0xff]
                %318 = vst [vmem:[%s246 + $0x118] sm:$0xff] %v317
                %v319 = vld [vmem:[%s245 + $0x1e0] sm:$0xff]
                %320 = vst [vmem:[%s246 + $0x120] sm:$0xff] %v319
                %v321 = vld [vmem:[%s245 + $0x1e8] sm:$0xff]
                %322 = vst [vmem:[%s246 + $0x128] sm:$0xff] %v321
                %v323 = vld [vmem:[%s245 + $0x1f0] sm:$0xff]
                %324 = vst [vmem:[%s246 + $0x130] sm:$0xff] %v323
                %v325 = vld [vmem:[%s245 + $0x1f8] sm:$0xff]
                %326 = vst [vmem:[%s246 + $0x138] sm:$0xff] %v325
                %v327 = vld [vmem:[%s245 + $0x200] sm:$0xff]
                %328 = vst [vmem:[%s246 + $0x140] sm:$0xff] %v327
                %v329 = vld [vmem:[%s245 + $0x208] sm:$0xff]
                %330 = vst [vmem:[%s246 + $0x148] sm:$0xff] %v329
                %v331 = vld [vmem:[%s245 + $0x210] sm:$0xff]
                %332 = vst [vmem:[%s246 + $0x150] sm:$0xff] %v331
                %v333 = vld [vmem:[%s245 + $0x218] sm:$0xff]
                %334 = vst [vmem:[%s246 + $0x158] sm:$0xff] %v333
                %v335 = vld [vmem:[%s245 + $0x220] sm:$0xff]
                %336 = vst [vmem:[%s246 + $0x160] sm:$0xff] %v335
                %v337 = vld [vmem:[%s245 + $0x228] sm:$0xff]
                %338 = vst [vmem:[%s246 + $0x168] sm:$0xff] %v337
                %v339 = vld [vmem:[%s245 + $0x230] sm:$0xff]
                %340 = vst [vmem:[%s246 + $0x170] sm:$0xff] %v339
                %v341 = vld [vmem:[%s245 + $0x238] sm:$0xff]
                %342 = vst [vmem:[%s246 + $0x178] sm:$0xff] %v341
                %v343 = vld [vmem:[%s245 + $0x300] sm:$0xff]
                %344 = vst [vmem:[%s246 + $0x180] sm:$0xff] %v343
                %v345 = vld [vmem:[%s245 + $0x308] sm:$0xff]
                %346 = vst [vmem:[%s246 + $0x188] sm:$0xff] %v345
                %v347 = vld [vmem:[%s245 + $0x310] sm:$0xff]
                %348 = vst [vmem:[%s246 + $0x190] sm:$0xff] %v347
                %v349 = vld [vmem:[%s245 + $0x318] sm:$0xff]
                %350 = vst [vmem:[%s246 + $0x198] sm:$0xff] %v349
                %v351 = vld [vmem:[%s245 + $0x320] sm:$0xff]
                %352 = vst [vmem:[%s246 + $0x1a0] sm:$0xff] %v351
                %v353 = vld [vmem:[%s245 + $0x328] sm:$0xff]
                %354 = vst [vmem:[%s246 + $0x1a8] sm:$0xff] %v353
                %v355 = vld [vmem:[%s245 + $0x330] sm:$0xff]
                %356 = vst [vmem:[%s246 + $0x1b0] sm:$0xff] %v355
                %v357 = vld [vmem:[%s245 + $0x338] sm:$0xff]
                %358 = vst [vmem:[%s246 + $0x1b8] sm:$0xff] %v357
                %v359 = vld [vmem:[%s245 + $0x340] sm:$0xff]
                %360 = vst [vmem:[%s246 + $0x1c0] sm:$0xff] %v359
                %v361 = vld [vmem:[%s245 + $0x348] sm:$0xff]
                %362 = vst [vmem:[%s246 + $0x1c8] sm:$0xff] %v361
                %v363 = vld [vmem:[%s245 + $0x350] sm:$0xff]
                %364 = vst [vmem:[%s246 + $0x1d0] sm:$0xff] %v363
                %v365 = vld [vmem:[%s245 + $0x358] sm:$0xff]
                %366 = vst [vmem:[%s246 + $0x1d8] sm:$0xff] %v365
                %v367 = vld [vmem:[%s245 + $0x360] sm:$0xff]
                %368 = vst [vmem:[%s246 + $0x1e0] sm:$0xff] %v367
                %v369 = vld [vmem:[%s245 + $0x368] sm:$0xff]
                %370 = vst [vmem:[%s246 + $0x1e8] sm:$0xff] %v369
                %v371 = vld [vmem:[%s245 + $0x370] sm:$0xff]
                %372 = vst [vmem:[%s246 + $0x1f0] sm:$0xff] %v371
                %v373 = vld [vmem:[%s245 + $0x378] sm:$0xff]
                %374 = vst [vmem:[%s246 + $0x1f8] sm:$0xff] %v373
                %v375 = vld [vmem:[%s245 + $0x380] sm:$0xff]
                %376 = vst [vmem:[%s246 + $0x200] sm:$0xff] %v375
                %v377 = vld [vmem:[%s245 + $0x388] sm:$0xff]
                %378 = vst [vmem:[%s246 + $0x208] sm:$0xff] %v377
                %v379 = vld [vmem:[%s245 + $0x390] sm:$0xff]
                %380 = vst [vmem:[%s246 + $0x210] sm:$0xff] %v379
                %v381 = vld [vmem:[%s245 + $0x398] sm:$0xff]
                %382 = vst [vmem:[%s246 + $0x218] sm:$0xff] %v381
                %v383 = vld [vmem:[%s245 + $0x3a0] sm:$0xff]
                %384 = vst [vmem:[%s246 + $0x220] sm:$0xff] %v383
                %v385 = vld [vmem:[%s245 + $0x3a8] sm:$0xff]
                %386 = vst [vmem:[%s246 + $0x228] sm:$0xff] %v385
                %v387 = vld [vmem:[%s245 + $0x3b0] sm:$0xff]
                %388 = vst [vmem:[%s246 + $0x230] sm:$0xff] %v387
                %v389 = vld [vmem:[%s245 + $0x3b8] sm:$0xff]
                %390 = vst [vmem:[%s246 + $0x238] sm:$0xff] %v389
              $region53: #{bottleneck_forward.11} parent=47 // loop_footer
                %s244 = sadd.s32 1, %s240
              $region54: #{bottleneck_forward.11} parent=47 // loop_footer_branch
                %239 = sbr.rel target = $region50
              $region55: #{bottleneck_forward.11} parent=47 // loop_exit
                _
            $region48: #{bottleneck_forward.11} parent=39 // pred_fallthru
              _
          $region40: #{bottleneck_forward.11} parent=35 // pred_fallthru
            _
          %547 = vnop
        $region36: #{bottleneck_forward.11} parent=31 // pred_fallthru
          _
        // Predicated region
        $region71: #{bottleneck_forward.11} parent=31 // pred_check
          %p548 = pneg %p114
        $region72: #{bottleneck_forward.11} parent=31 // pred_check_branch
          %550 = sbr.rel (%p548) target = $region74
        $region73: #{bottleneck_forward.11} parent=31 // pred_region
          %s551 = sand.u32 %s104, 1
          %s552 = sand.u32 %s104, 1
          %s553 = smul.addr %s552, 576
          %s554 = scalar_lea.vmem [#allocation3], %s553
          %s555 = smul.u32 3, %s19
          %s556 = smul.u32 8, %s20
          %s557 = smul.addr %s556, 3
          %s558 = smul.addr %s555, 48
          %s559 = sadd.s32 %s557, %s558
          %s560 = smul.addr %s559, 8
          %s561 = scalar_lea.vmem %s3, %s560
          // Predicated region
          $region75: #{bottleneck_forward.11} parent=73 // pred_check
            _
          $region76: #{bottleneck_forward.11} parent=73 // pred_check_branch
            %563 = sbr.rel (0) target = $region78
          $region77: #{bottleneck_forward.11} parent=73 // pred_region
            // Predicated region
            $region79: #{bottleneck_forward.11} parent=77 // pred_check
              _
            $region80: #{bottleneck_forward.11} parent=77 // pred_check_branch
              %565 = sbr.rel (0) target = $region82
            $region81: #{bottleneck_forward.11} parent=77 // pred_region
              // Predicated region
              $region94: #{bottleneck_forward.11} parent=81 // pred_check
                _
              $region95: #{bottleneck_forward.11} parent=81 // pred_check_branch
                %722 = sbr.rel (0) target = $region97
              $region96: #{bottleneck_forward.11} parent=81 // pred_region
                loop: start=0, step=1, limit=1
                $region98: #{bottleneck_forward.11} parent=96 // loop_pre_header
                  _
                $region99: #{bottleneck_forward.11} parent=96 // loop_header
                  %s724 = sphi 0, %s728
                  %p725 = scmp.ge.s32.totalorder %s724, 1
                  %s729 = sphi %s561, %s561
                  %s730 = sphi %s554, %s554
                $region100: #{bottleneck_forward.11} parent=96 // loop_header_branch
                  %727 = sbr.rel (%p725) target = $region104
                $region101: #{bottleneck_forward.11} parent=96 // loop_body
                  %v731 = vld [vmem:[%s729] sm:$0xff]
                  %732 = vst [vmem:[%s730] sm:$0xff] %v731
                  %v733 = vld [vmem:[%s729 + $0x8] sm:$0xff]
                  %734 = vst [vmem:[%s730 + $0x8] sm:$0xff] %v733
                  %v735 = vld [vmem:[%s729 + $0x10] sm:$0xff]
                  %736 = vst [vmem:[%s730 + $0x10] sm:$0xff] %v735
                  %v737 = vld [vmem:[%s729 + $0x18] sm:$0xff]
                  %738 = vst [vmem:[%s730 + $0x18] sm:$0xff] %v737
                  %v739 = vld [vmem:[%s729 + $0x20] sm:$0xff]
                  %740 = vst [vmem:[%s730 + $0x20] sm:$0xff] %v739
                  %v741 = vld [vmem:[%s729 + $0x28] sm:$0xff]
                  %742 = vst [vmem:[%s730 + $0x28] sm:$0xff] %v741
                  %v743 = vld [vmem:[%s729 + $0x30] sm:$0xff]
                  %744 = vst [vmem:[%s730 + $0x30] sm:$0xff] %v743
                  %v745 = vld [vmem:[%s729 + $0x38] sm:$0xff]
                  %746 = vst [vmem:[%s730 + $0x38] sm:$0xff] %v745
                  %v747 = vld [vmem:[%s729 + $0x40] sm:$0xff]
                  %748 = vst [vmem:[%s730 + $0x40] sm:$0xff] %v747
                  %v749 = vld [vmem:[%s729 + $0x48] sm:$0xff]
                  %750 = vst [vmem:[%s730 + $0x48] sm:$0xff] %v749
                  %v751 = vld [vmem:[%s729 + $0x50] sm:$0xff]
                  %752 = vst [vmem:[%s730 + $0x50] sm:$0xff] %v751
                  %v753 = vld [vmem:[%s729 + $0x58] sm:$0xff]
                  %754 = vst [vmem:[%s730 + $0x58] sm:$0xff] %v753
                  %v755 = vld [vmem:[%s729 + $0x60] sm:$0xff]
                  %756 = vst [vmem:[%s730 + $0x60] sm:$0xff] %v755
                  %v757 = vld [vmem:[%s729 + $0x68] sm:$0xff]
                  %758 = vst [vmem:[%s730 + $0x68] sm:$0xff] %v757
                  %v759 = vld [vmem:[%s729 + $0x70] sm:$0xff]
                  %760 = vst [vmem:[%s730 + $0x70] sm:$0xff] %v759
                  %v761 = vld [vmem:[%s729 + $0x78] sm:$0xff]
                  %762 = vst [vmem:[%s730 + $0x78] sm:$0xff] %v761
                  %v763 = vld [vmem:[%s729 + $0x80] sm:$0xff]
                  %764 = vst [vmem:[%s730 + $0x80] sm:$0xff] %v763
                  %v765 = vld [vmem:[%s729 + $0x88] sm:$0xff]
                  %766 = vst [vmem:[%s730 + $0x88] sm:$0xff] %v765
                  %v767 = vld [vmem:[%s729 + $0x90] sm:$0xff]
                  %768 = vst [vmem:[%s730 + $0x90] sm:$0xff] %v767
                  %v769 = vld [vmem:[%s729 + $0x98] sm:$0xff]
                  %770 = vst [vmem:[%s730 + $0x98] sm:$0xff] %v769
                  %v771 = vld [vmem:[%s729 + $0xa0] sm:$0xff]
                  %772 = vst [vmem:[%s730 + $0xa0] sm:$0xff] %v771
                  %v773 = vld [vmem:[%s729 + $0xa8] sm:$0xff]
                  %774 = vst [vmem:[%s730 + $0xa8] sm:$0xff] %v773
                  %v775 = vld [vmem:[%s729 + $0xb0] sm:$0xff]
                  %776 = vst [vmem:[%s730 + $0xb0] sm:$0xff] %v775
                  %v777 = vld [vmem:[%s729 + $0xb8] sm:$0xff]
                  %778 = vst [vmem:[%s730 + $0xb8] sm:$0xff] %v777
                  %v779 = vld [vmem:[%s729 + $0x180] sm:$0xff]
                  %780 = vst [vmem:[%s730 + $0xc0] sm:$0xff] %v779
                  %v781 = vld [vmem:[%s729 + $0x188] sm:$0xff]
                  %782 = vst [vmem:[%s730 + $0xc8] sm:$0xff] %v781
                  %v783 = vld [vmem:[%s729 + $0x190] sm:$0xff]
                  %784 = vst [vmem:[%s730 + $0xd0] sm:$0xff] %v783
                  %v785 = vld [vmem:[%s729 + $0x198] sm:$0xff]
                  %786 = vst [vmem:[%s730 + $0xd8] sm:$0xff] %v785
                  %v787 = vld [vmem:[%s729 + $0x1a0] sm:$0xff]
                  %788 = vst [vmem:[%s730 + $0xe0] sm:$0xff] %v787
                  %v789 = vld [vmem:[%s729 + $0x1a8] sm:$0xff]
                  %790 = vst [vmem:[%s730 + $0xe8] sm:$0xff] %v789
                  %v791 = vld [vmem:[%s729 + $0x1b0] sm:$0xff]
                  %792 = vst [vmem:[%s730 + $0xf0] sm:$0xff] %v791
                  %v793 = vld [vmem:[%s729 + $0x1b8] sm:$0xff]
                  %794 = vst [vmem:[%s730 + $0xf8] sm:$0xff] %v793
                  %v795 = vld [vmem:[%s729 + $0x1c0] sm:$0xff]
                  %796 = vst [vmem:[%s730 + $0x100] sm:$0xff] %v795
                  %v797 = vld [vmem:[%s729 + $0x1c8] sm:$0xff]
                  %798 = vst [vmem:[%s730 + $0x108] sm:$0xff] %v797
                  %v799 = vld [vmem:[%s729 + $0x1d0] sm:$0xff]
                  %800 = vst [vmem:[%s730 + $0x110] sm:$0xff] %v799
                  %v801 = vld [vmem:[%s729 + $0x1d8] sm:$0xff]
                  %802 = vst [vmem:[%s730 + $0x118] sm:$0xff] %v801
                  %v803 = vld [vmem:[%s729 + $0x1e0] sm:$0xff]
                  %804 = vst [vmem:[%s730 + $0x120] sm:$0xff] %v803
                  %v805 = vld [vmem:[%s729 + $0x1e8] sm:$0xff]
                  %806 = vst [vmem:[%s730 + $0x128] sm:$0xff] %v805
                  %v807 = vld [vmem:[%s729 + $0x1f0] sm:$0xff]
                  %808 = vst [vmem:[%s730 + $0x130] sm:$0xff] %v807
                  %v809 = vld [vmem:[%s729 + $0x1f8] sm:$0xff]
                  %810 = vst [vmem:[%s730 + $0x138] sm:$0xff] %v809
                  %v811 = vld [vmem:[%s729 + $0x200] sm:$0xff]
                  %812 = vst [vmem:[%s730 + $0x140] sm:$0xff] %v811
                  %v813 = vld [vmem:[%s729 + $0x208] sm:$0xff]
                  %814 = vst [vmem:[%s730 + $0x148] sm:$0xff] %v813
                  %v815 = vld [vmem:[%s729 + $0x210] sm:$0xff]
                  %816 = vst [vmem:[%s730 + $0x150] sm:$0xff] %v815
                  %v817 = vld [vmem:[%s729 + $0x218] sm:$0xff]
                  %818 = vst [vmem:[%s730 + $0x158] sm:$0xff] %v817
                  %v819 = vld [vmem:[%s729 + $0x220] sm:$0xff]
                  %820 = vst [vmem:[%s730 + $0x160] sm:$0xff] %v819
                  %v821 = vld [vmem:[%s729 + $0x228] sm:$0xff]
                  %822 = vst [vmem:[%s730 + $0x168] sm:$0xff] %v821
                  %v823 = vld [vmem:[%s729 + $0x230] sm:$0xff]
                  %824 = vst [vmem:[%s730 + $0x170] sm:$0xff] %v823
                  %v825 = vld [vmem:[%s729 + $0x238] sm:$0xff]
                  %826 = vst [vmem:[%s730 + $0x178] sm:$0xff] %v825
                  %v827 = vld [vmem:[%s729 + $0x300] sm:$0xff]
                  %828 = vst [vmem:[%s730 + $0x180] sm:$0xff] %v827
                  %v829 = vld [vmem:[%s729 + $0x308] sm:$0xff]
                  %830 = vst [vmem:[%s730 + $0x188] sm:$0xff] %v829
                  %v831 = vld [vmem:[%s729 + $0x310] sm:$0xff]
                  %832 = vst [vmem:[%s730 + $0x190] sm:$0xff] %v831
                  %v833 = vld [vmem:[%s729 + $0x318] sm:$0xff]
                  %834 = vst [vmem:[%s730 + $0x198] sm:$0xff] %v833
                  %v835 = vld [vmem:[%s729 + $0x320] sm:$0xff]
                  %836 = vst [vmem:[%s730 + $0x1a0] sm:$0xff] %v835
                  %v837 = vld [vmem:[%s729 + $0x328] sm:$0xff]
                  %838 = vst [vmem:[%s730 + $0x1a8] sm:$0xff] %v837
                  %v839 = vld [vmem:[%s729 + $0x330] sm:$0xff]
                  %840 = vst [vmem:[%s730 + $0x1b0] sm:$0xff] %v839
                  %v841 = vld [vmem:[%s729 + $0x338] sm:$0xff]
                  %842 = vst [vmem:[%s730 + $0x1b8] sm:$0xff] %v841
                  %v843 = vld [vmem:[%s729 + $0x340] sm:$0xff]
                  %844 = vst [vmem:[%s730 + $0x1c0] sm:$0xff] %v843
                  %v845 = vld [vmem:[%s729 + $0x348] sm:$0xff]
                  %846 = vst [vmem:[%s730 + $0x1c8] sm:$0xff] %v845
                  %v847 = vld [vmem:[%s729 + $0x350] sm:$0xff]
                  %848 = vst [vmem:[%s730 + $0x1d0] sm:$0xff] %v847
                  %v849 = vld [vmem:[%s729 + $0x358] sm:$0xff]
                  %850 = vst [vmem:[%s730 + $0x1d8] sm:$0xff] %v849
                  %v851 = vld [vmem:[%s729 + $0x360] sm:$0xff]
                  %852 = vst [vmem:[%s730 + $0x1e0] sm:$0xff] %v851
                  %v853 = vld [vmem:[%s729 + $0x368] sm:$0xff]
                  %854 = vst [vmem:[%s730 + $0x1e8] sm:$0xff] %v853
                  %v855 = vld [vmem:[%s729 + $0x370] sm:$0xff]
                  %856 = vst [vmem:[%s730 + $0x1f0] sm:$0xff] %v855
                  %v857 = vld [vmem:[%s729 + $0x378] sm:$0xff]
                  %858 = vst [vmem:[%s730 + $0x1f8] sm:$0xff] %v857
                  %v859 = vld [vmem:[%s729 + $0x380] sm:$0xff]
                  %860 = vst [vmem:[%s730 + $0x200] sm:$0xff] %v859
                  %v861 = vld [vmem:[%s729 + $0x388] sm:$0xff]
                  %862 = vst [vmem:[%s730 + $0x208] sm:$0xff] %v861
                  %v863 = vld [vmem:[%s729 + $0x390] sm:$0xff]
                  %864 = vst [vmem:[%s730 + $0x210] sm:$0xff] %v863
                  %v865 = vld [vmem:[%s729 + $0x398] sm:$0xff]
                  %866 = vst [vmem:[%s730 + $0x218] sm:$0xff] %v865
                  %v867 = vld [vmem:[%s729 + $0x3a0] sm:$0xff]
                  %868 = vst [vmem:[%s730 + $0x220] sm:$0xff] %v867
                  %v869 = vld [vmem:[%s729 + $0x3a8] sm:$0xff]
                  %870 = vst [vmem:[%s730 + $0x228] sm:$0xff] %v869
                  %v871 = vld [vmem:[%s729 + $0x3b0] sm:$0xff]
                  %872 = vst [vmem:[%s730 + $0x230] sm:$0xff] %v871
                  %v873 = vld [vmem:[%s729 + $0x3b8] sm:$0xff]
                  %874 = vst [vmem:[%s730 + $0x238] sm:$0xff] %v873
                $region102: #{bottleneck_forward.11} parent=96 // loop_footer
                  %s728 = sadd.s32 1, %s724
                $region103: #{bottleneck_forward.11} parent=96 // loop_footer_branch
                  %723 = sbr.rel target = $region99
                $region104: #{bottleneck_forward.11} parent=96 // loop_exit
                  _
              $region97: #{bottleneck_forward.11} parent=81 // pred_fallthru
                _
              // Predicated region
              $region105: #{bottleneck_forward.11} parent=81 // pred_check
                _
              $region106: #{bottleneck_forward.11} parent=81 // pred_check_branch
                %876 = sbr.rel target = $region108
              $region107: #{bottleneck_forward.11} parent=81 // pred_region
                _
              $region108: #{bottleneck_forward.11} parent=81 // pred_fallthru
                _
            $region82: #{bottleneck_forward.11} parent=77 // pred_fallthru
              _
            // Predicated region
            $region83: #{bottleneck_forward.11} parent=77 // pred_check
              _
            $region84: #{bottleneck_forward.11} parent=77 // pred_check_branch
              %567 = sbr.rel target = $region86
            $region85: #{bottleneck_forward.11} parent=77 // pred_region
              loop: start=0, step=1, limit=1
              $region87: #{bottleneck_forward.11} parent=85 // loop_pre_header
                _
              $region88: #{bottleneck_forward.11} parent=85 // loop_header
                %s570 = sphi 0, %s574
                %p571 = scmp.ge.s32.totalorder %s570, 1
                %s575 = sphi %s561, %s561
                %s576 = sphi %s554, %s554
              $region89: #{bottleneck_forward.11} parent=85 // loop_header_branch
                %573 = sbr.rel (%p571) target = $region93
              $region90: #{bottleneck_forward.11} parent=85 // loop_body
                %v577 = vld [vmem:[%s575] sm:$0xff]
                %578 = vst [vmem:[%s576] sm:$0xff] %v577
                %v579 = vld [vmem:[%s575 + $0x8] sm:$0xff]
                %580 = vst [vmem:[%s576 + $0x8] sm:$0xff] %v579
                %v581 = vld [vmem:[%s575 + $0x10] sm:$0xff]
                %582 = vst [vmem:[%s576 + $0x10] sm:$0xff] %v581
                %v583 = vld [vmem:[%s575 + $0x18] sm:$0xff]
                %584 = vst [vmem:[%s576 + $0x18] sm:$0xff] %v583
                %v585 = vld [vmem:[%s575 + $0x20] sm:$0xff]
                %586 = vst [vmem:[%s576 + $0x20] sm:$0xff] %v585
                %v587 = vld [vmem:[%s575 + $0x28] sm:$0xff]
                %588 = vst [vmem:[%s576 + $0x28] sm:$0xff] %v587
                %v589 = vld [vmem:[%s575 + $0x30] sm:$0xff]
                %590 = vst [vmem:[%s576 + $0x30] sm:$0xff] %v589
                %v591 = vld [vmem:[%s575 + $0x38] sm:$0xff]
                %592 = vst [vmem:[%s576 + $0x38] sm:$0xff] %v591
                %v593 = vld [vmem:[%s575 + $0x40] sm:$0xff]
                %594 = vst [vmem:[%s576 + $0x40] sm:$0xff] %v593
                %v595 = vld [vmem:[%s575 + $0x48] sm:$0xff]
                %596 = vst [vmem:[%s576 + $0x48] sm:$0xff] %v595
                %v597 = vld [vmem:[%s575 + $0x50] sm:$0xff]
                %598 = vst [vmem:[%s576 + $0x50] sm:$0xff] %v597
                %v599 = vld [vmem:[%s575 + $0x58] sm:$0xff]
                %600 = vst [vmem:[%s576 + $0x58] sm:$0xff] %v599
                %v601 = vld [vmem:[%s575 + $0x60] sm:$0xff]
                %602 = vst [vmem:[%s576 + $0x60] sm:$0xff] %v601
                %v603 = vld [vmem:[%s575 + $0x68] sm:$0xff]
                %604 = vst [vmem:[%s576 + $0x68] sm:$0xff] %v603
                %v605 = vld [vmem:[%s575 + $0x70] sm:$0xff]
                %606 = vst [vmem:[%s576 + $0x70] sm:$0xff] %v605
                %v607 = vld [vmem:[%s575 + $0x78] sm:$0xff]
                %608 = vst [vmem:[%s576 + $0x78] sm:$0xff] %v607
                %v609 = vld [vmem:[%s575 + $0x80] sm:$0xff]
                %610 = vst [vmem:[%s576 + $0x80] sm:$0xff] %v609
                %v611 = vld [vmem:[%s575 + $0x88] sm:$0xff]
                %612 = vst [vmem:[%s576 + $0x88] sm:$0xff] %v611
                %v613 = vld [vmem:[%s575 + $0x90] sm:$0xff]
                %614 = vst [vmem:[%s576 + $0x90] sm:$0xff] %v613
                %v615 = vld [vmem:[%s575 + $0x98] sm:$0xff]
                %616 = vst [vmem:[%s576 + $0x98] sm:$0xff] %v615
                %v617 = vld [vmem:[%s575 + $0xa0] sm:$0xff]
                %618 = vst [vmem:[%s576 + $0xa0] sm:$0xff] %v617
                %v619 = vld [vmem:[%s575 + $0xa8] sm:$0xff]
                %620 = vst [vmem:[%s576 + $0xa8] sm:$0xff] %v619
                %v621 = vld [vmem:[%s575 + $0xb0] sm:$0xff]
                %622 = vst [vmem:[%s576 + $0xb0] sm:$0xff] %v621
                %v623 = vld [vmem:[%s575 + $0xb8] sm:$0xff]
                %624 = vst [vmem:[%s576 + $0xb8] sm:$0xff] %v623
                %v625 = vld [vmem:[%s575 + $0x180] sm:$0xff]
                %626 = vst [vmem:[%s576 + $0xc0] sm:$0xff] %v625
                %v627 = vld [vmem:[%s575 + $0x188] sm:$0xff]
                %628 = vst [vmem:[%s576 + $0xc8] sm:$0xff] %v627
                %v629 = vld [vmem:[%s575 + $0x190] sm:$0xff]
                %630 = vst [vmem:[%s576 + $0xd0] sm:$0xff] %v629
                %v631 = vld [vmem:[%s575 + $0x198] sm:$0xff]
                %632 = vst [vmem:[%s576 + $0xd8] sm:$0xff] %v631
                %v633 = vld [vmem:[%s575 + $0x1a0] sm:$0xff]
                %634 = vst [vmem:[%s576 + $0xe0] sm:$0xff] %v633
                %v635 = vld [vmem:[%s575 + $0x1a8] sm:$0xff]
                %636 = vst [vmem:[%s576 + $0xe8] sm:$0xff] %v635
                %v637 = vld [vmem:[%s575 + $0x1b0] sm:$0xff]
                %638 = vst [vmem:[%s576 + $0xf0] sm:$0xff] %v637
                %v639 = vld [vmem:[%s575 + $0x1b8] sm:$0xff]
                %640 = vst [vmem:[%s576 + $0xf8] sm:$0xff] %v639
                %v641 = vld [vmem:[%s575 + $0x1c0] sm:$0xff]
                %642 = vst [vmem:[%s576 + $0x100] sm:$0xff] %v641
                %v643 = vld [vmem:[%s575 + $0x1c8] sm:$0xff]
                %644 = vst [vmem:[%s576 + $0x108] sm:$0xff] %v643
                %v645 = vld [vmem:[%s575 + $0x1d0] sm:$0xff]
                %646 = vst [vmem:[%s576 + $0x110] sm:$0xff] %v645
                %v647 = vld [vmem:[%s575 + $0x1d8] sm:$0xff]
                %648 = vst [vmem:[%s576 + $0x118] sm:$0xff] %v647
                %v649 = vld [vmem:[%s575 + $0x1e0] sm:$0xff]
                %650 = vst [vmem:[%s576 + $0x120] sm:$0xff] %v649
                %v651 = vld [vmem:[%s575 + $0x1e8] sm:$0xff]
                %652 = vst [vmem:[%s576 + $0x128] sm:$0xff] %v651
                %v653 = vld [vmem:[%s575 + $0x1f0] sm:$0xff]
                %654 = vst [vmem:[%s576 + $0x130] sm:$0xff] %v653
                %v655 = vld [vmem:[%s575 + $0x1f8] sm:$0xff]
                %656 = vst [vmem:[%s576 + $0x138] sm:$0xff] %v655
                %v657 = vld [vmem:[%s575 + $0x200] sm:$0xff]
                %658 = vst [vmem:[%s576 + $0x140] sm:$0xff] %v657
                %v659 = vld [vmem:[%s575 + $0x208] sm:$0xff]
                %660 = vst [vmem:[%s576 + $0x148] sm:$0xff] %v659
                %v661 = vld [vmem:[%s575 + $0x210] sm:$0xff]
                %662 = vst [vmem:[%s576 + $0x150] sm:$0xff] %v661
                %v663 = vld [vmem:[%s575 + $0x218] sm:$0xff]
                %664 = vst [vmem:[%s576 + $0x158] sm:$0xff] %v663
                %v665 = vld [vmem:[%s575 + $0x220] sm:$0xff]
                %666 = vst [vmem:[%s576 + $0x160] sm:$0xff] %v665
                %v667 = vld [vmem:[%s575 + $0x228] sm:$0xff]
                %668 = vst [vmem:[%s576 + $0x168] sm:$0xff] %v667
                %v669 = vld [vmem:[%s575 + $0x230] sm:$0xff]
                %670 = vst [vmem:[%s576 + $0x170] sm:$0xff] %v669
                %v671 = vld [vmem:[%s575 + $0x238] sm:$0xff]
                %672 = vst [vmem:[%s576 + $0x178] sm:$0xff] %v671
                %v673 = vld [vmem:[%s575 + $0x300] sm:$0xff]
                %674 = vst [vmem:[%s576 + $0x180] sm:$0xff] %v673
                %v675 = vld [vmem:[%s575 + $0x308] sm:$0xff]
                %676 = vst [vmem:[%s576 + $0x188] sm:$0xff] %v675
                %v677 = vld [vmem:[%s575 + $0x310] sm:$0xff]
                %678 = vst [vmem:[%s576 + $0x190] sm:$0xff] %v677
                %v679 = vld [vmem:[%s575 + $0x318] sm:$0xff]
                %680 = vst [vmem:[%s576 + $0x198] sm:$0xff] %v679
                %v681 = vld [vmem:[%s575 + $0x320] sm:$0xff]
                %682 = vst [vmem:[%s576 + $0x1a0] sm:$0xff] %v681
                %v683 = vld [vmem:[%s575 + $0x328] sm:$0xff]
                %684 = vst [vmem:[%s576 + $0x1a8] sm:$0xff] %v683
                %v685 = vld [vmem:[%s575 + $0x330] sm:$0xff]
                %686 = vst [vmem:[%s576 + $0x1b0] sm:$0xff] %v685
                %v687 = vld [vmem:[%s575 + $0x338] sm:$0xff]
                %688 = vst [vmem:[%s576 + $0x1b8] sm:$0xff] %v687
                %v689 = vld [vmem:[%s575 + $0x340] sm:$0xff]
                %690 = vst [vmem:[%s576 + $0x1c0] sm:$0xff] %v689
                %v691 = vld [vmem:[%s575 + $0x348] sm:$0xff]
                %692 = vst [vmem:[%s576 + $0x1c8] sm:$0xff] %v691
                %v693 = vld [vmem:[%s575 + $0x350] sm:$0xff]
                %694 = vst [vmem:[%s576 + $0x1d0] sm:$0xff] %v693
                %v695 = vld [vmem:[%s575 + $0x358] sm:$0xff]
                %696 = vst [vmem:[%s576 + $0x1d8] sm:$0xff] %v695
                %v697 = vld [vmem:[%s575 + $0x360] sm:$0xff]
                %698 = vst [vmem:[%s576 + $0x1e0] sm:$0xff] %v697
                %v699 = vld [vmem:[%s575 + $0x368] sm:$0xff]
                %700 = vst [vmem:[%s576 + $0x1e8] sm:$0xff] %v699
                %v701 = vld [vmem:[%s575 + $0x370] sm:$0xff]
                %702 = vst [vmem:[%s576 + $0x1f0] sm:$0xff] %v701
                %v703 = vld [vmem:[%s575 + $0x378] sm:$0xff]
                %704 = vst [vmem:[%s576 + $0x1f8] sm:$0xff] %v703
                %v705 = vld [vmem:[%s575 + $0x380] sm:$0xff]
                %706 = vst [vmem:[%s576 + $0x200] sm:$0xff] %v705
                %v707 = vld [vmem:[%s575 + $0x388] sm:$0xff]
                %708 = vst [vmem:[%s576 + $0x208] sm:$0xff] %v707
                %v709 = vld [vmem:[%s575 + $0x390] sm:$0xff]
                %710 = vst [vmem:[%s576 + $0x210] sm:$0xff] %v709
                %v711 = vld [vmem:[%s575 + $0x398] sm:$0xff]
                %712 = vst [vmem:[%s576 + $0x218] sm:$0xff] %v711
                %v713 = vld [vmem:[%s575 + $0x3a0] sm:$0xff]
                %714 = vst [vmem:[%s576 + $0x220] sm:$0xff] %v713
                %v715 = vld [vmem:[%s575 + $0x3a8] sm:$0xff]
                %716 = vst [vmem:[%s576 + $0x228] sm:$0xff] %v715
                %v717 = vld [vmem:[%s575 + $0x3b0] sm:$0xff]
                %718 = vst [vmem:[%s576 + $0x230] sm:$0xff] %v717
                %v719 = vld [vmem:[%s575 + $0x3b8] sm:$0xff]
                %720 = vst [vmem:[%s576 + $0x238] sm:$0xff] %v719
              $region91: #{bottleneck_forward.11} parent=85 // loop_footer
                %s574 = sadd.s32 1, %s570
              $region92: #{bottleneck_forward.11} parent=85 // loop_footer_branch
                %569 = sbr.rel target = $region88
              $region93: #{bottleneck_forward.11} parent=85 // loop_exit
                _
            $region86: #{bottleneck_forward.11} parent=77 // pred_fallthru
              _
          $region78: #{bottleneck_forward.11} parent=73 // pred_fallthru
            _
          %877 = vnop
        $region74: #{bottleneck_forward.11} parent=31 // pred_fallthru
          _
      $region32: #{bottleneck_forward.11} parent=5 // pred_fallthru
        _
      %p878 = scmp.le.s32.totalorder 1, %s12
      %p879 = scmp.lt.s32.totalorder %s12, 5
      %p880 = pnand %p878, %p879
      %p881 = pneg %p880
      // Predicated region
      $region109: #{bottleneck_forward.11} parent=5 // pred_check
        _
      $region110: #{bottleneck_forward.11} parent=5 // pred_check_branch
        %883 = sbr.rel (%p880) target = $region112
      $region111: #{bottleneck_forward.11} parent=5 // pred_region
        %s884 = ssub.s32 %s12, 1
        %s885 = sand.u32 %s79, 1
        %s886 = sand.u32 %s79, 1
        %s887 = smul.addr %s886, 576
        %s888 = scalar_lea.vmem [#allocation2], %s887
        // Predicated region
        $region113: #{bottleneck_forward.11} parent=111 // pred_check
          %p889 = pneg %p92
        $region114: #{bottleneck_forward.11} parent=111 // pred_check_branch
          %891 = sbr.rel (%p889) target = $region116
        $region115: #{bottleneck_forward.11} parent=111 // pred_region
          _
        $region116: #{bottleneck_forward.11} parent=111 // pred_fallthru
          _
        %s892 = sand.u32 %s107, 1
        %s893 = sand.u32 %s107, 1
        %s894 = smul.addr %s893, 576
        %s895 = scalar_lea.vmem [#allocation3], %s894
        // Predicated region
        $region117: #{bottleneck_forward.11} parent=111 // pred_check
          %p896 = pneg %p120
        $region118: #{bottleneck_forward.11} parent=111 // pred_check_branch
          %898 = sbr.rel (%p896) target = $region120
        $region119: #{bottleneck_forward.11} parent=111 // pred_region
          _
        $region120: #{bottleneck_forward.11} parent=111 // pred_fallthru
          _
        %p899 = pneg %p45
        %p900 = pneg %p42
        %p901 = pneg %p66
        %p902 = pneg %p63
        %s903 = sand.u32 %s79, 1
        %s904 = sand.u32 %s79, 1
        %s905 = smul.addr %s904, 576
        %s906 = scalar_lea.vmem [#allocation2], %s905
        %p907 = pneg %p92
        %p908 = pneg %p89
        %s909 = sand.u32 %s107, 1
        %s910 = sand.u32 %s107, 1
        %s911 = smul.addr %s910, 576
        %s912 = scalar_lea.vmem [#allocation3], %s911
        %p913 = pneg %p120
        %p914 = pneg %p117
        %p915 = pneg %p141
        %p916 = pneg %p138
        %p917 = pneg %p162
        %p918 = pneg %p159
        %p919 = pneg %p190
        %p920 = pneg %p187
        %s921 = smul.u32 16, %s22
        %p922 = scmp.lt.s32.totalorder %s21, 1
        %s923 = scalar_select %p922, %s21, 1
        %p924 = scmp.lt.s32.totalorder %s921, 31
        %s925 = scalar_select %p924, %s921, 31
        %s926 = smul.addr %s923, 32
        %s927 = sadd.s32 %s925, %s926
        %s928 = smul.addr %s927, 8
        %s929 = scalar_lea.vmem %s6, %s928
        %s930 = smul.u32 8, %s22
        %s931 = smul.u32 3, %s21
        %s932 = smul.u32 8, %s22
        %s933 = smul.u32 16, %s22
        %p934 = scmp.lt.s32.totalorder %s21, 1
        %s935 = scalar_select %p934, %s21, 1
        %p936 = scmp.lt.s32.totalorder %s933, 31
        %s937 = scalar_select %p936, %s933, 31
        %s938 = smul.addr %s935, 32
        %s939 = sadd.s32 %s937, %s938
        %s940 = smul.addr %s939, 8
        %s941 = scalar_lea.vmem %s6, %s940
        %s942 = smul.u32 16, %s22
        %v944 = vld [vmem:[%s0] sm:$0x1]
        %v945 = vld [vmem:[%s1] sm:$0x1]
        %v946 = vld [vmem:[%s895] sm:$0xff]
        %v947 = vld [vmem:[%s895 + $0x8] sm:$0xff]
        %v948 = vld [vmem:[%s895 + $0x10] sm:$0x3]
        %v949 = vld [vmem:[%s895 + $0x18] sm:$0xff]
        %v950 = vld [vmem:[%s895 + $0x20] sm:$0xff]
        %v951 = vld [vmem:[%s895 + $0x28] sm:$0x3]
        %v952 = vld [vmem:[%s895 + $0x30] sm:$0xff]
        %v953 = vld [vmem:[%s895 + $0x38] sm:$0xff]
        %v954 = vld [vmem:[%s895 + $0x40] sm:$0x3]
        %v955 = vld [vmem:[%s895 + $0x48] sm:$0xff]
        %v956 = vld [vmem:[%s895 + $0x50] sm:$0xff]
        %v957 = vld [vmem:[%s895 + $0x58] sm:$0x3]
        %v958 = vld [vmem:[%s895 + $0x60] sm:$0xff]
        %v959 = vld [vmem:[%s895 + $0x68] sm:$0xff]
        %v960 = vld [vmem:[%s895 + $0x70] sm:$0x3]
        %v961 = vld [vmem:[%s895 + $0x78] sm:$0xff]
        %v962 = vld [vmem:[%s895 + $0x80] sm:$0xff]
        %v963 = vld [vmem:[%s895 + $0x88] sm:$0x3]
        %v964 = vld [vmem:[%s895 + $0x90] sm:$0xff]
        %v965 = vld [vmem:[%s895 + $0x98] sm:$0xff]
        %v966 = vld [vmem:[%s895 + $0xa0] sm:$0x3]
        %v967 = vld [vmem:[%s895 + $0xa8] sm:$0xff]
        %v968 = vld [vmem:[%s895 + $0xb0] sm:$0xff]
        %v969 = vld [vmem:[%s895 + $0xb8] sm:$0x3]
        %v971 = vlaneseq
        %v972 = vshrl.u32 %v971, 7
        %v973 = vsub.s32 0, %v972
        %v974 = vrot.slane %v944, %v973
        %v976 = vmul.f32 %v946, %v974
        %v977 = vmul.f32 %v947, %v974
        %v978 = vmul.f32 %v948, %v974
        %v979 = vmul.f32 %v949, %v974
        %v980 = vmul.f32 %v950, %v974
        %v981 = vmul.f32 %v951, %v974
        %v982 = vmul.f32 %v952, %v974
        %v983 = vmul.f32 %v953, %v974
        %v984 = vmul.f32 %v954, %v974
        %v985 = vmul.f32 %v955, %v974
        %v986 = vmul.f32 %v956, %v974
        %v987 = vmul.f32 %v957, %v974
        %v988 = vmul.f32 %v958, %v974
        %v989 = vmul.f32 %v959, %v974
        %v990 = vmul.f32 %v960, %v974
        %v991 = vmul.f32 %v961, %v974
        %v992 = vmul.f32 %v962, %v974
        %v993 = vmul.f32 %v963, %v974
        %v994 = vmul.f32 %v964, %v974
        %v995 = vmul.f32 %v965, %v974
        %v996 = vmul.f32 %v966, %v974
        %v997 = vmul.f32 %v967, %v974
        %v998 = vmul.f32 %v968, %v974
        %v999 = vmul.f32 %v969, %v974
        %v1001 = vlaneseq
        %v1002 = vshrl.u32 %v1001, 7
        %v1003 = vsub.s32 0, %v1002
        %v1004 = vrot.slane %v945, %v1003
        %v1006 = vadd.f32 %v976, %v1004
        %v1007 = vadd.f32 %v977, %v1004
        %v1008 = vadd.f32 %v978, %v1004
        %v1009 = vadd.f32 %v979, %v1004
        %v1010 = vadd.f32 %v980, %v1004
        %v1011 = vadd.f32 %v981, %v1004
        %v1012 = vadd.f32 %v982, %v1004
        %v1013 = vadd.f32 %v983, %v1004
        %v1014 = vadd.f32 %v984, %v1004
        %v1015 = vadd.f32 %v985, %v1004
        %v1016 = vadd.f32 %v986, %v1004
        %v1017 = vadd.f32 %v987, %v1004
        %v1018 = vadd.f32 %v988, %v1004
        %v1019 = vadd.f32 %v989, %v1004
        %v1020 = vadd.f32 %v990, %v1004
        %v1021 = vadd.f32 %v991, %v1004
        %v1022 = vadd.f32 %v992, %v1004
        %v1023 = vadd.f32 %v993, %v1004
        %v1024 = vadd.f32 %v994, %v1004
        %v1025 = vadd.f32 %v995, %v1004
        %v1026 = vadd.f32 %v996, %v1004
        %v1027 = vadd.f32 %v997, %v1004
        %v1028 = vadd.f32 %v998, %v1004
        %v1029 = vadd.f32 %v999, %v1004
        %v1030 = vmax.f32 %v1006, 0.0
        %v1031 = vmax.f32 %v1007, 0.0
        %v1032 = vmax.f32 %v1008, 0.0
        %v1033 = vmax.f32 %v1009, 0.0
        %v1034 = vmax.f32 %v1010, 0.0
        %v1035 = vmax.f32 %v1011, 0.0
        %v1036 = vmax.f32 %v1012, 0.0
        %v1037 = vmax.f32 %v1013, 0.0
        %v1038 = vmax.f32 %v1014, 0.0
        %v1039 = vmax.f32 %v1015, 0.0
        %v1040 = vmax.f32 %v1016, 0.0
        %v1041 = vmax.f32 %v1017, 0.0
        %v1042 = vmax.f32 %v1018, 0.0
        %v1043 = vmax.f32 %v1019, 0.0
        %v1044 = vmax.f32 %v1020, 0.0
        %v1045 = vmax.f32 %v1021, 0.0
        %v1046 = vmax.f32 %v1022, 0.0
        %v1047 = vmax.f32 %v1023, 0.0
        %v1048 = vmax.f32 %v1024, 0.0
        %v1049 = vmax.f32 %v1025, 0.0
        %v1050 = vmax.f32 %v1026, 0.0
        %v1051 = vmax.f32 %v1027, 0.0
        %v1052 = vmax.f32 %v1028, 0.0
        %v1053 = vmax.f32 %v1029, 0.0
        %v1054 = vld [vmem:[%s888] sm:$0xff]
        %v1055 = vld [vmem:[%s888 + $0x8] sm:$0xff]
        %v1056 = vld [vmem:[%s888 + $0x10] sm:$0x3]
        %v1057 = vld [vmem:[%s888 + $0x18] sm:$0xff]
        %v1058 = vld [vmem:[%s888 + $0x20] sm:$0xff]
        %v1059 = vld [vmem:[%s888 + $0x28] sm:$0x3]
        %v1060 = vld [vmem:[%s888 + $0x30] sm:$0xff]
        %v1061 = vld [vmem:[%s888 + $0x38] sm:$0xff]
        %v1062 = vld [vmem:[%s888 + $0x40] sm:$0x3]
        %v1063 = vld [vmem:[%s888 + $0x48] sm:$0xff]
        %v1064 = vld [vmem:[%s888 + $0x50] sm:$0xff]
        %v1065 = vld [vmem:[%s888 + $0x58] sm:$0x3]
        %v1066 = vld [vmem:[%s888 + $0x60] sm:$0xff]
        %v1067 = vld [vmem:[%s888 + $0x68] sm:$0xff]
        %v1068 = vld [vmem:[%s888 + $0x70] sm:$0x3]
        %v1069 = vld [vmem:[%s888 + $0x78] sm:$0xff]
        %v1070 = vld [vmem:[%s888 + $0x80] sm:$0xff]
        %v1071 = vld [vmem:[%s888 + $0x88] sm:$0x3]
        %v1072 = vld [vmem:[%s888 + $0x90] sm:$0xff]
        %v1073 = vld [vmem:[%s888 + $0x98] sm:$0xff]
        %v1074 = vld [vmem:[%s888 + $0xa0] sm:$0x3]
        %v1075 = vld [vmem:[%s888 + $0xa8] sm:$0xff]
        %v1076 = vld [vmem:[%s888 + $0xb0] sm:$0xff]
        %v1077 = vld [vmem:[%s888 + $0xb8] sm:$0x3]
        %1079 = vset.pattern.permute.xlu0 0
        %1080 = vperm.xlu0 %1079, %v1054
        %v1081 = vpop.permute.xlu0 %1080
        %1084 = vset.pattern.permute.xlu0 0
        %1085 = vperm.xlu0 %1084, %v1055
        %v1086 = vpop.permute.xlu0 %1085
        %1089 = vset.pattern.permute.xlu0 0
        %1090 = vperm.xlu0 %1089, %v1056
        %v1091 = vpop.permute.xlu0 %1090
        %1094 = vset.pattern.permute.xlu0 0
        %1095 = vperm.xlu0 %1094, %v1057
        %v1096 = vpop.permute.xlu0 %1095
        %1099 = vset.pattern.permute.xlu0 0
        %1100 = vperm.xlu0 %1099, %v1058
        %v1101 = vpop.permute.xlu0 %1100
        %1104 = vset.pattern.permute.xlu0 0
        %1105 = vperm.xlu0 %1104, %v1059
        %v1106 = vpop.permute.xlu0 %1105
        %1109 = vset.pattern.permute.xlu0 0
        %1110 = vperm.xlu0 %1109, %v1060
        %v1111 = vpop.permute.xlu0 %1110
        %1114 = vset.pattern.permute.xlu0 0
        %1115 = vperm.xlu0 %1114, %v1061
        %v1116 = vpop.permute.xlu0 %1115
        %1119 = vset.pattern.permute.xlu0 0
        %1120 = vperm.xlu0 %1119, %v1062
        %v1121 = vpop.permute.xlu0 %1120
        %1124 = vset.pattern.permute.xlu0 0
        %1125 = vperm.xlu0 %1124, %v1063
        %v1126 = vpop.permute.xlu0 %1125
        %1129 = vset.pattern.permute.xlu0 0
        %1130 = vperm.xlu0 %1129, %v1064
        %v1131 = vpop.permute.xlu0 %1130
        %1134 = vset.pattern.permute.xlu0 0
        %1135 = vperm.xlu0 %1134, %v1065
        %v1136 = vpop.permute.xlu0 %1135
        %1139 = vset.pattern.permute.xlu0 0
        %1140 = vperm.xlu0 %1139, %v1066
        %v1141 = vpop.permute.xlu0 %1140
        %1144 = vset.pattern.permute.xlu0 0
        %1145 = vperm.xlu0 %1144, %v1067
        %v1146 = vpop.permute.xlu0 %1145
        %1149 = vset.pattern.permute.xlu0 0
        %1150 = vperm.xlu0 %1149, %v1068
        %v1151 = vpop.permute.xlu0 %1150
        %1154 = vset.pattern.permute.xlu0 0
        %1155 = vperm.xlu0 %1154, %v1069
        %v1156 = vpop.permute.xlu0 %1155
        %1159 = vset.pattern.permute.xlu0 0
        %1160 = vperm.xlu0 %1159, %v1070
        %v1161 = vpop.permute.xlu0 %1160
        %1164 = vset.pattern.permute.xlu0 0
        %1165 = vperm.xlu0 %1164, %v1071
        %v1166 = vpop.permute.xlu0 %1165
        %1169 = vset.pattern.permute.xlu0 0
        %1170 = vperm.xlu0 %1169, %v1072
        %v1171 = vpop.permute.xlu0 %1170
        %1174 = vset.pattern.permute.xlu0 0
        %1175 = vperm.xlu0 %1174, %v1073
        %v1176 = vpop.permute.xlu0 %1175
        %1179 = vset.pattern.permute.xlu0 0
        %1180 = vperm.xlu0 %1179, %v1074
        %v1181 = vpop.permute.xlu0 %1180
        %1184 = vset.pattern.permute.xlu0 0
        %1185 = vperm.xlu0 %1184, %v1075
        %v1186 = vpop.permute.xlu0 %1185
        %1189 = vset.pattern.permute.xlu0 0
        %1190 = vperm.xlu0 %1189, %v1076
        %v1191 = vpop.permute.xlu0 %1190
        %1194 = vset.pattern.permute.xlu0 0
        %1195 = vperm.xlu0 %1194, %v1077
        %v1196 = vpop.permute.xlu0 %1195
        %v1198 = vmul.f32 %v1030, %v1081
        %v1199 = vmul.f32 %v1031, %v1086
        %v1200 = vmul.f32 %v1032, %v1091
        %v1201 = vmul.f32 %v1033, %v1096
        %v1202 = vmul.f32 %v1034, %v1101
        %v1203 = vmul.f32 %v1035, %v1106
        %v1204 = vmul.f32 %v1036, %v1111
        %v1205 = vmul.f32 %v1037, %v1116
        %v1206 = vmul.f32 %v1038, %v1121
        %v1207 = vmul.f32 %v1039, %v1126
        %v1208 = vmul.f32 %v1040, %v1131
        %v1209 = vmul.f32 %v1041, %v1136
        %v1210 = vmul.f32 %v1042, %v1141
        %v1211 = vmul.f32 %v1043, %v1146
        %v1212 = vmul.f32 %v1044, %v1151
        %v1213 = vmul.f32 %v1045, %v1156
        %v1214 = vmul.f32 %v1046, %v1161
        %v1215 = vmul.f32 %v1047, %v1166
        %v1216 = vmul.f32 %v1048, %v1171
        %v1217 = vmul.f32 %v1049, %v1176
        %v1218 = vmul.f32 %v1050, %v1181
        %v1219 = vmul.f32 %v1051, %v1186
        %v1220 = vmul.f32 %v1052, %v1191
        %v1221 = vmul.f32 %v1053, %v1196
        %v1222 = vpack.c.bf16 %v1199, %v1198
        %v1223 = vpack.c.bf16 %v1200, %v1200
        %v1224 = vpack.c.bf16 %v1202, %v1201
        %v1225 = vpack.c.bf16 %v1203, %v1203
        %v1226 = vpack.c.bf16 %v1205, %v1204
        %v1227 = vpack.c.bf16 %v1206, %v1206
        %v1228 = vpack.c.bf16 %v1208, %v1207
        %v1229 = vpack.c.bf16 %v1209, %v1209
        %v1230 = vpack.c.bf16 %v1211, %v1210
        %v1231 = vpack.c.bf16 %v1212, %v1212
        %v1232 = vpack.c.bf16 %v1214, %v1213
        %v1233 = vpack.c.bf16 %v1215, %v1215
        %v1234 = vpack.c.bf16 %v1217, %v1216
        %v1235 = vpack.c.bf16 %v1218, %v1218
        %v1236 = vpack.c.bf16 %v1220, %v1219
        %v1237 = vpack.c.bf16 %v1221, %v1221
        %s1238 = scalar_lea.vmem %s895, 192 [#allocation3]
        %v1239 = vld [vmem:[%s1238] sm:$0xff]
        %v1240 = vld [vmem:[%s1238 + $0x8] sm:$0xff]
        %v1241 = vld [vmem:[%s1238 + $0x10] sm:$0x3]
        %v1242 = vld [vmem:[%s1238 + $0x18] sm:$0xff]
        %v1243 = vld [vmem:[%s1238 + $0x20] sm:$0xff]
        %v1244 = vld [vmem:[%s1238 + $0x28] sm:$0x3]
        %v1245 = vld [vmem:[%s1238 + $0x30] sm:$0xff]
        %v1246 = vld [vmem:[%s1238 + $0x38] sm:$0xff]
        %v1247 = vld [vmem:[%s1238 + $0x40] sm:$0x3]
        %v1248 = vld [vmem:[%s1238 + $0x48] sm:$0xff]
        %v1249 = vld [vmem:[%s1238 + $0x50] sm:$0xff]
        %v1250 = vld [vmem:[%s1238 + $0x58] sm:$0x3]
        %v1251 = vld [vmem:[%s1238 + $0x60] sm:$0xff]
        %v1252 = vld [vmem:[%s1238 + $0x68] sm:$0xff]
        %v1253 = vld [vmem:[%s1238 + $0x70] sm:$0x3]
        %v1254 = vld [vmem:[%s1238 + $0x78] sm:$0xff]
        %v1255 = vld [vmem:[%s1238 + $0x80] sm:$0xff]
        %v1256 = vld [vmem:[%s1238 + $0x88] sm:$0x3]
        %v1257 = vld [vmem:[%s1238 + $0x90] sm:$0xff]
        %v1258 = vld [vmem:[%s1238 + $0x98] sm:$0xff]
        %v1259 = vld [vmem:[%s1238 + $0xa0] sm:$0x3]
        %v1260 = vld [vmem:[%s1238 + $0xa8] sm:$0xff]
        %v1261 = vld [vmem:[%s1238 + $0xb0] sm:$0xff]
        %v1262 = vld [vmem:[%s1238 + $0xb8] sm:$0x3]
        %v1263 = vmul.f32 %v1239, %v974
        %v1264 = vmul.f32 %v1240, %v974
        %v1265 = vmul.f32 %v1241, %v974
        %v1266 = vmul.f32 %v1242, %v974
        %v1267 = vmul.f32 %v1243, %v974
        %v1268 = vmul.f32 %v1244, %v974
        %v1269 = vmul.f32 %v1245, %v974
        %v1270 = vmul.f32 %v1246, %v974
        %v1271 = vmul.f32 %v1247, %v974
        %v1272 = vmul.f32 %v1248, %v974
        %v1273 = vmul.f32 %v1249, %v974
        %v1274 = vmul.f32 %v1250, %v974
        %v1275 = vmul.f32 %v1251, %v974
        %v1276 = vmul.f32 %v1252, %v974
        %v1277 = vmul.f32 %v1253, %v974
        %v1278 = vmul.f32 %v1254, %v974
        %v1279 = vmul.f32 %v1255, %v974
        %v1280 = vmul.f32 %v1256, %v974
        %v1281 = vmul.f32 %v1257, %v974
        %v1282 = vmul.f32 %v1258, %v974
        %v1283 = vmul.f32 %v1259, %v974
        %v1284 = vmul.f32 %v1260, %v974
        %v1285 = vmul.f32 %v1261, %v974
        %v1286 = vmul.f32 %v1262, %v974
        %v1287 = vadd.f32 %v1263, %v1004
        %v1288 = vadd.f32 %v1264, %v1004
        %v1289 = vadd.f32 %v1265, %v1004
        %v1290 = vadd.f32 %v1266, %v1004
        %v1291 = vadd.f32 %v1267, %v1004
        %v1292 = vadd.f32 %v1268, %v1004
        %v1293 = vadd.f32 %v1269, %v1004
        %v1294 = vadd.f32 %v1270, %v1004
        %v1295 = vadd.f32 %v1271, %v1004
        %v1296 = vadd.f32 %v1272, %v1004
        %v1297 = vadd.f32 %v1273, %v1004
        %v1298 = vadd.f32 %v1274, %v1004
        %v1299 = vadd.f32 %v1275, %v1004
        %v1300 = vadd.f32 %v1276, %v1004
        %v1301 = vadd.f32 %v1277, %v1004
        %v1302 = vadd.f32 %v1278, %v1004
        %v1303 = vadd.f32 %v1279, %v1004
        %v1304 = vadd.f32 %v1280, %v1004
        %v1305 = vadd.f32 %v1281, %v1004
        %v1306 = vadd.f32 %v1282, %v1004
        %v1307 = vadd.f32 %v1283, %v1004
        %v1308 = vadd.f32 %v1284, %v1004
        %v1309 = vadd.f32 %v1285, %v1004
        %v1310 = vadd.f32 %v1286, %v1004
        %v1311 = vmax.f32 %v1287, 0.0
        %v1312 = vmax.f32 %v1288, 0.0
        %v1313 = vmax.f32 %v1289, 0.0
        %v1314 = vmax.f32 %v1290, 0.0
        %v1315 = vmax.f32 %v1291, 0.0
        %v1316 = vmax.f32 %v1292, 0.0
        %v1317 = vmax.f32 %v1293, 0.0
        %v1318 = vmax.f32 %v1294, 0.0
        %v1319 = vmax.f32 %v1295, 0.0
        %v1320 = vmax.f32 %v1296, 0.0
        %v1321 = vmax.f32 %v1297, 0.0
        %v1322 = vmax.f32 %v1298, 0.0
        %v1323 = vmax.f32 %v1299, 0.0
        %v1324 = vmax.f32 %v1300, 0.0
        %v1325 = vmax.f32 %v1301, 0.0
        %v1326 = vmax.f32 %v1302, 0.0
        %v1327 = vmax.f32 %v1303, 0.0
        %v1328 = vmax.f32 %v1304, 0.0
        %v1329 = vmax.f32 %v1305, 0.0
        %v1330 = vmax.f32 %v1306, 0.0
        %v1331 = vmax.f32 %v1307, 0.0
        %v1332 = vmax.f32 %v1308, 0.0
        %v1333 = vmax.f32 %v1309, 0.0
        %v1334 = vmax.f32 %v1310, 0.0
        %s1335 = scalar_lea.vmem %s888, 192 [#allocation2]
        %v1336 = vld [vmem:[%s1335] sm:$0xff]
        %v1337 = vld [vmem:[%s1335 + $0x8] sm:$0xff]
        %v1338 = vld [vmem:[%s1335 + $0x10] sm:$0x3]
        %v1339 = vld [vmem:[%s1335 + $0x18] sm:$0xff]
        %v1340 = vld [vmem:[%s1335 + $0x20] sm:$0xff]
        %v1341 = vld [vmem:[%s1335 + $0x28] sm:$0x3]
        %v1342 = vld [vmem:[%s1335 + $0x30] sm:$0xff]
        %v1343 = vld [vmem:[%s1335 + $0x38] sm:$0xff]
        %v1344 = vld [vmem:[%s1335 + $0x40] sm:$0x3]
        %v1345 = vld [vmem:[%s1335 + $0x48] sm:$0xff]
        %v1346 = vld [vmem:[%s1335 + $0x50] sm:$0xff]
        %v1347 = vld [vmem:[%s1335 + $0x58] sm:$0x3]
        %v1348 = vld [vmem:[%s1335 + $0x60] sm:$0xff]
        %v1349 = vld [vmem:[%s1335 + $0x68] sm:$0xff]
        %v1350 = vld [vmem:[%s1335 + $0x70] sm:$0x3]
        %v1351 = vld [vmem:[%s1335 + $0x78] sm:$0xff]
        %v1352 = vld [vmem:[%s1335 + $0x80] sm:$0xff]
        %v1353 = vld [vmem:[%s1335 + $0x88] sm:$0x3]
        %v1354 = vld [vmem:[%s1335 + $0x90] sm:$0xff]
        %v1355 = vld [vmem:[%s1335 + $0x98] sm:$0xff]
        %v1356 = vld [vmem:[%s1335 + $0xa0] sm:$0x3]
        %v1357 = vld [vmem:[%s1335 + $0xa8] sm:$0xff]
        %v1358 = vld [vmem:[%s1335 + $0xb0] sm:$0xff]
        %v1359 = vld [vmem:[%s1335 + $0xb8] sm:$0x3]
        %1361 = vset.pattern.permute.xlu0 0
        %1362 = vperm.xlu0 %1361, %v1336
        %v1363 = vpop.permute.xlu0 %1362
        %1366 = vset.pattern.permute.xlu0 0
        %1367 = vperm.xlu0 %1366, %v1337
        %v1368 = vpop.permute.xlu0 %1367
        %1371 = vset.pattern.permute.xlu0 0
        %1372 = vperm.xlu0 %1371, %v1338
        %v1373 = vpop.permute.xlu0 %1372
        %1376 = vset.pattern.permute.xlu0 0
        %1377 = vperm.xlu0 %1376, %v1339
        %v1378 = vpop.permute.xlu0 %1377
        %1381 = vset.pattern.permute.xlu0 0
        %1382 = vperm.xlu0 %1381, %v1340
        %v1383 = vpop.permute.xlu0 %1382
        %1386 = vset.pattern.permute.xlu0 0
        %1387 = vperm.xlu0 %1386, %v1341
        %v1388 = vpop.permute.xlu0 %1387
        %1391 = vset.pattern.permute.xlu0 0
        %1392 = vperm.xlu0 %1391, %v1342
        %v1393 = vpop.permute.xlu0 %1392
        %1396 = vset.pattern.permute.xlu0 0
        %1397 = vperm.xlu0 %1396, %v1343
        %v1398 = vpop.permute.xlu0 %1397
        %1401 = vset.pattern.permute.xlu0 0
        %1402 = vperm.xlu0 %1401, %v1344
        %v1403 = vpop.permute.xlu0 %1402
        %1406 = vset.pattern.permute.xlu0 0
        %1407 = vperm.xlu0 %1406, %v1345
        %v1408 = vpop.permute.xlu0 %1407
        %1411 = vset.pattern.permute.xlu0 0
        %1412 = vperm.xlu0 %1411, %v1346
        %v1413 = vpop.permute.xlu0 %1412
        %1416 = vset.pattern.permute.xlu0 0
        %1417 = vperm.xlu0 %1416, %v1347
        %v1418 = vpop.permute.xlu0 %1417
        %1421 = vset.pattern.permute.xlu0 0
        %1422 = vperm.xlu0 %1421, %v1348
        %v1423 = vpop.permute.xlu0 %1422
        %1426 = vset.pattern.permute.xlu0 0
        %1427 = vperm.xlu0 %1426, %v1349
        %v1428 = vpop.permute.xlu0 %1427
        %1431 = vset.pattern.permute.xlu0 0
        %1432 = vperm.xlu0 %1431, %v1350
        %v1433 = vpop.permute.xlu0 %1432
        %1436 = vset.pattern.permute.xlu0 0
        %1437 = vperm.xlu0 %1436, %v1351
        %v1438 = vpop.permute.xlu0 %1437
        %1441 = vset.pattern.permute.xlu0 0
        %1442 = vperm.xlu0 %1441, %v1352
        %v1443 = vpop.permute.xlu0 %1442
        %1446 = vset.pattern.permute.xlu0 0
        %1447 = vperm.xlu0 %1446, %v1353
        %v1448 = vpop.permute.xlu0 %1447
        %1451 = vset.pattern.permute.xlu0 0
        %1452 = vperm.xlu0 %1451, %v1354
        %v1453 = vpop.permute.xlu0 %1452
        %1456 = vset.pattern.permute.xlu0 0
        %1457 = vperm.xlu0 %1456, %v1355
        %v1458 = vpop.permute.xlu0 %1457
        %1461 = vset.pattern.permute.xlu0 0
        %1462 = vperm.xlu0 %1461, %v1356
        %v1463 = vpop.permute.xlu0 %1462
        %1466 = vset.pattern.permute.xlu0 0
        %1467 = vperm.xlu0 %1466, %v1357
        %v1468 = vpop.permute.xlu0 %1467
        %1471 = vset.pattern.permute.xlu0 0
        %1472 = vperm.xlu0 %1471, %v1358
        %v1473 = vpop.permute.xlu0 %1472
        %1476 = vset.pattern.permute.xlu0 0
        %1477 = vperm.xlu0 %1476, %v1359
        %v1478 = vpop.permute.xlu0 %1477
        %v1480 = vmul.f32 %v1311, %v1363
        %v1481 = vmul.f32 %v1312, %v1368
        %v1482 = vmul.f32 %v1313, %v1373
        %v1483 = vmul.f32 %v1314, %v1378
        %v1484 = vmul.f32 %v1315, %v1383
        %v1485 = vmul.f32 %v1316, %v1388
        %v1486 = vmul.f32 %v1317, %v1393
        %v1487 = vmul.f32 %v1318, %v1398
        %v1488 = vmul.f32 %v1319, %v1403
        %v1489 = vmul.f32 %v1320, %v1408
        %v1490 = vmul.f32 %v1321, %v1413
        %v1491 = vmul.f32 %v1322, %v1418
        %v1492 = vmul.f32 %v1323, %v1423
        %v1493 = vmul.f32 %v1324, %v1428
        %v1494 = vmul.f32 %v1325, %v1433
        %v1495 = vmul.f32 %v1326, %v1438
        %v1496 = vmul.f32 %v1327, %v1443
        %v1497 = vmul.f32 %v1328, %v1448
        %v1498 = vmul.f32 %v1329, %v1453
        %v1499 = vmul.f32 %v1330, %v1458
        %v1500 = vmul.f32 %v1331, %v1463
        %v1501 = vmul.f32 %v1332, %v1468
        %v1502 = vmul.f32 %v1333, %v1473
        %v1503 = vmul.f32 %v1334, %v1478
        %v1504 = vpack.c.bf16 %v1481, %v1480
        %v1505 = vpack.c.bf16 %v1482, %v1482
        %v1506 = vpack.c.bf16 %v1484, %v1483
        %v1507 = vpack.c.bf16 %v1485, %v1485
        %v1508 = vpack.c.bf16 %v1487, %v1486
        %v1509 = vpack.c.bf16 %v1488, %v1488
        %v1510 = vpack.c.bf16 %v1490, %v1489
        %v1511 = vpack.c.bf16 %v1491, %v1491
        %v1512 = vpack.c.bf16 %v1493, %v1492
        %v1513 = vpack.c.bf16 %v1494, %v1494
        %v1514 = vpack.c.bf16 %v1496, %v1495
        %v1515 = vpack.c.bf16 %v1497, %v1497
        %v1516 = vpack.c.bf16 %v1499, %v1498
        %v1517 = vpack.c.bf16 %v1500, %v1500
        %v1518 = vpack.c.bf16 %v1502, %v1501
        %v1519 = vpack.c.bf16 %v1503, %v1503
        %s1520 = scalar_lea.vmem %s895, 384 [#allocation3]
        %v1521 = vld [vmem:[%s1520] sm:$0xff]
        %v1522 = vld [vmem:[%s1520 + $0x8] sm:$0xff]
        %v1523 = vld [vmem:[%s1520 + $0x10] sm:$0x3]
        %v1524 = vld [vmem:[%s1520 + $0x18] sm:$0xff]
        %v1525 = vld [vmem:[%s1520 + $0x20] sm:$0xff]
        %v1526 = vld [vmem:[%s1520 + $0x28] sm:$0x3]
        %v1527 = vld [vmem:[%s1520 + $0x30] sm:$0xff]
        %v1528 = vld [vmem:[%s1520 + $0x38] sm:$0xff]
        %v1529 = vld [vmem:[%s1520 + $0x40] sm:$0x3]
        %v1530 = vld [vmem:[%s1520 + $0x48] sm:$0xff]
        %v1531 = vld [vmem:[%s1520 + $0x50] sm:$0xff]
        %v1532 = vld [vmem:[%s1520 + $0x58] sm:$0x3]
        %v1533 = vld [vmem:[%s1520 + $0x60] sm:$0xff]
        %v1534 = vld [vmem:[%s1520 + $0x68] sm:$0xff]
        %v1535 = vld [vmem:[%s1520 + $0x70] sm:$0x3]
        %v1536 = vld [vmem:[%s1520 + $0x78] sm:$0xff]
        %v1537 = vld [vmem:[%s1520 + $0x80] sm:$0xff]
        %v1538 = vld [vmem:[%s1520 + $0x88] sm:$0x3]
        %v1539 = vld [vmem:[%s1520 + $0x90] sm:$0xff]
        %v1540 = vld [vmem:[%s1520 + $0x98] sm:$0xff]
        %v1541 = vld [vmem:[%s1520 + $0xa0] sm:$0x3]
        %v1542 = vld [vmem:[%s1520 + $0xa8] sm:$0xff]
        %v1543 = vld [vmem:[%s1520 + $0xb0] sm:$0xff]
        %v1544 = vld [vmem:[%s1520 + $0xb8] sm:$0x3]
        %v1545 = vmul.f32 %v1521, %v974
        %v1546 = vmul.f32 %v1522, %v974
        %v1547 = vmul.f32 %v1523, %v974
        %v1548 = vmul.f32 %v1524, %v974
        %v1549 = vmul.f32 %v1525, %v974
        %v1550 = vmul.f32 %v1526, %v974
        %v1551 = vmul.f32 %v1527, %v974
        %v1552 = vmul.f32 %v1528, %v974
        %v1553 = vmul.f32 %v1529, %v974
        %v1554 = vmul.f32 %v1530, %v974
        %v1555 = vmul.f32 %v1531, %v974
        %v1556 = vmul.f32 %v1532, %v974
        %v1557 = vmul.f32 %v1533, %v974
        %v1558 = vmul.f32 %v1534, %v974
        %v1559 = vmul.f32 %v1535, %v974
        %v1560 = vmul.f32 %v1536, %v974
        %v1561 = vmul.f32 %v1537, %v974
        %v1562 = vmul.f32 %v1538, %v974
        %v1563 = vmul.f32 %v1539, %v974
        %v1564 = vmul.f32 %v1540, %v974
        %v1565 = vmul.f32 %v1541, %v974
        %v1566 = vmul.f32 %v1542, %v974
        %v1567 = vmul.f32 %v1543, %v974
        %v1568 = vmul.f32 %v1544, %v974
        %v1569 = vadd.f32 %v1545, %v1004
        %v1570 = vadd.f32 %v1546, %v1004
        %v1571 = vadd.f32 %v1547, %v1004
        %v1572 = vadd.f32 %v1548, %v1004
        %v1573 = vadd.f32 %v1549, %v1004
        %v1574 = vadd.f32 %v1550, %v1004
        %v1575 = vadd.f32 %v1551, %v1004
        %v1576 = vadd.f32 %v1552, %v1004
        %v1577 = vadd.f32 %v1553, %v1004
        %v1578 = vadd.f32 %v1554, %v1004
        %v1579 = vadd.f32 %v1555, %v1004
        %v1580 = vadd.f32 %v1556, %v1004
        %v1581 = vadd.f32 %v1557, %v1004
        %v1582 = vadd.f32 %v1558, %v1004
        %v1583 = vadd.f32 %v1559, %v1004
        %v1584 = vadd.f32 %v1560, %v1004
        %v1585 = vadd.f32 %v1561, %v1004
        %v1586 = vadd.f32 %v1562, %v1004
        %v1587 = vadd.f32 %v1563, %v1004
        %v1588 = vadd.f32 %v1564, %v1004
        %v1589 = vadd.f32 %v1565, %v1004
        %v1590 = vadd.f32 %v1566, %v1004
        %v1591 = vadd.f32 %v1567, %v1004
        %v1592 = vadd.f32 %v1568, %v1004
        %v1593 = vmax.f32 %v1569, 0.0
        %v1594 = vmax.f32 %v1570, 0.0
        %v1595 = vmax.f32 %v1571, 0.0
        %v1596 = vmax.f32 %v1572, 0.0
        %v1597 = vmax.f32 %v1573, 0.0
        %v1598 = vmax.f32 %v1574, 0.0
        %v1599 = vmax.f32 %v1575, 0.0
        %v1600 = vmax.f32 %v1576, 0.0
        %v1601 = vmax.f32 %v1577, 0.0
        %v1602 = vmax.f32 %v1578, 0.0
        %v1603 = vmax.f32 %v1579, 0.0
        %v1604 = vmax.f32 %v1580, 0.0
        %v1605 = vmax.f32 %v1581, 0.0
        %v1606 = vmax.f32 %v1582, 0.0
        %v1607 = vmax.f32 %v1583, 0.0
        %v1608 = vmax.f32 %v1584, 0.0
        %v1609 = vmax.f32 %v1585, 0.0
        %v1610 = vmax.f32 %v1586, 0.0
        %v1611 = vmax.f32 %v1587, 0.0
        %v1612 = vmax.f32 %v1588, 0.0
        %v1613 = vmax.f32 %v1589, 0.0
        %v1614 = vmax.f32 %v1590, 0.0
        %v1615 = vmax.f32 %v1591, 0.0
        %v1616 = vmax.f32 %v1592, 0.0
        %s1617 = scalar_lea.vmem %s888, 384 [#allocation2]
        %v1618 = vld [vmem:[%s1617] sm:$0xff]
        %v1619 = vld [vmem:[%s1617 + $0x8] sm:$0xff]
        %v1620 = vld [vmem:[%s1617 + $0x10] sm:$0x3]
        %v1621 = vld [vmem:[%s1617 + $0x18] sm:$0xff]
        %v1622 = vld [vmem:[%s1617 + $0x20] sm:$0xff]
        %v1623 = vld [vmem:[%s1617 + $0x28] sm:$0x3]
        %v1624 = vld [vmem:[%s1617 + $0x30] sm:$0xff]
        %v1625 = vld [vmem:[%s1617 + $0x38] sm:$0xff]
        %v1626 = vld [vmem:[%s1617 + $0x40] sm:$0x3]
        %v1627 = vld [vmem:[%s1617 + $0x48] sm:$0xff]
        %v1628 = vld [vmem:[%s1617 + $0x50] sm:$0xff]
        %v1629 = vld [vmem:[%s1617 + $0x58] sm:$0x3]
        %v1630 = vld [vmem:[%s1617 + $0x60] sm:$0xff]
        %v1631 = vld [vmem:[%s1617 + $0x68] sm:$0xff]
        %v1632 = vld [vmem:[%s1617 + $0x70] sm:$0x3]
        %v1633 = vld [vmem:[%s1617 + $0x78] sm:$0xff]
        %v1634 = vld [vmem:[%s1617 + $0x80] sm:$0xff]
        %v1635 = vld [vmem:[%s1617 + $0x88] sm:$0x3]
        %v1636 = vld [vmem:[%s1617 + $0x90] sm:$0xff]
        %v1637 = vld [vmem:[%s1617 + $0x98] sm:$0xff]
        %v1638 = vld [vmem:[%s1617 + $0xa0] sm:$0x3]
        %v1639 = vld [vmem:[%s1617 + $0xa8] sm:$0xff]
        %v1640 = vld [vmem:[%s1617 + $0xb0] sm:$0xff]
        %v1641 = vld [vmem:[%s1617 + $0xb8] sm:$0x3]
        %1643 = vset.pattern.permute.xlu0 0
        %1644 = vperm.xlu0 %1643, %v1618
        %v1645 = vpop.permute.xlu0 %1644
        %1648 = vset.pattern.permute.xlu0 0
        %1649 = vperm.xlu0 %1648, %v1619
        %v1650 = vpop.permute.xlu0 %1649
        %1653 = vset.pattern.permute.xlu0 0
        %1654 = vperm.xlu0 %1653, %v1620
        %v1655 = vpop.permute.xlu0 %1654
        %1658 = vset.pattern.permute.xlu0 0
        %1659 = vperm.xlu0 %1658, %v1621
        %v1660 = vpop.permute.xlu0 %1659
        %1663 = vset.pattern.permute.xlu0 0
        %1664 = vperm.xlu0 %1663, %v1622
        %v1665 = vpop.permute.xlu0 %1664
        %1668 = vset.pattern.permute.xlu0 0
        %1669 = vperm.xlu0 %1668, %v1623
        %v1670 = vpop.permute.xlu0 %1669
        %1673 = vset.pattern.permute.xlu0 0
        %1674 = vperm.xlu0 %1673, %v1624
        %v1675 = vpop.permute.xlu0 %1674
        %1678 = vset.pattern.permute.xlu0 0
        %1679 = vperm.xlu0 %1678, %v1625
        %v1680 = vpop.permute.xlu0 %1679
        %1683 = vset.pattern.permute.xlu0 0
        %1684 = vperm.xlu0 %1683, %v1626
        %v1685 = vpop.permute.xlu0 %1684
        %1688 = vset.pattern.permute.xlu0 0
        %1689 = vperm.xlu0 %1688, %v1627
        %v1690 = vpop.permute.xlu0 %1689
        %1693 = vset.pattern.permute.xlu0 0
        %1694 = vperm.xlu0 %1693, %v1628
        %v1695 = vpop.permute.xlu0 %1694
        %1698 = vset.pattern.permute.xlu0 0
        %1699 = vperm.xlu0 %1698, %v1629
        %v1700 = vpop.permute.xlu0 %1699
        %1703 = vset.pattern.permute.xlu0 0
        %1704 = vperm.xlu0 %1703, %v1630
        %v1705 = vpop.permute.xlu0 %1704
        %1708 = vset.pattern.permute.xlu0 0
        %1709 = vperm.xlu0 %1708, %v1631
        %v1710 = vpop.permute.xlu0 %1709
        %1713 = vset.pattern.permute.xlu0 0
        %1714 = vperm.xlu0 %1713, %v1632
        %v1715 = vpop.permute.xlu0 %1714
        %1718 = vset.pattern.permute.xlu0 0
        %1719 = vperm.xlu0 %1718, %v1633
        %v1720 = vpop.permute.xlu0 %1719
        %1723 = vset.pattern.permute.xlu0 0
        %1724 = vperm.xlu0 %1723, %v1634
        %v1725 = vpop.permute.xlu0 %1724
        %1728 = vset.pattern.permute.xlu0 0
        %1729 = vperm.xlu0 %1728, %v1635
        %v1730 = vpop.permute.xlu0 %1729
        %1733 = vset.pattern.permute.xlu0 0
        %1734 = vperm.xlu0 %1733, %v1636
        %v1735 = vpop.permute.xlu0 %1734
        %1738 = vset.pattern.permute.xlu0 0
        %1739 = vperm.xlu0 %1738, %v1637
        %v1740 = vpop.permute.xlu0 %1739
        %1743 = vset.pattern.permute.xlu0 0
        %1744 = vperm.xlu0 %1743, %v1638
        %v1745 = vpop.permute.xlu0 %1744
        %1748 = vset.pattern.permute.xlu0 0
        %1749 = vperm.xlu0 %1748, %v1639
        %v1750 = vpop.permute.xlu0 %1749
        %1753 = vset.pattern.permute.xlu0 0
        %1754 = vperm.xlu0 %1753, %v1640
        %v1755 = vpop.permute.xlu0 %1754
        %1758 = vset.pattern.permute.xlu0 0
        %1759 = vperm.xlu0 %1758, %v1641
        %v1760 = vpop.permute.xlu0 %1759
        %v1762 = vmul.f32 %v1593, %v1645
        %v1763 = vmul.f32 %v1594, %v1650
        %v1764 = vmul.f32 %v1595, %v1655
        %v1765 = vmul.f32 %v1596, %v1660
        %v1766 = vmul.f32 %v1597, %v1665
        %v1767 = vmul.f32 %v1598, %v1670
        %v1768 = vmul.f32 %v1599, %v1675
        %v1769 = vmul.f32 %v1600, %v1680
        %v1770 = vmul.f32 %v1601, %v1685
        %v1771 = vmul.f32 %v1602, %v1690
        %v1772 = vmul.f32 %v1603, %v1695
        %v1773 = vmul.f32 %v1604, %v1700
        %v1774 = vmul.f32 %v1605, %v1705
        %v1775 = vmul.f32 %v1606, %v1710
        %v1776 = vmul.f32 %v1607, %v1715
        %v1777 = vmul.f32 %v1608, %v1720
        %v1778 = vmul.f32 %v1609, %v1725
        %v1779 = vmul.f32 %v1610, %v1730
        %v1780 = vmul.f32 %v1611, %v1735
        %v1781 = vmul.f32 %v1612, %v1740
        %v1782 = vmul.f32 %v1613, %v1745
        %v1783 = vmul.f32 %v1614, %v1750
        %v1784 = vmul.f32 %v1615, %v1755
        %v1785 = vmul.f32 %v1616, %v1760
        %v1786 = vpack.c.bf16 %v1763, %v1762
        %v1787 = vpack.c.bf16 %v1764, %v1764
        %v1788 = vpack.c.bf16 %v1766, %v1765
        %v1789 = vpack.c.bf16 %v1767, %v1767
        %v1790 = vpack.c.bf16 %v1769, %v1768
        %v1791 = vpack.c.bf16 %v1770, %v1770
        %v1792 = vpack.c.bf16 %v1772, %v1771
        %v1793 = vpack.c.bf16 %v1773, %v1773
        %v1794 = vpack.c.bf16 %v1775, %v1774
        %v1795 = vpack.c.bf16 %v1776, %v1776
        %v1796 = vpack.c.bf16 %v1778, %v1777
        %v1797 = vpack.c.bf16 %v1779, %v1779
        %v1798 = vpack.c.bf16 %v1781, %v1780
        %v1799 = vpack.c.bf16 %v1782, %v1782
        %v1800 = vpack.c.bf16 %v1784, %v1783
        %v1801 = vpack.c.bf16 %v1785, %v1785
        %vm1802 = vsmask.f32 7424
        %v1804 = vshrl.u32 %v1222, 16
        %v1806 = vshll.u32 %v1222, 16
        %v1808 = vrot.slane %v1806, 1
        %v1809 = vor.u32 %v1804, %v1808
        %v1811 = vshll.u32 %v1223, 16
        %v1813 = vrot.slane %v1811, 1
        %v1814 = vsel %vm1802, %v1809, %v1813
        %v1816 = vshrl.u32 %v1224, 16
        %v1818 = vshll.u32 %v1224, 16
        %v1820 = vrot.slane %v1818, 1
        %v1821 = vor.u32 %v1816, %v1820
        %v1823 = vshll.u32 %v1225, 16
        %v1825 = vrot.slane %v1823, 1
        %v1826 = vsel %vm1802, %v1821, %v1825
        %v1828 = vshrl.u32 %v1226, 16
        %v1830 = vshll.u32 %v1226, 16
        %v1832 = vrot.slane %v1830, 1
        %v1833 = vor.u32 %v1828, %v1832
        %v1835 = vshll.u32 %v1227, 16
        %v1837 = vrot.slane %v1835, 1
        %v1838 = vsel %vm1802, %v1833, %v1837
        %v1840 = vshrl.u32 %v1228, 16
        %v1842 = vshll.u32 %v1228, 16
        %v1844 = vrot.slane %v1842, 1
        %v1845 = vor.u32 %v1840, %v1844
        %v1847 = vshll.u32 %v1229, 16
        %v1849 = vrot.slane %v1847, 1
        %v1850 = vsel %vm1802, %v1845, %v1849
        %v1852 = vshrl.u32 %v1230, 16
        %v1854 = vshll.u32 %v1230, 16
        %v1856 = vrot.slane %v1854, 1
        %v1857 = vor.u32 %v1852, %v1856
        %v1859 = vshll.u32 %v1231, 16
        %v1861 = vrot.slane %v1859, 1
        %v1862 = vsel %vm1802, %v1857, %v1861
        %v1864 = vshrl.u32 %v1232, 16
        %v1866 = vshll.u32 %v1232, 16
        %v1868 = vrot.slane %v1866, 1
        %v1869 = vor.u32 %v1864, %v1868
        %v1871 = vshll.u32 %v1233, 16
        %v1873 = vrot.slane %v1871, 1
        %v1874 = vsel %vm1802, %v1869, %v1873
        %v1876 = vshrl.u32 %v1234, 16
        %v1878 = vshll.u32 %v1234, 16
        %v1880 = vrot.slane %v1878, 1
        %v1881 = vor.u32 %v1876, %v1880
        %v1883 = vshll.u32 %v1235, 16
        %v1885 = vrot.slane %v1883, 1
        %v1886 = vsel %vm1802, %v1881, %v1885
        %v1888 = vshrl.u32 %v1236, 16
        %v1890 = vshll.u32 %v1236, 16
        %v1892 = vrot.slane %v1890, 1
        %v1893 = vor.u32 %v1888, %v1892
        %v1895 = vshll.u32 %v1237, 16
        %v1897 = vrot.slane %v1895, 1
        %v1898 = vsel %vm1802, %v1893, %v1897
        %1899 = vrot.lane.b32.xlu0 %v1814, 12
        %v1900 = vpop.permute.xlu0 %1899
        %1901 = vrot.lane.b32.xlu0 %v1826, 12
        %v1902 = vpop.permute.xlu0 %1901
        %1903 = vrot.lane.b32.xlu0 %v1838, 12
        %v1904 = vpop.permute.xlu0 %1903
        %1905 = vrot.lane.b32.xlu0 %v1850, 12
        %v1906 = vpop.permute.xlu0 %1905
        %1907 = vrot.lane.b32.xlu0 %v1862, 12
        %v1908 = vpop.permute.xlu0 %1907
        %1909 = vrot.lane.b32.xlu0 %v1874, 12
        %v1910 = vpop.permute.xlu0 %1909
        %1911 = vrot.lane.b32.xlu0 %v1886, 12
        %v1912 = vpop.permute.xlu0 %1911
        %1913 = vrot.lane.b32.xlu0 %v1898, 12
        %v1914 = vpop.permute.xlu0 %1913
        %vm1931 = vcmask 1046528
        %v1932 = vrot.slane %v1222, 1
        %v1933 = vrot.slane %v1223, 1
        %v1934 = vsel %vm1931, %v1932, %v1933
        %v1935 = vrot.slane %v1224, 1
        %v1936 = vrot.slane %v1225, 1
        %v1937 = vsel %vm1931, %v1935, %v1936
        %v1938 = vrot.slane %v1226, 1
        %v1939 = vrot.slane %v1227, 1
        %v1940 = vsel %vm1931, %v1938, %v1939
        %v1941 = vrot.slane %v1228, 1
        %v1942 = vrot.slane %v1229, 1
        %v1943 = vsel %vm1931, %v1941, %v1942
        %v1944 = vrot.slane %v1230, 1
        %v1945 = vrot.slane %v1231, 1
        %v1946 = vsel %vm1931, %v1944, %v1945
        %v1947 = vrot.slane %v1232, 1
        %v1948 = vrot.slane %v1233, 1
        %v1949 = vsel %vm1931, %v1947, %v1948
        %v1950 = vrot.slane %v1234, 1
        %v1951 = vrot.slane %v1235, 1
        %v1952 = vsel %vm1931, %v1950, %v1951
        %v1953 = vrot.slane %v1236, 1
        %v1954 = vrot.slane %v1237, 1
        %v1955 = vsel %vm1931, %v1953, %v1954
        %1956 = vrot.lane.b32.xlu0 %v1934, 24
        %v1957 = vpop.permute.xlu0 %1956
        %1958 = vrot.lane.b32.xlu0 %v1937, 24
        %v1959 = vpop.permute.xlu0 %1958
        %1960 = vrot.lane.b32.xlu0 %v1940, 24
        %v1961 = vpop.permute.xlu0 %1960
        %1962 = vrot.lane.b32.xlu0 %v1943, 24
        %v1963 = vpop.permute.xlu0 %1962
        %1964 = vrot.lane.b32.xlu0 %v1946, 24
        %v1965 = vpop.permute.xlu0 %1964
        %1966 = vrot.lane.b32.xlu0 %v1949, 24
        %v1967 = vpop.permute.xlu0 %1966
        %1968 = vrot.lane.b32.xlu0 %v1952, 24
        %v1969 = vpop.permute.xlu0 %1968
        %1970 = vrot.lane.b32.xlu0 %v1955, 24
        %v1971 = vpop.permute.xlu0 %1970
        %1980 = vrot.lane.b32.xlu0 %v1504, 36
        %v1981 = vpop.permute.xlu0 %1980
        %1982 = vrot.lane.b32.xlu0 %v1506, 36
        %v1983 = vpop.permute.xlu0 %1982
        %1984 = vrot.lane.b32.xlu0 %v1508, 36
        %v1985 = vpop.permute.xlu0 %1984
        %1986 = vrot.lane.b32.xlu0 %v1510, 36
        %v1987 = vpop.permute.xlu0 %1986
        %1988 = vrot.lane.b32.xlu0 %v1512, 36
        %v1989 = vpop.permute.xlu0 %1988
        %1990 = vrot.lane.b32.xlu0 %v1514, 36
        %v1991 = vpop.permute.xlu0 %1990
        %1992 = vrot.lane.b32.xlu0 %v1516, 36
        %v1993 = vpop.permute.xlu0 %1992
        %1994 = vrot.lane.b32.xlu0 %v1518, 36
        %v1995 = vpop.permute.xlu0 %1994
        %v1997 = vshrl.u32 %v1504, 16
        %v1999 = vshll.u32 %v1504, 16
        %v2001 = vrot.slane %v1999, 1
        %v2002 = vor.u32 %v1997, %v2001
        %v2004 = vshll.u32 %v1505, 16
        %v2006 = vrot.slane %v2004, 1
        %v2007 = vsel %vm1802, %v2002, %v2006
        %v2009 = vshrl.u32 %v1506, 16
        %v2011 = vshll.u32 %v1506, 16
        %v2013 = vrot.slane %v2011, 1
        %v2014 = vor.u32 %v2009, %v2013
        %v2016 = vshll.u32 %v1507, 16
        %v2018 = vrot.slane %v2016, 1
        %v2019 = vsel %vm1802, %v2014, %v2018
        %v2021 = vshrl.u32 %v1508, 16
        %v2023 = vshll.u32 %v1508, 16
        %v2025 = vrot.slane %v2023, 1
        %v2026 = vor.u32 %v2021, %v2025
        %v2028 = vshll.u32 %v1509, 16
        %v2030 = vrot.slane %v2028, 1
        %v2031 = vsel %vm1802, %v2026, %v2030
        %v2033 = vshrl.u32 %v1510, 16
        %v2035 = vshll.u32 %v1510, 16
        %v2037 = vrot.slane %v2035, 1
        %v2038 = vor.u32 %v2033, %v2037
        %v2040 = vshll.u32 %v1511, 16
        %v2042 = vrot.slane %v2040, 1
        %v2043 = vsel %vm1802, %v2038, %v2042
        %v2045 = vshrl.u32 %v1512, 16
        %v2047 = vshll.u32 %v1512, 16
        %v2049 = vrot.slane %v2047, 1
        %v2050 = vor.u32 %v2045, %v2049
        %v2052 = vshll.u32 %v1513, 16
        %v2054 = vrot.slane %v2052, 1
        %v2055 = vsel %vm1802, %v2050, %v2054
        %v2057 = vshrl.u32 %v1514, 16
        %v2059 = vshll.u32 %v1514, 16
        %v2061 = vrot.slane %v2059, 1
        %v2062 = vor.u32 %v2057, %v2061
        %v2064 = vshll.u32 %v1515, 16
        %v2066 = vrot.slane %v2064, 1
        %v2067 = vsel %vm1802, %v2062, %v2066
        %v2069 = vshrl.u32 %v1516, 16
        %v2071 = vshll.u32 %v1516, 16
        %v2073 = vrot.slane %v2071, 1
        %v2074 = vor.u32 %v2069, %v2073
        %v2076 = vshll.u32 %v1517, 16
        %v2078 = vrot.slane %v2076, 1
        %v2079 = vsel %vm1802, %v2074, %v2078
        %v2081 = vshrl.u32 %v1518, 16
        %v2083 = vshll.u32 %v1518, 16
        %v2085 = vrot.slane %v2083, 1
        %v2086 = vor.u32 %v2081, %v2085
        %v2088 = vshll.u32 %v1519, 16
        %v2090 = vrot.slane %v2088, 1
        %v2091 = vsel %vm1802, %v2086, %v2090
        %2092 = vrot.lane.b32.xlu0 %v2007, 48
        %v2093 = vpop.permute.xlu0 %2092
        %2094 = vrot.lane.b32.xlu0 %v2019, 48
        %v2095 = vpop.permute.xlu0 %2094
        %2096 = vrot.lane.b32.xlu0 %v2031, 48
        %v2097 = vpop.permute.xlu0 %2096
        %2098 = vrot.lane.b32.xlu0 %v2043, 48
        %v2099 = vpop.permute.xlu0 %2098
        %2100 = vrot.lane.b32.xlu0 %v2055, 48
        %v2101 = vpop.permute.xlu0 %2100
        %2102 = vrot.lane.b32.xlu0 %v2067, 48
        %v2103 = vpop.permute.xlu0 %2102
        %2104 = vrot.lane.b32.xlu0 %v2079, 48
        %v2105 = vpop.permute.xlu0 %2104
        %2106 = vrot.lane.b32.xlu0 %v2091, 48
        %v2107 = vpop.permute.xlu0 %2106
        %v2116 = vrot.slane %v1504, 1
        %v2117 = vrot.slane %v1505, 1
        %v2118 = vsel %vm1931, %v2116, %v2117
        %v2119 = vrot.slane %v1506, 1
        %v2120 = vrot.slane %v1507, 1
        %v2121 = vsel %vm1931, %v2119, %v2120
        %v2122 = vrot.slane %v1508, 1
        %v2123 = vrot.slane %v1509, 1
        %v2124 = vsel %vm1931, %v2122, %v2123
        %v2125 = vrot.slane %v1510, 1
        %v2126 = vrot.slane %v1511, 1
        %v2127 = vsel %vm1931, %v2125, %v2126
        %v2128 = vrot.slane %v1512, 1
        %v2129 = vrot.slane %v1513, 1
        %v2130 = vsel %vm1931, %v2128, %v2129
        %v2131 = vrot.slane %v1514, 1
        %v2132 = vrot.slane %v1515, 1
        %v2133 = vsel %vm1931, %v2131, %v2132
        %v2134 = vrot.slane %v1516, 1
        %v2135 = vrot.slane %v1517, 1
        %v2136 = vsel %vm1931, %v2134, %v2135
        %v2137 = vrot.slane %v1518, 1
        %v2138 = vrot.slane %v1519, 1
        %v2139 = vsel %vm1931, %v2137, %v2138
        %2140 = vrot.lane.b32.xlu0 %v2118, 60
        %v2141 = vpop.permute.xlu0 %2140
        %2142 = vrot.lane.b32.xlu0 %v2121, 60
        %v2143 = vpop.permute.xlu0 %2142
        %2144 = vrot.lane.b32.xlu0 %v2124, 60
        %v2145 = vpop.permute.xlu0 %2144
        %2146 = vrot.lane.b32.xlu0 %v2127, 60
        %v2147 = vpop.permute.xlu0 %2146
        %2148 = vrot.lane.b32.xlu0 %v2130, 60
        %v2149 = vpop.permute.xlu0 %2148
        %2150 = vrot.lane.b32.xlu0 %v2133, 60
        %v2151 = vpop.permute.xlu0 %2150
        %2152 = vrot.lane.b32.xlu0 %v2136, 60
        %v2153 = vpop.permute.xlu0 %2152
        %2154 = vrot.lane.b32.xlu0 %v2139, 60
        %v2155 = vpop.permute.xlu0 %2154
        %2164 = vrot.lane.b32.xlu0 %v1786, 72
        %v2165 = vpop.permute.xlu0 %2164
        %2166 = vrot.lane.b32.xlu0 %v1788, 72
        %v2167 = vpop.permute.xlu0 %2166
        %2168 = vrot.lane.b32.xlu0 %v1790, 72
        %v2169 = vpop.permute.xlu0 %2168
        %2170 = vrot.lane.b32.xlu0 %v1792, 72
        %v2171 = vpop.permute.xlu0 %2170
        %2172 = vrot.lane.b32.xlu0 %v1794, 72
        %v2173 = vpop.permute.xlu0 %2172
        %2174 = vrot.lane.b32.xlu0 %v1796, 72
        %v2175 = vpop.permute.xlu0 %2174
        %2176 = vrot.lane.b32.xlu0 %v1798, 72
        %v2177 = vpop.permute.xlu0 %2176
        %2178 = vrot.lane.b32.xlu0 %v1800, 72
        %v2179 = vpop.permute.xlu0 %2178
        %v2181 = vshrl.u32 %v1786, 16
        %v2183 = vshll.u32 %v1786, 16
        %v2185 = vrot.slane %v2183, 1
        %v2186 = vor.u32 %v2181, %v2185
        %v2188 = vshll.u32 %v1787, 16
        %v2190 = vrot.slane %v2188, 1
        %v2191 = vsel %vm1802, %v2186, %v2190
        %v2193 = vshrl.u32 %v1788, 16
        %v2195 = vshll.u32 %v1788, 16
        %v2197 = vrot.slane %v2195, 1
        %v2198 = vor.u32 %v2193, %v2197
        %v2200 = vshll.u32 %v1789, 16
        %v2202 = vrot.slane %v2200, 1
        %v2203 = vsel %vm1802, %v2198, %v2202
        %v2205 = vshrl.u32 %v1790, 16
        %v2207 = vshll.u32 %v1790, 16
        %v2209 = vrot.slane %v2207, 1
        %v2210 = vor.u32 %v2205, %v2209
        %v2212 = vshll.u32 %v1791, 16
        %v2214 = vrot.slane %v2212, 1
        %v2215 = vsel %vm1802, %v2210, %v2214
        %v2217 = vshrl.u32 %v1792, 16
        %v2219 = vshll.u32 %v1792, 16
        %v2221 = vrot.slane %v2219, 1
        %v2222 = vor.u32 %v2217, %v2221
        %v2224 = vshll.u32 %v1793, 16
        %v2226 = vrot.slane %v2224, 1
        %v2227 = vsel %vm1802, %v2222, %v2226
        %v2229 = vshrl.u32 %v1794, 16
        %v2231 = vshll.u32 %v1794, 16
        %v2233 = vrot.slane %v2231, 1
        %v2234 = vor.u32 %v2229, %v2233
        %v2236 = vshll.u32 %v1795, 16
        %v2238 = vrot.slane %v2236, 1
        %v2239 = vsel %vm1802, %v2234, %v2238
        %v2241 = vshrl.u32 %v1796, 16
        %v2243 = vshll.u32 %v1796, 16
        %v2245 = vrot.slane %v2243, 1
        %v2246 = vor.u32 %v2241, %v2245
        %v2248 = vshll.u32 %v1797, 16
        %v2250 = vrot.slane %v2248, 1
        %v2251 = vsel %vm1802, %v2246, %v2250
        %v2253 = vshrl.u32 %v1798, 16
        %v2255 = vshll.u32 %v1798, 16
        %v2257 = vrot.slane %v2255, 1
        %v2258 = vor.u32 %v2253, %v2257
        %v2260 = vshll.u32 %v1799, 16
        %v2262 = vrot.slane %v2260, 1
        %v2263 = vsel %vm1802, %v2258, %v2262
        %v2265 = vshrl.u32 %v1800, 16
        %v2267 = vshll.u32 %v1800, 16
        %v2269 = vrot.slane %v2267, 1
        %v2270 = vor.u32 %v2265, %v2269
        %v2272 = vshll.u32 %v1801, 16
        %v2274 = vrot.slane %v2272, 1
        %v2275 = vsel %vm1802, %v2270, %v2274
        %2276 = vrot.lane.b32.xlu0 %v2191, 84
        %v2277 = vpop.permute.xlu0 %2276
        %2278 = vrot.lane.b32.xlu0 %v2203, 84
        %v2279 = vpop.permute.xlu0 %2278
        %2280 = vrot.lane.b32.xlu0 %v2215, 84
        %v2281 = vpop.permute.xlu0 %2280
        %2282 = vrot.lane.b32.xlu0 %v2227, 84
        %v2283 = vpop.permute.xlu0 %2282
        %2284 = vrot.lane.b32.xlu0 %v2239, 84
        %v2285 = vpop.permute.xlu0 %2284
        %2286 = vrot.lane.b32.xlu0 %v2251, 84
        %v2287 = vpop.permute.xlu0 %2286
        %2288 = vrot.lane.b32.xlu0 %v2263, 84
        %v2289 = vpop.permute.xlu0 %2288
        %2290 = vrot.lane.b32.xlu0 %v2275, 84
        %v2291 = vpop.permute.xlu0 %2290
        %v2300 = vrot.slane %v1786, 1
        %v2301 = vrot.slane %v1787, 1
        %v2302 = vsel %vm1931, %v2300, %v2301
        %v2303 = vrot.slane %v1788, 1
        %v2304 = vrot.slane %v1789, 1
        %v2305 = vsel %vm1931, %v2303, %v2304
        %v2306 = vrot.slane %v1790, 1
        %v2307 = vrot.slane %v1791, 1
        %v2308 = vsel %vm1931, %v2306, %v2307
        %v2309 = vrot.slane %v1792, 1
        %v2310 = vrot.slane %v1793, 1
        %v2311 = vsel %vm1931, %v2309, %v2310
        %v2312 = vrot.slane %v1794, 1
        %v2313 = vrot.slane %v1795, 1
        %v2314 = vsel %vm1931, %v2312, %v2313
        %v2315 = vrot.slane %v1796, 1
        %v2316 = vrot.slane %v1797, 1
        %v2317 = vsel %vm1931, %v2315, %v2316
        %v2318 = vrot.slane %v1798, 1
        %v2319 = vrot.slane %v1799, 1
        %v2320 = vsel %vm1931, %v2318, %v2319
        %v2321 = vrot.slane %v1800, 1
        %v2322 = vrot.slane %v1801, 1
        %v2323 = vsel %vm1931, %v2321, %v2322
        %2324 = vrot.lane.b32.xlu0 %v2302, 96
        %v2325 = vpop.permute.xlu0 %2324
        %2326 = vrot.lane.b32.xlu0 %v2305, 96
        %v2327 = vpop.permute.xlu0 %2326
        %2328 = vrot.lane.b32.xlu0 %v2308, 96
        %v2329 = vpop.permute.xlu0 %2328
        %2330 = vrot.lane.b32.xlu0 %v2311, 96
        %v2331 = vpop.permute.xlu0 %2330
        %2332 = vrot.lane.b32.xlu0 %v2314, 96
        %v2333 = vpop.permute.xlu0 %2332
        %2334 = vrot.lane.b32.xlu0 %v2317, 96
        %v2335 = vpop.permute.xlu0 %2334
        %2336 = vrot.lane.b32.xlu0 %v2320, 96
        %v2337 = vpop.permute.xlu0 %2336
        %2338 = vrot.lane.b32.xlu0 %v2323, 96
        %v2339 = vpop.permute.xlu0 %2338
        %vm2340 = vcmask 97280
        %v2342 = vsel %vm2340, %v1222, %v1900
        %v2344 = vsel %vm2340, %v1224, %v1902
        %v2346 = vsel %vm2340, %v1226, %v1904
        %v2348 = vsel %vm2340, %v1228, %v1906
        %v2350 = vsel %vm2340, %v1230, %v1908
        %v2352 = vsel %vm2340, %v1232, %v1910
        %v2354 = vsel %vm2340, %v1234, %v1912
        %v2356 = vsel %vm2340, %v1236, %v1914
        %vm2357 = vcmask 195584
        %v2359 = vsel %vm2357, %v2342, %v1957
        %v2361 = vsel %vm2357, %v2344, %v1959
        %v2363 = vsel %vm2357, %v2346, %v1961
        %v2365 = vsel %vm2357, %v2348, %v1963
        %v2367 = vsel %vm2357, %v2350, %v1965
        %v2369 = vsel %vm2357, %v2352, %v1967
        %v2371 = vsel %vm2357, %v2354, %v1969
        %v2373 = vsel %vm2357, %v2356, %v1971
        %vm2374 = vcmask 293888
        %v2376 = vsel %vm2374, %v2359, %v1981
        %v2378 = vsel %vm2374, %v2361, %v1983
        %v2380 = vsel %vm2374, %v2363, %v1985
        %v2382 = vsel %vm2374, %v2365, %v1987
        %v2384 = vsel %vm2374, %v2367, %v1989
        %v2386 = vsel %vm2374, %v2369, %v1991
        %v2388 = vsel %vm2374, %v2371, %v1993
        %v2390 = vsel %vm2374, %v2373, %v1995
        %vm2391 = vcmask 392192
        %v2393 = vsel %vm2391, %v2376, %v2093
        %v2395 = vsel %vm2391, %v2378, %v2095
        %v2397 = vsel %vm2391, %v2380, %v2097
        %v2399 = vsel %vm2391, %v2382, %v2099
        %v2401 = vsel %vm2391, %v2384, %v2101
        %v2403 = vsel %vm2391, %v2386, %v2103
        %v2405 = vsel %vm2391, %v2388, %v2105
        %v2407 = vsel %vm2391, %v2390, %v2107
        %vm2408 = vcmask 490496
        %v2410 = vsel %vm2408, %v2393, %v2141
        %v2412 = vsel %vm2408, %v2395, %v2143
        %v2414 = vsel %vm2408, %v2397, %v2145
        %v2416 = vsel %vm2408, %v2399, %v2147
        %v2418 = vsel %vm2408, %v2401, %v2149
        %v2420 = vsel %vm2408, %v2403, %v2151
        %v2422 = vsel %vm2408, %v2405, %v2153
        %v2424 = vsel %vm2408, %v2407, %v2155
        %vm2425 = vcmask 588800
        %v2427 = vsel %vm2425, %v2410, %v2165
        %v2429 = vsel %vm2425, %v2412, %v2167
        %v2431 = vsel %vm2425, %v2414, %v2169
        %v2433 = vsel %vm2425, %v2416, %v2171
        %v2435 = vsel %vm2425, %v2418, %v2173
        %v2437 = vsel %vm2425, %v2420, %v2175
        %v2439 = vsel %vm2425, %v2422, %v2177
        %v2441 = vsel %vm2425, %v2424, %v2179
        %vm2442 = vcmask 687104
        %v2444 = vsel %vm2442, %v2427, %v2277
        %v2446 = vsel %vm2442, %v2429, %v2279
        %v2448 = vsel %vm2442, %v2431, %v2281
        %v2450 = vsel %vm2442, %v2433, %v2283
        %v2452 = vsel %vm2442, %v2435, %v2285
        %v2454 = vsel %vm2442, %v2437, %v2287
        %v2456 = vsel %vm2442, %v2439, %v2289
        %v2458 = vsel %vm2442, %v2441, %v2291
        %vm2459 = vcmask 785408
        %v2461 = vsel %vm2459, %v2444, %v2325
        %v2463 = vsel %vm2459, %v2446, %v2327
        %v2465 = vsel %vm2459, %v2448, %v2329
        %v2467 = vsel %vm2459, %v2450, %v2331
        %v2469 = vsel %vm2459, %v2452, %v2333
        %v2471 = vsel %vm2459, %v2454, %v2335
        %v2473 = vsel %vm2459, %v2456, %v2337
        %v2475 = vsel %vm2459, %v2458, %v2339
        %v2476 = vld [vmem:[%s4] sm:$0xf]
        %v2477 = vld [vmem:[%s4 + $0x4] sm:$0xf]
        %v2478 = vld [vmem:[%s4 + $0x8] sm:$0xf]
        %v2479 = vld [vmem:[%s4 + $0xc] sm:$0xf]
        %v2480 = vld [vmem:[%s4 + $0x10] sm:$0xf]
        %v2481 = vld [vmem:[%s4 + $0x14] sm:$0xf]
        %v2482 = vld [vmem:[%s4 + $0x18] sm:$0xf]
        %v2483 = vld [vmem:[%s4 + $0x1c] sm:$0xf]
        %v2484 = vld [vmem:[%s4 + $0x20] sm:$0xf]
        %v2485 = vld [vmem:[%s4 + $0x24] sm:$0xf]
        %v2486 = vld [vmem:[%s4 + $0x28] sm:$0xf]
        %v2487 = vld [vmem:[%s4 + $0x2c] sm:$0xf]
        %v2488 = vld [vmem:[%s4 + $0x30] sm:$0xf]
        %v2489 = vld [vmem:[%s4 + $0x34] sm:$0x3]
        %v2490 = vld [vmem:[%s5] sm:$0x1]
        %v2492 = vlaneseq
        %v2493 = vshrl.u32 %v2492, 7
        %v2494 = vsub.s32 0, %v2493
        %v2495 = vrot.slane %v2490, %v2494
        %v2511 = vunpack.c.l.b16 %v2476
        %v2512 = vunpack.c.l.b16 %v2477
        %v2513 = vunpack.c.l.b16 %v2478
        %v2514 = vunpack.c.l.b16 %v2479
        %v2515 = vunpack.c.l.b16 %v2480
        %v2516 = vunpack.c.l.b16 %v2481
        %v2517 = vunpack.c.l.b16 %v2482
        %v2518 = vunpack.c.l.b16 %v2483
        %v2519 = vunpack.c.l.b16 %v2484
        %v2520 = vunpack.c.l.b16 %v2485
        %v2521 = vunpack.c.l.b16 %v2486
        %v2522 = vunpack.c.l.b16 %v2487
        %v2523 = vunpack.c.l.b16 %v2488
        %v2524 = vunpack.c.l.b16 %v2489
        %v2525 = vpack.c.b16 %v2512, %v2511
        %v2526 = vpack.c.b16 %v2514, %v2513
        %v2527 = vpack.c.b16 %v2516, %v2515
        %v2528 = vpack.c.b16 %v2518, %v2517
        %v2529 = vpack.c.b16 %v2520, %v2519
        %v2530 = vpack.c.b16 %v2522, %v2521
        %v2531 = vpack.c.b16 %v2524, %v2523
        %vm2538 = vcmask 883712
        %v2539 = vsel %vm2538, %v2461, 0
        %v2541 = vsel %vm2538, %v2463, 0
        %v2543 = vsel %vm2538, %v2465, 0
        %v2545 = vsel %vm2538, %v2467, 0
        %v2547 = vsel %vm2538, %v2469, 0
        %v2549 = vsel %vm2538, %v2471, 0
        %v2551 = vsel %vm2538, %v2473, 0
        %v2553 = vsel %vm2538, %v2475, 0
        %vm2555 = vcmask 1045504
        %v2557 = vsel %vm2555, %v2531, 0
        %2559 = vmatprep.subr.bf16.mxu0 0
        %2560 = vmatpush1.bf16.msra.mxu0 %v2525
        %2561 = vmatprep.subr.bf16.mxu0 0
        %2562 = vmatpush1.bf16.msra.mxu0 %v2526
        %2563 = vmatprep.subr.bf16.mxu0 0
        %2564 = vmatpush1.bf16.msra.mxu0 %v2527
        %2565 = vmatprep.subr.bf16.mxu0 0
        %2566 = vmatpush1.bf16.msra.mxu0 %v2528
        %2567 = vmatprep.subr.bf16.mxu0 0
        %2568 = vmatpush1.bf16.msra.mxu0 %v2529
        %2569 = vmatprep.subr.bf16.mxu0 0
        %2570 = vmatpush1.bf16.msra.mxu0 %v2530
        %2571 = vmatprep.subr.bf16.mxu0 0
        %2572 = vmatpush1.bf16.msra.mxu0 %v2557
        %2573 = vmatprep.subr.bf16.mxu0 0
        %2574 = vmatpush1.bf16.msra.mxu0 0
        %2575 = vmatprep.subr.bf16.mxu0 0
        %2576 = vmatpush1.bf16.msra.mxu0 0
        %2577 = vmatprep.subr.bf16.mxu0 0
        %2578 = vmatpush1.bf16.msra.mxu0 0
        %2579 = vmatprep.subr.bf16.mxu0 0
        %2580 = vmatpush1.bf16.msra.mxu0 0
        %2581 = vmatprep.subr.bf16.mxu0 0
        %2582 = vmatpush1.bf16.msra.mxu0 0
        %2583 = vmatprep.subr.bf16.mxu0 0
        %2584 = vmatpush1.bf16.msra.mxu0 0
        %2585 = vmatprep.subr.bf16.mxu0 0
        %2586 = vmatpush1.bf16.msra.mxu0 0
        %2587 = vmatprep.subr.bf16.mxu0 0
        %2588 = vmatpush1.bf16.msra.mxu0 0
        %2589 = vmatprep.subr.bf16.mxu0 0
        %2590 = vmatpush1.bf16.msra.mxu0 0
        %2591 = vmatprep.mubr.bf16.mxu0 0
        %2592 = vmatmul.mubr.bf16.gmra.mrb[0].mxu0 %v2539
        %v2593 = vpop.f32.mrb[0].mxu0
        %v2594 = vadd.f32 %v2495, %v2593
        %v2595 = vpop.f32.mrb[0].mxu0
        %v2596 = vpop.f32.mrb[0].mxu0
        %v2597 = vadd.f32 %v2495, %v2596
        %v2598 = vpop.f32.mrb[0].mxu0
        %2599 = vmatprep.mubr.bf16.mxu0 0
        %2600 = vmatmul.mubr.bf16.gmra.mrb[0].mxu0 %v2541
        %v2601 = vpop.f32.mrb[0].mxu0
        %v2602 = vadd.f32 %v2495, %v2601
        %v2603 = vpop.f32.mrb[0].mxu0
        %v2604 = vpop.f32.mrb[0].mxu0
        %v2605 = vadd.f32 %v2495, %v2604
        %v2606 = vpop.f32.mrb[0].mxu0
        %2607 = vmatprep.mubr.bf16.mxu0 0
        %2608 = vmatmul.mubr.bf16.gmra.mrb[0].mxu0 %v2543
        %v2609 = vpop.f32.mrb[0].mxu0
        %v2610 = vadd.f32 %v2495, %v2609
        %v2611 = vpop.f32.mrb[0].mxu0
        %v2612 = vpop.f32.mrb[0].mxu0
        %v2613 = vadd.f32 %v2495, %v2612
        %v2614 = vpop.f32.mrb[0].mxu0
        %2615 = vmatprep.mubr.bf16.mxu0 0
        %2616 = vmatmul.mubr.bf16.gmra.mrb[0].mxu0 %v2545
        %v2617 = vpop.f32.mrb[0].mxu0
        %v2618 = vadd.f32 %v2495, %v2617
        %v2619 = vpop.f32.mrb[0].mxu0
        %v2620 = vpop.f32.mrb[0].mxu0
        %v2621 = vadd.f32 %v2495, %v2620
        %v2622 = vpop.f32.mrb[0].mxu0
        %2623 = vmatprep.mubr.bf16.mxu0 0
        %2624 = vmatmul.mubr.bf16.gmra.mrb[0].mxu0 %v2547
        %v2625 = vpop.f32.mrb[0].mxu0
        %v2626 = vadd.f32 %v2495, %v2625
        %v2627 = vpop.f32.mrb[0].mxu0
        %v2628 = vpop.f32.mrb[0].mxu0
        %v2629 = vadd.f32 %v2495, %v2628
        %v2630 = vpop.f32.mrb[0].mxu0
        %2631 = vmatprep.mubr.bf16.mxu0 0
        %2632 = vmatmul.mubr.bf16.gmra.mrb[0].mxu0 %v2549
        %v2633 = vpop.f32.mrb[0].mxu0
        %v2634 = vadd.f32 %v2495, %v2633
        %v2635 = vpop.f32.mrb[0].mxu0
        %v2636 = vpop.f32.mrb[0].mxu0
        %v2637 = vadd.f32 %v2495, %v2636
        %v2638 = vpop.f32.mrb[0].mxu0
        %2639 = vmatprep.mubr.bf16.mxu0 0
        %2640 = vmatmul.mubr.bf16.gmra.mrb[0].mxu0 %v2551
        %v2641 = vpop.f32.mrb[0].mxu0
        %v2642 = vadd.f32 %v2495, %v2641
        %v2643 = vpop.f32.mrb[0].mxu0
        %v2644 = vpop.f32.mrb[0].mxu0
        %v2645 = vadd.f32 %v2495, %v2644
        %v2646 = vpop.f32.mrb[0].mxu0
        %2647 = vmatprep.mubr.bf16.mxu0 0
        %2648 = vmatmul.mubr.bf16.gmra.mrb[0].mxu0 %v2553
        %v2649 = vpop.f32.mrb[0].mxu0
        %v2650 = vadd.f32 %v2495, %v2649
        %v2651 = vpop.f32.mrb[0].mxu0
        %v2652 = vpop.f32.mrb[0].mxu0
        %v2653 = vadd.f32 %v2495, %v2652
        %v2654 = vpop.f32.mrb[0].mxu0
        %2655 = vdwg.mxu0
        %2656 = vst [vmem:[%s941] sm:$0xff] %v2594
        %2657 = vst [vmem:[%s941 + $0x8] sm:$0xff] %v2597
        %2658 = vst [vmem:[%s941 + $0x10] sm:$0xff] %v2602
        %2659 = vst [vmem:[%s941 + $0x18] sm:$0xff] %v2605
        %2660 = vst [vmem:[%s941 + $0x20] sm:$0xff] %v2610
        %2661 = vst [vmem:[%s941 + $0x28] sm:$0xff] %v2613
        %2662 = vst [vmem:[%s941 + $0x30] sm:$0xff] %v2618
        %2663 = vst [vmem:[%s941 + $0x38] sm:$0xff] %v2621
        %2664 = vst [vmem:[%s941 + $0x40] sm:$0xff] %v2626
        %2665 = vst [vmem:[%s941 + $0x48] sm:$0xff] %v2629
        %2666 = vst [vmem:[%s941 + $0x50] sm:$0xff] %v2634
        %2667 = vst [vmem:[%s941 + $0x58] sm:$0xff] %v2637
        %2668 = vst [vmem:[%s941 + $0x60] sm:$0xff] %v2642
        %2669 = vst [vmem:[%s941 + $0x68] sm:$0xff] %v2645
        %2670 = vst [vmem:[%s941 + $0x70] sm:$0xff] %v2650
        %2671 = vst [vmem:[%s941 + $0x78] sm:$0xff] %v2653
        %s2672 = smul.u32 16, %s22
        %p2673 = scmp.lt.s32.totalorder %s21, 1
        %s2674 = scalar_select %p2673, %s21, 1
        %p2675 = scmp.lt.s32.totalorder %s2672, 31
        %s2676 = scalar_select %p2675, %s2672, 31
        %s2677 = smul.addr %s2674, 32
        %s2678 = sadd.s32 %s2676, %s2677
        %s2679 = smul.addr %s2678, 8
        %s2680 = scalar_lea.vmem %s6, %s2679
        // Predicated region
        $region121: #{bottleneck_forward.11} parent=111 // pred_check
          %p2681 = pneg %p187
        $region122: #{bottleneck_forward.11} parent=111 // pred_check_branch
          %2683 = sbr.rel (%p2681) target = $region124
        $region123: #{bottleneck_forward.11} parent=111 // pred_region
          %s2684 = smul.u32 16, %s22
        $region124: #{bottleneck_forward.11} parent=111 // pred_fallthru
          _
      $region112: #{bottleneck_forward.11} parent=5 // pred_fallthru
        _
      %p2685 = scmp.le.s32.totalorder 2, %s12
      // Predicated region
      $region125: #{bottleneck_forward.11} parent=5 // pred_check
        %p2686 = pneg %p2685
      $region126: #{bottleneck_forward.11} parent=5 // pred_check_branch
        %2688 = sbr.rel (%p2686) target = $region128
      $region127: #{bottleneck_forward.11} parent=5 // pred_region
        %s2689 = ssub.s32 %s12, 2
        // Predicated region
        $region129: #{bottleneck_forward.11} parent=127 // pred_check
          %p2690 = pneg %p193
        $region130: #{bottleneck_forward.11} parent=127 // pred_check_branch
          %2692 = sbr.rel (%p2690) target = $region132
        $region131: #{bottleneck_forward.11} parent=127 // pred_region
          %s2693 = smul.u32 16, %s24
          %p2694 = scmp.lt.s32.totalorder %s23, 1
          %s2695 = scalar_select %p2694, %s23, 1
          %p2696 = scmp.lt.s32.totalorder %s2693, 31
          %s2697 = scalar_select %p2696, %s2693, 31
          %s2698 = smul.addr %s2695, 32
          %s2699 = sadd.s32 %s2697, %s2698
          %s2700 = smul.addr %s2699, 8
          %s2701 = scalar_lea.vmem %s6, %s2700
        $region132: #{bottleneck_forward.11} parent=127 // pred_fallthru
          _
      $region128: #{bottleneck_forward.11} parent=5 // pred_fallthru
        _
    $region6: #{bottleneck_forward.11} parent=1 // loop_footer
      %s16 = sadd.s32 1, %s12
    $region7: #{bottleneck_forward.11} parent=1 // loop_footer_branch
      %11 = sbr.rel target = $region3
    $region8: #{bottleneck_forward.11} parent=1 // loop_exit
      _

</llo_original>
